<compile_context>
chip_gen: v6e
topology: v6e:2x2x1
jax: 0.10.0
libtpu: 0.0.40
codegen_flags: <defaults>
</compile_context>

<pallas_src>
import functools

import jax
import jax.numpy as jnp
import numpy as np
from jax.experimental import pallas as pl
from jax.experimental.pallas import tpu as pltpu


# ---------------------------------------------------------------------------
# small helpers
# ---------------------------------------------------------------------------
def _vmem_limit_bytes():
    """Generation-aware scoped-VMEM budget (headroom below physical VMEM)."""
    cap = 64 * 1024 * 1024          # conservative default (v7x per-TC VMEM)
    try:
        cap = int(pltpu.get_tpu_info().vmem_capacity_bytes)
    except Exception:
        pass
    cap = max(cap, 32 * 1024 * 1024)
    return int(min(cap - 8 * 1024 * 1024, 96 * 1024 * 1024))


def _row_tile(n):
    """Row tile for the elementwise/projection kernels (lane-dense multiple of 128)."""
    for t in (512, 256, 128):
        if n % t == 0:
            return t
    return n


def _pair_tile(requested, length):
    """Clamp a pairwise-contraction tile to the actual edge length."""
    t = min(requested, length)
    if length % t != 0:
        t = length
    return t


# ---------------------------------------------------------------------------
# Kernel 1: LayerNorm + fused 8-way projection + gating, channel-major outputs
#   grid = (B, N // r), N = L*L,  a/b/c/d stored as (B, C, N)
# ---------------------------------------------------------------------------
def _proj_kernel(z_ref, gi_ref, bi_ref, wct_ref, bct_ref,
                 a_ref, b_ref, c_ref, d_ref):
    C = a_ref.shape[1]

    z = z_ref[0].astype(jnp.float32)                       # (R, D)
    mean = jnp.mean(z, axis=-1, keepdims=True)
    var = jnp.mean((z - mean) ** 2, axis=-1, keepdims=True)   # biased, as torch
    zn = (z - mean) * jax.lax.rsqrt(var + 1e-5) * gi_ref[...] + bi_ref[...]

    # Fused transposed projection: (8C, D) @ (D, R) -> channel-major (8C, R).
    # Rows are [gate_a gate_b gate_c gate_d | lin_a lin_b lin_c lin_d], so all
    # splits below are sublane slices at multiples of C (no lane relayouts).
    m = jnp.dot(wct_ref[...], zn.T,
                preferred_element_type=jnp.float32) + bct_ref[...]
    gated = jax.nn.sigmoid(m[: 4 * C]) * m[4 * C:]          # sigmoid(gate)*linear

    a_ref[0] = gated[0 * C:1 * C].astype(a_ref.dtype)       # (C, R) lane-dense
    b_ref[0] = gated[1 * C:2 * C].astype(b_ref.dtype)
    c_ref[0] = gated[2 * C:3 * C].astype(c_ref.dtype)
    d_ref[0] = gated[3 * C:4 * C].astype(d_ref.dtype)


# ---------------------------------------------------------------------------
# Kernel 2: tiled quadratic contraction on the MXU (channel-batched matmuls)
#   grid = (B, L/TI, L/TJ, L/TK); K axis innermost + "arbitrary"
#   k_cm[b, c, i, j] = (sum_k a[c,i,k] b[c,j,k]) * (sum_k c[c,i,k] d[c,j,k])
# ---------------------------------------------------------------------------
def _pair_kernel(a_ref, b_ref, c_ref, d_ref, k_ref, ab_acc, cd_acc):
    kk = pl.program_id(3)

    @pl.when(kk == 0)
    def _():
        ab_acc[...] = jnp.zeros_like(ab_acc)
        cd_acc[...] = jnp.zeros_like(cd_acc)

    # Channel-batched MXU contraction over the shared reduction axis.
    ab_acc[...] += jnp.einsum('cik,cjk->cij', a_ref[0], b_ref[0],
                              preferred_element_type=jnp.float32)
    cd_acc[...] += jnp.einsum('cik,cjk->cij', c_ref[0], d_ref[0],
                              preferred_element_type=jnp.float32)

    @pl.when(kk == pl.num_programs(3) - 1)
    def _():
        k_ref[0] = (ab_acc[...] * cd_acc[...]).astype(k_ref.dtype)


# ---------------------------------------------------------------------------
# Kernel 3: LayerNorm over C + linear_o + output gate (row-major epilogue)
#   grid = (B, N // r)
# ---------------------------------------------------------------------------
def _out_kernel(k_ref, z_ref, gi_ref, bi_ref, wgo_ref, bgo_ref,
                gko_ref, bko_ref, wlo_ref, blo_ref, o_ref):
    # LayerNorm_C(k) + linear_o
    kv = k_ref[0].astype(jnp.float32)                       # (R, C)
    km = jnp.mean(kv, axis=-1, keepdims=True)
    kvv = jnp.mean((kv - km) ** 2, axis=-1, keepdims=True)
    kn = (kv - km) * jax.lax.rsqrt(kvv + 1e-5) * gko_ref[...] + bko_ref[...]
    lin_o = jnp.dot(kn, wlo_ref[...],
                    preferred_element_type=jnp.float32) + blo_ref[...]   # (R, D)

    # Recompute sigmoid(gate_o(LayerNorm(z))) here (cheap) instead of
    # round-tripping a (B, L, L, D) gate tensor through HBM.
    z = z_ref[0].astype(jnp.float32)                        # (R, D)
    zm = jnp.mean(z, axis=-1, keepdims=True)
    zv = jnp.mean((z - zm) ** 2, axis=-1, keepdims=True)
    zn = (z - zm) * jax.lax.rsqrt(zv + 1e-5) * gi_ref[...] + bi_ref[...]
    gate = jax.nn.sigmoid(
        jnp.dot(zn, wgo_ref[...], preferred_element_type=jnp.float32)
        + bgo_ref[...])

    o_ref[0] = (gate * lin_o).astype(o_ref.dtype)


# ---------------------------------------------------------------------------
# Wrapper
# ---------------------------------------------------------------------------
@functools.partial(jax.jit, static_argnames=("ti", "tj", "tk", "compute_dtype"))
def quadratic_edge_update_forward(z, params, *, ti=128, tj=128, tk=128,
                                  compute_dtype=jnp.float32):
    """z: (B, L, L, input_dim) -> (B, L, L, input_dim).   (mask=None, axis=1)"""
    B, L, L2, D = z.shape
    assert L == L2, "edge feature map must be square"
    C = params["w_la"].shape[0]
    N = L * L

    ti = _pair_tile(ti, L)
    tj = _pair_tile(tj, L)
    tk = _pair_tile(tk, L)
    r = _row_tile(N)
    vmem = _vmem_limit_bytes()
    f32 = jnp.float32

    # Fused transposed projection weights (torch Linear weight layout (out, in)
    # is already the transposed-projection layout -> plain row concatenation).
    wct = jnp.concatenate(
        [params["w_ga"], params["w_gb"], params["w_gc"], params["w_gd"],
         params["w_la"], params["w_lb"], params["w_lc"], params["w_ld"]],
        axis=0).astype(f32)                                  # (8C, D)
    bct = jnp.concatenate(
        [params["b_ga"], params["b_gb"], params["b_gc"], params["b_gd"],
         params["b_la"], params["b_lb"], params["b_lc"], params["b_ld"]],
        axis=0).reshape(8 * C, 1).astype(f32)                # (8C, 1)

    gi = params["g_in"].reshape(1, D).astype(f32)
    bi = params["b_in"].reshape(1, D).astype(f32)
    gko = params["g_o"].reshape(1, C).astype(f32)
    bko = params["b_o"].reshape(1, C).astype(f32)
    wgo_t = params["w_go"].T.astype(f32)                     # (D, D)
    bgo = params["b_go"].reshape(1, D).astype(f32)
    wlo_t = params["w_lo"].T.astype(f32)                     # (C, D)
    blo = params["b_lo"].reshape(1, D).astype(f32)

    z_flat = z.reshape(B, N, D)

    # ---- kernel 1: LayerNorm + fused projections, channel-major outputs -----
    a, b, c, d = pl.pallas_call(
        _proj_kernel,
        out_shape=tuple(jax.ShapeDtypeStruct((B, C, N), compute_dtype)
                        for _ in range(4)),
        grid=(B, N // r),
        in_specs=[
            pl.BlockSpec((1, r, D), lambda bb, rr: (bb, rr, 0)),
            pl.BlockSpec((1, D), lambda bb, rr: (0, 0)),
            pl.BlockSpec((1, D), lambda bb, rr: (0, 0)),
            pl.BlockSpec((8 * C, D), lambda bb, rr: (0, 0)),
            pl.BlockSpec((8 * C, 1), lambda bb, rr: (0, 0)),
        ],
        out_specs=tuple(pl.BlockSpec((1, C, r), lambda bb, rr: (bb, 0, rr))
                        for _ in range(4)),
        compiler_params=pltpu.CompilerParams(
            dimension_semantics=("parallel", "parallel"),
            vmem_limit_bytes=vmem),
    )(z_flat, gi, bi, wct, bct)

    # channel-major edge activations: a4[b, c, i, k] == a_rowmajor[b, i, k, c]
    a4 = a.reshape(B, C, L, L)
    b4 = b.reshape(B, C, L, L)
    c4 = c.reshape(B, C, L, L)
    d4 = d.reshape(B, C, L, L)

    # ---- kernel 2: tiled quadratic contraction on the MXU -------------------
    k_cm = pl.pallas_call(
        _pair_kernel,
        out_shape=jax.ShapeDtypeStruct((B, C, L, L), compute_dtype),
        grid=(B, L // ti, L // tj, L // tk),
        in_specs=[
            pl.BlockSpec((1, C, ti, tk), lambda bb, ii, jj, kk: (bb, 0, ii, kk)),
            pl.BlockSpec((1, C, tj, tk), lambda bb, ii, jj, kk: (bb, 0, jj, kk)),
            pl.BlockSpec((1, C, ti, tk), lambda bb, ii, jj, kk: (bb, 0, ii, kk)),
            pl.BlockSpec((1, C, tj, tk), lambda bb, ii, jj, kk: (bb, 0, jj, kk)),
        ],
        out_specs=pl.BlockSpec((1, C, ti, tj),
                               lambda bb, ii, jj, kk: (bb, 0, ii, jj)),
        scratch_shapes=[pltpu.VMEM((C, ti, tj), jnp.float32),
                        pltpu.VMEM((C, ti, tj), jnp.float32)],
        compiler_params=pltpu.CompilerParams(
            dimension_semantics=("parallel", "parallel", "parallel", "arbitrary"),
            vmem_limit_bytes=vmem),
    )(a4, b4, c4, d4)

    # channel-major -> row-major for the epilogue (wrapper-side layout plumbing).
    k_rm = jnp.transpose(k_cm, (0, 2, 3, 1)).reshape(B, N, C)

    # ---- kernel 3: LayerNorm_C + linear_o + output gate ----------------------
    out = pl.pallas_call(
        _out_kernel,
        out_shape=jax.ShapeDtypeStruct((B, N, D), f32),
        grid=(B, N // r),
        in_specs=[
            pl.BlockSpec((1, r, C), lambda bb, rr: (bb, rr, 0)),
            pl.BlockSpec((1, r, D), lambda bb, rr: (bb, rr, 0)),
            pl.BlockSpec((1, D), lambda bb, rr: (0, 0)),
            pl.BlockSpec((1, D), lambda bb, rr: (0, 0)),
            pl.BlockSpec((D, D), lambda bb, rr: (0, 0)),
            pl.BlockSpec((1, D), lambda bb, rr: (0, 0)),
            pl.BlockSpec((1, C), lambda bb, rr: (0, 0)),
            pl.BlockSpec((1, C), lambda bb, rr: (0, 0)),
            pl.BlockSpec((C, D), lambda bb, rr: (0, 0)),
            pl.BlockSpec((1, D), lambda bb, rr: (0, 0)),
        ],
        out_specs=pl.BlockSpec((1, r, D), lambda bb, rr: (bb, rr, 0)),
        compiler_params=pltpu.CompilerParams(
            dimension_semantics=("parallel", "parallel"),
            vmem_limit_bytes=vmem),
    )(k_rm, z_flat, gi, bi, wgo_t, bgo, gko, bko, wlo_t, blo)

    return out.reshape(B, L, L, D)


# ---------------------------------------------------------------------------
# Pure-JAX reference (mirrors the PyTorch forward exactly, mask=None, axis=1)
# ---------------------------------------------------------------------------
def quadratic_edge_update_ref(z, params):
    def lin(x, w, bias):
        return x @ w.T + bias

    def layer_norm(x, g, bias):
        m = jnp.mean(x, axis=-1, keepdims=True)
        v = jnp.mean((x - m) ** 2, axis=-1, keepdims=True)
        return (x - m) / jnp.sqrt(v + 1e-5) * g + bias

    zn = layer_norm(z, params["g_in"], params["b_in"])
    a = jax.nn.sigmoid(lin(zn, params["w_ga"], params["b_ga"])) * lin(zn, params["w_la"], params["b_la"])
    b = jax.nn.sigmoid(lin(zn, params["w_gb"], params["b_gb"])) * lin(zn, params["w_lb"], params["b_lb"])
    c = jax.nn.sigmoid(lin(zn, params["w_gc"], params["b_gc"])) * lin(zn, params["w_lc"], params["b_lc"])
    d = jax.nn.sigmoid(lin(zn, params["w_gd"], params["b_gd"])) * lin(zn, params["w_ld"], params["b_ld"])

    # einsum('biko,bjko,bilo,bjlo->bijo') == (sum_k a*b) * (sum_l c*d)
    ab = jnp.sum(a[:, :, None, :, :] * b[:, None, :, :, :], axis=3)
    cd = jnp.sum(c[:, :, None, :, :] * d[:, None, :, :, :], axis=3)
    k = ab * cd

    kn = layer_norm(k, params["g_o"], params["b_o"])
    return jax.nn.sigmoid(lin(zn, params["w_go"], params["b_go"])) * lin(kn, params["w_lo"], params["b_lo"])


# ---------------------------------------------------------------------------
# Main
# ---------------------------------------------------------------------------
if __name__ == "__main__":
    B, L = 2, 16
    input_dim, channel_dim = 32, 16      # D, C

    key = jax.random.PRNGKey(0)

    def rnd(k, shape, scale=0.1):
        return scale * jax.random.normal(k, shape, dtype=jnp.float32)

    names = ["la", "ga", "lb", "gb", "lc", "gc", "ld", "gd"]
    keys = jax.random.split(key, 2 * len(names) + 9)
    it = iter(keys)

    params = {}
    for n in names:                      # torch Linear weight layout: (out, in)
        params[f"w_{n}"] = rnd(next(it), (channel_dim, input_dim))
        params[f"b_{n}"] = rnd(next(it), (channel_dim,))
    params["g_in"] = 1.0 + rnd(next(it), (input_dim,))       # norm_input
    params["b_in"] = rnd(next(it), (input_dim,))
    params["g_o"] = 1.0 + rnd(next(it), (channel_dim,))      # norm_o
    params["b_o"] = rnd(next(it), (channel_dim,))
    params["w_go"] = rnd(next(it), (input_dim, input_dim))   # gate_o
    params["b_go"] = rnd(next(it), (input_dim,))
    params["w_lo"] = rnd(next(it), (input_dim, channel_dim))  # linear_o (non-zero)
    params["b_lo"] = rnd(next(it), (input_dim,))

    z = jax.random.normal(next(it), (B, L, L, input_dim), dtype=jnp.float32)

    ref = quadratic_edge_update_ref(z, params)

    # f32 inter-kernel path: tight check against the f32 reference.
    out32 = jax.block_until_ready(
        quadratic_edge_update_forward(z, params, compute_dtype=jnp.float32))
    np.testing.assert_allclose(np.asarray(out32), np.asarray(ref),
                               rtol=2e-4, atol=2e-4)
    assert out32.shape == (B, L, L, input_dim)

    # bf16 inter-kernel path (halved HBM traffic, bf16 MXU rate): looser check.
    out16 = jax.block_until_ready(
        quadratic_edge_update_forward(z, params, compute_dtype=jnp.bfloat16))
    np.testing.assert_allclose(np.asarray(out16), np.asarray(ref),
                               rtol=5e-2, atol=5e-2)
    assert out16.shape == (B, L, L, input_dim)

    print("KERNEL_OK")
</pallas_src>

<mosaic_0001>
module attributes {stable_mosaic.version = 11 : i64} {
  func.func @_pair_kernel(%arg0: i32, %arg1: i32, %arg2: i32, %arg3: i32, %arg4: memref<1x16x16x16xf32, #tpu.memory_space<vmem>>, %arg5: memref<1x16x16x16xf32, #tpu.memory_space<vmem>>, %arg6: memref<1x16x16x16xf32, #tpu.memory_space<vmem>>, %arg7: memref<1x16x16x16xf32, #tpu.memory_space<vmem>>, %arg8: memref<1x16x16x16xf32, #tpu.memory_space<vmem>>, %arg9: memref<16x16x16xf32, #tpu.memory_space<vmem>>, %arg10: memref<16x16x16xf32, #tpu.memory_space<vmem>>) attributes {dimension_semantics = [#tpu.dimension_semantics<parallel>, #tpu.dimension_semantics<parallel>, #tpu.dimension_semantics<parallel>, #tpu.dimension_semantics<arbitrary>], iteration_bounds = array<i64: 2, 1, 1, 1>, scalar_prefetch = 0 : i64, scratch_operands = 2 : i64, tpu.core_type = #tpu.core_type<tc>, window_params = [{transform_indices = @transform_0, window_bounds = array<i64: 1, 16, 16, 16>}, {transform_indices = @transform_1, window_bounds = array<i64: 1, 16, 16, 16>}, {transform_indices = @transform_2, window_bounds = array<i64: 1, 16, 16, 16>}, {transform_indices = @transform_3, window_bounds = array<i64: 1, 16, 16, 16>}, {transform_indices = @transform_4, window_bounds = array<i64: 1, 16, 16, 16>}]} {
    %c0_i32 = arith.constant 0 : i32
    %0 = arith.cmpi eq, %arg3, %c0_i32 : i32
    %1 = arith.extui %0 : i1 to i32
    %c0_i32_0 = arith.constant 0 : i32
    %2 = arith.cmpi ne, %1, %c0_i32_0 : i32
    scf.if %2 {
      %cst_31 = arith.constant 0.000000e+00 : f32
      %22 = vector.broadcast %cst_31 : f32 to vector<16x16x16xf32>
      %c0_32 = arith.constant 0 : index
      %c0_33 = arith.constant 0 : index
      %c0_34 = arith.constant 0 : index
      %23 = vector.load %arg9[%c0_32, %c0_33, %c0_34] : memref<16x16x16xf32, #tpu.memory_space<vmem>>, vector<16x16x16xf32>
      tpu.vector_store %arg9[%c0_32, %c0_33, %c0_34], %22 {strides = array<i32>} : memref<16x16x16xf32, #tpu.memory_space<vmem>>, vector<16x16x16xf32>,
      %cst_35 = arith.constant 0.000000e+00 : f32
      %24 = vector.broadcast %cst_35 : f32 to vector<16x16x16xf32>
      %c0_36 = arith.constant 0 : index
      %c0_37 = arith.constant 0 : index
      %c0_38 = arith.constant 0 : index
      %25 = vector.load %arg10[%c0_36, %c0_37, %c0_38] : memref<16x16x16xf32, #tpu.memory_space<vmem>>, vector<16x16x16xf32>
      tpu.vector_store %arg10[%c0_36, %c0_37, %c0_38], %24 {strides = array<i32>} : memref<16x16x16xf32, #tpu.memory_space<vmem>>, vector<16x16x16xf32>,
    } else {
    }
    %c0 = arith.constant 0 : index
    %c0_1 = arith.constant 0 : index
    %c0_2 = arith.constant 0 : index
    %3 = vector.load %arg9[%c0, %c0_1, %c0_2] : memref<16x16x16xf32, #tpu.memory_space<vmem>>, vector<16x16x16xf32>
    %c0_3 = arith.constant 0 : index
    %c0_4 = arith.constant 0 : index
    %c0_5 = arith.constant 0 : index
    %c0_6 = arith.constant 0 : index
    %4 = vector.load %arg4[%c0_3, %c0_4, %c0_5, %c0_6] : memref<1x16x16x16xf32, #tpu.memory_space<vmem>>, vector<1x16x16x16xf32>
    %5 = vector.shape_cast %4 : vector<1x16x16x16xf32> to vector<16x16x16xf32>
    %c0_7 = arith.constant 0 : index
    %c0_8 = arith.constant 0 : index
    %c0_9 = arith.constant 0 : index
    %c0_10 = arith.constant 0 : index
    %6 = vector.load %arg5[%c0_7, %c0_8, %c0_9, %c0_10] : memref<1x16x16x16xf32, #tpu.memory_space<vmem>>, vector<1x16x16x16xf32>
    %7 = vector.shape_cast %6 : vector<1x16x16x16xf32> to vector<16x16x16xf32>
    "tpu.trace_start"() <{level = 10 : i32, message = "cik,cjk->cij"}> : () -> ()
    %cst = arith.constant dense<0.000000e+00> : vector<16x16x16xf32>
    %8 = tpu.matmul %5, %7, %cst {dimension_numbers = #tpu.dot_dimension_numbers<[2], [2], [1], [1], [0, 0, 0, 1, 1, 1], [0], [0]>} : vector<16x16x16xf32>, vector<16x16x16xf32>, vector<16x16x16xf32> -> vector<16x16x16xf32>
    "tpu.trace_stop"() : () -> ()
    %9 = arith.addf %3, %8 : vector<16x16x16xf32>
    %c0_11 = arith.constant 0 : index
    %c0_12 = arith.constant 0 : index
    %c0_13 = arith.constant 0 : index
    %10 = vector.load %arg9[%c0_11, %c0_12, %c0_13] : memref<16x16x16xf32, #tpu.memory_space<vmem>>, vector<16x16x16xf32>
    tpu.vector_store %arg9[%c0_11, %c0_12, %c0_13], %9 {strides = array<i32>} : memref<16x16x16xf32, #tpu.memory_space<vmem>>, vector<16x16x16xf32>,
    %c0_14 = arith.constant 0 : index
    %c0_15 = arith.constant 0 : index
    %c0_16 = arith.constant 0 : index
    %11 = vector.load %arg10[%c0_14, %c0_15, %c0_16] : memref<16x16x16xf32, #tpu.memory_space<vmem>>, vector<16x16x16xf32>
    %c0_17 = arith.constant 0 : index
    %c0_18 = arith.constant 0 : index
    %c0_19 = arith.constant 0 : index
    %c0_20 = arith.constant 0 : index
    %12 = vector.load %arg6[%c0_17, %c0_18, %c0_19, %c0_20] : memref<1x16x16x16xf32, #tpu.memory_space<vmem>>, vector<1x16x16x16xf32>
    %13 = vector.shape_cast %12 : vector<1x16x16x16xf32> to vector<16x16x16xf32>
    %c0_21 = arith.constant 0 : index
    %c0_22 = arith.constant 0 : index
    %c0_23 = arith.constant 0 : index
    %c0_24 = arith.constant 0 : index
    %14 = vector.load %arg7[%c0_21, %c0_22, %c0_23, %c0_24] : memref<1x16x16x16xf32, #tpu.memory_space<vmem>>, vector<1x16x16x16xf32>
    %15 = vector.shape_cast %14 : vector<1x16x16x16xf32> to vector<16x16x16xf32>
    "tpu.trace_start"() <{level = 10 : i32, message = "cik,cjk->cij"}> : () -> ()
    %cst_25 = arith.constant dense<0.000000e+00> : vector<16x16x16xf32>
    %16 = tpu.matmul %13, %15, %cst_25 {dimension_numbers = #tpu.dot_dimension_numbers<[2], [2], [1], [1], [0, 0, 0, 1, 1, 1], [0], [0]>} : vector<16x16x16xf32>, vector<16x16x16xf32>, vector<16x16x16xf32> -> vector<16x16x16xf32>
    "tpu.trace_stop"() : () -> ()
    %17 = arith.addf %11, %16 : vector<16x16x16xf32>
    %c0_26 = arith.constant 0 : index
    %c0_27 = arith.constant 0 : index
    %c0_28 = arith.constant 0 : index
    %18 = vector.load %arg10[%c0_26, %c0_27, %c0_28] : memref<16x16x16xf32, #tpu.memory_space<vmem>>, vector<16x16x16xf32>
    tpu.vector_store %arg10[%c0_26, %c0_27, %c0_28], %17 {strides = array<i32>} : memref<16x16x16xf32, #tpu.memory_space<vmem>>, vector<16x16x16xf32>,
    %c0_i32_29 = arith.constant 0 : i32
    %19 = arith.cmpi eq, %arg3, %c0_i32_29 : i32
    %20 = arith.extui %19 : i1 to i32
    %c0_i32_30 = arith.constant 0 : i32
    %21 = arith.cmpi ne, %20, %c0_i32_30 : i32
    scf.if %21 {
      %c0_31 = arith.constant 0 : index
      %c0_32 = arith.constant 0 : index
      %c0_33 = arith.constant 0 : index
      %22 = vector.load %arg9[%c0_31, %c0_32, %c0_33] : memref<16x16x16xf32, #tpu.memory_space<vmem>>, vector<16x16x16xf32>
      %c0_34 = arith.constant 0 : index
      %c0_35 = arith.constant 0 : index
      %c0_36 = arith.constant 0 : index
      %23 = vector.load %arg10[%c0_34, %c0_35, %c0_36] : memref<16x16x16xf32, #tpu.memory_space<vmem>>, vector<16x16x16xf32>
      %24 = arith.mulf %22, %23 : vector<16x16x16xf32>
      %c0_37 = arith.constant 0 : index
      %c0_38 = arith.constant 0 : index
      %c0_39 = arith.constant 0 : index
      %c0_40 = arith.constant 0 : index
      %25 = vector.load %arg8[%c0_37, %c0_38, %c0_39, %c0_40] : memref<1x16x16x16xf32, #tpu.memory_space<vmem>>, vector<1x16x16x16xf32>
      %26 = vector.shape_cast %25 : vector<1x16x16x16xf32> to vector<16x16x16xf32>
      %27 = vector.shape_cast %24 : vector<16x16x16xf32> to vector<1x16x16x16xf32>
      tpu.vector_store %arg8[%c0_37, %c0_38, %c0_39, %c0_40], %27 {strides = array<i32>} : memref<1x16x16x16xf32, #tpu.memory_space<vmem>>, vector<1x16x16x16xf32>,
    } else {
    }
    return
  }
  func.func @transform_0(%arg0: i32, %arg1: i32, %arg2: i32, %arg3: i32) -> (i32, i32, i32, i32) {
    %c0_i32 = arith.constant 0 : i32
    %c0_i32_0 = arith.constant 0 : i32
    return %arg0, %c0_i32, %arg1, %arg3 : i32, i32, i32, i32
  }
  func.func @transform_1(%arg0: i32, %arg1: i32, %arg2: i32, %arg3: i32) -> (i32, i32, i32, i32) {
    %c0_i32 = arith.constant 0 : i32
    %c0_i32_0 = arith.constant 0 : i32
    return %arg0, %c0_i32, %arg2, %arg3 : i32, i32, i32, i32
  }
  func.func @transform_2(%arg0: i32, %arg1: i32, %arg2: i32, %arg3: i32) -> (i32, i32, i32, i32) {
    %c0_i32 = arith.constant 0 : i32
    %c0_i32_0 = arith.constant 0 : i32
    return %arg0, %c0_i32, %arg1, %arg3 : i32, i32, i32, i32
  }
  func.func @transform_3(%arg0: i32, %arg1: i32, %arg2: i32, %arg3: i32) -> (i32, i32, i32, i32) {
    %c0_i32 = arith.constant 0 : i32
    %c0_i32_0 = arith.constant 0 : i32
    return %arg0, %c0_i32, %arg2, %arg3 : i32, i32, i32, i32
  }
  func.func @transform_4(%arg0: i32, %arg1: i32, %arg2: i32, %arg3: i32) -> (i32, i32, i32, i32) {
    %c0_i32 = arith.constant 0 : i32
    %c0_i32_0 = arith.constant 0 : i32
    return %arg0, %c0_i32, %arg1, %arg2 : i32, i32, i32, i32
  }
}

module attributes {stable_mosaic.version = 11 : i64} {
  func.func @_out_kernel(%arg0: i32, %arg1: i32, %arg2: memref<1x256x16xf32, #tpu.memory_space<vmem>>, %arg3: memref<1x256x32xf32, #tpu.memory_space<vmem>>, %arg4: memref<1x32xf32, #tpu.memory_space<vmem>>, %arg5: memref<1x32xf32, #tpu.memory_space<vmem>>, %arg6: memref<32x32xf32, #tpu.memory_space<vmem>>, %arg7: memref<1x32xf32, #tpu.memory_space<vmem>>, %arg8: memref<1x16xf32, #tpu.memory_space<vmem>>, %arg9: memref<1x16xf32, #tpu.memory_space<vmem>>, %arg10: memref<16x32xf32, #tpu.memory_space<vmem>>, %arg11: memref<1x32xf32, #tpu.memory_space<vmem>>, %arg12: memref<1x256x32xf32, #tpu.memory_space<vmem>>) attributes {dimension_semantics = [#tpu.dimension_semantics<parallel>, #tpu.dimension_semantics<parallel>], iteration_bounds = array<i64: 2, 1>, scalar_prefetch = 0 : i64, scratch_operands = 0 : i64, tpu.core_type = #tpu.core_type<tc>, window_params = [{transform_indices = @transform_0, window_bounds = array<i64: 1, 256, 16>}, {transform_indices = @transform_1, window_bounds = array<i64: 1, 256, 32>}, {pipeline_mode = #tpu.pipeline_mode<synchronous>, transform_indices = @transform_2, window_bounds = array<i64: 1, 32>}, {pipeline_mode = #tpu.pipeline_mode<synchronous>, transform_indices = @transform_3, window_bounds = array<i64: 1, 32>}, {pipeline_mode = #tpu.pipeline_mode<synchronous>, transform_indices = @transform_4, window_bounds = array<i64: 32, 32>}, {pipeline_mode = #tpu.pipeline_mode<synchronous>, transform_indices = @transform_5, window_bounds = array<i64: 1, 32>}, {pipeline_mode = #tpu.pipeline_mode<synchronous>, transform_indices = @transform_6, window_bounds = array<i64: 1, 16>}, {pipeline_mode = #tpu.pipeline_mode<synchronous>, transform_indices = @transform_7, window_bounds = array<i64: 1, 16>}, {pipeline_mode = #tpu.pipeline_mode<synchronous>, transform_indices = @transform_8, window_bounds = array<i64: 16, 32>}, {pipeline_mode = #tpu.pipeline_mode<synchronous>, transform_indices = @transform_9, window_bounds = array<i64: 1, 32>}, {transform_indices = @transform_10, window_bounds = array<i64: 1, 256, 32>}]} {
    %c0 = arith.constant 0 : index
    %c0_0 = arith.constant 0 : index
    %c0_1 = arith.constant 0 : index
    %0 = vector.load %arg2[%c0, %c0_0, %c0_1] : memref<1x256x16xf32, #tpu.memory_space<vmem>>, vector<1x256x16xf32>
    %1 = vector.shape_cast %0 : vector<1x256x16xf32> to vector<256x16xf32>
    %cst = arith.constant dense<0.000000e+00> : vector<256xf32>
    %2 = vector.multi_reduction <add>, %1, %cst [1] : vector<256x16xf32> to vector<256xf32>
    %3 = vector.shape_cast %2 : vector<256xf32> to vector<256x1xf32>
    %cst_2 = arith.constant 1.600000e+01 : f32
    %4 = vector.broadcast %cst_2 : f32 to vector<256x1xf32>
    %5 = arith.divf %3, %4 : vector<256x1xf32>
    %6 = vector.broadcast %5 : vector<256x1xf32> to vector<256x16xf32>
    %7 = arith.subf %1, %6 : vector<256x16xf32>
    %8 = arith.mulf %7, %7 : vector<256x16xf32>
    %cst_3 = arith.constant dense<0.000000e+00> : vector<256xf32>
    %9 = vector.multi_reduction <add>, %8, %cst_3 [1] : vector<256x16xf32> to vector<256xf32>
    %10 = vector.shape_cast %9 : vector<256xf32> to vector<256x1xf32>
    %cst_4 = arith.constant 1.600000e+01 : f32
    %11 = vector.broadcast %cst_4 : f32 to vector<256x1xf32>
    %12 = arith.divf %10, %11 : vector<256x1xf32>
    %13 = vector.broadcast %5 : vector<256x1xf32> to vector<256x16xf32>
    %14 = arith.subf %1, %13 : vector<256x16xf32>
    %cst_5 = arith.constant 9.99999974E-6 : f32
    %15 = vector.broadcast %cst_5 : f32 to vector<256x1xf32>
    %16 = arith.addf %12, %15 : vector<256x1xf32>
    %17 = math.rsqrt %16 : vector<256x1xf32>
    %18 = vector.broadcast %17 : vector<256x1xf32> to vector<256x16xf32>
    %19 = arith.mulf %14, %18 : vector<256x16xf32>
    %c0_6 = arith.constant 0 : index
    %c0_7 = arith.constant 0 : index
    %20 = vector.load %arg8[%c0_6, %c0_7] : memref<1x16xf32, #tpu.memory_space<vmem>>, vector<1x16xf32>
    %21 = vector.broadcast %20 : vector<1x16xf32> to vector<256x16xf32>
    %22 = arith.mulf %19, %21 : vector<256x16xf32>
    %c0_8 = arith.constant 0 : index
    %c0_9 = arith.constant 0 : index
    %23 = vector.load %arg9[%c0_8, %c0_9] : memref<1x16xf32, #tpu.memory_space<vmem>>, vector<1x16xf32>
    %24 = vector.broadcast %23 : vector<1x16xf32> to vector<256x16xf32>
    %25 = arith.addf %22, %24 : vector<256x16xf32>
    %c0_10 = arith.constant 0 : index
    %c0_11 = arith.constant 0 : index
    %26 = vector.load %arg10[%c0_10, %c0_11] : memref<16x32xf32, #tpu.memory_space<vmem>>, vector<16x32xf32>
    %cst_12 = arith.constant dense<0.000000e+00> : vector<256x32xf32>
    %27 = tpu.matmul %25, %26, %cst_12 {dimension_numbers = #tpu.dot_dimension_numbers<[1], [0], [0], [1], [0, 0, 1, 1], [], []>} : vector<256x16xf32>, vector<16x32xf32>, vector<256x32xf32> -> vector<256x32xf32>
    %c0_13 = arith.constant 0 : index
    %c0_14 = arith.constant 0 : index
    %28 = vector.load %arg11[%c0_13, %c0_14] : memref<1x32xf32, #tpu.memory_space<vmem>>, vector<1x32xf32>
    %29 = vector.broadcast %28 : vector<1x32xf32> to vector<256x32xf32>
    %30 = arith.addf %27, %29 : vector<256x32xf32>
    %c0_15 = arith.constant 0 : index
    %c0_16 = arith.constant 0 : index
    %c0_17 = arith.constant 0 : index
    %31 = vector.load %arg3[%c0_15, %c0_16, %c0_17] : memref<1x256x32xf32, #tpu.memory_space<vmem>>, vector<1x256x32xf32>
    %32 = vector.shape_cast %31 : vector<1x256x32xf32> to vector<256x32xf32>
    %cst_18 = arith.constant dense<0.000000e+00> : vector<256xf32>
    %33 = vector.multi_reduction <add>, %32, %cst_18 [1] : vector<256x32xf32> to vector<256xf32>
    %34 = vector.shape_cast %33 : vector<256xf32> to vector<256x1xf32>
    %cst_19 = arith.constant 3.200000e+01 : f32
    %35 = vector.broadcast %cst_19 : f32 to vector<256x1xf32>
    %36 = arith.divf %34, %35 : vector<256x1xf32>
    %37 = vector.broadcast %36 : vector<256x1xf32> to vector<256x32xf32>
    %38 = arith.subf %32, %37 : vector<256x32xf32>
    %39 = arith.mulf %38, %38 : vector<256x32xf32>
    %cst_20 = arith.constant dense<0.000000e+00> : vector<256xf32>
    %40 = vector.multi_reduction <add>, %39, %cst_20 [1] : vector<256x32xf32> to vector<256xf32>
    %41 = vector.shape_cast %40 : vector<256xf32> to vector<256x1xf32>
    %cst_21 = arith.constant 3.200000e+01 : f32
    %42 = vector.broadcast %cst_21 : f32 to vector<256x1xf32>
    %43 = arith.divf %41, %42 : vector<256x1xf32>
    %44 = vector.broadcast %36 : vector<256x1xf32> to vector<256x32xf32>
    %45 = arith.subf %32, %44 : vector<256x32xf32>
    %cst_22 = arith.constant 9.99999974E-6 : f32
    %46 = vector.broadcast %cst_22 : f32 to vector<256x1xf32>
    %47 = arith.addf %43, %46 : vector<256x1xf32>
    %48 = math.rsqrt %47 : vector<256x1xf32>
    %49 = vector.broadcast %48 : vector<256x1xf32> to vector<256x32xf32>
    %50 = arith.mulf %45, %49 : vector<256x32xf32>
    %c0_23 = arith.constant 0 : index
    %c0_24 = arith.constant 0 : index
    %51 = vector.load %arg4[%c0_23, %c0_24] : memref<1x32xf32, #tpu.memory_space<vmem>>, vector<1x32xf32>
    %52 = vector.broadcast %51 : vector<1x32xf32> to vector<256x32xf32>
    %53 = arith.mulf %50, %52 : vector<256x32xf32>
    %c0_25 = arith.constant 0 : index
    %c0_26 = arith.constant 0 : index
    %54 = vector.load %arg5[%c0_25, %c0_26] : memref<1x32xf32, #tpu.memory_space<vmem>>, vector<1x32xf32>
    %55 = vector.broadcast %54 : vector<1x32xf32> to vector<256x32xf32>
    %56 = arith.addf %53, %55 : vector<256x32xf32>
    %c0_27 = arith.constant 0 : index
    %c0_28 = arith.constant 0 : index
    %57 = vector.load %arg6[%c0_27, %c0_28] : memref<32x32xf32, #tpu.memory_space<vmem>>, vector<32x32xf32>
    %cst_29 = arith.constant dense<0.000000e+00> : vector<256x32xf32>
    %58 = tpu.matmul %56, %57, %cst_29 {dimension_numbers = #tpu.dot_dimension_numbers<[1], [0], [0], [1], [0, 0, 1, 1], [], []>} : vector<256x32xf32>, vector<32x32xf32>, vector<256x32xf32> -> vector<256x32xf32>
    %c0_30 = arith.constant 0 : index
    %c0_31 = arith.constant 0 : index
    %59 = vector.load %arg7[%c0_30, %c0_31] : memref<1x32xf32, #tpu.memory_space<vmem>>, vector<1x32xf32>
    %60 = vector.broadcast %59 : vector<1x32xf32> to vector<256x32xf32>
    %61 = arith.addf %58, %60 : vector<256x32xf32>
    %62 = arith.negf %61 : vector<256x32xf32>
    %63 = math.exp %62 : vector<256x32xf32>
    %cst_32 = arith.constant 1.000000e+00 : f32
    %64 = vector.broadcast %cst_32 : f32 to vector<256x32xf32>
    %65 = arith.addf %64, %63 : vector<256x32xf32>
    %66 = arith.divf %64, %65 : vector<256x32xf32>
    %67 = arith.mulf %66, %30 : vector<256x32xf32>
    %c0_33 = arith.constant 0 : index
    %c0_34 = arith.constant 0 : index
    %c0_35 = arith.constant 0 : index
    %68 = vector.load %arg12[%c0_33, %c0_34, %c0_35] : memref<1x256x32xf32, #tpu.memory_space<vmem>>, vector<1x256x32xf32>
    %69 = vector.shape_cast %68 : vector<1x256x32xf32> to vector<256x32xf32>
    %70 = vector.shape_cast %67 : vector<256x32xf32> to vector<1x256x32xf32>
    tpu.vector_store %arg12[%c0_33, %c0_34, %c0_35], %70 {strides = array<i32>} : memref<1x256x32xf32, #tpu.memory_space<vmem>>, vector<1x256x32xf32>,
    return
  }
  func.func @transform_0(%arg0: i32, %arg1: i32) -> (i32, i32, i32) {
    %c0_i32 = arith.constant 0 : i32
    %c0_i32_0 = arith.constant 0 : i32
    return %arg0, %arg1, %c0_i32 : i32, i32, i32
  }
  func.func @transform_1(%arg0: i32, %arg1: i32) -> (i32, i32, i32) {
    %c0_i32 = arith.constant 0 : i32
    %c0_i32_0 = arith.constant 0 : i32
    return %arg0, %arg1, %c0_i32 : i32, i32, i32
  }
  func.func @transform_2(%arg0: i32, %arg1: i32) -> (i32, i32) {
    %c0_i32 = arith.constant 0 : i32
    %c0_i32_0 = arith.constant 0 : i32
    %c0_i32_1 = arith.constant 0 : i32
    return %c0_i32, %c0_i32_0 : i32, i32
  }
  func.func @transform_3(%arg0: i32, %arg1: i32) -> (i32, i32) {
    %c0_i32 = arith.constant 0 : i32
    %c0_i32_0 = arith.constant 0 : i32
    %c0_i32_1 = arith.constant 0 : i32
    return %c0_i32, %c0_i32_0 : i32, i32
  }
  func.func @transform_4(%arg0: i32, %arg1: i32) -> (i32, i32) {
    %c0_i32 = arith.constant 0 : i32
    %c0_i32_0 = arith.constant 0 : i32
    %c0_i32_1 = arith.constant 0 : i32
    return %c0_i32, %c0_i32_0 : i32, i32
  }
  func.func @transform_5(%arg0: i32, %arg1: i32) -> (i32, i32) {
    %c0_i32 = arith.constant 0 : i32
    %c0_i32_0 = arith.constant 0 : i32
    %c0_i32_1 = arith.constant 0 : i32
    return %c0_i32, %c0_i32_0 : i32, i32
  }
  func.func @transform_6(%arg0: i32, %arg1: i32) -> (i32, i32) {
    %c0_i32 = arith.constant 0 : i32
    %c0_i32_0 = arith.constant 0 : i32
    %c0_i32_1 = arith.constant 0 : i32
    return %c0_i32, %c0_i32_0 : i32, i32
  }
  func.func @transform_7(%arg0: i32, %arg1: i32) -> (i32, i32) {
    %c0_i32 = arith.constant 0 : i32
    %c0_i32_0 = arith.constant 0 : i32
    %c0_i32_1 = arith.constant 0 : i32
    return %c0_i32, %c0_i32_0 : i32, i32
  }
  func.func @transform_8(%arg0: i32, %arg1: i32) -> (i32, i32) {
    %c0_i32 = arith.constant 0 : i32
    %c0_i32_0 = arith.constant 0 : i32
    %c0_i32_1 = arith.constant 0 : i32
    return %c0_i32, %c0_i32_0 : i32, i32
  }
  func.func @transform_9(%arg0: i32, %arg1: i32) -> (i32, i32) {
    %c0_i32 = arith.constant 0 : i32
    %c0_i32_0 = arith.constant 0 : i32
    %c0_i32_1 = arith.constant 0 : i32
    return %c0_i32, %c0_i32_0 : i32, i32
  }
  func.func @transform_10(%arg0: i32, %arg1: i32) -> (i32, i32, i32) {
    %c0_i32 = arith.constant 0 : i32
    %c0_i32_0 = arith.constant 0 : i32
    return %arg0, %arg1, %c0_i32 : i32, i32, i32
  }
}

module attributes {stable_mosaic.version = 11 : i64} {
  func.func @_proj_kernel(%arg0: i32, %arg1: i32, %arg2: memref<1x256x32xf32, #tpu.memory_space<vmem>>, %arg3: memref<1x32xf32, #tpu.memory_space<vmem>>, %arg4: memref<1x32xf32, #tpu.memory_space<vmem>>, %arg5: memref<128x32xf32, #tpu.memory_space<vmem>>, %arg6: memref<128x1xf32, #tpu.memory_space<vmem>>, %arg7: memref<1x16x256xf32, #tpu.memory_space<vmem>>, %arg8: memref<1x16x256xf32, #tpu.memory_space<vmem>>, %arg9: memref<1x16x256xf32, #tpu.memory_space<vmem>>, %arg10: memref<1x16x256xf32, #tpu.memory_space<vmem>>) attributes {dimension_semantics = [#tpu.dimension_semantics<parallel>, #tpu.dimension_semantics<parallel>], iteration_bounds = array<i64: 2, 1>, scalar_prefetch = 0 : i64, scratch_operands = 0 : i64, tpu.core_type = #tpu.core_type<tc>, window_params = [{transform_indices = @transform_0, window_bounds = array<i64: 1, 256, 32>}, {pipeline_mode = #tpu.pipeline_mode<synchronous>, transform_indices = @transform_1, window_bounds = array<i64: 1, 32>}, {pipeline_mode = #tpu.pipeline_mode<synchronous>, transform_indices = @transform_2, window_bounds = array<i64: 1, 32>}, {pipeline_mode = #tpu.pipeline_mode<synchronous>, transform_indices = @transform_3, window_bounds = array<i64: 128, 32>}, {pipeline_mode = #tpu.pipeline_mode<synchronous>, transform_indices = @transform_4, window_bounds = array<i64: 128, 1>}, {transform_indices = @transform_5, window_bounds = array<i64: 1, 16, 256>}, {transform_indices = @transform_6, window_bounds = array<i64: 1, 16, 256>}, {transform_indices = @transform_7, window_bounds = array<i64: 1, 16, 256>}, {transform_indices = @transform_8, window_bounds = array<i64: 1, 16, 256>}]} {
    %c0 = arith.constant 0 : index
    %c0_0 = arith.constant 0 : index
    %c0_1 = arith.constant 0 : index
    %0 = vector.load %arg2[%c0, %c0_0, %c0_1] : memref<1x256x32xf32, #tpu.memory_space<vmem>>, vector<1x256x32xf32>
    %1 = vector.shape_cast %0 : vector<1x256x32xf32> to vector<256x32xf32>
    %cst = arith.constant dense<0.000000e+00> : vector<256xf32>
    %2 = vector.multi_reduction <add>, %1, %cst [1] : vector<256x32xf32> to vector<256xf32>
    %3 = vector.shape_cast %2 : vector<256xf32> to vector<256x1xf32>
    %cst_2 = arith.constant 3.200000e+01 : f32
    %4 = vector.broadcast %cst_2 : f32 to vector<256x1xf32>
    %5 = arith.divf %3, %4 : vector<256x1xf32>
    %6 = vector.broadcast %5 : vector<256x1xf32> to vector<256x32xf32>
    %7 = arith.subf %1, %6 : vector<256x32xf32>
    %8 = arith.mulf %7, %7 : vector<256x32xf32>
    %cst_3 = arith.constant dense<0.000000e+00> : vector<256xf32>
    %9 = vector.multi_reduction <add>, %8, %cst_3 [1] : vector<256x32xf32> to vector<256xf32>
    %10 = vector.shape_cast %9 : vector<256xf32> to vector<256x1xf32>
    %cst_4 = arith.constant 3.200000e+01 : f32
    %11 = vector.broadcast %cst_4 : f32 to vector<256x1xf32>
    %12 = arith.divf %10, %11 : vector<256x1xf32>
    %13 = vector.broadcast %5 : vector<256x1xf32> to vector<256x32xf32>
    %14 = arith.subf %1, %13 : vector<256x32xf32>
    %cst_5 = arith.constant 9.99999974E-6 : f32
    %15 = vector.broadcast %cst_5 : f32 to vector<256x1xf32>
    %16 = arith.addf %12, %15 : vector<256x1xf32>
    %17 = math.rsqrt %16 : vector<256x1xf32>
    %18 = vector.broadcast %17 : vector<256x1xf32> to vector<256x32xf32>
    %19 = arith.mulf %14, %18 : vector<256x32xf32>
    %c0_6 = arith.constant 0 : index
    %c0_7 = arith.constant 0 : index
    %20 = vector.load %arg3[%c0_6, %c0_7] : memref<1x32xf32, #tpu.memory_space<vmem>>, vector<1x32xf32>
    %21 = vector.broadcast %20 : vector<1x32xf32> to vector<256x32xf32>
    %22 = arith.mulf %19, %21 : vector<256x32xf32>
    %c0_8 = arith.constant 0 : index
    %c0_9 = arith.constant 0 : index
    %23 = vector.load %arg4[%c0_8, %c0_9] : memref<1x32xf32, #tpu.memory_space<vmem>>, vector<1x32xf32>
    %24 = vector.broadcast %23 : vector<1x32xf32> to vector<256x32xf32>
    %25 = arith.addf %22, %24 : vector<256x32xf32>
    %c0_10 = arith.constant 0 : index
    %c0_11 = arith.constant 0 : index
    %26 = vector.load %arg5[%c0_10, %c0_11] : memref<128x32xf32, #tpu.memory_space<vmem>>, vector<128x32xf32>
    %27 = tpu.transpose %25, [1, 0] : vector<256x32xf32> -> vector<32x256xf32>
    %cst_12 = arith.constant dense<0.000000e+00> : vector<128x256xf32>
    %28 = tpu.matmul %26, %27, %cst_12 {dimension_numbers = #tpu.dot_dimension_numbers<[1], [0], [0], [1], [0, 0, 1, 1], [], []>} : vector<128x32xf32>, vector<32x256xf32>, vector<128x256xf32> -> vector<128x256xf32>
    %c0_13 = arith.constant 0 : index
    %c0_14 = arith.constant 0 : index
    %29 = vector.load %arg6[%c0_13, %c0_14] : memref<128x1xf32, #tpu.memory_space<vmem>>, vector<128x1xf32>
    %30 = vector.broadcast %29 : vector<128x1xf32> to vector<128x256xf32>
    %31 = arith.addf %28, %30 : vector<128x256xf32>
    %32 = vector.extract_strided_slice %31 {offsets = [0, 0], sizes = [64, 256], strides = [1, 1]} : vector<128x256xf32> to vector<64x256xf32>
    %33 = arith.negf %32 : vector<64x256xf32>
    %34 = math.exp %33 : vector<64x256xf32>
    %cst_15 = arith.constant 1.000000e+00 : f32
    %35 = vector.broadcast %cst_15 : f32 to vector<64x256xf32>
    %36 = arith.addf %35, %34 : vector<64x256xf32>
    %37 = arith.divf %35, %36 : vector<64x256xf32>
    %38 = vector.extract_strided_slice %31 {offsets = [64, 0], sizes = [64, 256], strides = [1, 1]} : vector<128x256xf32> to vector<64x256xf32>
    %39 = arith.mulf %37, %38 : vector<64x256xf32>
    %40 = vector.extract_strided_slice %39 {offsets = [0, 0], sizes = [16, 256], strides = [1, 1]} : vector<64x256xf32> to vector<16x256xf32>
    %c0_16 = arith.constant 0 : index
    %c0_17 = arith.constant 0 : index
    %c0_18 = arith.constant 0 : index
    %41 = vector.load %arg7[%c0_16, %c0_17, %c0_18] : memref<1x16x256xf32, #tpu.memory_space<vmem>>, vector<1x16x256xf32>
    %42 = vector.shape_cast %41 : vector<1x16x256xf32> to vector<16x256xf32>
    %43 = vector.shape_cast %40 : vector<16x256xf32> to vector<1x16x256xf32>
    tpu.vector_store %arg7[%c0_16, %c0_17, %c0_18], %43 {strides = array<i32>} : memref<1x16x256xf32, #tpu.memory_space<vmem>>, vector<1x16x256xf32>,
    %44 = vector.extract_strided_slice %39 {offsets = [16, 0], sizes = [16, 256], strides = [1, 1]} : vector<64x256xf32> to vector<16x256xf32>
    %c0_19 = arith.constant 0 : index
    %c0_20 = arith.constant 0 : index
    %c0_21 = arith.constant 0 : index
    %45 = vector.load %arg8[%c0_19, %c0_20, %c0_21] : memref<1x16x256xf32, #tpu.memory_space<vmem>>, vector<1x16x256xf32>
    %46 = vector.shape_cast %45 : vector<1x16x256xf32> to vector<16x256xf32>
    %47 = vector.shape_cast %44 : vector<16x256xf32> to vector<1x16x256xf32>
    tpu.vector_store %arg8[%c0_19, %c0_20, %c0_21], %47 {strides = array<i32>} : memref<1x16x256xf32, #tpu.memory_space<vmem>>, vector<1x16x256xf32>,
    %48 = vector.extract_strided_slice %39 {offsets = [32, 0], sizes = [16, 256], strides = [1, 1]} : vector<64x256xf32> to vector<16x256xf32>
    %c0_22 = arith.constant 0 : index
    %c0_23 = arith.constant 0 : index
    %c0_24 = arith.constant 0 : index
    %49 = vector.load %arg9[%c0_22, %c0_23, %c0_24] : memref<1x16x256xf32, #tpu.memory_space<vmem>>, vector<1x16x256xf32>
    %50 = vector.shape_cast %49 : vector<1x16x256xf32> to vector<16x256xf32>
    %51 = vector.shape_cast %48 : vector<16x256xf32> to vector<1x16x256xf32>
    tpu.vector_store %arg9[%c0_22, %c0_23, %c0_24], %51 {strides = array<i32>} : memref<1x16x256xf32, #tpu.memory_space<vmem>>, vector<1x16x256xf32>,
    %52 = vector.extract_strided_slice %39 {offsets = [48, 0], sizes = [16, 256], strides = [1, 1]} : vector<64x256xf32> to vector<16x256xf32>
    %c0_25 = arith.constant 0 : index
    %c0_26 = arith.constant 0 : index
    %c0_27 = arith.constant 0 : index
    %53 = vector.load %arg10[%c0_25, %c0_26, %c0_27] : memref<1x16x256xf32, #tpu.memory_space<vmem>>, vector<1x16x256xf32>
    %54 = vector.shape_cast %53 : vector<1x16x256xf32> to vector<16x256xf32>
    %55 = vector.shape_cast %52 : vector<16x256xf32> to vector<1x16x256xf32>
    tpu.vector_store %arg10[%c0_25, %c0_26, %c0_27], %55 {strides = array<i32>} : memref<1x16x256xf32, #tpu.memory_space<vmem>>, vector<1x16x256xf32>,
    return
  }
  func.func @transform_0(%arg0: i32, %arg1: i32) -> (i32, i32, i32) {
    %c0_i32 = arith.constant 0 : i32
    %c0_i32_0 = arith.constant 0 : i32
    return %arg0, %arg1, %c0_i32 : i32, i32, i32
  }
  func.func @transform_1(%arg0: i32, %arg1: i32) -> (i32, i32) {
    %c0_i32 = arith.constant 0 : i32
    %c0_i32_0 = arith.constant 0 : i32
    %c0_i32_1 = arith.constant 0 : i32
    return %c0_i32, %c0_i32_0 : i32, i32
  }
  func.func @transform_2(%arg0: i32, %arg1: i32) -> (i32, i32) {
    %c0_i32 = arith.constant 0 : i32
    %c0_i32_0 = arith.constant 0 : i32
    %c0_i32_1 = arith.constant 0 : i32
    return %c0_i32, %c0_i32_0 : i32, i32
  }
  func.func @transform_3(%arg0: i32, %arg1: i32) -> (i32, i32) {
    %c0_i32 = arith.constant 0 : i32
    %c0_i32_0 = arith.constant 0 : i32
    %c0_i32_1 = arith.constant 0 : i32
    return %c0_i32, %c0_i32_0 : i32, i32
  }
  func.func @transform_4(%arg0: i32, %arg1: i32) -> (i32, i32) {
    %c0_i32 = arith.constant 0 : i32
    %c0_i32_0 = arith.constant 0 : i32
    %c0_i32_1 = arith.constant 0 : i32
    return %c0_i32, %c0_i32_0 : i32, i32
  }
  func.func @transform_5(%arg0: i32, %arg1: i32) -> (i32, i32, i32) {
    %c0_i32 = arith.constant 0 : i32
    %c0_i32_0 = arith.constant 0 : i32
    return %arg0, %c0_i32, %arg1 : i32, i32, i32
  }
  func.func @transform_6(%arg0: i32, %arg1: i32) -> (i32, i32, i32) {
    %c0_i32 = arith.constant 0 : i32
    %c0_i32_0 = arith.constant 0 : i32
    return %arg0, %c0_i32, %arg1 : i32, i32, i32
  }
  func.func @transform_7(%arg0: i32, %arg1: i32) -> (i32, i32, i32) {
    %c0_i32 = arith.constant 0 : i32
    %c0_i32_0 = arith.constant 0 : i32
    return %arg0, %c0_i32, %arg1 : i32, i32, i32
  }
  func.func @transform_8(%arg0: i32, %arg1: i32) -> (i32, i32, i32) {
    %c0_i32 = arith.constant 0 : i32
    %c0_i32_0 = arith.constant 0 : i32
    return %arg0, %c0_i32, %arg1 : i32, i32, i32
  }
}

</mosaic_0001>

<llo_original>
// kernel: quadratic_edge_update_forward.3
$region0: #{quadratic_edge_update_forward.3}
  #allocation0 [shape = 'u32[]', space=smem, size = 0x4, offset = 0x4, fixed_abs, tag = 'smem constant byte address 0x4 - core index']
  #allocation1 [shape = 'u32[144,128]{1,0:T(1,128)}', space=vmem, size = 0x12000, scoped, tag = 'internal scratch']
  %s0 = inlined_call_operand.hbm [shape: f32[2,256,32], index: 0, kind: input, shape index: {}]
  %s1 = inlined_call_operand.vmem [shape: f32[1,32], index: 1, kind: input, shape index: {}]
  %s2 = inlined_call_operand.vmem [shape: f32[1,32], index: 2, kind: input, shape index: {}]
  %s3 = inlined_call_operand.vmem [shape: f32[128,32], index: 3, kind: input, shape index: {}]
  %s4 = inlined_call_operand.vmem [shape: f32[128,1], index: 4, kind: input, shape index: {}]
  %s5 = inlined_call_operand.vmem [shape: f32[2,16,256], index: 5, kind: output, shape index: {0}]
  %s6 = inlined_call_operand.vmem [shape: f32[2,16,256], index: 6, kind: output, shape index: {1}]
  %s7 = inlined_call_operand.vmem [shape: f32[2,16,256], index: 7, kind: output, shape index: {2}]
  %s8 = inlined_call_operand.vmem [shape: f32[2,16,256], index: 8, kind: output, shape index: {3}]
  %9 = xla_tuple %s5, %s6, %s7, %s8
  %s10 = sld [smem:[#allocation0]]
  $region81: #{quadratic_edge_update_forward.3} parent=0
    _
  %s12 = ssub.s32 1, %s10
  %s13 = scalar_select 0, %s12, %s10
  $region1: #{quadratic_edge_update_forward.3} parent=0
    #allocation2 [shape = 'u8[262144]{0}', space=vmem, size = 0x40000, scoped, tag = 'input window, operand 0']
    #allocation3 [shape = 's32[2]{0}', space=sflag, size = 0x8, scoped, tag = 'scoped memory for quadratic_edge_update_forward.3']
    %14 = vsyncpa [#allocation3], 0
    %s15 = scalar_lea.sflag [#allocation3], 1
    %16 = vsyncpa %s15, 0
    loop: start=0, step=1, limit=4
    $region2: #{quadratic_edge_update_forward.3} parent=1 // loop_pre_header
      _
    $region3: #{quadratic_edge_update_forward.3} parent=1 // loop_header
      %s18 = sphi 0, %s22
      %p19 = scmp.ge.s32.totalorder %s18, 4
      %s25 = sphi 0, %s37
      %s26 = sphi 0, %s33
      %s27 = sphi 0, %s25
      %s28 = sphi 0, %s26
      %s29 = sphi 0, %s27
      %s30 = sphi 0, %s28
      %s42 = sphi 0, %s44
      %s45 = sphi 0, %s42
      %s46 = sphi 0, %s45
      %s62 = sphi 0, %s46
      %s66 = sphi 0, %s66
      %s68 = sphi 0, %s66
      %s69 = sphi 0, %s68
      %s83 = sphi 0, %s69
      %s87 = sphi 0, %s87
      %s89 = sphi 0, %s87
      %s90 = sphi 0, %s89
      %s104 = sphi 0, %s90
      %s108 = sphi 0, %s108
      %s110 = sphi 0, %s108
      %s111 = sphi 0, %s110
      %s125 = sphi 0, %s111
      %s129 = sphi 0, %s129
      %s131 = sphi 0, %s129
      %s132 = sphi 0, %s131
      %s146 = sphi 0, %s132
      %s154 = sphi 0, %s156
      %s157 = sphi 0, %s154
      %s158 = sphi 0, %s157
      %s174 = sphi 0, %s158
      %s182 = sphi 0, %s184
      %s185 = sphi 0, %s182
      %s186 = sphi 0, %s185
      %s202 = sphi 0, %s186
      %s210 = sphi 0, %s212
      %s213 = sphi 0, %s210
      %s214 = sphi 0, %s213
      %s230 = sphi 0, %s214
      %s238 = sphi 0, %s240
      %s241 = sphi 0, %s238
      %s242 = sphi 0, %s241
      %s258 = sphi 0, %s242
    $region4: #{quadratic_edge_update_forward.3} parent=1 // loop_header_branch
      %21 = sbr.rel (%p19) target = $region8
    $region5: #{quadratic_edge_update_forward.3} parent=1 // loop_body
      %s23 = ssub.s32 %s18, 1
      %s24 = ssub.s32 %s18, 2
      %s31 = sadd.s32 1, %s26
      %p32 = scmp.ge.s32.totalorder %s31, 1
      %s33 = scalar_select %p32, 0, %s31
      %s34 = sadd.s32 1, %s25
      %s35 = scalar_select %p32, %s34, %s25
      %p36 = scmp.ge.s32.totalorder %s35, 2
      %s37 = scalar_select %p36, 0, %s35
      %s38 = ssub.s32 %s25, %s37
      %s39 = ssub.s32 %s26, %s33
      %s40 = sor.u32 %s38, %s39
      %p41 = scmp.eq.s32.totalorder %s40, 0
      %s43 = sadd.s32 %s42, 1
      %s44 = scalar_select %p41, %s42, %s43
      %p47 = pneg %p41
      %p48 = scmp.eq.s32.totalorder %s18, 1
      %p49 = por %p47, %p48
      %p50 = scmp.ne.s32.totalorder %s42, %s45
      %p51 = scmp.eq.s32.totalorder %s18, 0
      %p52 = por %p50, %p51
      %p53 = scmp.ne.s32.totalorder %s42, %s45
      %p54 = scmp.eq.s32.totalorder %s23, 1
      %p55 = por %p53, %p54
      %p56 = scmp.ne.s32.totalorder %s45, %s46
      %p57 = scmp.eq.s32.totalorder %s23, 0
      %p58 = por %p56, %p57
      %p59 = scmp.ne.s32.totalorder %s45, %s46
      %p60 = scmp.eq.s32.totalorder %s24, 1
      %p61 = por %p59, %p60
      %p63 = scmp.ne.s32.totalorder %s46, %s62
      %p64 = scmp.eq.s32.totalorder %s24, 0
      %p65 = por %p63, %p64
      %s67 = sadd.s32 %s66, 1
      %p70 = scmp.eq.s32.totalorder %s18, 1
      %p71 = scmp.ne.s32.totalorder %s66, %s68
      %p72 = scmp.eq.s32.totalorder %s18, 0
      %p73 = por %p71, %p72
      %p74 = scmp.ne.s32.totalorder %s66, %s68
      %p75 = scmp.eq.s32.totalorder %s23, 1
      %p76 = por %p74, %p75
      %p77 = scmp.ne.s32.totalorder %s68, %s69
      %p78 = scmp.eq.s32.totalorder %s23, 0
      %p79 = por %p77, %p78
      %p80 = scmp.ne.s32.totalorder %s68, %s69
      %p81 = scmp.eq.s32.totalorder %s24, 1
      %p82 = por %p80, %p81
      %p84 = scmp.ne.s32.totalorder %s69, %s83
      %p85 = scmp.eq.s32.totalorder %s24, 0
      %p86 = por %p84, %p85
      %s88 = sadd.s32 %s87, 1
      %p91 = scmp.eq.s32.totalorder %s18, 1
      %p92 = scmp.ne.s32.totalorder %s87, %s89
      %p93 = scmp.eq.s32.totalorder %s18, 0
      %p94 = por %p92, %p93
      %p95 = scmp.ne.s32.totalorder %s87, %s89
      %p96 = scmp.eq.s32.totalorder %s23, 1
      %p97 = por %p95, %p96
      %p98 = scmp.ne.s32.totalorder %s89, %s90
      %p99 = scmp.eq.s32.totalorder %s23, 0
      %p100 = por %p98, %p99
      %p101 = scmp.ne.s32.totalorder %s89, %s90
      %p102 = scmp.eq.s32.totalorder %s24, 1
      %p103 = por %p101, %p102
      %p105 = scmp.ne.s32.totalorder %s90, %s104
      %p106 = scmp.eq.s32.totalorder %s24, 0
      %p107 = por %p105, %p106
      %s109 = sadd.s32 %s108, 1
      %p112 = scmp.eq.s32.totalorder %s18, 1
      %p113 = scmp.ne.s32.totalorder %s108, %s110
      %p114 = scmp.eq.s32.totalorder %s18, 0
      %p115 = por %p113, %p114
      %p116 = scmp.ne.s32.totalorder %s108, %s110
      %p117 = scmp.eq.s32.totalorder %s23, 1
      %p118 = por %p116, %p117
      %p119 = scmp.ne.s32.totalorder %s110, %s111
      %p120 = scmp.eq.s32.totalorder %s23, 0
      %p121 = por %p119, %p120
      %p122 = scmp.ne.s32.totalorder %s110, %s111
      %p123 = scmp.eq.s32.totalorder %s24, 1
      %p124 = por %p122, %p123
      %p126 = scmp.ne.s32.totalorder %s111, %s125
      %p127 = scmp.eq.s32.totalorder %s24, 0
      %p128 = por %p126, %p127
      %s130 = sadd.s32 %s129, 1
      %p133 = scmp.eq.s32.totalorder %s18, 1
      %p134 = scmp.ne.s32.totalorder %s129, %s131
      %p135 = scmp.eq.s32.totalorder %s18, 0
      %p136 = por %p134, %p135
      %p137 = scmp.ne.s32.totalorder %s129, %s131
      %p138 = scmp.eq.s32.totalorder %s23, 1
      %p139 = por %p137, %p138
      %p140 = scmp.ne.s32.totalorder %s131, %s132
      %p141 = scmp.eq.s32.totalorder %s23, 0
      %p142 = por %p140, %p141
      %p143 = scmp.ne.s32.totalorder %s131, %s132
      %p144 = scmp.eq.s32.totalorder %s24, 1
      %p145 = por %p143, %p144
      %p147 = scmp.ne.s32.totalorder %s132, %s146
      %p148 = scmp.eq.s32.totalorder %s24, 0
      %p149 = por %p147, %p148
      %s150 = ssub.s32 %s25, %s37
      %s151 = ssub.s32 %s26, %s33
      %s152 = sor.u32 %s150, %s151
      %p153 = scmp.eq.s32.totalorder %s152, 0
      %s155 = sadd.s32 %s154, 1
      %s156 = scalar_select %p153, %s154, %s155
      %p159 = pneg %p153
      %p160 = scmp.eq.s32.totalorder %s18, 1
      %p161 = por %p159, %p160
      %p162 = scmp.ne.s32.totalorder %s154, %s157
      %p163 = scmp.eq.s32.totalorder %s18, 0
      %p164 = por %p162, %p163
      %p165 = scmp.ne.s32.totalorder %s154, %s157
      %p166 = scmp.eq.s32.totalorder %s23, 1
      %p167 = por %p165, %p166
      %p168 = scmp.ne.s32.totalorder %s157, %s158
      %p169 = scmp.eq.s32.totalorder %s23, 0
      %p170 = por %p168, %p169
      %p171 = scmp.ne.s32.totalorder %s157, %s158
      %p172 = scmp.eq.s32.totalorder %s24, 1
      %p173 = por %p171, %p172
      %p175 = scmp.ne.s32.totalorder %s158, %s174
      %p176 = scmp.eq.s32.totalorder %s24, 0
      %p177 = por %p175, %p176
      %s178 = ssub.s32 %s25, %s37
      %s179 = ssub.s32 %s26, %s33
      %s180 = sor.u32 %s178, %s179
      %p181 = scmp.eq.s32.totalorder %s180, 0
      %s183 = sadd.s32 %s182, 1
      %s184 = scalar_select %p181, %s182, %s183
      %p187 = pneg %p181
      %p188 = scmp.eq.s32.totalorder %s18, 1
      %p189 = por %p187, %p188
      %p190 = scmp.ne.s32.totalorder %s182, %s185
      %p191 = scmp.eq.s32.totalorder %s18, 0
      %p192 = por %p190, %p191
      %p193 = scmp.ne.s32.totalorder %s182, %s185
      %p194 = scmp.eq.s32.totalorder %s23, 1
      %p195 = por %p193, %p194
      %p196 = scmp.ne.s32.totalorder %s185, %s186
      %p197 = scmp.eq.s32.totalorder %s23, 0
      %p198 = por %p196, %p197
      %p199 = scmp.ne.s32.totalorder %s185, %s186
      %p200 = scmp.eq.s32.totalorder %s24, 1
      %p201 = por %p199, %p200
      %p203 = scmp.ne.s32.totalorder %s186, %s202
      %p204 = scmp.eq.s32.totalorder %s24, 0
      %p205 = por %p203, %p204
      %s206 = ssub.s32 %s25, %s37
      %s207 = ssub.s32 %s26, %s33
      %s208 = sor.u32 %s206, %s207
      %p209 = scmp.eq.s32.totalorder %s208, 0
      %s211 = sadd.s32 %s210, 1
      %s212 = scalar_select %p209, %s210, %s211
      %p215 = pneg %p209
      %p216 = scmp.eq.s32.totalorder %s18, 1
      %p217 = por %p215, %p216
      %p218 = scmp.ne.s32.totalorder %s210, %s213
      %p219 = scmp.eq.s32.totalorder %s18, 0
      %p220 = por %p218, %p219
      %p221 = scmp.ne.s32.totalorder %s210, %s213
      %p222 = scmp.eq.s32.totalorder %s23, 1
      %p223 = por %p221, %p222
      %p224 = scmp.ne.s32.totalorder %s213, %s214
      %p225 = scmp.eq.s32.totalorder %s23, 0
      %p226 = por %p224, %p225
      %p227 = scmp.ne.s32.totalorder %s213, %s214
      %p228 = scmp.eq.s32.totalorder %s24, 1
      %p229 = por %p227, %p228
      %p231 = scmp.ne.s32.totalorder %s214, %s230
      %p232 = scmp.eq.s32.totalorder %s24, 0
      %p233 = por %p231, %p232
      %s234 = ssub.s32 %s25, %s37
      %s235 = ssub.s32 %s26, %s33
      %s236 = sor.u32 %s234, %s235
      %p237 = scmp.eq.s32.totalorder %s236, 0
      %s239 = sadd.s32 %s238, 1
      %s240 = scalar_select %p237, %s238, %s239
      %p243 = pneg %p237
      %p244 = scmp.eq.s32.totalorder %s18, 1
      %p245 = por %p243, %p244
      %p246 = scmp.ne.s32.totalorder %s238, %s241
      %p247 = scmp.eq.s32.totalorder %s18, 0
      %p248 = por %p246, %p247
      %p249 = scmp.ne.s32.totalorder %s238, %s241
      %p250 = scmp.eq.s32.totalorder %s23, 1
      %p251 = por %p249, %p250
      %p252 = scmp.ne.s32.totalorder %s241, %s242
      %p253 = scmp.eq.s32.totalorder %s23, 0
      %p254 = por %p252, %p253
      %p255 = scmp.ne.s32.totalorder %s241, %s242
      %p256 = scmp.eq.s32.totalorder %s24, 1
      %p257 = por %p255, %p256
      %p259 = scmp.ne.s32.totalorder %s242, %s258
      %p260 = scmp.eq.s32.totalorder %s24, 0
      %p261 = por %p259, %p260
      %p262 = scmp.le.s32.totalorder 1, %s18
      %p263 = scmp.lt.s32.totalorder %s18, 3
      %p264 = pnand %p262, %p263
      %p265 = pneg %p264
      // Predicated region
      $region9: #{quadratic_edge_update_forward.3} parent=5 // pred_check
        _
      $region10: #{quadratic_edge_update_forward.3} parent=5 // pred_check_branch
        %267 = sbr.rel (%p264) target = $region12
      $region11: #{quadratic_edge_update_forward.3} parent=5 // pred_region
        %s268 = ssub.s32 %s18, 1
        // Predicated region
        $region13: #{quadratic_edge_update_forward.3} parent=11 // pred_check
          %p269 = pneg %p79
        $region14: #{quadratic_edge_update_forward.3} parent=11 // pred_check_branch
          %271 = sbr.rel (%p269) target = $region16
        $region15: #{quadratic_edge_update_forward.3} parent=11 // pred_region
          _
        $region16: #{quadratic_edge_update_forward.3} parent=11 // pred_fallthru
          _
        // Predicated region
        $region17: #{quadratic_edge_update_forward.3} parent=11 // pred_check
          %p272 = pneg %p100
        $region18: #{quadratic_edge_update_forward.3} parent=11 // pred_check_branch
          %274 = sbr.rel (%p272) target = $region20
        $region19: #{quadratic_edge_update_forward.3} parent=11 // pred_region
          _
        $region20: #{quadratic_edge_update_forward.3} parent=11 // pred_fallthru
          _
        // Predicated region
        $region21: #{quadratic_edge_update_forward.3} parent=11 // pred_check
          %p275 = pneg %p121
        $region22: #{quadratic_edge_update_forward.3} parent=11 // pred_check_branch
          %277 = sbr.rel (%p275) target = $region24
        $region23: #{quadratic_edge_update_forward.3} parent=11 // pred_region
          _
        $region24: #{quadratic_edge_update_forward.3} parent=11 // pred_fallthru
          _
        // Predicated region
        $region25: #{quadratic_edge_update_forward.3} parent=11 // pred_check
          %p278 = pneg %p142
        $region26: #{quadratic_edge_update_forward.3} parent=11 // pred_check_branch
          %280 = sbr.rel (%p278) target = $region28
        $region27: #{quadratic_edge_update_forward.3} parent=11 // pred_region
          _
        $region28: #{quadratic_edge_update_forward.3} parent=11 // pred_fallthru
          _
      $region12: #{quadratic_edge_update_forward.3} parent=5 // pred_fallthru
        _
      %p281 = scmp.lt.s32.totalorder %s18, 2
      // Predicated region
      $region29: #{quadratic_edge_update_forward.3} parent=5 // pred_check
        %p282 = pneg %p281
      $region30: #{quadratic_edge_update_forward.3} parent=5 // pred_check_branch
        %284 = sbr.rel (%p282) target = $region32
      $region31: #{quadratic_edge_update_forward.3} parent=5 // pred_region
        // Predicated region
        $region33: #{quadratic_edge_update_forward.3} parent=31 // pred_check
          %p285 = pneg %p52
        $region34: #{quadratic_edge_update_forward.3} parent=31 // pred_check_branch
          %287 = sbr.rel (%p285) target = $region36
        $region35: #{quadratic_edge_update_forward.3} parent=31 // pred_region
          %s288 = sand.u32 %s42, 1
          %s289 = scalar_lea.sflag [#allocation3], %s288
          %s290 = sand.u32 %s42, 1
          %s291 = smul.addr %s290, 256
          %s292 = scalar_lea.vmem [#allocation2], %s291
          %s293 = smul.u32 32, %s26
          %s295 = ssub.s32 4096, 4096
          %296 = vsyncadd %s289, %s295
          %s297 = smul.addr %s25, 32
          %s298 = sadd.s32 %s293, %s297
          %s299 = smul.addr %s298, 128
          %s300 = scalar_lea.hbm %s0, %s299
          %s301 = sshll.u32 %s292, 4
          %s302 = int_to_ptr.vmem [resolvable:$true] %s301
          %307 = dma.hbm_to_vmem [thread:$0]  %s300, 4096, %s302, %s289, 128, 128, 8
        $region36: #{quadratic_edge_update_forward.3} parent=31 // pred_fallthru
          _
      $region32: #{quadratic_edge_update_forward.3} parent=5 // pred_fallthru
        _
      %p308 = scmp.le.s32.totalorder 1, %s18
      %p309 = scmp.lt.s32.totalorder %s18, 3
      %p310 = pnand %p308, %p309
      %p311 = pneg %p310
      // Predicated region
      $region37: #{quadratic_edge_update_forward.3} parent=5 // pred_check
        _
      $region38: #{quadratic_edge_update_forward.3} parent=5 // pred_check_branch
        %313 = sbr.rel (%p310) target = $region40
      $region39: #{quadratic_edge_update_forward.3} parent=5 // pred_region
        %s314 = ssub.s32 %s18, 1
        %s315 = sand.u32 %s45, 1
        %s316 = scalar_lea.sflag [#allocation3], %s315
        %s317 = sand.u32 %s45, 1
        %s318 = smul.addr %s317, 256
        %s319 = scalar_lea.vmem [#allocation2], %s318
        // Predicated region
        $region41: #{quadratic_edge_update_forward.3} parent=39 // pred_check
          %p320 = pneg %p58
        $region42: #{quadratic_edge_update_forward.3} parent=39 // pred_check_branch
          %322 = sbr.rel (%p320) target = $region44
        $region43: #{quadratic_edge_update_forward.3} parent=39 // pred_region
          %323 = dma.done %s316, 4096
        $region44: #{quadratic_edge_update_forward.3} parent=39 // pred_fallthru
          _
        %s324 = sand.u32 %s45, 1
        %s325 = scalar_lea.sflag [#allocation3], %s324
        %s326 = sand.u32 %s45, 1
        %s327 = smul.addr %s326, 256
        %s328 = scalar_lea.vmem [#allocation2], %s327
        %p329 = pneg %p58
        %p330 = pneg %p55
        %p331 = pneg %p79
        %p332 = pneg %p76
        %p333 = pneg %p100
        %p334 = pneg %p97
        %p335 = pneg %p121
        %p336 = pneg %p118
        %p337 = pneg %p142
        %p338 = pneg %p139
        %p339 = pneg %p170
        %p340 = pneg %p167
        %s341 = smul.u32 2, %s28
        %p342 = scmp.lt.s32.totalorder %s27, 1
        %s343 = scalar_select %p342, %s27, 1
        %p344 = scmp.lt.s32.totalorder %s341, 1
        %s345 = scalar_select %p344, %s341, 1
        %s346 = smul.addr %s343, 4
        %s347 = sadd.s32 %s345, %s346
        %s348 = smul.addr %s347, 8
        %s349 = scalar_lea.vmem %s5, %s348
        %p350 = pneg %p198
        %p351 = pneg %p195
        %s352 = smul.u32 2, %s28
        %p353 = scmp.lt.s32.totalorder %s27, 1
        %s354 = scalar_select %p353, %s27, 1
        %p355 = scmp.lt.s32.totalorder %s352, 1
        %s356 = scalar_select %p355, %s352, 1
        %s357 = smul.addr %s354, 4
        %s358 = sadd.s32 %s356, %s357
        %s359 = smul.addr %s358, 8
        %s360 = scalar_lea.vmem %s6, %s359
        %p361 = pneg %p226
        %p362 = pneg %p223
        %s363 = smul.u32 2, %s28
        %p364 = scmp.lt.s32.totalorder %s27, 1
        %s365 = scalar_select %p364, %s27, 1
        %p366 = scmp.lt.s32.totalorder %s363, 1
        %s367 = scalar_select %p366, %s363, 1
        %s368 = smul.addr %s365, 4
        %s369 = sadd.s32 %s367, %s368
        %s370 = smul.addr %s369, 8
        %s371 = scalar_lea.vmem %s7, %s370
        %p372 = pneg %p254
        %p373 = pneg %p251
        %s374 = smul.u32 2, %s28
        %p375 = scmp.lt.s32.totalorder %s27, 1
        %s376 = scalar_select %p375, %s27, 1
        %p377 = scmp.lt.s32.totalorder %s374, 1
        %s378 = scalar_select %p377, %s374, 1
        %s379 = smul.addr %s376, 4
        %s380 = sadd.s32 %s378, %s379
        %s381 = smul.addr %s380, 8
        %s382 = scalar_lea.vmem %s8, %s381
        %s383 = smul.u32 32, %s28
        %s384 = smul.u32 2, %s28
        %p385 = scmp.lt.s32.totalorder %s27, 1
        %s386 = scalar_select %p385, %s27, 1
        %p387 = scmp.lt.s32.totalorder %s384, 1
        %s388 = scalar_select %p387, %s384, 1
        %s389 = smul.addr %s386, 4
        %s390 = sadd.s32 %s388, %s389
        %s391 = smul.addr %s390, 8
        %s392 = scalar_lea.vmem %s5, %s391
        %s393 = smul.u32 2, %s28
        %s394 = smul.u32 2, %s28
        %p395 = scmp.lt.s32.totalorder %s27, 1
        %s396 = scalar_select %p395, %s27, 1
        %p397 = scmp.lt.s32.totalorder %s394, 1
        %s398 = scalar_select %p397, %s394, 1
        %s399 = smul.addr %s396, 4
        %s400 = sadd.s32 %s398, %s399
        %s401 = smul.addr %s400, 8
        %s402 = scalar_lea.vmem %s6, %s401
        %s403 = smul.u32 2, %s28
        %s404 = smul.u32 2, %s28
        %p405 = scmp.lt.s32.totalorder %s27, 1
        %s406 = scalar_select %p405, %s27, 1
        %p407 = scmp.lt.s32.totalorder %s404, 1
        %s408 = scalar_select %p407, %s404, 1
        %s409 = smul.addr %s406, 4
        %s410 = sadd.s32 %s408, %s409
        %s411 = smul.addr %s410, 8
        %s412 = scalar_lea.vmem %s7, %s411
        %s413 = smul.u32 2, %s28
        %s414 = smul.u32 2, %s28
        %p415 = scmp.lt.s32.totalorder %s27, 1
        %s416 = scalar_select %p415, %s27, 1
        %p417 = scmp.lt.s32.totalorder %s414, 1
        %s418 = scalar_select %p417, %s414, 1
        %s419 = smul.addr %s416, 4
        %s420 = sadd.s32 %s418, %s419
        %s421 = smul.addr %s420, 8
        %s422 = scalar_lea.vmem %s8, %s421
        %s423 = smul.u32 2, %s28
        %v424 = vld [vmem:[%s319] sm:$0xff]
        %v425 = vld [vmem:[%s319 + $0x8] sm:$0xff]
        %v426 = vld [vmem:[%s319 + $0x10] sm:$0xff]
        %v427 = vld [vmem:[%s319 + $0x18] sm:$0xff]
        %v428 = vld [vmem:[%s319 + $0x20] sm:$0xff]
        %v429 = vld [vmem:[%s319 + $0x28] sm:$0xff]
        %v430 = vld [vmem:[%s319 + $0x30] sm:$0xff]
        %v431 = vld [vmem:[%s319 + $0x38] sm:$0xff]
        %v432 = vld [vmem:[%s319 + $0x40] sm:$0xff]
        %v433 = vld [vmem:[%s319 + $0x48] sm:$0xff]
        %v434 = vld [vmem:[%s319 + $0x50] sm:$0xff]
        %v435 = vld [vmem:[%s319 + $0x58] sm:$0xff]
        %v436 = vld [vmem:[%s319 + $0x60] sm:$0xff]
        %v437 = vld [vmem:[%s319 + $0x68] sm:$0xff]
        %v438 = vld [vmem:[%s319 + $0x70] sm:$0xff]
        %v439 = vld [vmem:[%s319 + $0x78] sm:$0xff]
        %v440 = vld [vmem:[%s319 + $0x80] sm:$0xff]
        %v441 = vld [vmem:[%s319 + $0x88] sm:$0xff]
        %v442 = vld [vmem:[%s319 + $0x90] sm:$0xff]
        %v443 = vld [vmem:[%s319 + $0x98] sm:$0xff]
        %v444 = vld [vmem:[%s319 + $0xa0] sm:$0xff]
        %v445 = vld [vmem:[%s319 + $0xa8] sm:$0xff]
        %v446 = vld [vmem:[%s319 + $0xb0] sm:$0xff]
        %v447 = vld [vmem:[%s319 + $0xb8] sm:$0xff]
        %v448 = vld [vmem:[%s319 + $0xc0] sm:$0xff]
        %v449 = vld [vmem:[%s319 + $0xc8] sm:$0xff]
        %v450 = vld [vmem:[%s319 + $0xd0] sm:$0xff]
        %v451 = vld [vmem:[%s319 + $0xd8] sm:$0xff]
        %v452 = vld [vmem:[%s319 + $0xe0] sm:$0xff]
        %v453 = vld [vmem:[%s319 + $0xe8] sm:$0xff]
        %v454 = vld [vmem:[%s319 + $0xf0] sm:$0xff]
        %v455 = vld [vmem:[%s319 + $0xf8] sm:$0xff]
        %vm456 = vcmask 261120
        %v457 = vsel %vm456, %v424, 0.0
        %458 = vadd.xlane.f32.xlu0 %v457
        %v459 = vpop.xlane.xlu0 %458
        %v460 = vsel %vm456, %v425, 0.0
        %461 = vadd.xlane.f32.xlu0 %v460
        %v462 = vpop.xlane.xlu0 %461
        %v463 = vsel %vm456, %v426, 0.0
        %464 = vadd.xlane.f32.xlu0 %v463
        %v465 = vpop.xlane.xlu0 %464
        %v466 = vsel %vm456, %v427, 0.0
        %467 = vadd.xlane.f32.xlu0 %v466
        %v468 = vpop.xlane.xlu0 %467
        %v469 = vsel %vm456, %v428, 0.0
        %470 = vadd.xlane.f32.xlu0 %v469
        %v471 = vpop.xlane.xlu0 %470
        %v472 = vsel %vm456, %v429, 0.0
        %473 = vadd.xlane.f32.xlu0 %v472
        %v474 = vpop.xlane.xlu0 %473
        %v475 = vsel %vm456, %v430, 0.0
        %476 = vadd.xlane.f32.xlu0 %v475
        %v477 = vpop.xlane.xlu0 %476
        %v478 = vsel %vm456, %v431, 0.0
        %479 = vadd.xlane.f32.xlu0 %v478
        %v480 = vpop.xlane.xlu0 %479
        %v481 = vsel %vm456, %v432, 0.0
        %482 = vadd.xlane.f32.xlu0 %v481
        %v483 = vpop.xlane.xlu0 %482
        %v484 = vsel %vm456, %v433, 0.0
        %485 = vadd.xlane.f32.xlu0 %v484
        %v486 = vpop.xlane.xlu0 %485
        %v487 = vsel %vm456, %v434, 0.0
        %488 = vadd.xlane.f32.xlu0 %v487
        %v489 = vpop.xlane.xlu0 %488
        %v490 = vsel %vm456, %v435, 0.0
        %491 = vadd.xlane.f32.xlu0 %v490
        %v492 = vpop.xlane.xlu0 %491
        %v493 = vsel %vm456, %v436, 0.0
        %494 = vadd.xlane.f32.xlu0 %v493
        %v495 = vpop.xlane.xlu0 %494
        %v496 = vsel %vm456, %v437, 0.0
        %497 = vadd.xlane.f32.xlu0 %v496
        %v498 = vpop.xlane.xlu0 %497
        %v499 = vsel %vm456, %v438, 0.0
        %500 = vadd.xlane.f32.xlu0 %v499
        %v501 = vpop.xlane.xlu0 %500
        %v502 = vsel %vm456, %v439, 0.0
        %503 = vadd.xlane.f32.xlu0 %v502
        %v504 = vpop.xlane.xlu0 %503
        %v505 = vsel %vm456, %v440, 0.0
        %506 = vadd.xlane.f32.xlu0 %v505
        %v507 = vpop.xlane.xlu0 %506
        %v508 = vsel %vm456, %v441, 0.0
        %509 = vadd.xlane.f32.xlu0 %v508
        %v510 = vpop.xlane.xlu0 %509
        %v511 = vsel %vm456, %v442, 0.0
        %512 = vadd.xlane.f32.xlu0 %v511
        %v513 = vpop.xlane.xlu0 %512
        %v514 = vsel %vm456, %v443, 0.0
        %515 = vadd.xlane.f32.xlu0 %v514
        %v516 = vpop.xlane.xlu0 %515
        %v517 = vsel %vm456, %v444, 0.0
        %518 = vadd.xlane.f32.xlu0 %v517
        %v519 = vpop.xlane.xlu0 %518
        %v520 = vsel %vm456, %v445, 0.0
        %521 = vadd.xlane.f32.xlu0 %v520
        %v522 = vpop.xlane.xlu0 %521
        %v523 = vsel %vm456, %v446, 0.0
        %524 = vadd.xlane.f32.xlu0 %v523
        %v525 = vpop.xlane.xlu0 %524
        %v526 = vsel %vm456, %v447, 0.0
        %527 = vadd.xlane.f32.xlu0 %v526
        %v528 = vpop.xlane.xlu0 %527
        %v529 = vsel %vm456, %v448, 0.0
        %530 = vadd.xlane.f32.xlu0 %v529
        %v531 = vpop.xlane.xlu0 %530
        %v532 = vsel %vm456, %v449, 0.0
        %533 = vadd.xlane.f32.xlu0 %v532
        %v534 = vpop.xlane.xlu0 %533
        %v535 = vsel %vm456, %v450, 0.0
        %536 = vadd.xlane.f32.xlu0 %v535
        %v537 = vpop.xlane.xlu0 %536
        %v538 = vsel %vm456, %v451, 0.0
        %539 = vadd.xlane.f32.xlu0 %v538
        %v540 = vpop.xlane.xlu0 %539
        %v541 = vsel %vm456, %v452, 0.0
        %542 = vadd.xlane.f32.xlu0 %v541
        %v543 = vpop.xlane.xlu0 %542
        %v544 = vsel %vm456, %v453, 0.0
        %545 = vadd.xlane.f32.xlu0 %v544
        %v546 = vpop.xlane.xlu0 %545
        %v547 = vsel %vm456, %v454, 0.0
        %548 = vadd.xlane.f32.xlu0 %v547
        %v549 = vpop.xlane.xlu0 %548
        %v550 = vsel %vm456, %v455, 0.0
        %551 = vadd.xlane.f32.xlu0 %v550
        %v552 = vpop.xlane.xlu0 %551
        %v553 = vrcp.pop 32.0
        %v554 = vmul.f32 %v459, %v553
        %v555 = vmul.f32 %v462, %v553
        %v556 = vmul.f32 %v465, %v553
        %v557 = vmul.f32 %v468, %v553
        %v558 = vmul.f32 %v471, %v553
        %v559 = vmul.f32 %v474, %v553
        %v560 = vmul.f32 %v477, %v553
        %v561 = vmul.f32 %v480, %v553
        %v562 = vmul.f32 %v483, %v553
        %v563 = vmul.f32 %v486, %v553
        %v564 = vmul.f32 %v489, %v553
        %v565 = vmul.f32 %v492, %v553
        %v566 = vmul.f32 %v495, %v553
        %v567 = vmul.f32 %v498, %v553
        %v568 = vmul.f32 %v501, %v553
        %v569 = vmul.f32 %v504, %v553
        %v570 = vmul.f32 %v507, %v553
        %v571 = vmul.f32 %v510, %v553
        %v572 = vmul.f32 %v513, %v553
        %v573 = vmul.f32 %v516, %v553
        %v574 = vmul.f32 %v519, %v553
        %v575 = vmul.f32 %v522, %v553
        %v576 = vmul.f32 %v525, %v553
        %v577 = vmul.f32 %v528, %v553
        %v578 = vmul.f32 %v531, %v553
        %v579 = vmul.f32 %v534, %v553
        %v580 = vmul.f32 %v537, %v553
        %v581 = vmul.f32 %v540, %v553
        %v582 = vmul.f32 %v543, %v553
        %v583 = vmul.f32 %v546, %v553
        %v584 = vmul.f32 %v549, %v553
        %v585 = vmul.f32 %v552, %v553
        %v586 = vsub.f32 %v424, %v554
        %v587 = vsub.f32 %v425, %v555
        %v588 = vsub.f32 %v426, %v556
        %v589 = vsub.f32 %v427, %v557
        %v590 = vsub.f32 %v428, %v558
        %v591 = vsub.f32 %v429, %v559
        %v592 = vsub.f32 %v430, %v560
        %v593 = vsub.f32 %v431, %v561
        %v594 = vsub.f32 %v432, %v562
        %v595 = vsub.f32 %v433, %v563
        %v596 = vsub.f32 %v434, %v564
        %v597 = vsub.f32 %v435, %v565
        %v598 = vsub.f32 %v436, %v566
        %v599 = vsub.f32 %v437, %v567
        %v600 = vsub.f32 %v438, %v568
        %v601 = vsub.f32 %v439, %v569
        %v602 = vsub.f32 %v440, %v570
        %v603 = vsub.f32 %v441, %v571
        %v604 = vsub.f32 %v442, %v572
        %v605 = vsub.f32 %v443, %v573
        %v606 = vsub.f32 %v444, %v574
        %v607 = vsub.f32 %v445, %v575
        %v608 = vsub.f32 %v446, %v576
        %v609 = vsub.f32 %v447, %v577
        %v610 = vsub.f32 %v448, %v578
        %v611 = vsub.f32 %v449, %v579
        %v612 = vsub.f32 %v450, %v580
        %v613 = vsub.f32 %v451, %v581
        %v614 = vsub.f32 %v452, %v582
        %v615 = vsub.f32 %v453, %v583
        %v616 = vsub.f32 %v454, %v584
        %v617 = vsub.f32 %v455, %v585
        %v618 = vmul.f32 %v586, %v586
        %v619 = vmul.f32 %v587, %v587
        %v620 = vmul.f32 %v588, %v588
        %v621 = vmul.f32 %v589, %v589
        %v622 = vmul.f32 %v590, %v590
        %v623 = vmul.f32 %v591, %v591
        %v624 = vmul.f32 %v592, %v592
        %v625 = vmul.f32 %v593, %v593
        %v626 = vmul.f32 %v594, %v594
        %v627 = vmul.f32 %v595, %v595
        %v628 = vmul.f32 %v596, %v596
        %v629 = vmul.f32 %v597, %v597
        %v630 = vmul.f32 %v598, %v598
        %v631 = vmul.f32 %v599, %v599
        %v632 = vmul.f32 %v600, %v600
        %v633 = vmul.f32 %v601, %v601
        %v634 = vmul.f32 %v602, %v602
        %v635 = vmul.f32 %v603, %v603
        %v636 = vmul.f32 %v604, %v604
        %v637 = vmul.f32 %v605, %v605
        %v638 = vmul.f32 %v606, %v606
        %v639 = vmul.f32 %v607, %v607
        %v640 = vmul.f32 %v608, %v608
        %v641 = vmul.f32 %v609, %v609
        %v642 = vmul.f32 %v610, %v610
        %v643 = vmul.f32 %v611, %v611
        %v644 = vmul.f32 %v612, %v612
        %v645 = vmul.f32 %v613, %v613
        %v646 = vmul.f32 %v614, %v614
        %v647 = vmul.f32 %v615, %v615
        %v648 = vmul.f32 %v616, %v616
        %v649 = vmul.f32 %v617, %v617
        %v650 = vsel %vm456, %v618, 0.0
        %651 = vadd.xlane.f32.xlu0 %v650
        %v652 = vpop.xlane.xlu0 %651
        %v653 = vsel %vm456, %v619, 0.0
        %654 = vadd.xlane.f32.xlu0 %v653
        %v655 = vpop.xlane.xlu0 %654
        %v656 = vsel %vm456, %v620, 0.0
        %657 = vadd.xlane.f32.xlu0 %v656
        %v658 = vpop.xlane.xlu0 %657
        %v659 = vsel %vm456, %v621, 0.0
        %660 = vadd.xlane.f32.xlu0 %v659
        %v661 = vpop.xlane.xlu0 %660
        %v662 = vsel %vm456, %v622, 0.0
        %663 = vadd.xlane.f32.xlu0 %v662
        %v664 = vpop.xlane.xlu0 %663
        %v665 = vsel %vm456, %v623, 0.0
        %666 = vadd.xlane.f32.xlu0 %v665
        %v667 = vpop.xlane.xlu0 %666
        %v668 = vsel %vm456, %v624, 0.0
        %669 = vadd.xlane.f32.xlu0 %v668
        %v670 = vpop.xlane.xlu0 %669
        %v671 = vsel %vm456, %v625, 0.0
        %672 = vadd.xlane.f32.xlu0 %v671
        %v673 = vpop.xlane.xlu0 %672
        %v674 = vsel %vm456, %v626, 0.0
        %675 = vadd.xlane.f32.xlu0 %v674
        %v676 = vpop.xlane.xlu0 %675
        %v677 = vsel %vm456, %v627, 0.0
        %678 = vadd.xlane.f32.xlu0 %v677
        %v679 = vpop.xlane.xlu0 %678
        %v680 = vsel %vm456, %v628, 0.0
        %681 = vadd.xlane.f32.xlu0 %v680
        %v682 = vpop.xlane.xlu0 %681
        %v683 = vsel %vm456, %v629, 0.0
        %684 = vadd.xlane.f32.xlu0 %v683
        %v685 = vpop.xlane.xlu0 %684
        %v686 = vsel %vm456, %v630, 0.0
        %687 = vadd.xlane.f32.xlu0 %v686
        %v688 = vpop.xlane.xlu0 %687
        %v689 = vsel %vm456, %v631, 0.0
        %690 = vadd.xlane.f32.xlu0 %v689
        %v691 = vpop.xlane.xlu0 %690
        %v692 = vsel %vm456, %v632, 0.0
        %693 = vadd.xlane.f32.xlu0 %v692
        %v694 = vpop.xlane.xlu0 %693
        %v695 = vsel %vm456, %v633, 0.0
        %696 = vadd.xlane.f32.xlu0 %v695
        %v697 = vpop.xlane.xlu0 %696
        %v698 = vsel %vm456, %v634, 0.0
        %699 = vadd.xlane.f32.xlu0 %v698
        %v700 = vpop.xlane.xlu0 %699
        %v701 = vsel %vm456, %v635, 0.0
        %702 = vadd.xlane.f32.xlu0 %v701
        %v703 = vpop.xlane.xlu0 %702
        %v704 = vsel %vm456, %v636, 0.0
        %705 = vadd.xlane.f32.xlu0 %v704
        %v706 = vpop.xlane.xlu0 %705
        %v707 = vsel %vm456, %v637, 0.0
        %708 = vadd.xlane.f32.xlu0 %v707
        %v709 = vpop.xlane.xlu0 %708
        %v710 = vsel %vm456, %v638, 0.0
        %711 = vadd.xlane.f32.xlu0 %v710
        %v712 = vpop.xlane.xlu0 %711
        %v713 = vsel %vm456, %v639, 0.0
        %714 = vadd.xlane.f32.xlu0 %v713
        %v715 = vpop.xlane.xlu0 %714
        %v716 = vsel %vm456, %v640, 0.0
        %717 = vadd.xlane.f32.xlu0 %v716
        %v718 = vpop.xlane.xlu0 %717
        %v719 = vsel %vm456, %v641, 0.0
        %720 = vadd.xlane.f32.xlu0 %v719
        %v721 = vpop.xlane.xlu0 %720
        %v722 = vsel %vm456, %v642, 0.0
        %723 = vadd.xlane.f32.xlu0 %v722
        %v724 = vpop.xlane.xlu0 %723
        %v725 = vsel %vm456, %v643, 0.0
        %726 = vadd.xlane.f32.xlu0 %v725
        %v727 = vpop.xlane.xlu0 %726
        %v728 = vsel %vm456, %v644, 0.0
        %729 = vadd.xlane.f32.xlu0 %v728
        %v730 = vpop.xlane.xlu0 %729
        %v731 = vsel %vm456, %v645, 0.0
        %732 = vadd.xlane.f32.xlu0 %v731
        %v733 = vpop.xlane.xlu0 %732
        %v734 = vsel %vm456, %v646, 0.0
        %735 = vadd.xlane.f32.xlu0 %v734
        %v736 = vpop.xlane.xlu0 %735
        %v737 = vsel %vm456, %v647, 0.0
        %738 = vadd.xlane.f32.xlu0 %v737
        %v739 = vpop.xlane.xlu0 %738
        %v740 = vsel %vm456, %v648, 0.0
        %741 = vadd.xlane.f32.xlu0 %v740
        %v742 = vpop.xlane.xlu0 %741
        %v743 = vsel %vm456, %v649, 0.0
        %744 = vadd.xlane.f32.xlu0 %v743
        %v745 = vpop.xlane.xlu0 %744
        %v746 = vmul.f32 %v652, %v553
        %v747 = vmul.f32 %v655, %v553
        %v748 = vmul.f32 %v658, %v553
        %v749 = vmul.f32 %v661, %v553
        %v750 = vmul.f32 %v664, %v553
        %v751 = vmul.f32 %v667, %v553
        %v752 = vmul.f32 %v670, %v553
        %v753 = vmul.f32 %v673, %v553
        %v754 = vmul.f32 %v676, %v553
        %v755 = vmul.f32 %v679, %v553
        %v756 = vmul.f32 %v682, %v553
        %v757 = vmul.f32 %v685, %v553
        %v758 = vmul.f32 %v688, %v553
        %v759 = vmul.f32 %v691, %v553
        %v760 = vmul.f32 %v694, %v553
        %v761 = vmul.f32 %v697, %v553
        %v762 = vmul.f32 %v700, %v553
        %v763 = vmul.f32 %v703, %v553
        %v764 = vmul.f32 %v706, %v553
        %v765 = vmul.f32 %v709, %v553
        %v766 = vmul.f32 %v712, %v553
        %v767 = vmul.f32 %v715, %v553
        %v768 = vmul.f32 %v718, %v553
        %v769 = vmul.f32 %v721, %v553
        %v770 = vmul.f32 %v724, %v553
        %v771 = vmul.f32 %v727, %v553
        %v772 = vmul.f32 %v730, %v553
        %v773 = vmul.f32 %v733, %v553
        %v774 = vmul.f32 %v736, %v553
        %v775 = vmul.f32 %v739, %v553
        %v776 = vmul.f32 %v742, %v553
        %v777 = vmul.f32 %v745, %v553
        %v778 = vadd.f32 %v746, 1e-05
        %v779 = vadd.f32 %v747, 1e-05
        %v780 = vadd.f32 %v748, 1e-05
        %v781 = vadd.f32 %v749, 1e-05
        %v782 = vadd.f32 %v750, 1e-05
        %v783 = vadd.f32 %v751, 1e-05
        %v784 = vadd.f32 %v752, 1e-05
        %v785 = vadd.f32 %v753, 1e-05
        %v786 = vadd.f32 %v754, 1e-05
        %v787 = vadd.f32 %v755, 1e-05
        %v788 = vadd.f32 %v756, 1e-05
        %v789 = vadd.f32 %v757, 1e-05
        %v790 = vadd.f32 %v758, 1e-05
        %v791 = vadd.f32 %v759, 1e-05
        %v792 = vadd.f32 %v760, 1e-05
        %v793 = vadd.f32 %v761, 1e-05
        %v794 = vadd.f32 %v762, 1e-05
        %v795 = vadd.f32 %v763, 1e-05
        %v796 = vadd.f32 %v764, 1e-05
        %v797 = vadd.f32 %v765, 1e-05
        %v798 = vadd.f32 %v766, 1e-05
        %v799 = vadd.f32 %v767, 1e-05
        %v800 = vadd.f32 %v768, 1e-05
        %v801 = vadd.f32 %v769, 1e-05
        %v802 = vadd.f32 %v770, 1e-05
        %v803 = vadd.f32 %v771, 1e-05
        %v804 = vadd.f32 %v772, 1e-05
        %v805 = vadd.f32 %v773, 1e-05
        %v806 = vadd.f32 %v774, 1e-05
        %v807 = vadd.f32 %v775, 1e-05
        %v808 = vadd.f32 %v776, 1e-05
        %v809 = vadd.f32 %v777, 1e-05
        %v810 = vrsqrt.pop %v778
        %v811 = vrsqrt.pop %v779
        %v812 = vrsqrt.pop %v780
        %v813 = vrsqrt.pop %v781
        %v814 = vrsqrt.pop %v782
        %v815 = vrsqrt.pop %v783
        %v816 = vrsqrt.pop %v784
        %v817 = vrsqrt.pop %v785
        %v818 = vrsqrt.pop %v786
        %v819 = vrsqrt.pop %v787
        %v820 = vrsqrt.pop %v788
        %v821 = vrsqrt.pop %v789
        %v822 = vrsqrt.pop %v790
        %v823 = vrsqrt.pop %v791
        %v824 = vrsqrt.pop %v792
        %v825 = vrsqrt.pop %v793
        %v826 = vrsqrt.pop %v794
        %v827 = vrsqrt.pop %v795
        %v828 = vrsqrt.pop %v796
        %v829 = vrsqrt.pop %v797
        %v830 = vrsqrt.pop %v798
        %v831 = vrsqrt.pop %v799
        %v832 = vrsqrt.pop %v800
        %v833 = vrsqrt.pop %v801
        %v834 = vrsqrt.pop %v802
        %v835 = vrsqrt.pop %v803
        %v836 = vrsqrt.pop %v804
        %v837 = vrsqrt.pop %v805
        %v838 = vrsqrt.pop %v806
        %v839 = vrsqrt.pop %v807
        %v840 = vrsqrt.pop %v808
        %v841 = vrsqrt.pop %v809
        %v842 = vmul.f32 %v586, %v810
        %v843 = vmul.f32 %v587, %v811
        %v844 = vmul.f32 %v588, %v812
        %v845 = vmul.f32 %v589, %v813
        %v846 = vmul.f32 %v590, %v814
        %v847 = vmul.f32 %v591, %v815
        %v848 = vmul.f32 %v592, %v816
        %v849 = vmul.f32 %v593, %v817
        %v850 = vmul.f32 %v594, %v818
        %v851 = vmul.f32 %v595, %v819
        %v852 = vmul.f32 %v596, %v820
        %v853 = vmul.f32 %v597, %v821
        %v854 = vmul.f32 %v598, %v822
        %v855 = vmul.f32 %v599, %v823
        %v856 = vmul.f32 %v600, %v824
        %v857 = vmul.f32 %v601, %v825
        %v858 = vmul.f32 %v602, %v826
        %v859 = vmul.f32 %v603, %v827
        %v860 = vmul.f32 %v604, %v828
        %v861 = vmul.f32 %v605, %v829
        %v862 = vmul.f32 %v606, %v830
        %v863 = vmul.f32 %v607, %v831
        %v864 = vmul.f32 %v608, %v832
        %v865 = vmul.f32 %v609, %v833
        %v866 = vmul.f32 %v610, %v834
        %v867 = vmul.f32 %v611, %v835
        %v868 = vmul.f32 %v612, %v836
        %v869 = vmul.f32 %v613, %v837
        %v870 = vmul.f32 %v614, %v838
        %v871 = vmul.f32 %v615, %v839
        %v872 = vmul.f32 %v616, %v840
        %v873 = vmul.f32 %v617, %v841
        %v874 = vld [vmem:[%s1] sm:$0x1]
        %v876 = vlaneseq
        %v877 = vshrl.u32 %v876, 7
        %v878 = vsub.s32 0, %v877
        %v879 = vrot.slane %v874, %v878
        %v881 = vmul.f32 %v842, %v879
        %v882 = vmul.f32 %v843, %v879
        %v883 = vmul.f32 %v844, %v879
        %v884 = vmul.f32 %v845, %v879
        %v885 = vmul.f32 %v846, %v879
        %v886 = vmul.f32 %v847, %v879
        %v887 = vmul.f32 %v848, %v879
        %v888 = vmul.f32 %v849, %v879
        %v889 = vmul.f32 %v850, %v879
        %v890 = vmul.f32 %v851, %v879
        %v891 = vmul.f32 %v852, %v879
        %v892 = vmul.f32 %v853, %v879
        %v893 = vmul.f32 %v854, %v879
        %v894 = vmul.f32 %v855, %v879
        %v895 = vmul.f32 %v856, %v879
        %v896 = vmul.f32 %v857, %v879
        %v897 = vmul.f32 %v858, %v879
        %v898 = vmul.f32 %v859, %v879
        %v899 = vmul.f32 %v860, %v879
        %v900 = vmul.f32 %v861, %v879
        %v901 = vmul.f32 %v862, %v879
        %v902 = vmul.f32 %v863, %v879
        %v903 = vmul.f32 %v864, %v879
        %v904 = vmul.f32 %v865, %v879
        %v905 = vmul.f32 %v866, %v879
        %v906 = vmul.f32 %v867, %v879
        %v907 = vmul.f32 %v868, %v879
        %v908 = vmul.f32 %v869, %v879
        %v909 = vmul.f32 %v870, %v879
        %v910 = vmul.f32 %v871, %v879
        %v911 = vmul.f32 %v872, %v879
        %v912 = vmul.f32 %v873, %v879
        %v913 = vld [vmem:[%s2] sm:$0x1]
        %v915 = vlaneseq
        %v916 = vshrl.u32 %v915, 7
        %v917 = vsub.s32 0, %v916
        %v918 = vrot.slane %v913, %v917
        %v920 = vadd.f32 %v881, %v918
        %v921 = vadd.f32 %v882, %v918
        %v922 = vadd.f32 %v883, %v918
        %v923 = vadd.f32 %v884, %v918
        %v924 = vadd.f32 %v885, %v918
        %v925 = vadd.f32 %v886, %v918
        %v926 = vadd.f32 %v887, %v918
        %v927 = vadd.f32 %v888, %v918
        %v928 = vadd.f32 %v889, %v918
        %v929 = vadd.f32 %v890, %v918
        %v930 = vadd.f32 %v891, %v918
        %v931 = vadd.f32 %v892, %v918
        %v932 = vadd.f32 %v893, %v918
        %v933 = vadd.f32 %v894, %v918
        %v934 = vadd.f32 %v895, %v918
        %v935 = vadd.f32 %v896, %v918
        %v936 = vadd.f32 %v897, %v918
        %v937 = vadd.f32 %v898, %v918
        %v938 = vadd.f32 %v899, %v918
        %v939 = vadd.f32 %v900, %v918
        %v940 = vadd.f32 %v901, %v918
        %v941 = vadd.f32 %v902, %v918
        %v942 = vadd.f32 %v903, %v918
        %v943 = vadd.f32 %v904, %v918
        %v944 = vadd.f32 %v905, %v918
        %v945 = vadd.f32 %v906, %v918
        %v946 = vadd.f32 %v907, %v918
        %v947 = vadd.f32 %v908, %v918
        %v948 = vadd.f32 %v909, %v918
        %v949 = vadd.f32 %v910, %v918
        %v950 = vadd.f32 %v911, %v918
        %v951 = vadd.f32 %v912, %v918
        %v952 = vld [vmem:[%s3] sm:$0xff]
        %v953 = vld [vmem:[%s3 + $0x8] sm:$0xff]
        %v954 = vld [vmem:[%s3 + $0x10] sm:$0xff]
        %v955 = vld [vmem:[%s3 + $0x18] sm:$0xff]
        %v956 = vld [vmem:[%s3 + $0x20] sm:$0xff]
        %v957 = vld [vmem:[%s3 + $0x28] sm:$0xff]
        %v958 = vld [vmem:[%s3 + $0x30] sm:$0xff]
        %v959 = vld [vmem:[%s3 + $0x38] sm:$0xff]
        %v960 = vld [vmem:[%s3 + $0x40] sm:$0xff]
        %v961 = vld [vmem:[%s3 + $0x48] sm:$0xff]
        %v962 = vld [vmem:[%s3 + $0x50] sm:$0xff]
        %v963 = vld [vmem:[%s3 + $0x58] sm:$0xff]
        %v964 = vld [vmem:[%s3 + $0x60] sm:$0xff]
        %v965 = vld [vmem:[%s3 + $0x68] sm:$0xff]
        %v966 = vld [vmem:[%s3 + $0x70] sm:$0xff]
        %v967 = vld [vmem:[%s3 + $0x78] sm:$0xff]
        %v968 = vld [vmem:[%s4] sm:$0xff]
        %v969 = vld [vmem:[%s4 + $0x8] sm:$0xff]
        %v970 = vld [vmem:[%s4 + $0x10] sm:$0xff]
        %v971 = vld [vmem:[%s4 + $0x18] sm:$0xff]
        %v972 = vld [vmem:[%s4 + $0x20] sm:$0xff]
        %v973 = vld [vmem:[%s4 + $0x28] sm:$0xff]
        %v974 = vld [vmem:[%s4 + $0x30] sm:$0xff]
        %v975 = vld [vmem:[%s4 + $0x38] sm:$0xff]
        %v976 = vld [vmem:[%s4 + $0x40] sm:$0xff]
        %v977 = vld [vmem:[%s4 + $0x48] sm:$0xff]
        %v978 = vld [vmem:[%s4 + $0x50] sm:$0xff]
        %v979 = vld [vmem:[%s4 + $0x58] sm:$0xff]
        %v980 = vld [vmem:[%s4 + $0x60] sm:$0xff]
        %v981 = vld [vmem:[%s4 + $0x68] sm:$0xff]
        %v982 = vld [vmem:[%s4 + $0x70] sm:$0xff]
        %v983 = vld [vmem:[%s4 + $0x78] sm:$0xff]
        %985 = vset.pattern.permute.xlu0 0
        %986 = vperm.xlu0 %985, %v968
        %v987 = vpop.permute.xlu0 %986
        %990 = vset.pattern.permute.xlu0 0
        %991 = vperm.xlu0 %990, %v969
        %v992 = vpop.permute.xlu0 %991
        %995 = vset.pattern.permute.xlu0 0
        %996 = vperm.xlu0 %995, %v970
        %v997 = vpop.permute.xlu0 %996
        %1000 = vset.pattern.permute.xlu0 0
        %1001 = vperm.xlu0 %1000, %v971
        %v1002 = vpop.permute.xlu0 %1001
        %1005 = vset.pattern.permute.xlu0 0
        %1006 = vperm.xlu0 %1005, %v972
        %v1007 = vpop.permute.xlu0 %1006
        %1010 = vset.pattern.permute.xlu0 0
        %1011 = vperm.xlu0 %1010, %v973
        %v1012 = vpop.permute.xlu0 %1011
        %1015 = vset.pattern.permute.xlu0 0
        %1016 = vperm.xlu0 %1015, %v974
        %v1017 = vpop.permute.xlu0 %1016
        %1020 = vset.pattern.permute.xlu0 0
        %1021 = vperm.xlu0 %1020, %v975
        %v1022 = vpop.permute.xlu0 %1021
        %1025 = vset.pattern.permute.xlu0 0
        %1026 = vperm.xlu0 %1025, %v976
        %v1027 = vpop.permute.xlu0 %1026
        %1030 = vset.pattern.permute.xlu0 0
        %1031 = vperm.xlu0 %1030, %v977
        %v1032 = vpop.permute.xlu0 %1031
        %1035 = vset.pattern.permute.xlu0 0
        %1036 = vperm.xlu0 %1035, %v978
        %v1037 = vpop.permute.xlu0 %1036
        %1040 = vset.pattern.permute.xlu0 0
        %1041 = vperm.xlu0 %1040, %v979
        %v1042 = vpop.permute.xlu0 %1041
        %1045 = vset.pattern.permute.xlu0 0
        %1046 = vperm.xlu0 %1045, %v980
        %v1047 = vpop.permute.xlu0 %1046
        %1050 = vset.pattern.permute.xlu0 0
        %1051 = vperm.xlu0 %1050, %v981
        %v1052 = vpop.permute.xlu0 %1051
        %1055 = vset.pattern.permute.xlu0 0
        %1056 = vperm.xlu0 %1055, %v982
        %v1057 = vpop.permute.xlu0 %1056
        %1060 = vset.pattern.permute.xlu0 0
        %1061 = vperm.xlu0 %1060, %v983
        %v1062 = vpop.permute.xlu0 %1061
        %v1065 = vsel %vm456, %v952, 0
        %v1068 = vsel %vm456, %v953, 0
        %v1071 = vsel %vm456, %v954, 0
        %v1074 = vsel %vm456, %v955, 0
        %v1077 = vsel %vm456, %v956, 0
        %v1080 = vsel %vm456, %v957, 0
        %v1083 = vsel %vm456, %v958, 0
        %v1086 = vsel %vm456, %v959, 0
        %v1089 = vsel %vm456, %v960, 0
        %v1092 = vsel %vm456, %v961, 0
        %v1095 = vsel %vm456, %v962, 0
        %v1098 = vsel %vm456, %v963, 0
        %v1101 = vsel %vm456, %v964, 0
        %v1104 = vsel %vm456, %v965, 0
        %v1107 = vsel %vm456, %v966, 0
        %v1110 = vsel %vm456, %v967, 0
        %v1113 = vsel %vm456, %v920, 0
        %v1116 = vsel %vm456, %v921, 0
        %v1119 = vsel %vm456, %v922, 0
        %v1122 = vsel %vm456, %v923, 0
        %v1125 = vsel %vm456, %v924, 0
        %v1128 = vsel %vm456, %v925, 0
        %v1131 = vsel %vm456, %v926, 0
        %v1134 = vsel %vm456, %v927, 0
        %v1137 = vsel %vm456, %v928, 0
        %v1140 = vsel %vm456, %v929, 0
        %v1143 = vsel %vm456, %v930, 0
        %v1146 = vsel %vm456, %v931, 0
        %v1149 = vsel %vm456, %v932, 0
        %v1152 = vsel %vm456, %v933, 0
        %v1155 = vsel %vm456, %v934, 0
        %v1158 = vsel %vm456, %v935, 0
        %v1161 = vsel %vm456, %v936, 0
        %v1164 = vsel %vm456, %v937, 0
        %v1167 = vsel %vm456, %v938, 0
        %v1170 = vsel %vm456, %v939, 0
        %v1173 = vsel %vm456, %v940, 0
        %v1176 = vsel %vm456, %v941, 0
        %v1179 = vsel %vm456, %v942, 0
        %v1182 = vsel %vm456, %v943, 0
        %v1185 = vsel %vm456, %v944, 0
        %v1188 = vsel %vm456, %v945, 0
        %v1191 = vsel %vm456, %v946, 0
        %v1194 = vsel %vm456, %v947, 0
        %v1197 = vsel %vm456, %v948, 0
        %v1200 = vsel %vm456, %v949, 0
        %v1203 = vsel %vm456, %v950, 0
        %v1206 = vsel %vm456, %v951, 0
        %1208 = vmatprep.subr.mxu0 0.0
        %1209 = vmatpush1.xpose.msra.mxu0 %v1158
        %1210 = vmatprep.subr.mxu0 0.0
        %1211 = vmatpush1.xpose.msra.mxu0 %v1155
        %1212 = vmatprep.subr.mxu0 0.0
        %1213 = vmatpush1.xpose.msra.mxu0 %v1152
        %1214 = vmatprep.subr.mxu0 0.0
        %1215 = vmatpush1.xpose.msra.mxu0 %v1149
        %1216 = vmatprep.subr.mxu0 0.0
        %1217 = vmatpush1.xpose.msra.mxu0 %v1146
        %1218 = vmatprep.subr.mxu0 0.0
        %1219 = vmatpush1.xpose.msra.mxu0 %v1143
        %1220 = vmatprep.subr.mxu0 0.0
        %1221 = vmatpush1.xpose.msra.mxu0 %v1140
        %1222 = vmatprep.subr.mxu0 0.0
        %1223 = vmatpush1.xpose.msra.mxu0 %v1137
        %1224 = vmatprep.subr.mxu0 0.0
        %1225 = vmatpush1.xpose.msra.mxu0 %v1134
        %1226 = vmatprep.subr.mxu0 0.0
        %1227 = vmatpush1.xpose.msra.mxu0 %v1131
        %1228 = vmatprep.subr.mxu0 0.0
        %1229 = vmatpush1.xpose.msra.mxu0 %v1128
        %1230 = vmatprep.subr.mxu0 0.0
        %1231 = vmatpush1.xpose.msra.mxu0 %v1125
        %1232 = vmatprep.subr.mxu0 0.0
        %1233 = vmatpush1.xpose.msra.mxu0 %v1122
        %1234 = vmatprep.subr.mxu0 0.0
        %1235 = vmatpush1.xpose.msra.mxu0 %v1119
        %1236 = vmatprep.subr.mxu0 0.0
        %1237 = vmatpush1.xpose.msra.mxu0 %v1116
        %1238 = vmatprep.subr.mxu0 0.0
        %1239 = vmatpush1.xpose.msra.mxu0 %v1113
        %1240 = vmatprep.subr.mxu0 0.0
        %1241 = vmatpush2.xpose.msra.mxu0 %v1206
        %1242 = vmatprep.subr.mxu0 0.0
        %1243 = vmatpush2.xpose.msra.mxu0 %v1203
        %1244 = vmatprep.subr.mxu0 0.0
        %1245 = vmatpush2.xpose.msra.mxu0 %v1200
        %1246 = vmatprep.subr.mxu0 0.0
        %1247 = vmatpush2.xpose.msra.mxu0 %v1197
        %1248 = vmatprep.subr.mxu0 0.0
        %1249 = vmatpush2.xpose.msra.mxu0 %v1194
        %1250 = vmatprep.subr.mxu0 0.0
        %1251 = vmatpush2.xpose.msra.mxu0 %v1191
        %1252 = vmatprep.subr.mxu0 0.0
        %1253 = vmatpush2.xpose.msra.mxu0 %v1188
        %1254 = vmatprep.subr.mxu0 0.0
        %1255 = vmatpush2.xpose.msra.mxu0 %v1185
        %1256 = vmatprep.subr.mxu0 0.0
        %1257 = vmatpush2.xpose.msra.mxu0 %v1182
        %1258 = vmatprep.subr.mxu0 0.0
        %1259 = vmatpush2.xpose.msra.mxu0 %v1179
        %1260 = vmatprep.subr.mxu0 0.0
        %1261 = vmatpush2.xpose.msra.mxu0 %v1176
        %1262 = vmatprep.subr.mxu0 0.0
        %1263 = vmatpush2.xpose.msra.mxu0 %v1173
        %1264 = vmatprep.subr.mxu0 0.0
        %1265 = vmatpush2.xpose.msra.mxu0 %v1170
        %1266 = vmatprep.subr.mxu0 0.0
        %1267 = vmatpush2.xpose.msra.mxu0 %v1167
        %1268 = vmatprep.subr.mxu0 0.0
        %1269 = vmatpush2.xpose.msra.mxu0 %v1164
        %1270 = vmatprep.subr.mxu0 0.0
        %1271 = vmatpush2.xpose.msra.mxu0 %v1161
        %1272 = vmatprep.mubr.f32.mxu0 0.0
        %1273 = vmatmul.mubr.f32.gmra.mxu0 %v1065
        %v1274 = vpop.f32.mrf.mxu0
        %v1275 = vadd.f32 %v987, %v1274
        %v1276 = vpop.f32.mrf.mxu0
        %v1277 = vadd.f32 %v987, %v1276
        %1278 = vmatprep.mubr.f32.mxu0 0.0
        %1279 = vmatmul.mubr.f32.gmra.mxu0 %v1068
        %v1280 = vpop.f32.mrf.mxu0
        %v1281 = vadd.f32 %v992, %v1280
        %v1282 = vpop.f32.mrf.mxu0
        %v1283 = vadd.f32 %v992, %v1282
        %1284 = vmatprep.mubr.f32.mxu0 0.0
        %1285 = vmatmul.mubr.f32.gmra.mxu0 %v1071
        %v1286 = vpop.f32.mrf.mxu0
        %v1287 = vadd.f32 %v997, %v1286
        %v1288 = vpop.f32.mrf.mxu0
        %v1289 = vadd.f32 %v997, %v1288
        %1290 = vmatprep.mubr.f32.mxu0 0.0
        %1291 = vmatmul.mubr.f32.gmra.mxu0 %v1074
        %v1292 = vpop.f32.mrf.mxu0
        %v1293 = vadd.f32 %v1002, %v1292
        %v1294 = vpop.f32.mrf.mxu0
        %v1295 = vadd.f32 %v1002, %v1294
        %1296 = vmatprep.mubr.f32.mxu0 0.0
        %1297 = vmatmul.mubr.f32.gmra.mxu0 %v1077
        %v1298 = vpop.f32.mrf.mxu0
        %v1299 = vadd.f32 %v1007, %v1298
        %v1300 = vpop.f32.mrf.mxu0
        %v1301 = vadd.f32 %v1007, %v1300
        %1302 = vmatprep.mubr.f32.mxu0 0.0
        %1303 = vmatmul.mubr.f32.gmra.mxu0 %v1080
        %v1304 = vpop.f32.mrf.mxu0
        %v1305 = vadd.f32 %v1012, %v1304
        %v1306 = vpop.f32.mrf.mxu0
        %v1307 = vadd.f32 %v1012, %v1306
        %1308 = vmatprep.mubr.f32.mxu0 0.0
        %1309 = vmatmul.mubr.f32.gmra.mxu0 %v1083
        %v1310 = vpop.f32.mrf.mxu0
        %v1311 = vadd.f32 %v1017, %v1310
        %v1312 = vpop.f32.mrf.mxu0
        %v1313 = vadd.f32 %v1017, %v1312
        %1314 = vmatprep.mubr.f32.mxu0 0.0
        %1315 = vmatmul.mubr.f32.gmra.mxu0 %v1086
        %v1316 = vpop.f32.mrf.mxu0
        %v1317 = vadd.f32 %v1022, %v1316
        %v1318 = vpop.f32.mrf.mxu0
        %v1319 = vadd.f32 %v1022, %v1318
        %1320 = vmatprep.mubr.f32.mxu0 0.0
        %1321 = vmatmul.mubr.f32.gmra.mxu0 %v1089
        %v1322 = vpop.f32.mrf.mxu0
        %v1323 = vadd.f32 %v1027, %v1322
        %v1324 = vpop.f32.mrf.mxu0
        %v1325 = vadd.f32 %v1027, %v1324
        %1326 = vmatprep.mubr.f32.mxu0 0.0
        %1327 = vmatmul.mubr.f32.gmra.mxu0 %v1092
        %v1328 = vpop.f32.mrf.mxu0
        %v1329 = vadd.f32 %v1032, %v1328
        %v1330 = vpop.f32.mrf.mxu0
        %v1331 = vadd.f32 %v1032, %v1330
        %1332 = vmatprep.mubr.f32.mxu0 0.0
        %1333 = vmatmul.mubr.f32.gmra.mxu0 %v1095
        %v1334 = vpop.f32.mrf.mxu0
        %v1335 = vadd.f32 %v1037, %v1334
        %v1336 = vpop.f32.mrf.mxu0
        %v1337 = vadd.f32 %v1037, %v1336
        %1338 = vmatprep.mubr.f32.mxu0 0.0
        %1339 = vmatmul.mubr.f32.gmra.mxu0 %v1098
        %v1340 = vpop.f32.mrf.mxu0
        %v1341 = vadd.f32 %v1042, %v1340
        %v1342 = vpop.f32.mrf.mxu0
        %v1343 = vadd.f32 %v1042, %v1342
        %1344 = vmatprep.mubr.f32.mxu0 0.0
        %1345 = vmatmul.mubr.f32.gmra.mxu0 %v1101
        %v1346 = vpop.f32.mrf.mxu0
        %v1347 = vadd.f32 %v1047, %v1346
        %v1348 = vpop.f32.mrf.mxu0
        %v1349 = vadd.f32 %v1047, %v1348
        %1350 = vmatprep.mubr.f32.mxu0 0.0
        %1351 = vmatmul.mubr.f32.gmra.mxu0 %v1104
        %v1352 = vpop.f32.mrf.mxu0
        %v1353 = vadd.f32 %v1052, %v1352
        %v1354 = vpop.f32.mrf.mxu0
        %v1355 = vadd.f32 %v1052, %v1354
        %1356 = vmatprep.mubr.f32.mxu0 0.0
        %1357 = vmatmul.mubr.f32.gmra.mxu0 %v1107
        %v1358 = vpop.f32.mrf.mxu0
        %v1359 = vadd.f32 %v1057, %v1358
        %v1360 = vpop.f32.mrf.mxu0
        %v1361 = vadd.f32 %v1057, %v1360
        %1362 = vmatprep.mubr.f32.mxu0 0.0
        %1363 = vmatmul.mubr.f32.gmra.mxu0 %v1110
        %v1364 = vpop.f32.mrf.mxu0
        %v1365 = vadd.f32 %v1062, %v1364
        %v1366 = vpop.f32.mrf.mxu0
        %v1367 = vadd.f32 %v1062, %v1366
        %1368 = vdwg.mxu0
        %v1369 = vxor.u32 %v1275, 2147483648
        %v1370 = vxor.u32 %v1277, 2147483648
        %v1371 = vxor.u32 %v1281, 2147483648
        %v1372 = vxor.u32 %v1283, 2147483648
        %v1373 = vxor.u32 %v1287, 2147483648
        %v1374 = vxor.u32 %v1289, 2147483648
        %v1375 = vxor.u32 %v1293, 2147483648
        %v1376 = vxor.u32 %v1295, 2147483648
        %v1377 = vxor.u32 %v1299, 2147483648
        %v1378 = vxor.u32 %v1301, 2147483648
        %v1379 = vxor.u32 %v1305, 2147483648
        %v1380 = vxor.u32 %v1307, 2147483648
        %v1381 = vxor.u32 %v1311, 2147483648
        %v1382 = vxor.u32 %v1313, 2147483648
        %v1383 = vxor.u32 %v1317, 2147483648
        %v1384 = vxor.u32 %v1319, 2147483648
        %v1385 = vmul.f32 %v1369, 1.442695
        %v1386 = vpow.pop %v1385
        %v1387 = vmul.f32 %v1370, 1.442695
        %v1388 = vpow.pop %v1387
        %v1389 = vmul.f32 %v1371, 1.442695
        %v1390 = vpow.pop %v1389
        %v1391 = vmul.f32 %v1372, 1.442695
        %v1392 = vpow.pop %v1391
        %v1393 = vmul.f32 %v1373, 1.442695
        %v1394 = vpow.pop %v1393
        %v1395 = vmul.f32 %v1374, 1.442695
        %v1396 = vpow.pop %v1395
        %v1397 = vmul.f32 %v1375, 1.442695
        %v1398 = vpow.pop %v1397
        %v1399 = vmul.f32 %v1376, 1.442695
        %v1400 = vpow.pop %v1399
        %v1401 = vmul.f32 %v1377, 1.442695
        %v1402 = vpow.pop %v1401
        %v1403 = vmul.f32 %v1378, 1.442695
        %v1404 = vpow.pop %v1403
        %v1405 = vmul.f32 %v1379, 1.442695
        %v1406 = vpow.pop %v1405
        %v1407 = vmul.f32 %v1380, 1.442695
        %v1408 = vpow.pop %v1407
        %v1409 = vmul.f32 %v1381, 1.442695
        %v1410 = vpow.pop %v1409
        %v1411 = vmul.f32 %v1382, 1.442695
        %v1412 = vpow.pop %v1411
        %v1413 = vmul.f32 %v1383, 1.442695
        %v1414 = vpow.pop %v1413
        %v1415 = vmul.f32 %v1384, 1.442695
        %v1416 = vpow.pop %v1415
        %v1417 = vadd.f32 %v1386, 1.0
        %v1418 = vadd.f32 %v1388, 1.0
        %v1419 = vadd.f32 %v1390, 1.0
        %v1420 = vadd.f32 %v1392, 1.0
        %v1421 = vadd.f32 %v1394, 1.0
        %v1422 = vadd.f32 %v1396, 1.0
        %v1423 = vadd.f32 %v1398, 1.0
        %v1424 = vadd.f32 %v1400, 1.0
        %v1425 = vadd.f32 %v1402, 1.0
        %v1426 = vadd.f32 %v1404, 1.0
        %v1427 = vadd.f32 %v1406, 1.0
        %v1428 = vadd.f32 %v1408, 1.0
        %v1429 = vadd.f32 %v1410, 1.0
        %v1430 = vadd.f32 %v1412, 1.0
        %v1431 = vadd.f32 %v1414, 1.0
        %v1432 = vadd.f32 %v1416, 1.0
        %v1433 = vrcp.pop %v1417
        %v1434 = vmul.f32 1.0, %v1433
        %v1435 = vrcp.pop %v1418
        %v1436 = vmul.f32 1.0, %v1435
        %v1437 = vrcp.pop %v1419
        %v1438 = vmul.f32 1.0, %v1437
        %v1439 = vrcp.pop %v1420
        %v1440 = vmul.f32 1.0, %v1439
        %v1441 = vrcp.pop %v1421
        %v1442 = vmul.f32 1.0, %v1441
        %v1443 = vrcp.pop %v1422
        %v1444 = vmul.f32 1.0, %v1443
        %v1445 = vrcp.pop %v1423
        %v1446 = vmul.f32 1.0, %v1445
        %v1447 = vrcp.pop %v1424
        %v1448 = vmul.f32 1.0, %v1447
        %v1449 = vrcp.pop %v1425
        %v1450 = vmul.f32 1.0, %v1449
        %v1451 = vrcp.pop %v1426
        %v1452 = vmul.f32 1.0, %v1451
        %v1453 = vrcp.pop %v1427
        %v1454 = vmul.f32 1.0, %v1453
        %v1455 = vrcp.pop %v1428
        %v1456 = vmul.f32 1.0, %v1455
        %v1457 = vrcp.pop %v1429
        %v1458 = vmul.f32 1.0, %v1457
        %v1459 = vrcp.pop %v1430
        %v1460 = vmul.f32 1.0, %v1459
        %v1461 = vrcp.pop %v1431
        %v1462 = vmul.f32 1.0, %v1461
        %v1463 = vrcp.pop %v1432
        %v1464 = vmul.f32 1.0, %v1463
        %v1465 = vmul.f32 %v1434, %v1323
        %v1466 = vmul.f32 %v1436, %v1325
        %v1467 = vmul.f32 %v1438, %v1329
        %v1468 = vmul.f32 %v1440, %v1331
        %v1469 = vmul.f32 %v1442, %v1335
        %v1470 = vmul.f32 %v1444, %v1337
        %v1471 = vmul.f32 %v1446, %v1341
        %v1472 = vmul.f32 %v1448, %v1343
        %v1473 = vmul.f32 %v1450, %v1347
        %v1474 = vmul.f32 %v1452, %v1349
        %v1475 = vmul.f32 %v1454, %v1353
        %v1476 = vmul.f32 %v1456, %v1355
        %v1477 = vmul.f32 %v1458, %v1359
        %v1478 = vmul.f32 %v1460, %v1361
        %v1479 = vmul.f32 %v1462, %v1365
        %v1480 = vmul.f32 %v1464, %v1367
        %1481 = vst [vmem:[%s392] sm:$0xff] %v1465
        %1482 = vst [vmem:[%s392 + $0x8] sm:$0xff] %v1466
        %1483 = vst [vmem:[%s392 + $0x10] sm:$0xff] %v1467
        %1484 = vst [vmem:[%s392 + $0x18] sm:$0xff] %v1468
        %1485 = vst [vmem:[%s402] sm:$0xff] %v1469
        %1486 = vst [vmem:[%s402 + $0x8] sm:$0xff] %v1470
        %1487 = vst [vmem:[%s402 + $0x10] sm:$0xff] %v1471
        %1488 = vst [vmem:[%s402 + $0x18] sm:$0xff] %v1472
        %1489 = vst [vmem:[%s412] sm:$0xff] %v1473
        %1490 = vst [vmem:[%s412 + $0x8] sm:$0xff] %v1474
        %1491 = vst [vmem:[%s412 + $0x10] sm:$0xff] %v1475
        %1492 = vst [vmem:[%s412 + $0x18] sm:$0xff] %v1476
        %1493 = vst [vmem:[%s422] sm:$0xff] %v1477
        %1494 = vst [vmem:[%s422 + $0x8] sm:$0xff] %v1478
        %1495 = vst [vmem:[%s422 + $0x10] sm:$0xff] %v1479
        %1496 = vst [vmem:[%s422 + $0x18] sm:$0xff] %v1480
        %s1497 = smul.u32 2, %s28
        %p1498 = scmp.lt.s32.totalorder %s27, 1
        %s1499 = scalar_select %p1498, %s27, 1
        %p1500 = scmp.lt.s32.totalorder %s1497, 1
        %s1501 = scalar_select %p1500, %s1497, 1
        %s1502 = smul.addr %s1499, 4
        %s1503 = sadd.s32 %s1501, %s1502
        %s1504 = smul.addr %s1503, 8
        %s1505 = scalar_lea.vmem %s5, %s1504
        %s1506 = smul.u32 2, %s28
        %p1507 = scmp.lt.s32.totalorder %s27, 1
        %s1508 = scalar_select %p1507, %s27, 1
        %p1509 = scmp.lt.s32.totalorder %s1506, 1
        %s1510 = scalar_select %p1509, %s1506, 1
        %s1511 = smul.addr %s1508, 4
        %s1512 = sadd.s32 %s1510, %s1511
        %s1513 = smul.addr %s1512, 8
        %s1514 = scalar_lea.vmem %s6, %s1513
        %s1515 = smul.u32 2, %s28
        %p1516 = scmp.lt.s32.totalorder %s27, 1
        %s1517 = scalar_select %p1516, %s27, 1
        %p1518 = scmp.lt.s32.totalorder %s1515, 1
        %s1519 = scalar_select %p1518, %s1515, 1
        %s1520 = smul.addr %s1517, 4
        %s1521 = sadd.s32 %s1519, %s1520
        %s1522 = smul.addr %s1521, 8
        %s1523 = scalar_lea.vmem %s7, %s1522
        %s1524 = smul.u32 2, %s28
        %p1525 = scmp.lt.s32.totalorder %s27, 1
        %s1526 = scalar_select %p1525, %s27, 1
        %p1527 = scmp.lt.s32.totalorder %s1524, 1
        %s1528 = scalar_select %p1527, %s1524, 1
        %s1529 = smul.addr %s1526, 4
        %s1530 = sadd.s32 %s1528, %s1529
        %s1531 = smul.addr %s1530, 8
        %s1532 = scalar_lea.vmem %s8, %s1531
        // Predicated region
        $region45: #{quadratic_edge_update_forward.3} parent=39 // pred_check
          %p1533 = pneg %p167
        $region46: #{quadratic_edge_update_forward.3} parent=39 // pred_check_branch
          %1535 = sbr.rel (%p1533) target = $region48
        $region47: #{quadratic_edge_update_forward.3} parent=39 // pred_region
          %s1536 = smul.u32 2, %s28
        $region48: #{quadratic_edge_update_forward.3} parent=39 // pred_fallthru
          _
        // Predicated region
        $region49: #{quadratic_edge_update_forward.3} parent=39 // pred_check
          %p1537 = pneg %p195
        $region50: #{quadratic_edge_update_forward.3} parent=39 // pred_check_branch
          %1539 = sbr.rel (%p1537) target = $region52
        $region51: #{quadratic_edge_update_forward.3} parent=39 // pred_region
          %s1540 = smul.u32 2, %s28
        $region52: #{quadratic_edge_update_forward.3} parent=39 // pred_fallthru
          _
        // Predicated region
        $region53: #{quadratic_edge_update_forward.3} parent=39 // pred_check
          %p1541 = pneg %p223
        $region54: #{quadratic_edge_update_forward.3} parent=39 // pred_check_branch
          %1543 = sbr.rel (%p1541) target = $region56
        $region55: #{quadratic_edge_update_forward.3} parent=39 // pred_region
          %s1544 = smul.u32 2, %s28
        $region56: #{quadratic_edge_update_forward.3} parent=39 // pred_fallthru
          _
        // Predicated region
        $region57: #{quadratic_edge_update_forward.3} parent=39 // pred_check
          %p1545 = pneg %p251
        $region58: #{quadratic_edge_update_forward.3} parent=39 // pred_check_branch
          %1547 = sbr.rel (%p1545) target = $region60
        $region59: #{quadratic_edge_update_forward.3} parent=39 // pred_region
          %s1548 = smul.u32 2, %s28
        $region60: #{quadratic_edge_update_forward.3} parent=39 // pred_fallthru
          _
      $region40: #{quadratic_edge_update_forward.3} parent=5 // pred_fallthru
        _
      %p1549 = scmp.le.s32.totalorder 2, %s18
      // Predicated region
      $region61: #{quadratic_edge_update_forward.3} parent=5 // pred_check
        %p1550 = pneg %p1549
      $region62: #{quadratic_edge_update_forward.3} parent=5 // pred_check_branch
        %1552 = sbr.rel (%p1550) target = $region64
      $region63: #{quadratic_edge_update_forward.3} parent=5 // pred_region
        %s1553 = ssub.s32 %s18, 2
        // Predicated region
        $region65: #{quadratic_edge_update_forward.3} parent=63 // pred_check
          %p1554 = pneg %p173
        $region66: #{quadratic_edge_update_forward.3} parent=63 // pred_check_branch
          %1556 = sbr.rel (%p1554) target = $region68
        $region67: #{quadratic_edge_update_forward.3} parent=63 // pred_region
          %s1557 = smul.u32 2, %s30
          %p1558 = scmp.lt.s32.totalorder %s29, 1
          %s1559 = scalar_select %p1558, %s29, 1
          %p1560 = scmp.lt.s32.totalorder %s1557, 1
          %s1561 = scalar_select %p1560, %s1557, 1
          %s1562 = smul.addr %s1559, 4
          %s1563 = sadd.s32 %s1561, %s1562
          %s1564 = smul.addr %s1563, 8
          %s1565 = scalar_lea.vmem %s5, %s1564
        $region68: #{quadratic_edge_update_forward.3} parent=63 // pred_fallthru
          _
        // Predicated region
        $region69: #{quadratic_edge_update_forward.3} parent=63 // pred_check
          %p1566 = pneg %p201
        $region70: #{quadratic_edge_update_forward.3} parent=63 // pred_check_branch
          %1568 = sbr.rel (%p1566) target = $region72
        $region71: #{quadratic_edge_update_forward.3} parent=63 // pred_region
          %s1569 = smul.u32 2, %s30
          %p1570 = scmp.lt.s32.totalorder %s29, 1
          %s1571 = scalar_select %p1570, %s29, 1
          %p1572 = scmp.lt.s32.totalorder %s1569, 1
          %s1573 = scalar_select %p1572, %s1569, 1
          %s1574 = smul.addr %s1571, 4
          %s1575 = sadd.s32 %s1573, %s1574
          %s1576 = smul.addr %s1575, 8
          %s1577 = scalar_lea.vmem %s6, %s1576
        $region72: #{quadratic_edge_update_forward.3} parent=63 // pred_fallthru
          _
        // Predicated region
        $region73: #{quadratic_edge_update_forward.3} parent=63 // pred_check
          %p1578 = pneg %p229
        $region74: #{quadratic_edge_update_forward.3} parent=63 // pred_check_branch
          %1580 = sbr.rel (%p1578) target = $region76
        $region75: #{quadratic_edge_update_forward.3} parent=63 // pred_region
          %s1581 = smul.u32 2, %s30
          %p1582 = scmp.lt.s32.totalorder %s29, 1
          %s1583 = scalar_select %p1582, %s29, 1
          %p1584 = scmp.lt.s32.totalorder %s1581, 1
          %s1585 = scalar_select %p1584, %s1581, 1
          %s1586 = smul.addr %s1583, 4
          %s1587 = sadd.s32 %s1585, %s1586
          %s1588 = smul.addr %s1587, 8
          %s1589 = scalar_lea.vmem %s7, %s1588
        $region76: #{quadratic_edge_update_forward.3} parent=63 // pred_fallthru
          _
        // Predicated region
        $region77: #{quadratic_edge_update_forward.3} parent=63 // pred_check
          %p1590 = pneg %p257
        $region78: #{quadratic_edge_update_forward.3} parent=63 // pred_check_branch
          %1592 = sbr.rel (%p1590) target = $region80
        $region79: #{quadratic_edge_update_forward.3} parent=63 // pred_region
          %s1593 = smul.u32 2, %s30
          %p1594 = scmp.lt.s32.totalorder %s29, 1
          %s1595 = scalar_select %p1594, %s29, 1
          %p1596 = scmp.lt.s32.totalorder %s1593, 1
          %s1597 = scalar_select %p1596, %s1593, 1
          %s1598 = smul.addr %s1595, 4
          %s1599 = sadd.s32 %s1597, %s1598
          %s1600 = smul.addr %s1599, 8
          %s1601 = scalar_lea.vmem %s8, %s1600
        $region80: #{quadratic_edge_update_forward.3} parent=63 // pred_fallthru
          _
      $region64: #{quadratic_edge_update_forward.3} parent=5 // pred_fallthru
        _
    $region6: #{quadratic_edge_update_forward.3} parent=1 // loop_footer
      %s22 = sadd.s32 1, %s18
    $region7: #{quadratic_edge_update_forward.3} parent=1 // loop_footer_branch
      %17 = sbr.rel target = $region3
    $region8: #{quadratic_edge_update_forward.3} parent=1 // loop_exit
      _
    %1602 = vsyncpa [#allocation3], 1
    %s1603 = scalar_lea.sflag [#allocation3], 1
    %1604 = vsyncpa %s1603, 1

// kernel: quadratic_edge_update_forward.5
$region0: #{quadratic_edge_update_forward.5}
  #allocation0 [shape = 'u32[]', space=smem, size = 0x4, offset = 0x4, fixed_abs, tag = 'smem constant byte address 0x4 - core index']
  #allocation1 [shape = 'u32[144,128]{1,0:T(1,128)}', space=vmem, size = 0x12000, scoped, tag = 'internal scratch']
  %s0 = inlined_call_operand.vmem [shape: f32[2,256,16], index: 0, kind: input, shape index: {}]
  %s1 = inlined_call_operand.vmem [shape: f32[2,256,32], index: 1, kind: input, shape index: {}]
  %s2 = inlined_call_operand.vmem [shape: f32[1,32], index: 2, kind: input, shape index: {}]
  %s3 = inlined_call_operand.vmem [shape: f32[1,32], index: 3, kind: input, shape index: {}]
  %s4 = inlined_call_operand.vmem [shape: f32[32,32], index: 4, kind: input, shape index: {}]
  %s5 = inlined_call_operand.vmem [shape: f32[1,32], index: 5, kind: input, shape index: {}]
  %s6 = inlined_call_operand.vmem [shape: f32[1,16], index: 6, kind: input, shape index: {}]
  %s7 = inlined_call_operand.vmem [shape: f32[1,16], index: 7, kind: input, shape index: {}]
  %s8 = inlined_call_operand.vmem [shape: f32[16,32], index: 8, kind: input, shape index: {}]
  %s9 = inlined_call_operand.vmem [shape: f32[1,32], index: 9, kind: input, shape index: {}]
  %s10 = inlined_call_operand.hbm [shape: f32[2,256,32], index: 10, kind: output, shape index: {}]
  %s11 = sld [smem:[#allocation0]]
  $region73: #{quadratic_edge_update_forward.5} parent=0
    _
  %s13 = ssub.s32 1, %s11
  %s14 = scalar_select 0, %s13, %s11
  $region1: #{quadratic_edge_update_forward.5} parent=0
    #allocation2 [shape = 'u8[262144]{0}', space=vmem, size = 0x40000, scoped, tag = 'output window, operand 0']
    #allocation3 [shape = 's32[2]{0}', space=sflag, size = 0x8, scoped, tag = 'scoped memory for quadratic_edge_update_forward.5']
    %15 = vsyncpa [#allocation3], 0
    %s16 = scalar_lea.sflag [#allocation3], 1
    %17 = vsyncpa %s16, 0
    loop: start=0, step=1, limit=4
    $region2: #{quadratic_edge_update_forward.5} parent=1 // loop_pre_header
      _
    $region3: #{quadratic_edge_update_forward.5} parent=1 // loop_header
      %s19 = sphi 0, %s23
      %p20 = scmp.ge.s32.totalorder %s19, 4
      %s26 = sphi 0, %s38
      %s27 = sphi 0, %s34
      %s28 = sphi 0, %s26
      %s29 = sphi 0, %s27
      %s30 = sphi 0, %s28
      %s31 = sphi 0, %s29
      %s43 = sphi 0, %s45
      %s46 = sphi 0, %s43
      %s47 = sphi 0, %s46
      %s63 = sphi 0, %s47
      %s71 = sphi 0, %s73
      %s74 = sphi 0, %s71
      %s75 = sphi 0, %s74
      %s91 = sphi 0, %s75
      %s95 = sphi 0, %s95
      %s97 = sphi 0, %s95
      %s98 = sphi 0, %s97
      %s112 = sphi 0, %s98
      %s116 = sphi 0, %s116
      %s118 = sphi 0, %s116
      %s119 = sphi 0, %s118
      %s133 = sphi 0, %s119
      %s137 = sphi 0, %s137
      %s139 = sphi 0, %s137
      %s140 = sphi 0, %s139
      %s154 = sphi 0, %s140
      %s158 = sphi 0, %s158
      %s160 = sphi 0, %s158
      %s161 = sphi 0, %s160
      %s175 = sphi 0, %s161
      %s179 = sphi 0, %s179
      %s181 = sphi 0, %s179
      %s182 = sphi 0, %s181
      %s196 = sphi 0, %s182
      %s200 = sphi 0, %s200
      %s202 = sphi 0, %s200
      %s203 = sphi 0, %s202
      %s217 = sphi 0, %s203
      %s221 = sphi 0, %s221
      %s223 = sphi 0, %s221
      %s224 = sphi 0, %s223
      %s238 = sphi 0, %s224
      %s242 = sphi 0, %s242
      %s244 = sphi 0, %s242
      %s245 = sphi 0, %s244
      %s259 = sphi 0, %s245
      %s267 = sphi 0, %s269
      %s270 = sphi 0, %s267
      %s271 = sphi 0, %s270
      %s287 = sphi 0, %s271
    $region4: #{quadratic_edge_update_forward.5} parent=1 // loop_header_branch
      %22 = sbr.rel (%p20) target = $region8
    $region5: #{quadratic_edge_update_forward.5} parent=1 // loop_body
      %s24 = ssub.s32 %s19, 1
      %s25 = ssub.s32 %s19, 2
      %s32 = sadd.s32 1, %s27
      %p33 = scmp.ge.s32.totalorder %s32, 1
      %s34 = scalar_select %p33, 0, %s32
      %s35 = sadd.s32 1, %s26
      %s36 = scalar_select %p33, %s35, %s26
      %p37 = scmp.ge.s32.totalorder %s36, 2
      %s38 = scalar_select %p37, 0, %s36
      %s39 = ssub.s32 %s26, %s38
      %s40 = ssub.s32 %s27, %s34
      %s41 = sor.u32 %s39, %s40
      %p42 = scmp.eq.s32.totalorder %s41, 0
      %s44 = sadd.s32 %s43, 1
      %s45 = scalar_select %p42, %s43, %s44
      %p48 = pneg %p42
      %p49 = scmp.eq.s32.totalorder %s19, 1
      %p50 = por %p48, %p49
      %p51 = scmp.ne.s32.totalorder %s43, %s46
      %p52 = scmp.eq.s32.totalorder %s19, 0
      %p53 = por %p51, %p52
      %p54 = scmp.ne.s32.totalorder %s43, %s46
      %p55 = scmp.eq.s32.totalorder %s24, 1
      %p56 = por %p54, %p55
      %p57 = scmp.ne.s32.totalorder %s46, %s47
      %p58 = scmp.eq.s32.totalorder %s24, 0
      %p59 = por %p57, %p58
      %p60 = scmp.ne.s32.totalorder %s46, %s47
      %p61 = scmp.eq.s32.totalorder %s25, 1
      %p62 = por %p60, %p61
      %p64 = scmp.ne.s32.totalorder %s47, %s63
      %p65 = scmp.eq.s32.totalorder %s25, 0
      %p66 = por %p64, %p65
      %s67 = ssub.s32 %s26, %s38
      %s68 = ssub.s32 %s27, %s34
      %s69 = sor.u32 %s67, %s68
      %p70 = scmp.eq.s32.totalorder %s69, 0
      %s72 = sadd.s32 %s71, 1
      %s73 = scalar_select %p70, %s71, %s72
      %p76 = pneg %p70
      %p77 = scmp.eq.s32.totalorder %s19, 1
      %p78 = por %p76, %p77
      %p79 = scmp.ne.s32.totalorder %s71, %s74
      %p80 = scmp.eq.s32.totalorder %s19, 0
      %p81 = por %p79, %p80
      %p82 = scmp.ne.s32.totalorder %s71, %s74
      %p83 = scmp.eq.s32.totalorder %s24, 1
      %p84 = por %p82, %p83
      %p85 = scmp.ne.s32.totalorder %s74, %s75
      %p86 = scmp.eq.s32.totalorder %s24, 0
      %p87 = por %p85, %p86
      %p88 = scmp.ne.s32.totalorder %s74, %s75
      %p89 = scmp.eq.s32.totalorder %s25, 1
      %p90 = por %p88, %p89
      %p92 = scmp.ne.s32.totalorder %s75, %s91
      %p93 = scmp.eq.s32.totalorder %s25, 0
      %p94 = por %p92, %p93
      %s96 = sadd.s32 %s95, 1
      %p99 = scmp.eq.s32.totalorder %s19, 1
      %p100 = scmp.ne.s32.totalorder %s95, %s97
      %p101 = scmp.eq.s32.totalorder %s19, 0
      %p102 = por %p100, %p101
      %p103 = scmp.ne.s32.totalorder %s95, %s97
      %p104 = scmp.eq.s32.totalorder %s24, 1
      %p105 = por %p103, %p104
      %p106 = scmp.ne.s32.totalorder %s97, %s98
      %p107 = scmp.eq.s32.totalorder %s24, 0
      %p108 = por %p106, %p107
      %p109 = scmp.ne.s32.totalorder %s97, %s98
      %p110 = scmp.eq.s32.totalorder %s25, 1
      %p111 = por %p109, %p110
      %p113 = scmp.ne.s32.totalorder %s98, %s112
      %p114 = scmp.eq.s32.totalorder %s25, 0
      %p115 = por %p113, %p114
      %s117 = sadd.s32 %s116, 1
      %p120 = scmp.eq.s32.totalorder %s19, 1
      %p121 = scmp.ne.s32.totalorder %s116, %s118
      %p122 = scmp.eq.s32.totalorder %s19, 0
      %p123 = por %p121, %p122
      %p124 = scmp.ne.s32.totalorder %s116, %s118
      %p125 = scmp.eq.s32.totalorder %s24, 1
      %p126 = por %p124, %p125
      %p127 = scmp.ne.s32.totalorder %s118, %s119
      %p128 = scmp.eq.s32.totalorder %s24, 0
      %p129 = por %p127, %p128
      %p130 = scmp.ne.s32.totalorder %s118, %s119
      %p131 = scmp.eq.s32.totalorder %s25, 1
      %p132 = por %p130, %p131
      %p134 = scmp.ne.s32.totalorder %s119, %s133
      %p135 = scmp.eq.s32.totalorder %s25, 0
      %p136 = por %p134, %p135
      %s138 = sadd.s32 %s137, 1
      %p141 = scmp.eq.s32.totalorder %s19, 1
      %p142 = scmp.ne.s32.totalorder %s137, %s139
      %p143 = scmp.eq.s32.totalorder %s19, 0
      %p144 = por %p142, %p143
      %p145 = scmp.ne.s32.totalorder %s137, %s139
      %p146 = scmp.eq.s32.totalorder %s24, 1
      %p147 = por %p145, %p146
      %p148 = scmp.ne.s32.totalorder %s139, %s140
      %p149 = scmp.eq.s32.totalorder %s24, 0
      %p150 = por %p148, %p149
      %p151 = scmp.ne.s32.totalorder %s139, %s140
      %p152 = scmp.eq.s32.totalorder %s25, 1
      %p153 = por %p151, %p152
      %p155 = scmp.ne.s32.totalorder %s140, %s154
      %p156 = scmp.eq.s32.totalorder %s25, 0
      %p157 = por %p155, %p156
      %s159 = sadd.s32 %s158, 1
      %p162 = scmp.eq.s32.totalorder %s19, 1
      %p163 = scmp.ne.s32.totalorder %s158, %s160
      %p164 = scmp.eq.s32.totalorder %s19, 0
      %p165 = por %p163, %p164
      %p166 = scmp.ne.s32.totalorder %s158, %s160
      %p167 = scmp.eq.s32.totalorder %s24, 1
      %p168 = por %p166, %p167
      %p169 = scmp.ne.s32.totalorder %s160, %s161
      %p170 = scmp.eq.s32.totalorder %s24, 0
      %p171 = por %p169, %p170
      %p172 = scmp.ne.s32.totalorder %s160, %s161
      %p173 = scmp.eq.s32.totalorder %s25, 1
      %p174 = por %p172, %p173
      %p176 = scmp.ne.s32.totalorder %s161, %s175
      %p177 = scmp.eq.s32.totalorder %s25, 0
      %p178 = por %p176, %p177
      %s180 = sadd.s32 %s179, 1
      %p183 = scmp.eq.s32.totalorder %s19, 1
      %p184 = scmp.ne.s32.totalorder %s179, %s181
      %p185 = scmp.eq.s32.totalorder %s19, 0
      %p186 = por %p184, %p185
      %p187 = scmp.ne.s32.totalorder %s179, %s181
      %p188 = scmp.eq.s32.totalorder %s24, 1
      %p189 = por %p187, %p188
      %p190 = scmp.ne.s32.totalorder %s181, %s182
      %p191 = scmp.eq.s32.totalorder %s24, 0
      %p192 = por %p190, %p191
      %p193 = scmp.ne.s32.totalorder %s181, %s182
      %p194 = scmp.eq.s32.totalorder %s25, 1
      %p195 = por %p193, %p194
      %p197 = scmp.ne.s32.totalorder %s182, %s196
      %p198 = scmp.eq.s32.totalorder %s25, 0
      %p199 = por %p197, %p198
      %s201 = sadd.s32 %s200, 1
      %p204 = scmp.eq.s32.totalorder %s19, 1
      %p205 = scmp.ne.s32.totalorder %s200, %s202
      %p206 = scmp.eq.s32.totalorder %s19, 0
      %p207 = por %p205, %p206
      %p208 = scmp.ne.s32.totalorder %s200, %s202
      %p209 = scmp.eq.s32.totalorder %s24, 1
      %p210 = por %p208, %p209
      %p211 = scmp.ne.s32.totalorder %s202, %s203
      %p212 = scmp.eq.s32.totalorder %s24, 0
      %p213 = por %p211, %p212
      %p214 = scmp.ne.s32.totalorder %s202, %s203
      %p215 = scmp.eq.s32.totalorder %s25, 1
      %p216 = por %p214, %p215
      %p218 = scmp.ne.s32.totalorder %s203, %s217
      %p219 = scmp.eq.s32.totalorder %s25, 0
      %p220 = por %p218, %p219
      %s222 = sadd.s32 %s221, 1
      %p225 = scmp.eq.s32.totalorder %s19, 1
      %p226 = scmp.ne.s32.totalorder %s221, %s223
      %p227 = scmp.eq.s32.totalorder %s19, 0
      %p228 = por %p226, %p227
      %p229 = scmp.ne.s32.totalorder %s221, %s223
      %p230 = scmp.eq.s32.totalorder %s24, 1
      %p231 = por %p229, %p230
      %p232 = scmp.ne.s32.totalorder %s223, %s224
      %p233 = scmp.eq.s32.totalorder %s24, 0
      %p234 = por %p232, %p233
      %p235 = scmp.ne.s32.totalorder %s223, %s224
      %p236 = scmp.eq.s32.totalorder %s25, 1
      %p237 = por %p235, %p236
      %p239 = scmp.ne.s32.totalorder %s224, %s238
      %p240 = scmp.eq.s32.totalorder %s25, 0
      %p241 = por %p239, %p240
      %s243 = sadd.s32 %s242, 1
      %p246 = scmp.eq.s32.totalorder %s19, 1
      %p247 = scmp.ne.s32.totalorder %s242, %s244
      %p248 = scmp.eq.s32.totalorder %s19, 0
      %p249 = por %p247, %p248
      %p250 = scmp.ne.s32.totalorder %s242, %s244
      %p251 = scmp.eq.s32.totalorder %s24, 1
      %p252 = por %p250, %p251
      %p253 = scmp.ne.s32.totalorder %s244, %s245
      %p254 = scmp.eq.s32.totalorder %s24, 0
      %p255 = por %p253, %p254
      %p256 = scmp.ne.s32.totalorder %s244, %s245
      %p257 = scmp.eq.s32.totalorder %s25, 1
      %p258 = por %p256, %p257
      %p260 = scmp.ne.s32.totalorder %s245, %s259
      %p261 = scmp.eq.s32.totalorder %s25, 0
      %p262 = por %p260, %p261
      %s263 = ssub.s32 %s26, %s38
      %s264 = ssub.s32 %s27, %s34
      %s265 = sor.u32 %s263, %s264
      %p266 = scmp.eq.s32.totalorder %s265, 0
      %s268 = sadd.s32 %s267, 1
      %s269 = scalar_select %p266, %s267, %s268
      %p272 = pneg %p266
      %p273 = scmp.eq.s32.totalorder %s19, 1
      %p274 = por %p272, %p273
      %p275 = scmp.ne.s32.totalorder %s267, %s270
      %p276 = scmp.eq.s32.totalorder %s19, 0
      %p277 = por %p275, %p276
      %p278 = scmp.ne.s32.totalorder %s267, %s270
      %p279 = scmp.eq.s32.totalorder %s24, 1
      %p280 = por %p278, %p279
      %p281 = scmp.ne.s32.totalorder %s270, %s271
      %p282 = scmp.eq.s32.totalorder %s24, 0
      %p283 = por %p281, %p282
      %p284 = scmp.ne.s32.totalorder %s270, %s271
      %p285 = scmp.eq.s32.totalorder %s25, 1
      %p286 = por %p284, %p285
      %p288 = scmp.ne.s32.totalorder %s271, %s287
      %p289 = scmp.eq.s32.totalorder %s25, 0
      %p290 = por %p288, %p289
      %p291 = scmp.le.s32.totalorder 1, %s19
      %p292 = scmp.lt.s32.totalorder %s19, 3
      %p293 = pnand %p291, %p292
      %p294 = pneg %p293
      // Predicated region
      $region9: #{quadratic_edge_update_forward.5} parent=5 // pred_check
        _
      $region10: #{quadratic_edge_update_forward.5} parent=5 // pred_check_branch
        %296 = sbr.rel (%p293) target = $region12
      $region11: #{quadratic_edge_update_forward.5} parent=5 // pred_region
        %s297 = ssub.s32 %s19, 1
        // Predicated region
        $region13: #{quadratic_edge_update_forward.5} parent=11 // pred_check
          %p298 = pneg %p108
        $region14: #{quadratic_edge_update_forward.5} parent=11 // pred_check_branch
          %300 = sbr.rel (%p298) target = $region16
        $region15: #{quadratic_edge_update_forward.5} parent=11 // pred_region
          _
        $region16: #{quadratic_edge_update_forward.5} parent=11 // pred_fallthru
          _
        // Predicated region
        $region17: #{quadratic_edge_update_forward.5} parent=11 // pred_check
          %p301 = pneg %p129
        $region18: #{quadratic_edge_update_forward.5} parent=11 // pred_check_branch
          %303 = sbr.rel (%p301) target = $region20
        $region19: #{quadratic_edge_update_forward.5} parent=11 // pred_region
          _
        $region20: #{quadratic_edge_update_forward.5} parent=11 // pred_fallthru
          _
        // Predicated region
        $region21: #{quadratic_edge_update_forward.5} parent=11 // pred_check
          %p304 = pneg %p150
        $region22: #{quadratic_edge_update_forward.5} parent=11 // pred_check_branch
          %306 = sbr.rel (%p304) target = $region24
        $region23: #{quadratic_edge_update_forward.5} parent=11 // pred_region
          _
        $region24: #{quadratic_edge_update_forward.5} parent=11 // pred_fallthru
          _
        // Predicated region
        $region25: #{quadratic_edge_update_forward.5} parent=11 // pred_check
          %p307 = pneg %p171
        $region26: #{quadratic_edge_update_forward.5} parent=11 // pred_check_branch
          %309 = sbr.rel (%p307) target = $region28
        $region27: #{quadratic_edge_update_forward.5} parent=11 // pred_region
          _
        $region28: #{quadratic_edge_update_forward.5} parent=11 // pred_fallthru
          _
        // Predicated region
        $region29: #{quadratic_edge_update_forward.5} parent=11 // pred_check
          %p310 = pneg %p192
        $region30: #{quadratic_edge_update_forward.5} parent=11 // pred_check_branch
          %312 = sbr.rel (%p310) target = $region32
        $region31: #{quadratic_edge_update_forward.5} parent=11 // pred_region
          _
        $region32: #{quadratic_edge_update_forward.5} parent=11 // pred_fallthru
          _
        // Predicated region
        $region33: #{quadratic_edge_update_forward.5} parent=11 // pred_check
          %p313 = pneg %p213
        $region34: #{quadratic_edge_update_forward.5} parent=11 // pred_check_branch
          %315 = sbr.rel (%p313) target = $region36
        $region35: #{quadratic_edge_update_forward.5} parent=11 // pred_region
          _
        $region36: #{quadratic_edge_update_forward.5} parent=11 // pred_fallthru
          _
        // Predicated region
        $region37: #{quadratic_edge_update_forward.5} parent=11 // pred_check
          %p316 = pneg %p234
        $region38: #{quadratic_edge_update_forward.5} parent=11 // pred_check_branch
          %318 = sbr.rel (%p316) target = $region40
        $region39: #{quadratic_edge_update_forward.5} parent=11 // pred_region
          _
        $region40: #{quadratic_edge_update_forward.5} parent=11 // pred_fallthru
          _
        // Predicated region
        $region41: #{quadratic_edge_update_forward.5} parent=11 // pred_check
          %p319 = pneg %p255
        $region42: #{quadratic_edge_update_forward.5} parent=11 // pred_check_branch
          %321 = sbr.rel (%p319) target = $region44
        $region43: #{quadratic_edge_update_forward.5} parent=11 // pred_region
          _
        $region44: #{quadratic_edge_update_forward.5} parent=11 // pred_fallthru
          _
      $region12: #{quadratic_edge_update_forward.5} parent=5 // pred_fallthru
        _
      %p322 = scmp.lt.s32.totalorder %s19, 2
      // Predicated region
      $region45: #{quadratic_edge_update_forward.5} parent=5 // pred_check
        %p323 = pneg %p322
      $region46: #{quadratic_edge_update_forward.5} parent=5 // pred_check_branch
        %325 = sbr.rel (%p323) target = $region48
      $region47: #{quadratic_edge_update_forward.5} parent=5 // pred_region
        // Predicated region
        $region49: #{quadratic_edge_update_forward.5} parent=47 // pred_check
          %p326 = pneg %p53
        $region50: #{quadratic_edge_update_forward.5} parent=47 // pred_check_branch
          %328 = sbr.rel (%p326) target = $region52
        $region51: #{quadratic_edge_update_forward.5} parent=47 // pred_region
          %s329 = smul.u32 32, %s27
          %p330 = scmp.lt.s32.totalorder %s26, 1
          %s331 = scalar_select %p330, %s26, 1
          %p332 = scmp.lt.s32.totalorder %s329, 31
          %s333 = scalar_select %p332, %s329, 31
          %s334 = smul.addr %s331, 32
          %s335 = sadd.s32 %s333, %s334
          %s336 = smul.addr %s335, 8
          %s337 = scalar_lea.vmem %s0, %s336
          %s338 = smul.u32 32, %s27
        $region52: #{quadratic_edge_update_forward.5} parent=47 // pred_fallthru
          _
        // Predicated region
        $region53: #{quadratic_edge_update_forward.5} parent=47 // pred_check
          %p339 = pneg %p81
        $region54: #{quadratic_edge_update_forward.5} parent=47 // pred_check_branch
          %341 = sbr.rel (%p339) target = $region56
        $region55: #{quadratic_edge_update_forward.5} parent=47 // pred_region
          %s342 = smul.u32 32, %s27
          %p343 = scmp.lt.s32.totalorder %s26, 1
          %s344 = scalar_select %p343, %s26, 1
          %p345 = scmp.lt.s32.totalorder %s342, 31
          %s346 = scalar_select %p345, %s342, 31
          %s347 = smul.addr %s344, 32
          %s348 = sadd.s32 %s346, %s347
          %s349 = smul.addr %s348, 8
          %s350 = scalar_lea.vmem %s1, %s349
          %s351 = smul.u32 32, %s27
        $region56: #{quadratic_edge_update_forward.5} parent=47 // pred_fallthru
          _
      $region48: #{quadratic_edge_update_forward.5} parent=5 // pred_fallthru
        _
      %p352 = scmp.le.s32.totalorder 1, %s19
      %p353 = scmp.lt.s32.totalorder %s19, 3
      %p354 = pnand %p352, %p353
      %p355 = pneg %p354
      // Predicated region
      $region57: #{quadratic_edge_update_forward.5} parent=5 // pred_check
        _
      $region58: #{quadratic_edge_update_forward.5} parent=5 // pred_check_branch
        %357 = sbr.rel (%p354) target = $region60
      $region59: #{quadratic_edge_update_forward.5} parent=5 // pred_region
        %s358 = ssub.s32 %s19, 1
        %s359 = smul.u32 32, %s29
        %p360 = scmp.lt.s32.totalorder %s28, 1
        %s361 = scalar_select %p360, %s28, 1
        %p362 = scmp.lt.s32.totalorder %s359, 31
        %s363 = scalar_select %p362, %s359, 31
        %s364 = smul.addr %s361, 32
        %s365 = sadd.s32 %s363, %s364
        %s366 = smul.addr %s365, 8
        %s367 = scalar_lea.vmem %s0, %s366
        %p368 = pneg %p59
        %p369 = pneg %p56
        %s370 = smul.u32 32, %s29
        %p371 = scmp.lt.s32.totalorder %s28, 1
        %s372 = scalar_select %p371, %s28, 1
        %p373 = scmp.lt.s32.totalorder %s370, 31
        %s374 = scalar_select %p373, %s370, 31
        %s375 = smul.addr %s372, 32
        %s376 = sadd.s32 %s374, %s375
        %s377 = smul.addr %s376, 8
        %s378 = scalar_lea.vmem %s1, %s377
        %p379 = pneg %p87
        %p380 = pneg %p84
        %p381 = pneg %p108
        %p382 = pneg %p105
        %p383 = pneg %p129
        %p384 = pneg %p126
        %p385 = pneg %p150
        %p386 = pneg %p147
        %p387 = pneg %p171
        %p388 = pneg %p168
        %p389 = pneg %p192
        %p390 = pneg %p189
        %p391 = pneg %p213
        %p392 = pneg %p210
        %p393 = pneg %p234
        %p394 = pneg %p231
        %p395 = pneg %p255
        %p396 = pneg %p252
        %p397 = pneg %p283
        %p398 = pneg %p280
        %s399 = sand.u32 %s270, 1
        %s400 = scalar_lea.sflag [#allocation3], %s399
        %s401 = sand.u32 %s270, 1
        %s402 = smul.addr %s401, 256
        %s403 = scalar_lea.vmem [#allocation2], %s402
        %s404 = smul.u32 32, %s29
        %p405 = scmp.lt.s32.totalorder %s28, 1
        %s406 = scalar_select %p405, %s28, 1
        %p407 = scmp.lt.s32.totalorder %s404, 31
        %s408 = scalar_select %p407, %s404, 31
        %s409 = smul.addr %s406, 32
        %s410 = sadd.s32 %s408, %s409
        %s411 = smul.addr %s410, 8
        %s412 = scalar_lea.vmem %s0, %s411
        %s413 = smul.u32 32, %s29
        %s414 = smul.u32 32, %s29
        %p415 = scmp.lt.s32.totalorder %s28, 1
        %s416 = scalar_select %p415, %s28, 1
        %p417 = scmp.lt.s32.totalorder %s414, 31
        %s418 = scalar_select %p417, %s414, 31
        %s419 = smul.addr %s416, 32
        %s420 = sadd.s32 %s418, %s419
        %s421 = smul.addr %s420, 8
        %s422 = scalar_lea.vmem %s1, %s421
        %s423 = smul.u32 32, %s29
        %s424 = smul.u32 32, %s29
        %v425 = vld [vmem:[%s412] sm:$0xff]
        %v426 = vld [vmem:[%s412 + $0x8] sm:$0xff]
        %v427 = vld [vmem:[%s412 + $0x10] sm:$0xff]
        %v428 = vld [vmem:[%s412 + $0x18] sm:$0xff]
        %v429 = vld [vmem:[%s412 + $0x20] sm:$0xff]
        %v430 = vld [vmem:[%s412 + $0x28] sm:$0xff]
        %v431 = vld [vmem:[%s412 + $0x30] sm:$0xff]
        %v432 = vld [vmem:[%s412 + $0x38] sm:$0xff]
        %v433 = vld [vmem:[%s412 + $0x40] sm:$0xff]
        %v434 = vld [vmem:[%s412 + $0x48] sm:$0xff]
        %v435 = vld [vmem:[%s412 + $0x50] sm:$0xff]
        %v436 = vld [vmem:[%s412 + $0x58] sm:$0xff]
        %v437 = vld [vmem:[%s412 + $0x60] sm:$0xff]
        %v438 = vld [vmem:[%s412 + $0x68] sm:$0xff]
        %v439 = vld [vmem:[%s412 + $0x70] sm:$0xff]
        %v440 = vld [vmem:[%s412 + $0x78] sm:$0xff]
        %v441 = vld [vmem:[%s412 + $0x80] sm:$0xff]
        %v442 = vld [vmem:[%s412 + $0x88] sm:$0xff]
        %v443 = vld [vmem:[%s412 + $0x90] sm:$0xff]
        %v444 = vld [vmem:[%s412 + $0x98] sm:$0xff]
        %v445 = vld [vmem:[%s412 + $0xa0] sm:$0xff]
        %v446 = vld [vmem:[%s412 + $0xa8] sm:$0xff]
        %v447 = vld [vmem:[%s412 + $0xb0] sm:$0xff]
        %v448 = vld [vmem:[%s412 + $0xb8] sm:$0xff]
        %v449 = vld [vmem:[%s412 + $0xc0] sm:$0xff]
        %v450 = vld [vmem:[%s412 + $0xc8] sm:$0xff]
        %v451 = vld [vmem:[%s412 + $0xd0] sm:$0xff]
        %v452 = vld [vmem:[%s412 + $0xd8] sm:$0xff]
        %v453 = vld [vmem:[%s412 + $0xe0] sm:$0xff]
        %v454 = vld [vmem:[%s412 + $0xe8] sm:$0xff]
        %v455 = vld [vmem:[%s412 + $0xf0] sm:$0xff]
        %v456 = vld [vmem:[%s412 + $0xf8] sm:$0xff]
        %vm457 = vcmask 130048
        %v458 = vsel %vm457, %v425, 0.0
        %459 = vadd.xlane.f32.xlu0 %v458
        %v460 = vpop.xlane.xlu0 %459
        %v461 = vsel %vm457, %v426, 0.0
        %462 = vadd.xlane.f32.xlu0 %v461
        %v463 = vpop.xlane.xlu0 %462
        %v464 = vsel %vm457, %v427, 0.0
        %465 = vadd.xlane.f32.xlu0 %v464
        %v466 = vpop.xlane.xlu0 %465
        %v467 = vsel %vm457, %v428, 0.0
        %468 = vadd.xlane.f32.xlu0 %v467
        %v469 = vpop.xlane.xlu0 %468
        %v470 = vsel %vm457, %v429, 0.0
        %471 = vadd.xlane.f32.xlu0 %v470
        %v472 = vpop.xlane.xlu0 %471
        %v473 = vsel %vm457, %v430, 0.0
        %474 = vadd.xlane.f32.xlu0 %v473
        %v475 = vpop.xlane.xlu0 %474
        %v476 = vsel %vm457, %v431, 0.0
        %477 = vadd.xlane.f32.xlu0 %v476
        %v478 = vpop.xlane.xlu0 %477
        %v479 = vsel %vm457, %v432, 0.0
        %480 = vadd.xlane.f32.xlu0 %v479
        %v481 = vpop.xlane.xlu0 %480
        %v482 = vsel %vm457, %v433, 0.0
        %483 = vadd.xlane.f32.xlu0 %v482
        %v484 = vpop.xlane.xlu0 %483
        %v485 = vsel %vm457, %v434, 0.0
        %486 = vadd.xlane.f32.xlu0 %v485
        %v487 = vpop.xlane.xlu0 %486
        %v488 = vsel %vm457, %v435, 0.0
        %489 = vadd.xlane.f32.xlu0 %v488
        %v490 = vpop.xlane.xlu0 %489
        %v491 = vsel %vm457, %v436, 0.0
        %492 = vadd.xlane.f32.xlu0 %v491
        %v493 = vpop.xlane.xlu0 %492
        %v494 = vsel %vm457, %v437, 0.0
        %495 = vadd.xlane.f32.xlu0 %v494
        %v496 = vpop.xlane.xlu0 %495
        %v497 = vsel %vm457, %v438, 0.0
        %498 = vadd.xlane.f32.xlu0 %v497
        %v499 = vpop.xlane.xlu0 %498
        %v500 = vsel %vm457, %v439, 0.0
        %501 = vadd.xlane.f32.xlu0 %v500
        %v502 = vpop.xlane.xlu0 %501
        %v503 = vsel %vm457, %v440, 0.0
        %504 = vadd.xlane.f32.xlu0 %v503
        %v505 = vpop.xlane.xlu0 %504
        %v506 = vsel %vm457, %v441, 0.0
        %507 = vadd.xlane.f32.xlu0 %v506
        %v508 = vpop.xlane.xlu0 %507
        %v509 = vsel %vm457, %v442, 0.0
        %510 = vadd.xlane.f32.xlu0 %v509
        %v511 = vpop.xlane.xlu0 %510
        %v512 = vsel %vm457, %v443, 0.0
        %513 = vadd.xlane.f32.xlu0 %v512
        %v514 = vpop.xlane.xlu0 %513
        %v515 = vsel %vm457, %v444, 0.0
        %516 = vadd.xlane.f32.xlu0 %v515
        %v517 = vpop.xlane.xlu0 %516
        %v518 = vsel %vm457, %v445, 0.0
        %519 = vadd.xlane.f32.xlu0 %v518
        %v520 = vpop.xlane.xlu0 %519
        %v521 = vsel %vm457, %v446, 0.0
        %522 = vadd.xlane.f32.xlu0 %v521
        %v523 = vpop.xlane.xlu0 %522
        %v524 = vsel %vm457, %v447, 0.0
        %525 = vadd.xlane.f32.xlu0 %v524
        %v526 = vpop.xlane.xlu0 %525
        %v527 = vsel %vm457, %v448, 0.0
        %528 = vadd.xlane.f32.xlu0 %v527
        %v529 = vpop.xlane.xlu0 %528
        %v530 = vsel %vm457, %v449, 0.0
        %531 = vadd.xlane.f32.xlu0 %v530
        %v532 = vpop.xlane.xlu0 %531
        %v533 = vsel %vm457, %v450, 0.0
        %534 = vadd.xlane.f32.xlu0 %v533
        %v535 = vpop.xlane.xlu0 %534
        %v536 = vsel %vm457, %v451, 0.0
        %537 = vadd.xlane.f32.xlu0 %v536
        %v538 = vpop.xlane.xlu0 %537
        %v539 = vsel %vm457, %v452, 0.0
        %540 = vadd.xlane.f32.xlu0 %v539
        %v541 = vpop.xlane.xlu0 %540
        %v542 = vsel %vm457, %v453, 0.0
        %543 = vadd.xlane.f32.xlu0 %v542
        %v544 = vpop.xlane.xlu0 %543
        %v545 = vsel %vm457, %v454, 0.0
        %546 = vadd.xlane.f32.xlu0 %v545
        %v547 = vpop.xlane.xlu0 %546
        %v548 = vsel %vm457, %v455, 0.0
        %549 = vadd.xlane.f32.xlu0 %v548
        %v550 = vpop.xlane.xlu0 %549
        %v551 = vsel %vm457, %v456, 0.0
        %552 = vadd.xlane.f32.xlu0 %v551
        %v553 = vpop.xlane.xlu0 %552
        %v554 = vrcp.pop 16.0
        %v555 = vmul.f32 %v460, %v554
        %v556 = vmul.f32 %v463, %v554
        %v557 = vmul.f32 %v466, %v554
        %v558 = vmul.f32 %v469, %v554
        %v559 = vmul.f32 %v472, %v554
        %v560 = vmul.f32 %v475, %v554
        %v561 = vmul.f32 %v478, %v554
        %v562 = vmul.f32 %v481, %v554
        %v563 = vmul.f32 %v484, %v554
        %v564 = vmul.f32 %v487, %v554
        %v565 = vmul.f32 %v490, %v554
        %v566 = vmul.f32 %v493, %v554
        %v567 = vmul.f32 %v496, %v554
        %v568 = vmul.f32 %v499, %v554
        %v569 = vmul.f32 %v502, %v554
        %v570 = vmul.f32 %v505, %v554
        %v571 = vmul.f32 %v508, %v554
        %v572 = vmul.f32 %v511, %v554
        %v573 = vmul.f32 %v514, %v554
        %v574 = vmul.f32 %v517, %v554
        %v575 = vmul.f32 %v520, %v554
        %v576 = vmul.f32 %v523, %v554
        %v577 = vmul.f32 %v526, %v554
        %v578 = vmul.f32 %v529, %v554
        %v579 = vmul.f32 %v532, %v554
        %v580 = vmul.f32 %v535, %v554
        %v581 = vmul.f32 %v538, %v554
        %v582 = vmul.f32 %v541, %v554
        %v583 = vmul.f32 %v544, %v554
        %v584 = vmul.f32 %v547, %v554
        %v585 = vmul.f32 %v550, %v554
        %v586 = vmul.f32 %v553, %v554
        %v587 = vsub.f32 %v425, %v555
        %v588 = vsub.f32 %v426, %v556
        %v589 = vsub.f32 %v427, %v557
        %v590 = vsub.f32 %v428, %v558
        %v591 = vsub.f32 %v429, %v559
        %v592 = vsub.f32 %v430, %v560
        %v593 = vsub.f32 %v431, %v561
        %v594 = vsub.f32 %v432, %v562
        %v595 = vsub.f32 %v433, %v563
        %v596 = vsub.f32 %v434, %v564
        %v597 = vsub.f32 %v435, %v565
        %v598 = vsub.f32 %v436, %v566
        %v599 = vsub.f32 %v437, %v567
        %v600 = vsub.f32 %v438, %v568
        %v601 = vsub.f32 %v439, %v569
        %v602 = vsub.f32 %v440, %v570
        %v603 = vsub.f32 %v441, %v571
        %v604 = vsub.f32 %v442, %v572
        %v605 = vsub.f32 %v443, %v573
        %v606 = vsub.f32 %v444, %v574
        %v607 = vsub.f32 %v445, %v575
        %v608 = vsub.f32 %v446, %v576
        %v609 = vsub.f32 %v447, %v577
        %v610 = vsub.f32 %v448, %v578
        %v611 = vsub.f32 %v449, %v579
        %v612 = vsub.f32 %v450, %v580
        %v613 = vsub.f32 %v451, %v581
        %v614 = vsub.f32 %v452, %v582
        %v615 = vsub.f32 %v453, %v583
        %v616 = vsub.f32 %v454, %v584
        %v617 = vsub.f32 %v455, %v585
        %v618 = vsub.f32 %v456, %v586
        %v619 = vmul.f32 %v587, %v587
        %v620 = vmul.f32 %v588, %v588
        %v621 = vmul.f32 %v589, %v589
        %v622 = vmul.f32 %v590, %v590
        %v623 = vmul.f32 %v591, %v591
        %v624 = vmul.f32 %v592, %v592
        %v625 = vmul.f32 %v593, %v593
        %v626 = vmul.f32 %v594, %v594
        %v627 = vmul.f32 %v595, %v595
        %v628 = vmul.f32 %v596, %v596
        %v629 = vmul.f32 %v597, %v597
        %v630 = vmul.f32 %v598, %v598
        %v631 = vmul.f32 %v599, %v599
        %v632 = vmul.f32 %v600, %v600
        %v633 = vmul.f32 %v601, %v601
        %v634 = vmul.f32 %v602, %v602
        %v635 = vmul.f32 %v603, %v603
        %v636 = vmul.f32 %v604, %v604
        %v637 = vmul.f32 %v605, %v605
        %v638 = vmul.f32 %v606, %v606
        %v639 = vmul.f32 %v607, %v607
        %v640 = vmul.f32 %v608, %v608
        %v641 = vmul.f32 %v609, %v609
        %v642 = vmul.f32 %v610, %v610
        %v643 = vmul.f32 %v611, %v611
        %v644 = vmul.f32 %v612, %v612
        %v645 = vmul.f32 %v613, %v613
        %v646 = vmul.f32 %v614, %v614
        %v647 = vmul.f32 %v615, %v615
        %v648 = vmul.f32 %v616, %v616
        %v649 = vmul.f32 %v617, %v617
        %v650 = vmul.f32 %v618, %v618
        %v651 = vsel %vm457, %v619, 0.0
        %652 = vadd.xlane.f32.xlu0 %v651
        %v653 = vpop.xlane.xlu0 %652
        %v654 = vsel %vm457, %v620, 0.0
        %655 = vadd.xlane.f32.xlu0 %v654
        %v656 = vpop.xlane.xlu0 %655
        %v657 = vsel %vm457, %v621, 0.0
        %658 = vadd.xlane.f32.xlu0 %v657
        %v659 = vpop.xlane.xlu0 %658
        %v660 = vsel %vm457, %v622, 0.0
        %661 = vadd.xlane.f32.xlu0 %v660
        %v662 = vpop.xlane.xlu0 %661
        %v663 = vsel %vm457, %v623, 0.0
        %664 = vadd.xlane.f32.xlu0 %v663
        %v665 = vpop.xlane.xlu0 %664
        %v666 = vsel %vm457, %v624, 0.0
        %667 = vadd.xlane.f32.xlu0 %v666
        %v668 = vpop.xlane.xlu0 %667
        %v669 = vsel %vm457, %v625, 0.0
        %670 = vadd.xlane.f32.xlu0 %v669
        %v671 = vpop.xlane.xlu0 %670
        %v672 = vsel %vm457, %v626, 0.0
        %673 = vadd.xlane.f32.xlu0 %v672
        %v674 = vpop.xlane.xlu0 %673
        %v675 = vsel %vm457, %v627, 0.0
        %676 = vadd.xlane.f32.xlu0 %v675
        %v677 = vpop.xlane.xlu0 %676
        %v678 = vsel %vm457, %v628, 0.0
        %679 = vadd.xlane.f32.xlu0 %v678
        %v680 = vpop.xlane.xlu0 %679
        %v681 = vsel %vm457, %v629, 0.0
        %682 = vadd.xlane.f32.xlu0 %v681
        %v683 = vpop.xlane.xlu0 %682
        %v684 = vsel %vm457, %v630, 0.0
        %685 = vadd.xlane.f32.xlu0 %v684
        %v686 = vpop.xlane.xlu0 %685
        %v687 = vsel %vm457, %v631, 0.0
        %688 = vadd.xlane.f32.xlu0 %v687
        %v689 = vpop.xlane.xlu0 %688
        %v690 = vsel %vm457, %v632, 0.0
        %691 = vadd.xlane.f32.xlu0 %v690
        %v692 = vpop.xlane.xlu0 %691
        %v693 = vsel %vm457, %v633, 0.0
        %694 = vadd.xlane.f32.xlu0 %v693
        %v695 = vpop.xlane.xlu0 %694
        %v696 = vsel %vm457, %v634, 0.0
        %697 = vadd.xlane.f32.xlu0 %v696
        %v698 = vpop.xlane.xlu0 %697
        %v699 = vsel %vm457, %v635, 0.0
        %700 = vadd.xlane.f32.xlu0 %v699
        %v701 = vpop.xlane.xlu0 %700
        %v702 = vsel %vm457, %v636, 0.0
        %703 = vadd.xlane.f32.xlu0 %v702
        %v704 = vpop.xlane.xlu0 %703
        %v705 = vsel %vm457, %v637, 0.0
        %706 = vadd.xlane.f32.xlu0 %v705
        %v707 = vpop.xlane.xlu0 %706
        %v708 = vsel %vm457, %v638, 0.0
        %709 = vadd.xlane.f32.xlu0 %v708
        %v710 = vpop.xlane.xlu0 %709
        %v711 = vsel %vm457, %v639, 0.0
        %712 = vadd.xlane.f32.xlu0 %v711
        %v713 = vpop.xlane.xlu0 %712
        %v714 = vsel %vm457, %v640, 0.0
        %715 = vadd.xlane.f32.xlu0 %v714
        %v716 = vpop.xlane.xlu0 %715
        %v717 = vsel %vm457, %v641, 0.0
        %718 = vadd.xlane.f32.xlu0 %v717
        %v719 = vpop.xlane.xlu0 %718
        %v720 = vsel %vm457, %v642, 0.0
        %721 = vadd.xlane.f32.xlu0 %v720
        %v722 = vpop.xlane.xlu0 %721
        %v723 = vsel %vm457, %v643, 0.0
        %724 = vadd.xlane.f32.xlu0 %v723
        %v725 = vpop.xlane.xlu0 %724
        %v726 = vsel %vm457, %v644, 0.0
        %727 = vadd.xlane.f32.xlu0 %v726
        %v728 = vpop.xlane.xlu0 %727
        %v729 = vsel %vm457, %v645, 0.0
        %730 = vadd.xlane.f32.xlu0 %v729
        %v731 = vpop.xlane.xlu0 %730
        %v732 = vsel %vm457, %v646, 0.0
        %733 = vadd.xlane.f32.xlu0 %v732
        %v734 = vpop.xlane.xlu0 %733
        %v735 = vsel %vm457, %v647, 0.0
        %736 = vadd.xlane.f32.xlu0 %v735
        %v737 = vpop.xlane.xlu0 %736
        %v738 = vsel %vm457, %v648, 0.0
        %739 = vadd.xlane.f32.xlu0 %v738
        %v740 = vpop.xlane.xlu0 %739
        %v741 = vsel %vm457, %v649, 0.0
        %742 = vadd.xlane.f32.xlu0 %v741
        %v743 = vpop.xlane.xlu0 %742
        %v744 = vsel %vm457, %v650, 0.0
        %745 = vadd.xlane.f32.xlu0 %v744
        %v746 = vpop.xlane.xlu0 %745
        %v747 = vmul.f32 %v653, %v554
        %v748 = vmul.f32 %v656, %v554
        %v749 = vmul.f32 %v659, %v554
        %v750 = vmul.f32 %v662, %v554
        %v751 = vmul.f32 %v665, %v554
        %v752 = vmul.f32 %v668, %v554
        %v753 = vmul.f32 %v671, %v554
        %v754 = vmul.f32 %v674, %v554
        %v755 = vmul.f32 %v677, %v554
        %v756 = vmul.f32 %v680, %v554
        %v757 = vmul.f32 %v683, %v554
        %v758 = vmul.f32 %v686, %v554
        %v759 = vmul.f32 %v689, %v554
        %v760 = vmul.f32 %v692, %v554
        %v761 = vmul.f32 %v695, %v554
        %v762 = vmul.f32 %v698, %v554
        %v763 = vmul.f32 %v701, %v554
        %v764 = vmul.f32 %v704, %v554
        %v765 = vmul.f32 %v707, %v554
        %v766 = vmul.f32 %v710, %v554
        %v767 = vmul.f32 %v713, %v554
        %v768 = vmul.f32 %v716, %v554
        %v769 = vmul.f32 %v719, %v554
        %v770 = vmul.f32 %v722, %v554
        %v771 = vmul.f32 %v725, %v554
        %v772 = vmul.f32 %v728, %v554
        %v773 = vmul.f32 %v731, %v554
        %v774 = vmul.f32 %v734, %v554
        %v775 = vmul.f32 %v737, %v554
        %v776 = vmul.f32 %v740, %v554
        %v777 = vmul.f32 %v743, %v554
        %v778 = vmul.f32 %v746, %v554
        %v779 = vadd.f32 %v747, 1e-05
        %v780 = vadd.f32 %v748, 1e-05
        %v781 = vadd.f32 %v749, 1e-05
        %v782 = vadd.f32 %v750, 1e-05
        %v783 = vadd.f32 %v751, 1e-05
        %v784 = vadd.f32 %v752, 1e-05
        %v785 = vadd.f32 %v753, 1e-05
        %v786 = vadd.f32 %v754, 1e-05
        %v787 = vadd.f32 %v755, 1e-05
        %v788 = vadd.f32 %v756, 1e-05
        %v789 = vadd.f32 %v757, 1e-05
        %v790 = vadd.f32 %v758, 1e-05
        %v791 = vadd.f32 %v759, 1e-05
        %v792 = vadd.f32 %v760, 1e-05
        %v793 = vadd.f32 %v761, 1e-05
        %v794 = vadd.f32 %v762, 1e-05
        %v795 = vadd.f32 %v763, 1e-05
        %v796 = vadd.f32 %v764, 1e-05
        %v797 = vadd.f32 %v765, 1e-05
        %v798 = vadd.f32 %v766, 1e-05
        %v799 = vadd.f32 %v767, 1e-05
        %v800 = vadd.f32 %v768, 1e-05
        %v801 = vadd.f32 %v769, 1e-05
        %v802 = vadd.f32 %v770, 1e-05
        %v803 = vadd.f32 %v771, 1e-05
        %v804 = vadd.f32 %v772, 1e-05
        %v805 = vadd.f32 %v773, 1e-05
        %v806 = vadd.f32 %v774, 1e-05
        %v807 = vadd.f32 %v775, 1e-05
        %v808 = vadd.f32 %v776, 1e-05
        %v809 = vadd.f32 %v777, 1e-05
        %v810 = vadd.f32 %v778, 1e-05
        %v811 = vrsqrt.pop %v779
        %v812 = vrsqrt.pop %v780
        %v813 = vrsqrt.pop %v781
        %v814 = vrsqrt.pop %v782
        %v815 = vrsqrt.pop %v783
        %v816 = vrsqrt.pop %v784
        %v817 = vrsqrt.pop %v785
        %v818 = vrsqrt.pop %v786
        %v819 = vrsqrt.pop %v787
        %v820 = vrsqrt.pop %v788
        %v821 = vrsqrt.pop %v789
        %v822 = vrsqrt.pop %v790
        %v823 = vrsqrt.pop %v791
        %v824 = vrsqrt.pop %v792
        %v825 = vrsqrt.pop %v793
        %v826 = vrsqrt.pop %v794
        %v827 = vrsqrt.pop %v795
        %v828 = vrsqrt.pop %v796
        %v829 = vrsqrt.pop %v797
        %v830 = vrsqrt.pop %v798
        %v831 = vrsqrt.pop %v799
        %v832 = vrsqrt.pop %v800
        %v833 = vrsqrt.pop %v801
        %v834 = vrsqrt.pop %v802
        %v835 = vrsqrt.pop %v803
        %v836 = vrsqrt.pop %v804
        %v837 = vrsqrt.pop %v805
        %v838 = vrsqrt.pop %v806
        %v839 = vrsqrt.pop %v807
        %v840 = vrsqrt.pop %v808
        %v841 = vrsqrt.pop %v809
        %v842 = vrsqrt.pop %v810
        %v843 = vmul.f32 %v587, %v811
        %v844 = vmul.f32 %v588, %v812
        %v845 = vmul.f32 %v589, %v813
        %v846 = vmul.f32 %v590, %v814
        %v847 = vmul.f32 %v591, %v815
        %v848 = vmul.f32 %v592, %v816
        %v849 = vmul.f32 %v593, %v817
        %v850 = vmul.f32 %v594, %v818
        %v851 = vmul.f32 %v595, %v819
        %v852 = vmul.f32 %v596, %v820
        %v853 = vmul.f32 %v597, %v821
        %v854 = vmul.f32 %v598, %v822
        %v855 = vmul.f32 %v599, %v823
        %v856 = vmul.f32 %v600, %v824
        %v857 = vmul.f32 %v601, %v825
        %v858 = vmul.f32 %v602, %v826
        %v859 = vmul.f32 %v603, %v827
        %v860 = vmul.f32 %v604, %v828
        %v861 = vmul.f32 %v605, %v829
        %v862 = vmul.f32 %v606, %v830
        %v863 = vmul.f32 %v607, %v831
        %v864 = vmul.f32 %v608, %v832
        %v865 = vmul.f32 %v609, %v833
        %v866 = vmul.f32 %v610, %v834
        %v867 = vmul.f32 %v611, %v835
        %v868 = vmul.f32 %v612, %v836
        %v869 = vmul.f32 %v613, %v837
        %v870 = vmul.f32 %v614, %v838
        %v871 = vmul.f32 %v615, %v839
        %v872 = vmul.f32 %v616, %v840
        %v873 = vmul.f32 %v617, %v841
        %v874 = vmul.f32 %v618, %v842
        %v875 = vld [vmem:[%s6] sm:$0x1]
        %v877 = vlaneseq
        %v878 = vshrl.u32 %v877, 7
        %v879 = vsub.s32 0, %v878
        %v880 = vrot.slane %v875, %v879
        %v882 = vmul.f32 %v843, %v880
        %v883 = vmul.f32 %v844, %v880
        %v884 = vmul.f32 %v845, %v880
        %v885 = vmul.f32 %v846, %v880
        %v886 = vmul.f32 %v847, %v880
        %v887 = vmul.f32 %v848, %v880
        %v888 = vmul.f32 %v849, %v880
        %v889 = vmul.f32 %v850, %v880
        %v890 = vmul.f32 %v851, %v880
        %v891 = vmul.f32 %v852, %v880
        %v892 = vmul.f32 %v853, %v880
        %v893 = vmul.f32 %v854, %v880
        %v894 = vmul.f32 %v855, %v880
        %v895 = vmul.f32 %v856, %v880
        %v896 = vmul.f32 %v857, %v880
        %v897 = vmul.f32 %v858, %v880
        %v898 = vmul.f32 %v859, %v880
        %v899 = vmul.f32 %v860, %v880
        %v900 = vmul.f32 %v861, %v880
        %v901 = vmul.f32 %v862, %v880
        %v902 = vmul.f32 %v863, %v880
        %v903 = vmul.f32 %v864, %v880
        %v904 = vmul.f32 %v865, %v880
        %v905 = vmul.f32 %v866, %v880
        %v906 = vmul.f32 %v867, %v880
        %v907 = vmul.f32 %v868, %v880
        %v908 = vmul.f32 %v869, %v880
        %v909 = vmul.f32 %v870, %v880
        %v910 = vmul.f32 %v871, %v880
        %v911 = vmul.f32 %v872, %v880
        %v912 = vmul.f32 %v873, %v880
        %v913 = vmul.f32 %v874, %v880
        %v914 = vld [vmem:[%s7] sm:$0x1]
        %v916 = vlaneseq
        %v917 = vshrl.u32 %v916, 7
        %v918 = vsub.s32 0, %v917
        %v919 = vrot.slane %v914, %v918
        %v921 = vadd.f32 %v882, %v919
        %v922 = vadd.f32 %v883, %v919
        %v923 = vadd.f32 %v884, %v919
        %v924 = vadd.f32 %v885, %v919
        %v925 = vadd.f32 %v886, %v919
        %v926 = vadd.f32 %v887, %v919
        %v927 = vadd.f32 %v888, %v919
        %v928 = vadd.f32 %v889, %v919
        %v929 = vadd.f32 %v890, %v919
        %v930 = vadd.f32 %v891, %v919
        %v931 = vadd.f32 %v892, %v919
        %v932 = vadd.f32 %v893, %v919
        %v933 = vadd.f32 %v894, %v919
        %v934 = vadd.f32 %v895, %v919
        %v935 = vadd.f32 %v896, %v919
        %v936 = vadd.f32 %v897, %v919
        %v937 = vadd.f32 %v898, %v919
        %v938 = vadd.f32 %v899, %v919
        %v939 = vadd.f32 %v900, %v919
        %v940 = vadd.f32 %v901, %v919
        %v941 = vadd.f32 %v902, %v919
        %v942 = vadd.f32 %v903, %v919
        %v943 = vadd.f32 %v904, %v919
        %v944 = vadd.f32 %v905, %v919
        %v945 = vadd.f32 %v906, %v919
        %v946 = vadd.f32 %v907, %v919
        %v947 = vadd.f32 %v908, %v919
        %v948 = vadd.f32 %v909, %v919
        %v949 = vadd.f32 %v910, %v919
        %v950 = vadd.f32 %v911, %v919
        %v951 = vadd.f32 %v912, %v919
        %v952 = vadd.f32 %v913, %v919
        %v953 = vld [vmem:[%s8] sm:$0xff]
        %v954 = vld [vmem:[%s8 + $0x8] sm:$0xff]
        %v955 = vld [vmem:[%s9] sm:$0x1]
        %v957 = vlaneseq
        %v958 = vshrl.u32 %v957, 7
        %v959 = vsub.s32 0, %v958
        %v960 = vrot.slane %v955, %v959
        %v963 = vsel %vm457, %v921, 0
        %v966 = vsel %vm457, %v922, 0
        %v969 = vsel %vm457, %v923, 0
        %v972 = vsel %vm457, %v924, 0
        %v975 = vsel %vm457, %v925, 0
        %v978 = vsel %vm457, %v926, 0
        %v981 = vsel %vm457, %v927, 0
        %v984 = vsel %vm457, %v928, 0
        %v987 = vsel %vm457, %v929, 0
        %v990 = vsel %vm457, %v930, 0
        %v993 = vsel %vm457, %v931, 0
        %v996 = vsel %vm457, %v932, 0
        %v999 = vsel %vm457, %v933, 0
        %v1002 = vsel %vm457, %v934, 0
        %v1005 = vsel %vm457, %v935, 0
        %v1008 = vsel %vm457, %v936, 0
        %v1011 = vsel %vm457, %v937, 0
        %v1014 = vsel %vm457, %v938, 0
        %v1017 = vsel %vm457, %v939, 0
        %v1020 = vsel %vm457, %v940, 0
        %v1023 = vsel %vm457, %v941, 0
        %v1026 = vsel %vm457, %v942, 0
        %v1029 = vsel %vm457, %v943, 0
        %v1032 = vsel %vm457, %v944, 0
        %v1035 = vsel %vm457, %v945, 0
        %v1038 = vsel %vm457, %v946, 0
        %v1041 = vsel %vm457, %v947, 0
        %v1044 = vsel %vm457, %v948, 0
        %v1047 = vsel %vm457, %v949, 0
        %v1050 = vsel %vm457, %v950, 0
        %v1053 = vsel %vm457, %v951, 0
        %v1056 = vsel %vm457, %v952, 0
        %1058 = vmatprep.subr.mxu0 0.0
        %1059 = vmatpush1.msra.mxu0 0.0
        %1060 = vmatprep.subr.mxu0 0.0
        %1061 = vmatpush1.msra.mxu0 0.0
        %1062 = vmatprep.subr.mxu0 0.0
        %1063 = vmatpush1.msra.mxu0 0.0
        %1064 = vmatprep.subr.mxu0 0.0
        %1065 = vmatpush1.msra.mxu0 0.0
        %1066 = vmatprep.subr.mxu0 0.0
        %1067 = vmatpush1.msra.mxu0 0.0
        %1068 = vmatprep.subr.mxu0 0.0
        %1069 = vmatpush1.msra.mxu0 0.0
        %1070 = vmatprep.subr.mxu0 0.0
        %1071 = vmatpush1.msra.mxu0 0.0
        %1072 = vmatprep.subr.mxu0 0.0
        %1073 = vmatpush1.msra.mxu0 0.0
        %1074 = vmatprep.subr.mxu0 0.0
        %1075 = vmatpush1.msra.mxu0 0.0
        %1076 = vmatprep.subr.mxu0 0.0
        %1077 = vmatpush1.msra.mxu0 0.0
        %1078 = vmatprep.subr.mxu0 0.0
        %1079 = vmatpush1.msra.mxu0 0.0
        %1080 = vmatprep.subr.mxu0 0.0
        %1081 = vmatpush1.msra.mxu0 0.0
        %1082 = vmatprep.subr.mxu0 0.0
        %1083 = vmatpush1.msra.mxu0 0.0
        %1084 = vmatprep.subr.mxu0 0.0
        %1085 = vmatpush1.msra.mxu0 0.0
        %1086 = vmatprep.subr.mxu0 0.0
        %1087 = vmatpush1.msra.mxu0 %v954
        %1088 = vmatprep.subr.mxu0 0.0
        %1089 = vmatpush1.msra.mxu0 %v953
        %1090 = vmatprep.subr.mxu0 0.0
        %1091 = vmatpush2.msra.mxu0 0.0
        %1092 = vmatprep.subr.mxu0 0.0
        %1093 = vmatpush2.msra.mxu0 0.0
        %1094 = vmatprep.subr.mxu0 0.0
        %1095 = vmatpush2.msra.mxu0 0.0
        %1096 = vmatprep.subr.mxu0 0.0
        %1097 = vmatpush2.msra.mxu0 0.0
        %1098 = vmatprep.subr.mxu0 0.0
        %1099 = vmatpush2.msra.mxu0 0.0
        %1100 = vmatprep.subr.mxu0 0.0
        %1101 = vmatpush2.msra.mxu0 0.0
        %1102 = vmatprep.subr.mxu0 0.0
        %1103 = vmatpush2.msra.mxu0 0.0
        %1104 = vmatprep.subr.mxu0 0.0
        %1105 = vmatpush2.msra.mxu0 0.0
        %1106 = vmatprep.subr.mxu0 0.0
        %1107 = vmatpush2.msra.mxu0 0.0
        %1108 = vmatprep.subr.mxu0 0.0
        %1109 = vmatpush2.msra.mxu0 0.0
        %1110 = vmatprep.subr.mxu0 0.0
        %1111 = vmatpush2.msra.mxu0 0.0
        %1112 = vmatprep.subr.mxu0 0.0
        %1113 = vmatpush2.msra.mxu0 0.0
        %1114 = vmatprep.subr.mxu0 0.0
        %1115 = vmatpush2.msra.mxu0 0.0
        %1116 = vmatprep.subr.mxu0 0.0
        %1117 = vmatpush2.msra.mxu0 0.0
        %1118 = vmatprep.subr.mxu0 0.0
        %1119 = vmatpush2.msra.mxu0 0.0
        %1120 = vmatprep.subr.mxu0 0.0
        %1121 = vmatpush2.msra.mxu0 0.0
        %1122 = vmatprep.mubr.f32.mxu0 0.0
        %1123 = vmatmul.mubr.f32.gmra.mxu0 %v963
        %v1124 = vpop.f32.mrf.mxu0
        %v1125 = vadd.f32 %v960, %v1124
        %v1126 = vpop.f32.mrf.mxu0
        %1127 = vmatprep.mubr.f32.mxu0 0.0
        %1128 = vmatmul.mubr.f32.gmra.mxu0 %v966
        %v1129 = vpop.f32.mrf.mxu0
        %v1130 = vadd.f32 %v960, %v1129
        %v1131 = vpop.f32.mrf.mxu0
        %1132 = vmatprep.mubr.f32.mxu0 0.0
        %1133 = vmatmul.mubr.f32.gmra.mxu0 %v969
        %v1134 = vpop.f32.mrf.mxu0
        %v1135 = vadd.f32 %v960, %v1134
        %v1136 = vpop.f32.mrf.mxu0
        %1137 = vmatprep.mubr.f32.mxu0 0.0
        %1138 = vmatmul.mubr.f32.gmra.mxu0 %v972
        %v1139 = vpop.f32.mrf.mxu0
        %v1140 = vadd.f32 %v960, %v1139
        %v1141 = vpop.f32.mrf.mxu0
        %1142 = vmatprep.mubr.f32.mxu0 0.0
        %1143 = vmatmul.mubr.f32.gmra.mxu0 %v975
        %v1144 = vpop.f32.mrf.mxu0
        %v1145 = vadd.f32 %v960, %v1144
        %v1146 = vpop.f32.mrf.mxu0
        %1147 = vmatprep.mubr.f32.mxu0 0.0
        %1148 = vmatmul.mubr.f32.gmra.mxu0 %v978
        %v1149 = vpop.f32.mrf.mxu0
        %v1150 = vadd.f32 %v960, %v1149
        %v1151 = vpop.f32.mrf.mxu0
        %1152 = vmatprep.mubr.f32.mxu0 0.0
        %1153 = vmatmul.mubr.f32.gmra.mxu0 %v981
        %v1154 = vpop.f32.mrf.mxu0
        %v1155 = vadd.f32 %v960, %v1154
        %v1156 = vpop.f32.mrf.mxu0
        %1157 = vmatprep.mubr.f32.mxu0 0.0
        %1158 = vmatmul.mubr.f32.gmra.mxu0 %v984
        %v1159 = vpop.f32.mrf.mxu0
        %v1160 = vadd.f32 %v960, %v1159
        %v1161 = vpop.f32.mrf.mxu0
        %1162 = vmatprep.mubr.f32.mxu0 0.0
        %1163 = vmatmul.mubr.f32.gmra.mxu0 %v987
        %v1164 = vpop.f32.mrf.mxu0
        %v1165 = vadd.f32 %v960, %v1164
        %v1166 = vpop.f32.mrf.mxu0
        %1167 = vmatprep.mubr.f32.mxu0 0.0
        %1168 = vmatmul.mubr.f32.gmra.mxu0 %v990
        %v1169 = vpop.f32.mrf.mxu0
        %v1170 = vadd.f32 %v960, %v1169
        %v1171 = vpop.f32.mrf.mxu0
        %1172 = vmatprep.mubr.f32.mxu0 0.0
        %1173 = vmatmul.mubr.f32.gmra.mxu0 %v993
        %v1174 = vpop.f32.mrf.mxu0
        %v1175 = vadd.f32 %v960, %v1174
        %v1176 = vpop.f32.mrf.mxu0
        %1177 = vmatprep.mubr.f32.mxu0 0.0
        %1178 = vmatmul.mubr.f32.gmra.mxu0 %v996
        %v1179 = vpop.f32.mrf.mxu0
        %v1180 = vadd.f32 %v960, %v1179
        %v1181 = vpop.f32.mrf.mxu0
        %1182 = vmatprep.mubr.f32.mxu0 0.0
        %1183 = vmatmul.mubr.f32.gmra.mxu0 %v999
        %v1184 = vpop.f32.mrf.mxu0
        %v1185 = vadd.f32 %v960, %v1184
        %v1186 = vpop.f32.mrf.mxu0
        %1187 = vmatprep.mubr.f32.mxu0 0.0
        %1188 = vmatmul.mubr.f32.gmra.mxu0 %v1002
        %v1189 = vpop.f32.mrf.mxu0
        %v1190 = vadd.f32 %v960, %v1189
        %v1191 = vpop.f32.mrf.mxu0
        %1192 = vmatprep.mubr.f32.mxu0 0.0
        %1193 = vmatmul.mubr.f32.gmra.mxu0 %v1005
        %v1194 = vpop.f32.mrf.mxu0
        %v1195 = vadd.f32 %v960, %v1194
        %v1196 = vpop.f32.mrf.mxu0
        %1197 = vmatprep.mubr.f32.mxu0 0.0
        %1198 = vmatmul.mubr.f32.gmra.mxu0 %v1008
        %v1199 = vpop.f32.mrf.mxu0
        %v1200 = vadd.f32 %v960, %v1199
        %v1201 = vpop.f32.mrf.mxu0
        %1202 = vmatprep.mubr.f32.mxu0 0.0
        %1203 = vmatmul.mubr.f32.gmra.mxu0 %v1011
        %v1204 = vpop.f32.mrf.mxu0
        %v1205 = vadd.f32 %v960, %v1204
        %v1206 = vpop.f32.mrf.mxu0
        %1207 = vmatprep.mubr.f32.mxu0 0.0
        %1208 = vmatmul.mubr.f32.gmra.mxu0 %v1014
        %v1209 = vpop.f32.mrf.mxu0
        %v1210 = vadd.f32 %v960, %v1209
        %v1211 = vpop.f32.mrf.mxu0
        %1212 = vmatprep.mubr.f32.mxu0 0.0
        %1213 = vmatmul.mubr.f32.gmra.mxu0 %v1017
        %v1214 = vpop.f32.mrf.mxu0
        %v1215 = vadd.f32 %v960, %v1214
        %v1216 = vpop.f32.mrf.mxu0
        %1217 = vmatprep.mubr.f32.mxu0 0.0
        %1218 = vmatmul.mubr.f32.gmra.mxu0 %v1020
        %v1219 = vpop.f32.mrf.mxu0
        %v1220 = vadd.f32 %v960, %v1219
        %v1221 = vpop.f32.mrf.mxu0
        %1222 = vmatprep.mubr.f32.mxu0 0.0
        %1223 = vmatmul.mubr.f32.gmra.mxu0 %v1023
        %v1224 = vpop.f32.mrf.mxu0
        %v1225 = vadd.f32 %v960, %v1224
        %v1226 = vpop.f32.mrf.mxu0
        %1227 = vmatprep.mubr.f32.mxu0 0.0
        %1228 = vmatmul.mubr.f32.gmra.mxu0 %v1026
        %v1229 = vpop.f32.mrf.mxu0
        %v1230 = vadd.f32 %v960, %v1229
        %v1231 = vpop.f32.mrf.mxu0
        %1232 = vmatprep.mubr.f32.mxu0 0.0
        %1233 = vmatmul.mubr.f32.gmra.mxu0 %v1029
        %v1234 = vpop.f32.mrf.mxu0
        %v1235 = vadd.f32 %v960, %v1234
        %v1236 = vpop.f32.mrf.mxu0
        %1237 = vmatprep.mubr.f32.mxu0 0.0
        %1238 = vmatmul.mubr.f32.gmra.mxu0 %v1032
        %v1239 = vpop.f32.mrf.mxu0
        %v1240 = vadd.f32 %v960, %v1239
        %v1241 = vpop.f32.mrf.mxu0
        %1242 = vmatprep.mubr.f32.mxu0 0.0
        %1243 = vmatmul.mubr.f32.gmra.mxu0 %v1035
        %v1244 = vpop.f32.mrf.mxu0
        %v1245 = vadd.f32 %v960, %v1244
        %v1246 = vpop.f32.mrf.mxu0
        %1247 = vmatprep.mubr.f32.mxu0 0.0
        %1248 = vmatmul.mubr.f32.gmra.mxu0 %v1038
        %v1249 = vpop.f32.mrf.mxu0
        %v1250 = vadd.f32 %v960, %v1249
        %v1251 = vpop.f32.mrf.mxu0
        %1252 = vmatprep.mubr.f32.mxu0 0.0
        %1253 = vmatmul.mubr.f32.gmra.mxu0 %v1041
        %v1254 = vpop.f32.mrf.mxu0
        %v1255 = vadd.f32 %v960, %v1254
        %v1256 = vpop.f32.mrf.mxu0
        %1257 = vmatprep.mubr.f32.mxu0 0.0
        %1258 = vmatmul.mubr.f32.gmra.mxu0 %v1044
        %v1259 = vpop.f32.mrf.mxu0
        %v1260 = vadd.f32 %v960, %v1259
        %v1261 = vpop.f32.mrf.mxu0
        %1262 = vmatprep.mubr.f32.mxu0 0.0
        %1263 = vmatmul.mubr.f32.gmra.mxu0 %v1047
        %v1264 = vpop.f32.mrf.mxu0
        %v1265 = vadd.f32 %v960, %v1264
        %v1266 = vpop.f32.mrf.mxu0
        %1267 = vmatprep.mubr.f32.mxu0 0.0
        %1268 = vmatmul.mubr.f32.gmra.mxu0 %v1050
        %v1269 = vpop.f32.mrf.mxu0
        %v1270 = vadd.f32 %v960, %v1269
        %v1271 = vpop.f32.mrf.mxu0
        %1272 = vmatprep.mubr.f32.mxu0 0.0
        %1273 = vmatmul.mubr.f32.gmra.mxu0 %v1053
        %v1274 = vpop.f32.mrf.mxu0
        %v1275 = vadd.f32 %v960, %v1274
        %v1276 = vpop.f32.mrf.mxu0
        %1277 = vmatprep.mubr.f32.mxu0 0.0
        %1278 = vmatmul.mubr.f32.gmra.mxu0 %v1056
        %v1279 = vpop.f32.mrf.mxu0
        %v1280 = vadd.f32 %v960, %v1279
        %v1281 = vpop.f32.mrf.mxu0
        %1282 = vdwg.mxu0
        %v1283 = vld [vmem:[%s422] sm:$0xff]
        %v1284 = vld [vmem:[%s422 + $0x8] sm:$0xff]
        %v1285 = vld [vmem:[%s422 + $0x10] sm:$0xff]
        %v1286 = vld [vmem:[%s422 + $0x18] sm:$0xff]
        %v1287 = vld [vmem:[%s422 + $0x20] sm:$0xff]
        %v1288 = vld [vmem:[%s422 + $0x28] sm:$0xff]
        %v1289 = vld [vmem:[%s422 + $0x30] sm:$0xff]
        %v1290 = vld [vmem:[%s422 + $0x38] sm:$0xff]
        %v1291 = vld [vmem:[%s422 + $0x40] sm:$0xff]
        %v1292 = vld [vmem:[%s422 + $0x48] sm:$0xff]
        %v1293 = vld [vmem:[%s422 + $0x50] sm:$0xff]
        %v1294 = vld [vmem:[%s422 + $0x58] sm:$0xff]
        %v1295 = vld [vmem:[%s422 + $0x60] sm:$0xff]
        %v1296 = vld [vmem:[%s422 + $0x68] sm:$0xff]
        %v1297 = vld [vmem:[%s422 + $0x70] sm:$0xff]
        %v1298 = vld [vmem:[%s422 + $0x78] sm:$0xff]
        %v1299 = vld [vmem:[%s422 + $0x80] sm:$0xff]
        %v1300 = vld [vmem:[%s422 + $0x88] sm:$0xff]
        %v1301 = vld [vmem:[%s422 + $0x90] sm:$0xff]
        %v1302 = vld [vmem:[%s422 + $0x98] sm:$0xff]
        %v1303 = vld [vmem:[%s422 + $0xa0] sm:$0xff]
        %v1304 = vld [vmem:[%s422 + $0xa8] sm:$0xff]
        %v1305 = vld [vmem:[%s422 + $0xb0] sm:$0xff]
        %v1306 = vld [vmem:[%s422 + $0xb8] sm:$0xff]
        %v1307 = vld [vmem:[%s422 + $0xc0] sm:$0xff]
        %v1308 = vld [vmem:[%s422 + $0xc8] sm:$0xff]
        %v1309 = vld [vmem:[%s422 + $0xd0] sm:$0xff]
        %v1310 = vld [vmem:[%s422 + $0xd8] sm:$0xff]
        %v1311 = vld [vmem:[%s422 + $0xe0] sm:$0xff]
        %v1312 = vld [vmem:[%s422 + $0xe8] sm:$0xff]
        %v1313 = vld [vmem:[%s422 + $0xf0] sm:$0xff]
        %v1314 = vld [vmem:[%s422 + $0xf8] sm:$0xff]
        %vm1315 = vcmask 261120
        %v1316 = vsel %vm1315, %v1283, 0.0
        %1317 = vadd.xlane.f32.xlu0 %v1316
        %v1318 = vpop.xlane.xlu0 %1317
        %v1319 = vsel %vm1315, %v1284, 0.0
        %1320 = vadd.xlane.f32.xlu0 %v1319
        %v1321 = vpop.xlane.xlu0 %1320
        %v1322 = vsel %vm1315, %v1285, 0.0
        %1323 = vadd.xlane.f32.xlu0 %v1322
        %v1324 = vpop.xlane.xlu0 %1323
        %v1325 = vsel %vm1315, %v1286, 0.0
        %1326 = vadd.xlane.f32.xlu0 %v1325
        %v1327 = vpop.xlane.xlu0 %1326
        %v1328 = vsel %vm1315, %v1287, 0.0
        %1329 = vadd.xlane.f32.xlu0 %v1328
        %v1330 = vpop.xlane.xlu0 %1329
        %v1331 = vsel %vm1315, %v1288, 0.0
        %1332 = vadd.xlane.f32.xlu0 %v1331
        %v1333 = vpop.xlane.xlu0 %1332
        %v1334 = vsel %vm1315, %v1289, 0.0
        %1335 = vadd.xlane.f32.xlu0 %v1334
        %v1336 = vpop.xlane.xlu0 %1335
        %v1337 = vsel %vm1315, %v1290, 0.0
        %1338 = vadd.xlane.f32.xlu0 %v1337
        %v1339 = vpop.xlane.xlu0 %1338
        %v1340 = vsel %vm1315, %v1291, 0.0
        %1341 = vadd.xlane.f32.xlu0 %v1340
        %v1342 = vpop.xlane.xlu0 %1341
        %v1343 = vsel %vm1315, %v1292, 0.0
        %1344 = vadd.xlane.f32.xlu0 %v1343
        %v1345 = vpop.xlane.xlu0 %1344
        %v1346 = vsel %vm1315, %v1293, 0.0
        %1347 = vadd.xlane.f32.xlu0 %v1346
        %v1348 = vpop.xlane.xlu0 %1347
        %v1349 = vsel %vm1315, %v1294, 0.0
        %1350 = vadd.xlane.f32.xlu0 %v1349
        %v1351 = vpop.xlane.xlu0 %1350
        %v1352 = vsel %vm1315, %v1295, 0.0
        %1353 = vadd.xlane.f32.xlu0 %v1352
        %v1354 = vpop.xlane.xlu0 %1353
        %v1355 = vsel %vm1315, %v1296, 0.0
        %1356 = vadd.xlane.f32.xlu0 %v1355
        %v1357 = vpop.xlane.xlu0 %1356
        %v1358 = vsel %vm1315, %v1297, 0.0
        %1359 = vadd.xlane.f32.xlu0 %v1358
        %v1360 = vpop.xlane.xlu0 %1359
        %v1361 = vsel %vm1315, %v1298, 0.0
        %1362 = vadd.xlane.f32.xlu0 %v1361
        %v1363 = vpop.xlane.xlu0 %1362
        %v1364 = vsel %vm1315, %v1299, 0.0
        %1365 = vadd.xlane.f32.xlu0 %v1364
        %v1366 = vpop.xlane.xlu0 %1365
        %v1367 = vsel %vm1315, %v1300, 0.0
        %1368 = vadd.xlane.f32.xlu0 %v1367
        %v1369 = vpop.xlane.xlu0 %1368
        %v1370 = vsel %vm1315, %v1301, 0.0
        %1371 = vadd.xlane.f32.xlu0 %v1370
        %v1372 = vpop.xlane.xlu0 %1371
        %v1373 = vsel %vm1315, %v1302, 0.0
        %1374 = vadd.xlane.f32.xlu0 %v1373
        %v1375 = vpop.xlane.xlu0 %1374
        %v1376 = vsel %vm1315, %v1303, 0.0
        %1377 = vadd.xlane.f32.xlu0 %v1376
        %v1378 = vpop.xlane.xlu0 %1377
        %v1379 = vsel %vm1315, %v1304, 0.0
        %1380 = vadd.xlane.f32.xlu0 %v1379
        %v1381 = vpop.xlane.xlu0 %1380
        %v1382 = vsel %vm1315, %v1305, 0.0
        %1383 = vadd.xlane.f32.xlu0 %v1382
        %v1384 = vpop.xlane.xlu0 %1383
        %v1385 = vsel %vm1315, %v1306, 0.0
        %1386 = vadd.xlane.f32.xlu0 %v1385
        %v1387 = vpop.xlane.xlu0 %1386
        %v1388 = vsel %vm1315, %v1307, 0.0
        %1389 = vadd.xlane.f32.xlu0 %v1388
        %v1390 = vpop.xlane.xlu0 %1389
        %v1391 = vsel %vm1315, %v1308, 0.0
        %1392 = vadd.xlane.f32.xlu0 %v1391
        %v1393 = vpop.xlane.xlu0 %1392
        %v1394 = vsel %vm1315, %v1309, 0.0
        %1395 = vadd.xlane.f32.xlu0 %v1394
        %v1396 = vpop.xlane.xlu0 %1395
        %v1397 = vsel %vm1315, %v1310, 0.0
        %1398 = vadd.xlane.f32.xlu0 %v1397
        %v1399 = vpop.xlane.xlu0 %1398
        %v1400 = vsel %vm1315, %v1311, 0.0
        %1401 = vadd.xlane.f32.xlu0 %v1400
        %v1402 = vpop.xlane.xlu0 %1401
        %v1403 = vsel %vm1315, %v1312, 0.0
        %1404 = vadd.xlane.f32.xlu0 %v1403
        %v1405 = vpop.xlane.xlu0 %1404
        %v1406 = vsel %vm1315, %v1313, 0.0
        %1407 = vadd.xlane.f32.xlu0 %v1406
        %v1408 = vpop.xlane.xlu0 %1407
        %v1409 = vsel %vm1315, %v1314, 0.0
        %1410 = vadd.xlane.f32.xlu0 %v1409
        %v1411 = vpop.xlane.xlu0 %1410
        %v1412 = vrcp.pop 32.0
        %v1413 = vmul.f32 %v1318, %v1412
        %v1414 = vmul.f32 %v1321, %v1412
        %v1415 = vmul.f32 %v1324, %v1412
        %v1416 = vmul.f32 %v1327, %v1412
        %v1417 = vmul.f32 %v1330, %v1412
        %v1418 = vmul.f32 %v1333, %v1412
        %v1419 = vmul.f32 %v1336, %v1412
        %v1420 = vmul.f32 %v1339, %v1412
        %v1421 = vmul.f32 %v1342, %v1412
        %v1422 = vmul.f32 %v1345, %v1412
        %v1423 = vmul.f32 %v1348, %v1412
        %v1424 = vmul.f32 %v1351, %v1412
        %v1425 = vmul.f32 %v1354, %v1412
        %v1426 = vmul.f32 %v1357, %v1412
        %v1427 = vmul.f32 %v1360, %v1412
        %v1428 = vmul.f32 %v1363, %v1412
        %v1429 = vmul.f32 %v1366, %v1412
        %v1430 = vmul.f32 %v1369, %v1412
        %v1431 = vmul.f32 %v1372, %v1412
        %v1432 = vmul.f32 %v1375, %v1412
        %v1433 = vmul.f32 %v1378, %v1412
        %v1434 = vmul.f32 %v1381, %v1412
        %v1435 = vmul.f32 %v1384, %v1412
        %v1436 = vmul.f32 %v1387, %v1412
        %v1437 = vmul.f32 %v1390, %v1412
        %v1438 = vmul.f32 %v1393, %v1412
        %v1439 = vmul.f32 %v1396, %v1412
        %v1440 = vmul.f32 %v1399, %v1412
        %v1441 = vmul.f32 %v1402, %v1412
        %v1442 = vmul.f32 %v1405, %v1412
        %v1443 = vmul.f32 %v1408, %v1412
        %v1444 = vmul.f32 %v1411, %v1412
        %v1445 = vsub.f32 %v1283, %v1413
        %v1446 = vsub.f32 %v1284, %v1414
        %v1447 = vsub.f32 %v1285, %v1415
        %v1448 = vsub.f32 %v1286, %v1416
        %v1449 = vsub.f32 %v1287, %v1417
        %v1450 = vsub.f32 %v1288, %v1418
        %v1451 = vsub.f32 %v1289, %v1419
        %v1452 = vsub.f32 %v1290, %v1420
        %v1453 = vsub.f32 %v1291, %v1421
        %v1454 = vsub.f32 %v1292, %v1422
        %v1455 = vsub.f32 %v1293, %v1423
        %v1456 = vsub.f32 %v1294, %v1424
        %v1457 = vsub.f32 %v1295, %v1425
        %v1458 = vsub.f32 %v1296, %v1426
        %v1459 = vsub.f32 %v1297, %v1427
        %v1460 = vsub.f32 %v1298, %v1428
        %v1461 = vsub.f32 %v1299, %v1429
        %v1462 = vsub.f32 %v1300, %v1430
        %v1463 = vsub.f32 %v1301, %v1431
        %v1464 = vsub.f32 %v1302, %v1432
        %v1465 = vsub.f32 %v1303, %v1433
        %v1466 = vsub.f32 %v1304, %v1434
        %v1467 = vsub.f32 %v1305, %v1435
        %v1468 = vsub.f32 %v1306, %v1436
        %v1469 = vsub.f32 %v1307, %v1437
        %v1470 = vsub.f32 %v1308, %v1438
        %v1471 = vsub.f32 %v1309, %v1439
        %v1472 = vsub.f32 %v1310, %v1440
        %v1473 = vsub.f32 %v1311, %v1441
        %v1474 = vsub.f32 %v1312, %v1442
        %v1475 = vsub.f32 %v1313, %v1443
        %v1476 = vsub.f32 %v1314, %v1444
        %v1477 = vmul.f32 %v1445, %v1445
        %v1478 = vmul.f32 %v1446, %v1446
        %v1479 = vmul.f32 %v1447, %v1447
        %v1480 = vmul.f32 %v1448, %v1448
        %v1481 = vmul.f32 %v1449, %v1449
        %v1482 = vmul.f32 %v1450, %v1450
        %v1483 = vmul.f32 %v1451, %v1451
        %v1484 = vmul.f32 %v1452, %v1452
        %v1485 = vmul.f32 %v1453, %v1453
        %v1486 = vmul.f32 %v1454, %v1454
        %v1487 = vmul.f32 %v1455, %v1455
        %v1488 = vmul.f32 %v1456, %v1456
        %v1489 = vmul.f32 %v1457, %v1457
        %v1490 = vmul.f32 %v1458, %v1458
        %v1491 = vmul.f32 %v1459, %v1459
        %v1492 = vmul.f32 %v1460, %v1460
        %v1493 = vmul.f32 %v1461, %v1461
        %v1494 = vmul.f32 %v1462, %v1462
        %v1495 = vmul.f32 %v1463, %v1463
        %v1496 = vmul.f32 %v1464, %v1464
        %v1497 = vmul.f32 %v1465, %v1465
        %v1498 = vmul.f32 %v1466, %v1466
        %v1499 = vmul.f32 %v1467, %v1467
        %v1500 = vmul.f32 %v1468, %v1468
        %v1501 = vmul.f32 %v1469, %v1469
        %v1502 = vmul.f32 %v1470, %v1470
        %v1503 = vmul.f32 %v1471, %v1471
        %v1504 = vmul.f32 %v1472, %v1472
        %v1505 = vmul.f32 %v1473, %v1473
        %v1506 = vmul.f32 %v1474, %v1474
        %v1507 = vmul.f32 %v1475, %v1475
        %v1508 = vmul.f32 %v1476, %v1476
        %v1509 = vsel %vm1315, %v1477, 0.0
        %1510 = vadd.xlane.f32.xlu0 %v1509
        %v1511 = vpop.xlane.xlu0 %1510
        %v1512 = vsel %vm1315, %v1478, 0.0
        %1513 = vadd.xlane.f32.xlu0 %v1512
        %v1514 = vpop.xlane.xlu0 %1513
        %v1515 = vsel %vm1315, %v1479, 0.0
        %1516 = vadd.xlane.f32.xlu0 %v1515
        %v1517 = vpop.xlane.xlu0 %1516
        %v1518 = vsel %vm1315, %v1480, 0.0
        %1519 = vadd.xlane.f32.xlu0 %v1518
        %v1520 = vpop.xlane.xlu0 %1519
        %v1521 = vsel %vm1315, %v1481, 0.0
        %1522 = vadd.xlane.f32.xlu0 %v1521
        %v1523 = vpop.xlane.xlu0 %1522
        %v1524 = vsel %vm1315, %v1482, 0.0
        %1525 = vadd.xlane.f32.xlu0 %v1524
        %v1526 = vpop.xlane.xlu0 %1525
        %v1527 = vsel %vm1315, %v1483, 0.0
        %1528 = vadd.xlane.f32.xlu0 %v1527
        %v1529 = vpop.xlane.xlu0 %1528
        %v1530 = vsel %vm1315, %v1484, 0.0
        %1531 = vadd.xlane.f32.xlu0 %v1530
        %v1532 = vpop.xlane.xlu0 %1531
        %v1533 = vsel %vm1315, %v1485, 0.0
        %1534 = vadd.xlane.f32.xlu0 %v1533
        %v1535 = vpop.xlane.xlu0 %1534
        %v1536 = vsel %vm1315, %v1486, 0.0
        %1537 = vadd.xlane.f32.xlu0 %v1536
        %v1538 = vpop.xlane.xlu0 %1537
        %v1539 = vsel %vm1315, %v1487, 0.0
        %1540 = vadd.xlane.f32.xlu0 %v1539
        %v1541 = vpop.xlane.xlu0 %1540
        %v1542 = vsel %vm1315, %v1488, 0.0
        %1543 = vadd.xlane.f32.xlu0 %v1542
        %v1544 = vpop.xlane.xlu0 %1543
        %v1545 = vsel %vm1315, %v1489, 0.0
        %1546 = vadd.xlane.f32.xlu0 %v1545
        %v1547 = vpop.xlane.xlu0 %1546
        %v1548 = vsel %vm1315, %v1490, 0.0
        %1549 = vadd.xlane.f32.xlu0 %v1548
        %v1550 = vpop.xlane.xlu0 %1549
        %v1551 = vsel %vm1315, %v1491, 0.0
        %1552 = vadd.xlane.f32.xlu0 %v1551
        %v1553 = vpop.xlane.xlu0 %1552
        %v1554 = vsel %vm1315, %v1492, 0.0
        %1555 = vadd.xlane.f32.xlu0 %v1554
        %v1556 = vpop.xlane.xlu0 %1555
        %v1557 = vsel %vm1315, %v1493, 0.0
        %1558 = vadd.xlane.f32.xlu0 %v1557
        %v1559 = vpop.xlane.xlu0 %1558
        %v1560 = vsel %vm1315, %v1494, 0.0
        %1561 = vadd.xlane.f32.xlu0 %v1560
        %v1562 = vpop.xlane.xlu0 %1561
        %v1563 = vsel %vm1315, %v1495, 0.0
        %1564 = vadd.xlane.f32.xlu0 %v1563
        %v1565 = vpop.xlane.xlu0 %1564
        %v1566 = vsel %vm1315, %v1496, 0.0
        %1567 = vadd.xlane.f32.xlu0 %v1566
        %v1568 = vpop.xlane.xlu0 %1567
        %v1569 = vsel %vm1315, %v1497, 0.0
        %1570 = vadd.xlane.f32.xlu0 %v1569
        %v1571 = vpop.xlane.xlu0 %1570
        %v1572 = vsel %vm1315, %v1498, 0.0
        %1573 = vadd.xlane.f32.xlu0 %v1572
        %v1574 = vpop.xlane.xlu0 %1573
        %v1575 = vsel %vm1315, %v1499, 0.0
        %1576 = vadd.xlane.f32.xlu0 %v1575
        %v1577 = vpop.xlane.xlu0 %1576
        %v1578 = vsel %vm1315, %v1500, 0.0
        %1579 = vadd.xlane.f32.xlu0 %v1578
        %v1580 = vpop.xlane.xlu0 %1579
        %v1581 = vsel %vm1315, %v1501, 0.0
        %1582 = vadd.xlane.f32.xlu0 %v1581
        %v1583 = vpop.xlane.xlu0 %1582
        %v1584 = vsel %vm1315, %v1502, 0.0
        %1585 = vadd.xlane.f32.xlu0 %v1584
        %v1586 = vpop.xlane.xlu0 %1585
        %v1587 = vsel %vm1315, %v1503, 0.0
        %1588 = vadd.xlane.f32.xlu0 %v1587
        %v1589 = vpop.xlane.xlu0 %1588
        %v1590 = vsel %vm1315, %v1504, 0.0
        %1591 = vadd.xlane.f32.xlu0 %v1590
        %v1592 = vpop.xlane.xlu0 %1591
        %v1593 = vsel %vm1315, %v1505, 0.0
        %1594 = vadd.xlane.f32.xlu0 %v1593
        %v1595 = vpop.xlane.xlu0 %1594
        %v1596 = vsel %vm1315, %v1506, 0.0
        %1597 = vadd.xlane.f32.xlu0 %v1596
        %v1598 = vpop.xlane.xlu0 %1597
        %v1599 = vsel %vm1315, %v1507, 0.0
        %1600 = vadd.xlane.f32.xlu0 %v1599
        %v1601 = vpop.xlane.xlu0 %1600
        %v1602 = vsel %vm1315, %v1508, 0.0
        %1603 = vadd.xlane.f32.xlu0 %v1602
        %v1604 = vpop.xlane.xlu0 %1603
        %v1605 = vmul.f32 %v1511, %v1412
        %v1606 = vmul.f32 %v1514, %v1412
        %v1607 = vmul.f32 %v1517, %v1412
        %v1608 = vmul.f32 %v1520, %v1412
        %v1609 = vmul.f32 %v1523, %v1412
        %v1610 = vmul.f32 %v1526, %v1412
        %v1611 = vmul.f32 %v1529, %v1412
        %v1612 = vmul.f32 %v1532, %v1412
        %v1613 = vmul.f32 %v1535, %v1412
        %v1614 = vmul.f32 %v1538, %v1412
        %v1615 = vmul.f32 %v1541, %v1412
        %v1616 = vmul.f32 %v1544, %v1412
        %v1617 = vmul.f32 %v1547, %v1412
        %v1618 = vmul.f32 %v1550, %v1412
        %v1619 = vmul.f32 %v1553, %v1412
        %v1620 = vmul.f32 %v1556, %v1412
        %v1621 = vmul.f32 %v1559, %v1412
        %v1622 = vmul.f32 %v1562, %v1412
        %v1623 = vmul.f32 %v1565, %v1412
        %v1624 = vmul.f32 %v1568, %v1412
        %v1625 = vmul.f32 %v1571, %v1412
        %v1626 = vmul.f32 %v1574, %v1412
        %v1627 = vmul.f32 %v1577, %v1412
        %v1628 = vmul.f32 %v1580, %v1412
        %v1629 = vmul.f32 %v1583, %v1412
        %v1630 = vmul.f32 %v1586, %v1412
        %v1631 = vmul.f32 %v1589, %v1412
        %v1632 = vmul.f32 %v1592, %v1412
        %v1633 = vmul.f32 %v1595, %v1412
        %v1634 = vmul.f32 %v1598, %v1412
        %v1635 = vmul.f32 %v1601, %v1412
        %v1636 = vmul.f32 %v1604, %v1412
        %v1637 = vadd.f32 %v1605, 1e-05
        %v1638 = vadd.f32 %v1606, 1e-05
        %v1639 = vadd.f32 %v1607, 1e-05
        %v1640 = vadd.f32 %v1608, 1e-05
        %v1641 = vadd.f32 %v1609, 1e-05
        %v1642 = vadd.f32 %v1610, 1e-05
        %v1643 = vadd.f32 %v1611, 1e-05
        %v1644 = vadd.f32 %v1612, 1e-05
        %v1645 = vadd.f32 %v1613, 1e-05
        %v1646 = vadd.f32 %v1614, 1e-05
        %v1647 = vadd.f32 %v1615, 1e-05
        %v1648 = vadd.f32 %v1616, 1e-05
        %v1649 = vadd.f32 %v1617, 1e-05
        %v1650 = vadd.f32 %v1618, 1e-05
        %v1651 = vadd.f32 %v1619, 1e-05
        %v1652 = vadd.f32 %v1620, 1e-05
        %v1653 = vadd.f32 %v1621, 1e-05
        %v1654 = vadd.f32 %v1622, 1e-05
        %v1655 = vadd.f32 %v1623, 1e-05
        %v1656 = vadd.f32 %v1624, 1e-05
        %v1657 = vadd.f32 %v1625, 1e-05
        %v1658 = vadd.f32 %v1626, 1e-05
        %v1659 = vadd.f32 %v1627, 1e-05
        %v1660 = vadd.f32 %v1628, 1e-05
        %v1661 = vadd.f32 %v1629, 1e-05
        %v1662 = vadd.f32 %v1630, 1e-05
        %v1663 = vadd.f32 %v1631, 1e-05
        %v1664 = vadd.f32 %v1632, 1e-05
        %v1665 = vadd.f32 %v1633, 1e-05
        %v1666 = vadd.f32 %v1634, 1e-05
        %v1667 = vadd.f32 %v1635, 1e-05
        %v1668 = vadd.f32 %v1636, 1e-05
        %v1669 = vrsqrt.pop %v1637
        %v1670 = vrsqrt.pop %v1638
        %v1671 = vrsqrt.pop %v1639
        %v1672 = vrsqrt.pop %v1640
        %v1673 = vrsqrt.pop %v1641
        %v1674 = vrsqrt.pop %v1642
        %v1675 = vrsqrt.pop %v1643
        %v1676 = vrsqrt.pop %v1644
        %v1677 = vrsqrt.pop %v1645
        %v1678 = vrsqrt.pop %v1646
        %v1679 = vrsqrt.pop %v1647
        %v1680 = vrsqrt.pop %v1648
        %v1681 = vrsqrt.pop %v1649
        %v1682 = vrsqrt.pop %v1650
        %v1683 = vrsqrt.pop %v1651
        %v1684 = vrsqrt.pop %v1652
        %v1685 = vrsqrt.pop %v1653
        %v1686 = vrsqrt.pop %v1654
        %v1687 = vrsqrt.pop %v1655
        %v1688 = vrsqrt.pop %v1656
        %v1689 = vrsqrt.pop %v1657
        %v1690 = vrsqrt.pop %v1658
        %v1691 = vrsqrt.pop %v1659
        %v1692 = vrsqrt.pop %v1660
        %v1693 = vrsqrt.pop %v1661
        %v1694 = vrsqrt.pop %v1662
        %v1695 = vrsqrt.pop %v1663
        %v1696 = vrsqrt.pop %v1664
        %v1697 = vrsqrt.pop %v1665
        %v1698 = vrsqrt.pop %v1666
        %v1699 = vrsqrt.pop %v1667
        %v1700 = vrsqrt.pop %v1668
        %v1701 = vmul.f32 %v1445, %v1669
        %v1702 = vmul.f32 %v1446, %v1670
        %v1703 = vmul.f32 %v1447, %v1671
        %v1704 = vmul.f32 %v1448, %v1672
        %v1705 = vmul.f32 %v1449, %v1673
        %v1706 = vmul.f32 %v1450, %v1674
        %v1707 = vmul.f32 %v1451, %v1675
        %v1708 = vmul.f32 %v1452, %v1676
        %v1709 = vmul.f32 %v1453, %v1677
        %v1710 = vmul.f32 %v1454, %v1678
        %v1711 = vmul.f32 %v1455, %v1679
        %v1712 = vmul.f32 %v1456, %v1680
        %v1713 = vmul.f32 %v1457, %v1681
        %v1714 = vmul.f32 %v1458, %v1682
        %v1715 = vmul.f32 %v1459, %v1683
        %v1716 = vmul.f32 %v1460, %v1684
        %v1717 = vmul.f32 %v1461, %v1685
        %v1718 = vmul.f32 %v1462, %v1686
        %v1719 = vmul.f32 %v1463, %v1687
        %v1720 = vmul.f32 %v1464, %v1688
        %v1721 = vmul.f32 %v1465, %v1689
        %v1722 = vmul.f32 %v1466, %v1690
        %v1723 = vmul.f32 %v1467, %v1691
        %v1724 = vmul.f32 %v1468, %v1692
        %v1725 = vmul.f32 %v1469, %v1693
        %v1726 = vmul.f32 %v1470, %v1694
        %v1727 = vmul.f32 %v1471, %v1695
        %v1728 = vmul.f32 %v1472, %v1696
        %v1729 = vmul.f32 %v1473, %v1697
        %v1730 = vmul.f32 %v1474, %v1698
        %v1731 = vmul.f32 %v1475, %v1699
        %v1732 = vmul.f32 %v1476, %v1700
        %v1733 = vld [vmem:[%s2] sm:$0x1]
        %v1735 = vlaneseq
        %v1736 = vshrl.u32 %v1735, 7
        %v1737 = vsub.s32 0, %v1736
        %v1738 = vrot.slane %v1733, %v1737
        %v1740 = vmul.f32 %v1701, %v1738
        %v1741 = vmul.f32 %v1702, %v1738
        %v1742 = vmul.f32 %v1703, %v1738
        %v1743 = vmul.f32 %v1704, %v1738
        %v1744 = vmul.f32 %v1705, %v1738
        %v1745 = vmul.f32 %v1706, %v1738
        %v1746 = vmul.f32 %v1707, %v1738
        %v1747 = vmul.f32 %v1708, %v1738
        %v1748 = vmul.f32 %v1709, %v1738
        %v1749 = vmul.f32 %v1710, %v1738
        %v1750 = vmul.f32 %v1711, %v1738
        %v1751 = vmul.f32 %v1712, %v1738
        %v1752 = vmul.f32 %v1713, %v1738
        %v1753 = vmul.f32 %v1714, %v1738
        %v1754 = vmul.f32 %v1715, %v1738
        %v1755 = vmul.f32 %v1716, %v1738
        %v1756 = vmul.f32 %v1717, %v1738
        %v1757 = vmul.f32 %v1718, %v1738
        %v1758 = vmul.f32 %v1719, %v1738
        %v1759 = vmul.f32 %v1720, %v1738
        %v1760 = vmul.f32 %v1721, %v1738
        %v1761 = vmul.f32 %v1722, %v1738
        %v1762 = vmul.f32 %v1723, %v1738
        %v1763 = vmul.f32 %v1724, %v1738
        %v1764 = vmul.f32 %v1725, %v1738
        %v1765 = vmul.f32 %v1726, %v1738
        %v1766 = vmul.f32 %v1727, %v1738
        %v1767 = vmul.f32 %v1728, %v1738
        %v1768 = vmul.f32 %v1729, %v1738
        %v1769 = vmul.f32 %v1730, %v1738
        %v1770 = vmul.f32 %v1731, %v1738
        %v1771 = vmul.f32 %v1732, %v1738
        %v1772 = vld [vmem:[%s3] sm:$0x1]
        %v1774 = vlaneseq
        %v1775 = vshrl.u32 %v1774, 7
        %v1776 = vsub.s32 0, %v1775
        %v1777 = vrot.slane %v1772, %v1776
        %v1779 = vadd.f32 %v1740, %v1777
        %v1780 = vadd.f32 %v1741, %v1777
        %v1781 = vadd.f32 %v1742, %v1777
        %v1782 = vadd.f32 %v1743, %v1777
        %v1783 = vadd.f32 %v1744, %v1777
        %v1784 = vadd.f32 %v1745, %v1777
        %v1785 = vadd.f32 %v1746, %v1777
        %v1786 = vadd.f32 %v1747, %v1777
        %v1787 = vadd.f32 %v1748, %v1777
        %v1788 = vadd.f32 %v1749, %v1777
        %v1789 = vadd.f32 %v1750, %v1777
        %v1790 = vadd.f32 %v1751, %v1777
        %v1791 = vadd.f32 %v1752, %v1777
        %v1792 = vadd.f32 %v1753, %v1777
        %v1793 = vadd.f32 %v1754, %v1777
        %v1794 = vadd.f32 %v1755, %v1777
        %v1795 = vadd.f32 %v1756, %v1777
        %v1796 = vadd.f32 %v1757, %v1777
        %v1797 = vadd.f32 %v1758, %v1777
        %v1798 = vadd.f32 %v1759, %v1777
        %v1799 = vadd.f32 %v1760, %v1777
        %v1800 = vadd.f32 %v1761, %v1777
        %v1801 = vadd.f32 %v1762, %v1777
        %v1802 = vadd.f32 %v1763, %v1777
        %v1803 = vadd.f32 %v1764, %v1777
        %v1804 = vadd.f32 %v1765, %v1777
        %v1805 = vadd.f32 %v1766, %v1777
        %v1806 = vadd.f32 %v1767, %v1777
        %v1807 = vadd.f32 %v1768, %v1777
        %v1808 = vadd.f32 %v1769, %v1777
        %v1809 = vadd.f32 %v1770, %v1777
        %v1810 = vadd.f32 %v1771, %v1777
        %v1811 = vld [vmem:[%s4] sm:$0xff]
        %v1812 = vld [vmem:[%s4 + $0x8] sm:$0xff]
        %v1813 = vld [vmem:[%s4 + $0x10] sm:$0xff]
        %v1814 = vld [vmem:[%s4 + $0x18] sm:$0xff]
        %v1815 = vld [vmem:[%s5] sm:$0x1]
        %v1817 = vlaneseq
        %v1818 = vshrl.u32 %v1817, 7
        %v1819 = vsub.s32 0, %v1818
        %v1820 = vrot.slane %v1815, %v1819
        %v1823 = vsel %vm1315, %v1779, 0
        %v1826 = vsel %vm1315, %v1780, 0
        %v1829 = vsel %vm1315, %v1781, 0
        %v1832 = vsel %vm1315, %v1782, 0
        %v1835 = vsel %vm1315, %v1783, 0
        %v1838 = vsel %vm1315, %v1784, 0
        %v1841 = vsel %vm1315, %v1785, 0
        %v1844 = vsel %vm1315, %v1786, 0
        %v1847 = vsel %vm1315, %v1787, 0
        %v1850 = vsel %vm1315, %v1788, 0
        %v1853 = vsel %vm1315, %v1789, 0
        %v1856 = vsel %vm1315, %v1790, 0
        %v1859 = vsel %vm1315, %v1791, 0
        %v1862 = vsel %vm1315, %v1792, 0
        %v1865 = vsel %vm1315, %v1793, 0
        %v1868 = vsel %vm1315, %v1794, 0
        %v1871 = vsel %vm1315, %v1795, 0
        %v1874 = vsel %vm1315, %v1796, 0
        %v1877 = vsel %vm1315, %v1797, 0
        %v1880 = vsel %vm1315, %v1798, 0
        %v1883 = vsel %vm1315, %v1799, 0
        %v1886 = vsel %vm1315, %v1800, 0
        %v1889 = vsel %vm1315, %v1801, 0
        %v1892 = vsel %vm1315, %v1802, 0
        %v1895 = vsel %vm1315, %v1803, 0
        %v1898 = vsel %vm1315, %v1804, 0
        %v1901 = vsel %vm1315, %v1805, 0
        %v1904 = vsel %vm1315, %v1806, 0
        %v1907 = vsel %vm1315, %v1807, 0
        %v1910 = vsel %vm1315, %v1808, 0
        %v1913 = vsel %vm1315, %v1809, 0
        %v1916 = vsel %vm1315, %v1810, 0
        %1918 = vmatprep.subr.mxu0 0.0
        %1919 = vmatpush1.msra.mxu0 0.0
        %1920 = vmatprep.subr.mxu0 0.0
        %1921 = vmatpush1.msra.mxu0 0.0
        %1922 = vmatprep.subr.mxu0 0.0
        %1923 = vmatpush1.msra.mxu0 0.0
        %1924 = vmatprep.subr.mxu0 0.0
        %1925 = vmatpush1.msra.mxu0 0.0
        %1926 = vmatprep.subr.mxu0 0.0
        %1927 = vmatpush1.msra.mxu0 0.0
        %1928 = vmatprep.subr.mxu0 0.0
        %1929 = vmatpush1.msra.mxu0 0.0
        %1930 = vmatprep.subr.mxu0 0.0
        %1931 = vmatpush1.msra.mxu0 0.0
        %1932 = vmatprep.subr.mxu0 0.0
        %1933 = vmatpush1.msra.mxu0 0.0
        %1934 = vmatprep.subr.mxu0 0.0
        %1935 = vmatpush1.msra.mxu0 0.0
        %1936 = vmatprep.subr.mxu0 0.0
        %1937 = vmatpush1.msra.mxu0 0.0
        %1938 = vmatprep.subr.mxu0 0.0
        %1939 = vmatpush1.msra.mxu0 0.0
        %1940 = vmatprep.subr.mxu0 0.0
        %1941 = vmatpush1.msra.mxu0 0.0
        %1942 = vmatprep.subr.mxu0 0.0
        %1943 = vmatpush1.msra.mxu0 %v1814
        %1944 = vmatprep.subr.mxu0 0.0
        %1945 = vmatpush1.msra.mxu0 %v1813
        %1946 = vmatprep.subr.mxu0 0.0
        %1947 = vmatpush1.msra.mxu0 %v1812
        %1948 = vmatprep.subr.mxu0 0.0
        %1949 = vmatpush1.msra.mxu0 %v1811
        %1950 = vmatprep.subr.mxu0 0.0
        %1951 = vmatpush2.msra.mxu0 0.0
        %1952 = vmatprep.subr.mxu0 0.0
        %1953 = vmatpush2.msra.mxu0 0.0
        %1954 = vmatprep.subr.mxu0 0.0
        %1955 = vmatpush2.msra.mxu0 0.0
        %1956 = vmatprep.subr.mxu0 0.0
        %1957 = vmatpush2.msra.mxu0 0.0
        %1958 = vmatprep.subr.mxu0 0.0
        %1959 = vmatpush2.msra.mxu0 0.0
        %1960 = vmatprep.subr.mxu0 0.0
        %1961 = vmatpush2.msra.mxu0 0.0
        %1962 = vmatprep.subr.mxu0 0.0
        %1963 = vmatpush2.msra.mxu0 0.0
        %1964 = vmatprep.subr.mxu0 0.0
        %1965 = vmatpush2.msra.mxu0 0.0
        %1966 = vmatprep.subr.mxu0 0.0
        %1967 = vmatpush2.msra.mxu0 0.0
        %1968 = vmatprep.subr.mxu0 0.0
        %1969 = vmatpush2.msra.mxu0 0.0
        %1970 = vmatprep.subr.mxu0 0.0
        %1971 = vmatpush2.msra.mxu0 0.0
        %1972 = vmatprep.subr.mxu0 0.0
        %1973 = vmatpush2.msra.mxu0 0.0
        %1974 = vmatprep.subr.mxu0 0.0
        %1975 = vmatpush2.msra.mxu0 0.0
        %1976 = vmatprep.subr.mxu0 0.0
        %1977 = vmatpush2.msra.mxu0 0.0
        %1978 = vmatprep.subr.mxu0 0.0
        %1979 = vmatpush2.msra.mxu0 0.0
        %1980 = vmatprep.subr.mxu0 0.0
        %1981 = vmatpush2.msra.mxu0 0.0
        %1982 = vmatprep.mubr.f32.mxu0 0.0
        %1983 = vmatmul.mubr.f32.gmra.mxu0 %v1823
        %v1984 = vpop.f32.mrf.mxu0
        %v1985 = vadd.f32 %v1820, %v1984
        %v1986 = vpop.f32.mrf.mxu0
        %1987 = vmatprep.mubr.f32.mxu0 0.0
        %1988 = vmatmul.mubr.f32.gmra.mxu0 %v1826
        %v1989 = vpop.f32.mrf.mxu0
        %v1990 = vadd.f32 %v1820, %v1989
        %v1991 = vpop.f32.mrf.mxu0
        %1992 = vmatprep.mubr.f32.mxu0 0.0
        %1993 = vmatmul.mubr.f32.gmra.mxu0 %v1829
        %v1994 = vpop.f32.mrf.mxu0
        %v1995 = vadd.f32 %v1820, %v1994
        %v1996 = vpop.f32.mrf.mxu0
        %1997 = vmatprep.mubr.f32.mxu0 0.0
        %1998 = vmatmul.mubr.f32.gmra.mxu0 %v1832
        %v1999 = vpop.f32.mrf.mxu0
        %v2000 = vadd.f32 %v1820, %v1999
        %v2001 = vpop.f32.mrf.mxu0
        %2002 = vmatprep.mubr.f32.mxu0 0.0
        %2003 = vmatmul.mubr.f32.gmra.mxu0 %v1835
        %v2004 = vpop.f32.mrf.mxu0
        %v2005 = vadd.f32 %v1820, %v2004
        %v2006 = vpop.f32.mrf.mxu0
        %2007 = vmatprep.mubr.f32.mxu0 0.0
        %2008 = vmatmul.mubr.f32.gmra.mxu0 %v1838
        %v2009 = vpop.f32.mrf.mxu0
        %v2010 = vadd.f32 %v1820, %v2009
        %v2011 = vpop.f32.mrf.mxu0
        %2012 = vmatprep.mubr.f32.mxu0 0.0
        %2013 = vmatmul.mubr.f32.gmra.mxu0 %v1841
        %v2014 = vpop.f32.mrf.mxu0
        %v2015 = vadd.f32 %v1820, %v2014
        %v2016 = vpop.f32.mrf.mxu0
        %2017 = vmatprep.mubr.f32.mxu0 0.0
        %2018 = vmatmul.mubr.f32.gmra.mxu0 %v1844
        %v2019 = vpop.f32.mrf.mxu0
        %v2020 = vadd.f32 %v1820, %v2019
        %v2021 = vpop.f32.mrf.mxu0
        %2022 = vmatprep.mubr.f32.mxu0 0.0
        %2023 = vmatmul.mubr.f32.gmra.mxu0 %v1847
        %v2024 = vpop.f32.mrf.mxu0
        %v2025 = vadd.f32 %v1820, %v2024
        %v2026 = vpop.f32.mrf.mxu0
        %2027 = vmatprep.mubr.f32.mxu0 0.0
        %2028 = vmatmul.mubr.f32.gmra.mxu0 %v1850
        %v2029 = vpop.f32.mrf.mxu0
        %v2030 = vadd.f32 %v1820, %v2029
        %v2031 = vpop.f32.mrf.mxu0
        %2032 = vmatprep.mubr.f32.mxu0 0.0
        %2033 = vmatmul.mubr.f32.gmra.mxu0 %v1853
        %v2034 = vpop.f32.mrf.mxu0
        %v2035 = vadd.f32 %v1820, %v2034
        %v2036 = vpop.f32.mrf.mxu0
        %2037 = vmatprep.mubr.f32.mxu0 0.0
        %2038 = vmatmul.mubr.f32.gmra.mxu0 %v1856
        %v2039 = vpop.f32.mrf.mxu0
        %v2040 = vadd.f32 %v1820, %v2039
        %v2041 = vpop.f32.mrf.mxu0
        %2042 = vmatprep.mubr.f32.mxu0 0.0
        %2043 = vmatmul.mubr.f32.gmra.mxu0 %v1859
        %v2044 = vpop.f32.mrf.mxu0
        %v2045 = vadd.f32 %v1820, %v2044
        %v2046 = vpop.f32.mrf.mxu0
        %2047 = vmatprep.mubr.f32.mxu0 0.0
        %2048 = vmatmul.mubr.f32.gmra.mxu0 %v1862
        %v2049 = vpop.f32.mrf.mxu0
        %v2050 = vadd.f32 %v1820, %v2049
        %v2051 = vpop.f32.mrf.mxu0
        %2052 = vmatprep.mubr.f32.mxu0 0.0
        %2053 = vmatmul.mubr.f32.gmra.mxu0 %v1865
        %v2054 = vpop.f32.mrf.mxu0
        %v2055 = vadd.f32 %v1820, %v2054
        %v2056 = vpop.f32.mrf.mxu0
        %2057 = vmatprep.mubr.f32.mxu0 0.0
        %2058 = vmatmul.mubr.f32.gmra.mxu0 %v1868
        %v2059 = vpop.f32.mrf.mxu0
        %v2060 = vadd.f32 %v1820, %v2059
        %v2061 = vpop.f32.mrf.mxu0
        %2062 = vmatprep.mubr.f32.mxu0 0.0
        %2063 = vmatmul.mubr.f32.gmra.mxu0 %v1871
        %v2064 = vpop.f32.mrf.mxu0
        %v2065 = vadd.f32 %v1820, %v2064
        %v2066 = vpop.f32.mrf.mxu0
        %2067 = vmatprep.mubr.f32.mxu0 0.0
        %2068 = vmatmul.mubr.f32.gmra.mxu0 %v1874
        %v2069 = vpop.f32.mrf.mxu0
        %v2070 = vadd.f32 %v1820, %v2069
        %v2071 = vpop.f32.mrf.mxu0
        %2072 = vmatprep.mubr.f32.mxu0 0.0
        %2073 = vmatmul.mubr.f32.gmra.mxu0 %v1877
        %v2074 = vpop.f32.mrf.mxu0
        %v2075 = vadd.f32 %v1820, %v2074
        %v2076 = vpop.f32.mrf.mxu0
        %2077 = vmatprep.mubr.f32.mxu0 0.0
        %2078 = vmatmul.mubr.f32.gmra.mxu0 %v1880
        %v2079 = vpop.f32.mrf.mxu0
        %v2080 = vadd.f32 %v1820, %v2079
        %v2081 = vpop.f32.mrf.mxu0
        %2082 = vmatprep.mubr.f32.mxu0 0.0
        %2083 = vmatmul.mubr.f32.gmra.mxu0 %v1883
        %v2084 = vpop.f32.mrf.mxu0
        %v2085 = vadd.f32 %v1820, %v2084
        %v2086 = vpop.f32.mrf.mxu0
        %2087 = vmatprep.mubr.f32.mxu0 0.0
        %2088 = vmatmul.mubr.f32.gmra.mxu0 %v1886
        %v2089 = vpop.f32.mrf.mxu0
        %v2090 = vadd.f32 %v1820, %v2089
        %v2091 = vpop.f32.mrf.mxu0
        %2092 = vmatprep.mubr.f32.mxu0 0.0
        %2093 = vmatmul.mubr.f32.gmra.mxu0 %v1889
        %v2094 = vpop.f32.mrf.mxu0
        %v2095 = vadd.f32 %v1820, %v2094
        %v2096 = vpop.f32.mrf.mxu0
        %2097 = vmatprep.mubr.f32.mxu0 0.0
        %2098 = vmatmul.mubr.f32.gmra.mxu0 %v1892
        %v2099 = vpop.f32.mrf.mxu0
        %v2100 = vadd.f32 %v1820, %v2099
        %v2101 = vpop.f32.mrf.mxu0
        %2102 = vmatprep.mubr.f32.mxu0 0.0
        %2103 = vmatmul.mubr.f32.gmra.mxu0 %v1895
        %v2104 = vpop.f32.mrf.mxu0
        %v2105 = vadd.f32 %v1820, %v2104
        %v2106 = vpop.f32.mrf.mxu0
        %2107 = vmatprep.mubr.f32.mxu0 0.0
        %2108 = vmatmul.mubr.f32.gmra.mxu0 %v1898
        %v2109 = vpop.f32.mrf.mxu0
        %v2110 = vadd.f32 %v1820, %v2109
        %v2111 = vpop.f32.mrf.mxu0
        %2112 = vmatprep.mubr.f32.mxu0 0.0
        %2113 = vmatmul.mubr.f32.gmra.mxu0 %v1901
        %v2114 = vpop.f32.mrf.mxu0
        %v2115 = vadd.f32 %v1820, %v2114
        %v2116 = vpop.f32.mrf.mxu0
        %2117 = vmatprep.mubr.f32.mxu0 0.0
        %2118 = vmatmul.mubr.f32.gmra.mxu0 %v1904
        %v2119 = vpop.f32.mrf.mxu0
        %v2120 = vadd.f32 %v1820, %v2119
        %v2121 = vpop.f32.mrf.mxu0
        %2122 = vmatprep.mubr.f32.mxu0 0.0
        %2123 = vmatmul.mubr.f32.gmra.mxu0 %v1907
        %v2124 = vpop.f32.mrf.mxu0
        %v2125 = vadd.f32 %v1820, %v2124
        %v2126 = vpop.f32.mrf.mxu0
        %2127 = vmatprep.mubr.f32.mxu0 0.0
        %2128 = vmatmul.mubr.f32.gmra.mxu0 %v1910
        %v2129 = vpop.f32.mrf.mxu0
        %v2130 = vadd.f32 %v1820, %v2129
        %v2131 = vpop.f32.mrf.mxu0
        %2132 = vmatprep.mubr.f32.mxu0 0.0
        %2133 = vmatmul.mubr.f32.gmra.mxu0 %v1913
        %v2134 = vpop.f32.mrf.mxu0
        %v2135 = vadd.f32 %v1820, %v2134
        %v2136 = vpop.f32.mrf.mxu0
        %2137 = vmatprep.mubr.f32.mxu0 0.0
        %2138 = vmatmul.mubr.f32.gmra.mxu0 %v1916
        %v2139 = vpop.f32.mrf.mxu0
        %v2140 = vadd.f32 %v1820, %v2139
        %v2141 = vpop.f32.mrf.mxu0
        %2142 = vdwg.mxu0
        %v2143 = vxor.u32 %v1985, 2147483648
        %v2144 = vxor.u32 %v1990, 2147483648
        %v2145 = vxor.u32 %v1995, 2147483648
        %v2146 = vxor.u32 %v2000, 2147483648
        %v2147 = vxor.u32 %v2005, 2147483648
        %v2148 = vxor.u32 %v2010, 2147483648
        %v2149 = vxor.u32 %v2015, 2147483648
        %v2150 = vxor.u32 %v2020, 2147483648
        %v2151 = vxor.u32 %v2025, 2147483648
        %v2152 = vxor.u32 %v2030, 2147483648
        %v2153 = vxor.u32 %v2035, 2147483648
        %v2154 = vxor.u32 %v2040, 2147483648
        %v2155 = vxor.u32 %v2045, 2147483648
        %v2156 = vxor.u32 %v2050, 2147483648
        %v2157 = vxor.u32 %v2055, 2147483648
        %v2158 = vxor.u32 %v2060, 2147483648
        %v2159 = vxor.u32 %v2065, 2147483648
        %v2160 = vxor.u32 %v2070, 2147483648
        %v2161 = vxor.u32 %v2075, 2147483648
        %v2162 = vxor.u32 %v2080, 2147483648
        %v2163 = vxor.u32 %v2085, 2147483648
        %v2164 = vxor.u32 %v2090, 2147483648
        %v2165 = vxor.u32 %v2095, 2147483648
        %v2166 = vxor.u32 %v2100, 2147483648
        %v2167 = vxor.u32 %v2105, 2147483648
        %v2168 = vxor.u32 %v2110, 2147483648
        %v2169 = vxor.u32 %v2115, 2147483648
        %v2170 = vxor.u32 %v2120, 2147483648
        %v2171 = vxor.u32 %v2125, 2147483648
        %v2172 = vxor.u32 %v2130, 2147483648
        %v2173 = vxor.u32 %v2135, 2147483648
        %v2174 = vxor.u32 %v2140, 2147483648
        %v2175 = vmul.f32 %v2143, 1.442695
        %v2176 = vpow.pop %v2175
        %v2177 = vmul.f32 %v2144, 1.442695
        %v2178 = vpow.pop %v2177
        %v2179 = vmul.f32 %v2145, 1.442695
        %v2180 = vpow.pop %v2179
        %v2181 = vmul.f32 %v2146, 1.442695
        %v2182 = vpow.pop %v2181
        %v2183 = vmul.f32 %v2147, 1.442695
        %v2184 = vpow.pop %v2183
        %v2185 = vmul.f32 %v2148, 1.442695
        %v2186 = vpow.pop %v2185
        %v2187 = vmul.f32 %v2149, 1.442695
        %v2188 = vpow.pop %v2187
        %v2189 = vmul.f32 %v2150, 1.442695
        %v2190 = vpow.pop %v2189
        %v2191 = vmul.f32 %v2151, 1.442695
        %v2192 = vpow.pop %v2191
        %v2193 = vmul.f32 %v2152, 1.442695
        %v2194 = vpow.pop %v2193
        %v2195 = vmul.f32 %v2153, 1.442695
        %v2196 = vpow.pop %v2195
        %v2197 = vmul.f32 %v2154, 1.442695
        %v2198 = vpow.pop %v2197
        %v2199 = vmul.f32 %v2155, 1.442695
        %v2200 = vpow.pop %v2199
        %v2201 = vmul.f32 %v2156, 1.442695
        %v2202 = vpow.pop %v2201
        %v2203 = vmul.f32 %v2157, 1.442695
        %v2204 = vpow.pop %v2203
        %v2205 = vmul.f32 %v2158, 1.442695
        %v2206 = vpow.pop %v2205
        %v2207 = vmul.f32 %v2159, 1.442695
        %v2208 = vpow.pop %v2207
        %v2209 = vmul.f32 %v2160, 1.442695
        %v2210 = vpow.pop %v2209
        %v2211 = vmul.f32 %v2161, 1.442695
        %v2212 = vpow.pop %v2211
        %v2213 = vmul.f32 %v2162, 1.442695
        %v2214 = vpow.pop %v2213
        %v2215 = vmul.f32 %v2163, 1.442695
        %v2216 = vpow.pop %v2215
        %v2217 = vmul.f32 %v2164, 1.442695
        %v2218 = vpow.pop %v2217
        %v2219 = vmul.f32 %v2165, 1.442695
        %v2220 = vpow.pop %v2219
        %v2221 = vmul.f32 %v2166, 1.442695
        %v2222 = vpow.pop %v2221
        %v2223 = vmul.f32 %v2167, 1.442695
        %v2224 = vpow.pop %v2223
        %v2225 = vmul.f32 %v2168, 1.442695
        %v2226 = vpow.pop %v2225
        %v2227 = vmul.f32 %v2169, 1.442695
        %v2228 = vpow.pop %v2227
        %v2229 = vmul.f32 %v2170, 1.442695
        %v2230 = vpow.pop %v2229
        %v2231 = vmul.f32 %v2171, 1.442695
        %v2232 = vpow.pop %v2231
        %v2233 = vmul.f32 %v2172, 1.442695
        %v2234 = vpow.pop %v2233
        %v2235 = vmul.f32 %v2173, 1.442695
        %v2236 = vpow.pop %v2235
        %v2237 = vmul.f32 %v2174, 1.442695
        %v2238 = vpow.pop %v2237
        %v2239 = vadd.f32 %v2176, 1.0
        %v2240 = vadd.f32 %v2178, 1.0
        %v2241 = vadd.f32 %v2180, 1.0
        %v2242 = vadd.f32 %v2182, 1.0
        %v2243 = vadd.f32 %v2184, 1.0
        %v2244 = vadd.f32 %v2186, 1.0
        %v2245 = vadd.f32 %v2188, 1.0
        %v2246 = vadd.f32 %v2190, 1.0
        %v2247 = vadd.f32 %v2192, 1.0
        %v2248 = vadd.f32 %v2194, 1.0
        %v2249 = vadd.f32 %v2196, 1.0
        %v2250 = vadd.f32 %v2198, 1.0
        %v2251 = vadd.f32 %v2200, 1.0
        %v2252 = vadd.f32 %v2202, 1.0
        %v2253 = vadd.f32 %v2204, 1.0
        %v2254 = vadd.f32 %v2206, 1.0
        %v2255 = vadd.f32 %v2208, 1.0
        %v2256 = vadd.f32 %v2210, 1.0
        %v2257 = vadd.f32 %v2212, 1.0
        %v2258 = vadd.f32 %v2214, 1.0
        %v2259 = vadd.f32 %v2216, 1.0
        %v2260 = vadd.f32 %v2218, 1.0
        %v2261 = vadd.f32 %v2220, 1.0
        %v2262 = vadd.f32 %v2222, 1.0
        %v2263 = vadd.f32 %v2224, 1.0
        %v2264 = vadd.f32 %v2226, 1.0
        %v2265 = vadd.f32 %v2228, 1.0
        %v2266 = vadd.f32 %v2230, 1.0
        %v2267 = vadd.f32 %v2232, 1.0
        %v2268 = vadd.f32 %v2234, 1.0
        %v2269 = vadd.f32 %v2236, 1.0
        %v2270 = vadd.f32 %v2238, 1.0
        %v2271 = vrcp.pop %v2239
        %v2272 = vmul.f32 1.0, %v2271
        %v2273 = vrcp.pop %v2240
        %v2274 = vmul.f32 1.0, %v2273
        %v2275 = vrcp.pop %v2241
        %v2276 = vmul.f32 1.0, %v2275
        %v2277 = vrcp.pop %v2242
        %v2278 = vmul.f32 1.0, %v2277
        %v2279 = vrcp.pop %v2243
        %v2280 = vmul.f32 1.0, %v2279
        %v2281 = vrcp.pop %v2244
        %v2282 = vmul.f32 1.0, %v2281
        %v2283 = vrcp.pop %v2245
        %v2284 = vmul.f32 1.0, %v2283
        %v2285 = vrcp.pop %v2246
        %v2286 = vmul.f32 1.0, %v2285
        %v2287 = vrcp.pop %v2247
        %v2288 = vmul.f32 1.0, %v2287
        %v2289 = vrcp.pop %v2248
        %v2290 = vmul.f32 1.0, %v2289
        %v2291 = vrcp.pop %v2249
        %v2292 = vmul.f32 1.0, %v2291
        %v2293 = vrcp.pop %v2250
        %v2294 = vmul.f32 1.0, %v2293
        %v2295 = vrcp.pop %v2251
        %v2296 = vmul.f32 1.0, %v2295
        %v2297 = vrcp.pop %v2252
        %v2298 = vmul.f32 1.0, %v2297
        %v2299 = vrcp.pop %v2253
        %v2300 = vmul.f32 1.0, %v2299
        %v2301 = vrcp.pop %v2254
        %v2302 = vmul.f32 1.0, %v2301
        %v2303 = vrcp.pop %v2255
        %v2304 = vmul.f32 1.0, %v2303
        %v2305 = vrcp.pop %v2256
        %v2306 = vmul.f32 1.0, %v2305
        %v2307 = vrcp.pop %v2257
        %v2308 = vmul.f32 1.0, %v2307
        %v2309 = vrcp.pop %v2258
        %v2310 = vmul.f32 1.0, %v2309
        %v2311 = vrcp.pop %v2259
        %v2312 = vmul.f32 1.0, %v2311
        %v2313 = vrcp.pop %v2260
        %v2314 = vmul.f32 1.0, %v2313
        %v2315 = vrcp.pop %v2261
        %v2316 = vmul.f32 1.0, %v2315
        %v2317 = vrcp.pop %v2262
        %v2318 = vmul.f32 1.0, %v2317
        %v2319 = vrcp.pop %v2263
        %v2320 = vmul.f32 1.0, %v2319
        %v2321 = vrcp.pop %v2264
        %v2322 = vmul.f32 1.0, %v2321
        %v2323 = vrcp.pop %v2265
        %v2324 = vmul.f32 1.0, %v2323
        %v2325 = vrcp.pop %v2266
        %v2326 = vmul.f32 1.0, %v2325
        %v2327 = vrcp.pop %v2267
        %v2328 = vmul.f32 1.0, %v2327
        %v2329 = vrcp.pop %v2268
        %v2330 = vmul.f32 1.0, %v2329
        %v2331 = vrcp.pop %v2269
        %v2332 = vmul.f32 1.0, %v2331
        %v2333 = vrcp.pop %v2270
        %v2334 = vmul.f32 1.0, %v2333
        %v2335 = vmul.f32 %v2272, %v1125
        %v2336 = vmul.f32 %v2274, %v1130
        %v2337 = vmul.f32 %v2276, %v1135
        %v2338 = vmul.f32 %v2278, %v1140
        %v2339 = vmul.f32 %v2280, %v1145
        %v2340 = vmul.f32 %v2282, %v1150
        %v2341 = vmul.f32 %v2284, %v1155
        %v2342 = vmul.f32 %v2286, %v1160
        %v2343 = vmul.f32 %v2288, %v1165
        %v2344 = vmul.f32 %v2290, %v1170
        %v2345 = vmul.f32 %v2292, %v1175
        %v2346 = vmul.f32 %v2294, %v1180
        %v2347 = vmul.f32 %v2296, %v1185
        %v2348 = vmul.f32 %v2298, %v1190
        %v2349 = vmul.f32 %v2300, %v1195
        %v2350 = vmul.f32 %v2302, %v1200
        %v2351 = vmul.f32 %v2304, %v1205
        %v2352 = vmul.f32 %v2306, %v1210
        %v2353 = vmul.f32 %v2308, %v1215
        %v2354 = vmul.f32 %v2310, %v1220
        %v2355 = vmul.f32 %v2312, %v1225
        %v2356 = vmul.f32 %v2314, %v1230
        %v2357 = vmul.f32 %v2316, %v1235
        %v2358 = vmul.f32 %v2318, %v1240
        %v2359 = vmul.f32 %v2320, %v1245
        %v2360 = vmul.f32 %v2322, %v1250
        %v2361 = vmul.f32 %v2324, %v1255
        %v2362 = vmul.f32 %v2326, %v1260
        %v2363 = vmul.f32 %v2328, %v1265
        %v2364 = vmul.f32 %v2330, %v1270
        %v2365 = vmul.f32 %v2332, %v1275
        %v2366 = vmul.f32 %v2334, %v1280
        %2367 = vst.msk [vmem:[%s403] sm:$0xff] %vm1315, %v2335
        %2368 = vst.msk [vmem:[%s403 + $0x8] sm:$0xff] %vm1315, %v2336
        %2369 = vst.msk [vmem:[%s403 + $0x10] sm:$0xff] %vm1315, %v2337
        %2370 = vst.msk [vmem:[%s403 + $0x18] sm:$0xff] %vm1315, %v2338
        %2371 = vst.msk [vmem:[%s403 + $0x20] sm:$0xff] %vm1315, %v2339
        %2372 = vst.msk [vmem:[%s403 + $0x28] sm:$0xff] %vm1315, %v2340
        %2373 = vst.msk [vmem:[%s403 + $0x30] sm:$0xff] %vm1315, %v2341
        %2374 = vst.msk [vmem:[%s403 + $0x38] sm:$0xff] %vm1315, %v2342
        %2375 = vst.msk [vmem:[%s403 + $0x40] sm:$0xff] %vm1315, %v2343
        %2376 = vst.msk [vmem:[%s403 + $0x48] sm:$0xff] %vm1315, %v2344
        %2377 = vst.msk [vmem:[%s403 + $0x50] sm:$0xff] %vm1315, %v2345
        %2378 = vst.msk [vmem:[%s403 + $0x58] sm:$0xff] %vm1315, %v2346
        %2379 = vst.msk [vmem:[%s403 + $0x60] sm:$0xff] %vm1315, %v2347
        %2380 = vst.msk [vmem:[%s403 + $0x68] sm:$0xff] %vm1315, %v2348
        %2381 = vst.msk [vmem:[%s403 + $0x70] sm:$0xff] %vm1315, %v2349
        %2382 = vst.msk [vmem:[%s403 + $0x78] sm:$0xff] %vm1315, %v2350
        %2383 = vst.msk [vmem:[%s403 + $0x80] sm:$0xff] %vm1315, %v2351
        %2384 = vst.msk [vmem:[%s403 + $0x88] sm:$0xff] %vm1315, %v2352
        %2385 = vst.msk [vmem:[%s403 + $0x90] sm:$0xff] %vm1315, %v2353
        %2386 = vst.msk [vmem:[%s403 + $0x98] sm:$0xff] %vm1315, %v2354
        %2387 = vst.msk [vmem:[%s403 + $0xa0] sm:$0xff] %vm1315, %v2355
        %2388 = vst.msk [vmem:[%s403 + $0xa8] sm:$0xff] %vm1315, %v2356
        %2389 = vst.msk [vmem:[%s403 + $0xb0] sm:$0xff] %vm1315, %v2357
        %2390 = vst.msk [vmem:[%s403 + $0xb8] sm:$0xff] %vm1315, %v2358
        %2391 = vst.msk [vmem:[%s403 + $0xc0] sm:$0xff] %vm1315, %v2359
        %2392 = vst.msk [vmem:[%s403 + $0xc8] sm:$0xff] %vm1315, %v2360
        %2393 = vst.msk [vmem:[%s403 + $0xd0] sm:$0xff] %vm1315, %v2361
        %2394 = vst.msk [vmem:[%s403 + $0xd8] sm:$0xff] %vm1315, %v2362
        %2395 = vst.msk [vmem:[%s403 + $0xe0] sm:$0xff] %vm1315, %v2363
        %2396 = vst.msk [vmem:[%s403 + $0xe8] sm:$0xff] %vm1315, %v2364
        %2397 = vst.msk [vmem:[%s403 + $0xf0] sm:$0xff] %vm1315, %v2365
        %2398 = vst.msk [vmem:[%s403 + $0xf8] sm:$0xff] %vm1315, %v2366
        %s2399 = sand.u32 %s270, 1
        %s2400 = scalar_lea.sflag [#allocation3], %s2399
        %s2401 = sand.u32 %s270, 1
        %s2402 = smul.addr %s2401, 256
        %s2403 = scalar_lea.vmem [#allocation2], %s2402
        // Predicated region
        $region61: #{quadratic_edge_update_forward.5} parent=59 // pred_check
          %p2404 = pneg %p280
        $region62: #{quadratic_edge_update_forward.5} parent=59 // pred_check_branch
          %2406 = sbr.rel (%p2404) target = $region64
        $region63: #{quadratic_edge_update_forward.5} parent=59 // pred_region
          %s2407 = smul.u32 32, %s29
          %s2409 = ssub.s32 4096, 4096
          %2410 = vsyncadd %s2400, %s2409
          %s2411 = smul.addr %s28, 32
          %s2412 = sadd.s32 %s2407, %s2411
          %s2413 = smul.addr %s2412, 128
          %s2414 = scalar_lea.hbm %s10, %s2413
          %s2415 = sshll.u32 %s2403, 4
          %s2416 = int_to_ptr.vmem [resolvable:$true] %s2415
          %2421 = dma.vmem_to_hbm [thread:$0]  %s2416, 4096, %s2414, %s2400, 128, 128, 8
        $region64: #{quadratic_edge_update_forward.5} parent=59 // pred_fallthru
          _
      $region60: #{quadratic_edge_update_forward.5} parent=5 // pred_fallthru
        _
      %p2422 = scmp.le.s32.totalorder 2, %s19
      // Predicated region
      $region65: #{quadratic_edge_update_forward.5} parent=5 // pred_check
        %p2423 = pneg %p2422
      $region66: #{quadratic_edge_update_forward.5} parent=5 // pred_check_branch
        %2425 = sbr.rel (%p2423) target = $region68
      $region67: #{quadratic_edge_update_forward.5} parent=5 // pred_region
        %s2426 = ssub.s32 %s19, 2
        // Predicated region
        $region69: #{quadratic_edge_update_forward.5} parent=67 // pred_check
          %p2427 = pneg %p286
        $region70: #{quadratic_edge_update_forward.5} parent=67 // pred_check_branch
          %2429 = sbr.rel (%p2427) target = $region72
        $region71: #{quadratic_edge_update_forward.5} parent=67 // pred_region
          %s2430 = sand.u32 %s271, 1
          %s2431 = scalar_lea.sflag [#allocation3], %s2430
          %s2432 = sand.u32 %s271, 1
          %s2433 = smul.addr %s2432, 256
          %s2434 = scalar_lea.vmem [#allocation2], %s2433
          %2435 = dma.done %s2431, 4096
        $region72: #{quadratic_edge_update_forward.5} parent=67 // pred_fallthru
          _
      $region68: #{quadratic_edge_update_forward.5} parent=5 // pred_fallthru
        _
    $region6: #{quadratic_edge_update_forward.5} parent=1 // loop_footer
      %s23 = sadd.s32 1, %s19
    $region7: #{quadratic_edge_update_forward.5} parent=1 // loop_footer_branch
      %18 = sbr.rel target = $region3
    $region8: #{quadratic_edge_update_forward.5} parent=1 // loop_exit
      _
    %2436 = vsyncpa [#allocation3], 1
    %s2437 = scalar_lea.sflag [#allocation3], 1
    %2438 = vsyncpa %s2437, 1

// kernel: quadratic_edge_update_forward.4
$region0: #{quadratic_edge_update_forward.4}
  #allocation0 [shape = 'u32[]', space=smem, size = 0x4, offset = 0x4, fixed_abs, tag = 'smem constant byte address 0x4 - core index']
  #allocation1 [shape = 'u32[144,128]{1,0:T(1,128)}', space=vmem, size = 0x12000, scoped, tag = 'internal scratch']
  #allocation2 [shape = 'f32[16,16,16]{2,1,0:T(8,128)}', space=vmem, size = 0x20000, scoped, tag = 'scratch operand']
  #allocation3 [shape = 'f32[16,16,16]{2,1,0:T(8,128)}', space=vmem, size = 0x20000, scoped, tag = 'scratch operand']
  %s0 = inlined_call_operand.vmem [shape: f32[2,16,16,16], index: 0, kind: input, shape index: {}]
  %s1 = inlined_call_operand.vmem [shape: f32[2,16,16,16], index: 1, kind: input, shape index: {}]
  %s2 = inlined_call_operand.vmem [shape: f32[2,16,16,16], index: 2, kind: input, shape index: {}]
  %s3 = inlined_call_operand.vmem [shape: f32[2,16,16,16], index: 3, kind: input, shape index: {}]
  %s4 = inlined_call_operand.vmem [shape: f32[2,16,16,16], index: 4, kind: output, shape index: {}]
  %s5 = sld [smem:[#allocation0]]
  $region57: #{quadratic_edge_update_forward.4} parent=0
    _
  %s7 = ssub.s32 1, %s5
  %s8 = scalar_select 0, %s7, %s5
  loop: start=0, step=1, limit=4
  $region2: #{quadratic_edge_update_forward.4} parent=0 // loop_pre_header
    _
  $region3: #{quadratic_edge_update_forward.4} parent=0 // loop_header
    %s10 = sphi 0, %s14
    %p11 = scmp.ge.s32.totalorder %s10, 4
    %s17 = sphi 0, %s43
    %s18 = sphi 0, %s39
    %s19 = sphi 0, %s35
    %s20 = sphi 0, %s31
    %s21 = sphi 0, %s17
    %s22 = sphi 0, %s18
    %s23 = sphi 0, %s19
    %s24 = sphi 0, %s20
    %s25 = sphi 0, %s21
    %s26 = sphi 0, %s22
    %s27 = sphi 0, %s23
    %s28 = sphi 0, %s24
    %s50 = sphi 0, %s52
    %s53 = sphi 0, %s50
    %s54 = sphi 0, %s53
    %s70 = sphi 0, %s54
    %s80 = sphi 0, %s82
    %s83 = sphi 0, %s80
    %s84 = sphi 0, %s83
    %s100 = sphi 0, %s84
    %s110 = sphi 0, %s112
    %s113 = sphi 0, %s110
    %s114 = sphi 0, %s113
    %s130 = sphi 0, %s114
    %s140 = sphi 0, %s142
    %s143 = sphi 0, %s140
    %s144 = sphi 0, %s143
    %s160 = sphi 0, %s144
    %s170 = sphi 0, %s172
    %s173 = sphi 0, %s170
    %s174 = sphi 0, %s173
    %s190 = sphi 0, %s174
  $region4: #{quadratic_edge_update_forward.4} parent=0 // loop_header_branch
    %13 = sbr.rel (%p11) target = $region8
  $region5: #{quadratic_edge_update_forward.4} parent=0 // loop_body
    %s15 = ssub.s32 %s10, 1
    %s16 = ssub.s32 %s10, 2
    %s29 = sadd.s32 1, %s20
    %p30 = scmp.ge.s32.totalorder %s29, 1
    %s31 = scalar_select %p30, 0, %s29
    %s32 = sadd.s32 1, %s19
    %s33 = scalar_select %p30, %s32, %s19
    %p34 = scmp.ge.s32.totalorder %s33, 1
    %s35 = scalar_select %p34, 0, %s33
    %s36 = sadd.s32 1, %s18
    %s37 = scalar_select %p34, %s36, %s18
    %p38 = scmp.ge.s32.totalorder %s37, 1
    %s39 = scalar_select %p38, 0, %s37
    %s40 = sadd.s32 1, %s17
    %s41 = scalar_select %p38, %s40, %s17
    %p42 = scmp.ge.s32.totalorder %s41, 2
    %s43 = scalar_select %p42, 0, %s41
    %s44 = ssub.s32 %s17, %s43
    %s45 = ssub.s32 %s18, %s39
    %s46 = sor.u32 %s44, %s45
    %s47 = ssub.s32 %s20, %s31
    %s48 = sor.u32 %s46, %s47
    %p49 = scmp.eq.s32.totalorder %s48, 0
    %s51 = sadd.s32 %s50, 1
    %s52 = scalar_select %p49, %s50, %s51
    %p55 = pneg %p49
    %p56 = scmp.eq.s32.totalorder %s10, 1
    %p57 = por %p55, %p56
    %p58 = scmp.ne.s32.totalorder %s50, %s53
    %p59 = scmp.eq.s32.totalorder %s10, 0
    %p60 = por %p58, %p59
    %p61 = scmp.ne.s32.totalorder %s50, %s53
    %p62 = scmp.eq.s32.totalorder %s15, 1
    %p63 = por %p61, %p62
    %p64 = scmp.ne.s32.totalorder %s53, %s54
    %p65 = scmp.eq.s32.totalorder %s15, 0
    %p66 = por %p64, %p65
    %p67 = scmp.ne.s32.totalorder %s53, %s54
    %p68 = scmp.eq.s32.totalorder %s16, 1
    %p69 = por %p67, %p68
    %p71 = scmp.ne.s32.totalorder %s54, %s70
    %p72 = scmp.eq.s32.totalorder %s16, 0
    %p73 = por %p71, %p72
    %s74 = ssub.s32 %s17, %s43
    %s75 = ssub.s32 %s19, %s35
    %s76 = sor.u32 %s74, %s75
    %s77 = ssub.s32 %s20, %s31
    %s78 = sor.u32 %s76, %s77
    %p79 = scmp.eq.s32.totalorder %s78, 0
    %s81 = sadd.s32 %s80, 1
    %s82 = scalar_select %p79, %s80, %s81
    %p85 = pneg %p79
    %p86 = scmp.eq.s32.totalorder %s10, 1
    %p87 = por %p85, %p86
    %p88 = scmp.ne.s32.totalorder %s80, %s83
    %p89 = scmp.eq.s32.totalorder %s10, 0
    %p90 = por %p88, %p89
    %p91 = scmp.ne.s32.totalorder %s80, %s83
    %p92 = scmp.eq.s32.totalorder %s15, 1
    %p93 = por %p91, %p92
    %p94 = scmp.ne.s32.totalorder %s83, %s84
    %p95 = scmp.eq.s32.totalorder %s15, 0
    %p96 = por %p94, %p95
    %p97 = scmp.ne.s32.totalorder %s83, %s84
    %p98 = scmp.eq.s32.totalorder %s16, 1
    %p99 = por %p97, %p98
    %p101 = scmp.ne.s32.totalorder %s84, %s100
    %p102 = scmp.eq.s32.totalorder %s16, 0
    %p103 = por %p101, %p102
    %s104 = ssub.s32 %s17, %s43
    %s105 = ssub.s32 %s18, %s39
    %s106 = sor.u32 %s104, %s105
    %s107 = ssub.s32 %s20, %s31
    %s108 = sor.u32 %s106, %s107
    %p109 = scmp.eq.s32.totalorder %s108, 0
    %s111 = sadd.s32 %s110, 1
    %s112 = scalar_select %p109, %s110, %s111
    %p115 = pneg %p109
    %p116 = scmp.eq.s32.totalorder %s10, 1
    %p117 = por %p115, %p116
    %p118 = scmp.ne.s32.totalorder %s110, %s113
    %p119 = scmp.eq.s32.totalorder %s10, 0
    %p120 = por %p118, %p119
    %p121 = scmp.ne.s32.totalorder %s110, %s113
    %p122 = scmp.eq.s32.totalorder %s15, 1
    %p123 = por %p121, %p122
    %p124 = scmp.ne.s32.totalorder %s113, %s114
    %p125 = scmp.eq.s32.totalorder %s15, 0
    %p126 = por %p124, %p125
    %p127 = scmp.ne.s32.totalorder %s113, %s114
    %p128 = scmp.eq.s32.totalorder %s16, 1
    %p129 = por %p127, %p128
    %p131 = scmp.ne.s32.totalorder %s114, %s130
    %p132 = scmp.eq.s32.totalorder %s16, 0
    %p133 = por %p131, %p132
    %s134 = ssub.s32 %s17, %s43
    %s135 = ssub.s32 %s19, %s35
    %s136 = sor.u32 %s134, %s135
    %s137 = ssub.s32 %s20, %s31
    %s138 = sor.u32 %s136, %s137
    %p139 = scmp.eq.s32.totalorder %s138, 0
    %s141 = sadd.s32 %s140, 1
    %s142 = scalar_select %p139, %s140, %s141
    %p145 = pneg %p139
    %p146 = scmp.eq.s32.totalorder %s10, 1
    %p147 = por %p145, %p146
    %p148 = scmp.ne.s32.totalorder %s140, %s143
    %p149 = scmp.eq.s32.totalorder %s10, 0
    %p150 = por %p148, %p149
    %p151 = scmp.ne.s32.totalorder %s140, %s143
    %p152 = scmp.eq.s32.totalorder %s15, 1
    %p153 = por %p151, %p152
    %p154 = scmp.ne.s32.totalorder %s143, %s144
    %p155 = scmp.eq.s32.totalorder %s15, 0
    %p156 = por %p154, %p155
    %p157 = scmp.ne.s32.totalorder %s143, %s144
    %p158 = scmp.eq.s32.totalorder %s16, 1
    %p159 = por %p157, %p158
    %p161 = scmp.ne.s32.totalorder %s144, %s160
    %p162 = scmp.eq.s32.totalorder %s16, 0
    %p163 = por %p161, %p162
    %s164 = ssub.s32 %s17, %s43
    %s165 = ssub.s32 %s18, %s39
    %s166 = sor.u32 %s164, %s165
    %s167 = ssub.s32 %s19, %s35
    %s168 = sor.u32 %s166, %s167
    %p169 = scmp.eq.s32.totalorder %s168, 0
    %s171 = sadd.s32 %s170, 1
    %s172 = scalar_select %p169, %s170, %s171
    %p175 = pneg %p169
    %p176 = scmp.eq.s32.totalorder %s10, 1
    %p177 = por %p175, %p176
    %p178 = scmp.ne.s32.totalorder %s170, %s173
    %p179 = scmp.eq.s32.totalorder %s10, 0
    %p180 = por %p178, %p179
    %p181 = scmp.ne.s32.totalorder %s170, %s173
    %p182 = scmp.eq.s32.totalorder %s15, 1
    %p183 = por %p181, %p182
    %p184 = scmp.ne.s32.totalorder %s173, %s174
    %p185 = scmp.eq.s32.totalorder %s15, 0
    %p186 = por %p184, %p185
    %p187 = scmp.ne.s32.totalorder %s173, %s174
    %p188 = scmp.eq.s32.totalorder %s16, 1
    %p189 = por %p187, %p188
    %p191 = scmp.ne.s32.totalorder %s174, %s190
    %p192 = scmp.eq.s32.totalorder %s16, 0
    %p193 = por %p191, %p192
    %p194 = scmp.le.s32.totalorder 1, %s10
    %p195 = scmp.lt.s32.totalorder %s10, 3
    %p196 = pnand %p194, %p195
    %p197 = pneg %p196
    // Predicated region
    $region9: #{quadratic_edge_update_forward.4} parent=5 // pred_check
      _
    $region10: #{quadratic_edge_update_forward.4} parent=5 // pred_check_branch
      %199 = sbr.rel (%p196) target = $region12
    $region11: #{quadratic_edge_update_forward.4} parent=5 // pred_region
      %s200 = ssub.s32 %s10, 1
    $region12: #{quadratic_edge_update_forward.4} parent=5 // pred_fallthru
      _
    %p201 = scmp.lt.s32.totalorder %s10, 2
    // Predicated region
    $region13: #{quadratic_edge_update_forward.4} parent=5 // pred_check
      %p202 = pneg %p201
    $region14: #{quadratic_edge_update_forward.4} parent=5 // pred_check_branch
      %204 = sbr.rel (%p202) target = $region16
    $region15: #{quadratic_edge_update_forward.4} parent=5 // pred_region
      // Predicated region
      $region17: #{quadratic_edge_update_forward.4} parent=15 // pred_check
        %p205 = pneg %p60
      $region18: #{quadratic_edge_update_forward.4} parent=15 // pred_check_branch
        %207 = sbr.rel (%p205) target = $region20
      $region19: #{quadratic_edge_update_forward.4} parent=15 // pred_region
        %s208 = smul.u32 2, %s18
        %p209 = scmp.lt.s32.totalorder %s17, 1
        %s210 = scalar_select %p209, %s17, 1
        %p211 = scmp.lt.s32.totalorder %s208, 1
        %s212 = scalar_select %p211, %s208, 1
        %p213 = scmp.lt.s32.totalorder %s20, 0
        %s214 = scalar_select %p213, %s20, 0
        %s215 = sadd.s32 %s214, %s212
        %s216 = smul.addr %s210, 32
        %s217 = sadd.s32 %s215, %s216
        %s218 = smul.addr %s217, 8
        %s219 = scalar_lea.vmem %s0, %s218
        %s220 = smul.u32 2, %s18
      $region20: #{quadratic_edge_update_forward.4} parent=15 // pred_fallthru
        _
      // Predicated region
      $region21: #{quadratic_edge_update_forward.4} parent=15 // pred_check
        %p221 = pneg %p90
      $region22: #{quadratic_edge_update_forward.4} parent=15 // pred_check_branch
        %223 = sbr.rel (%p221) target = $region24
      $region23: #{quadratic_edge_update_forward.4} parent=15 // pred_region
        %s224 = smul.u32 2, %s19
        %p225 = scmp.lt.s32.totalorder %s17, 1
        %s226 = scalar_select %p225, %s17, 1
        %p227 = scmp.lt.s32.totalorder %s224, 1
        %s228 = scalar_select %p227, %s224, 1
        %p229 = scmp.lt.s32.totalorder %s20, 0
        %s230 = scalar_select %p229, %s20, 0
        %s231 = sadd.s32 %s230, %s228
        %s232 = smul.addr %s226, 32
        %s233 = sadd.s32 %s231, %s232
        %s234 = smul.addr %s233, 8
        %s235 = scalar_lea.vmem %s1, %s234
        %s236 = smul.u32 2, %s19
      $region24: #{quadratic_edge_update_forward.4} parent=15 // pred_fallthru
        _
      // Predicated region
      $region25: #{quadratic_edge_update_forward.4} parent=15 // pred_check
        %p237 = pneg %p120
      $region26: #{quadratic_edge_update_forward.4} parent=15 // pred_check_branch
        %239 = sbr.rel (%p237) target = $region28
      $region27: #{quadratic_edge_update_forward.4} parent=15 // pred_region
        %s240 = smul.u32 2, %s18
        %p241 = scmp.lt.s32.totalorder %s17, 1
        %s242 = scalar_select %p241, %s17, 1
        %p243 = scmp.lt.s32.totalorder %s240, 1
        %s244 = scalar_select %p243, %s240, 1
        %p245 = scmp.lt.s32.totalorder %s20, 0
        %s246 = scalar_select %p245, %s20, 0
        %s247 = sadd.s32 %s246, %s244
        %s248 = smul.addr %s242, 32
        %s249 = sadd.s32 %s247, %s248
        %s250 = smul.addr %s249, 8
        %s251 = scalar_lea.vmem %s2, %s250
        %s252 = smul.u32 2, %s18
      $region28: #{quadratic_edge_update_forward.4} parent=15 // pred_fallthru
        _
      // Predicated region
      $region29: #{quadratic_edge_update_forward.4} parent=15 // pred_check
        %p253 = pneg %p150
      $region30: #{quadratic_edge_update_forward.4} parent=15 // pred_check_branch
        %255 = sbr.rel (%p253) target = $region32
      $region31: #{quadratic_edge_update_forward.4} parent=15 // pred_region
        %s256 = smul.u32 2, %s19
        %p257 = scmp.lt.s32.totalorder %s17, 1
        %s258 = scalar_select %p257, %s17, 1
        %p259 = scmp.lt.s32.totalorder %s256, 1
        %s260 = scalar_select %p259, %s256, 1
        %p261 = scmp.lt.s32.totalorder %s20, 0
        %s262 = scalar_select %p261, %s20, 0
        %s263 = sadd.s32 %s262, %s260
        %s264 = smul.addr %s258, 32
        %s265 = sadd.s32 %s263, %s264
        %s266 = smul.addr %s265, 8
        %s267 = scalar_lea.vmem %s3, %s266
        %s268 = smul.u32 2, %s19
      $region32: #{quadratic_edge_update_forward.4} parent=15 // pred_fallthru
        _
    $region16: #{quadratic_edge_update_forward.4} parent=5 // pred_fallthru
      _
    %p269 = scmp.le.s32.totalorder 1, %s10
    %p270 = scmp.lt.s32.totalorder %s10, 3
    %p271 = pnand %p269, %p270
    %p272 = pneg %p271
    // Predicated region
    $region33: #{quadratic_edge_update_forward.4} parent=5 // pred_check
      _
    $region34: #{quadratic_edge_update_forward.4} parent=5 // pred_check_branch
      %274 = sbr.rel (%p271) target = $region36
    $region35: #{quadratic_edge_update_forward.4} parent=5 // pred_region
      %s275 = ssub.s32 %s10, 1
      %s276 = smul.u32 2, %s22
      %p277 = scmp.lt.s32.totalorder %s21, 1
      %s278 = scalar_select %p277, %s21, 1
      %p279 = scmp.lt.s32.totalorder %s276, 1
      %s280 = scalar_select %p279, %s276, 1
      %p281 = scmp.lt.s32.totalorder %s24, 0
      %s282 = scalar_select %p281, %s24, 0
      %s283 = sadd.s32 %s282, %s280
      %s284 = smul.addr %s278, 32
      %s285 = sadd.s32 %s283, %s284
      %s286 = smul.addr %s285, 8
      %s287 = scalar_lea.vmem %s0, %s286
      %p288 = pneg %p66
      %p289 = pneg %p63
      %s290 = smul.u32 2, %s23
      %p291 = scmp.lt.s32.totalorder %s21, 1
      %s292 = scalar_select %p291, %s21, 1
      %p293 = scmp.lt.s32.totalorder %s290, 1
      %s294 = scalar_select %p293, %s290, 1
      %p295 = scmp.lt.s32.totalorder %s24, 0
      %s296 = scalar_select %p295, %s24, 0
      %s297 = sadd.s32 %s296, %s294
      %s298 = smul.addr %s292, 32
      %s299 = sadd.s32 %s297, %s298
      %s300 = smul.addr %s299, 8
      %s301 = scalar_lea.vmem %s1, %s300
      %p302 = pneg %p96
      %p303 = pneg %p93
      %s304 = smul.u32 2, %s22
      %p305 = scmp.lt.s32.totalorder %s21, 1
      %s306 = scalar_select %p305, %s21, 1
      %p307 = scmp.lt.s32.totalorder %s304, 1
      %s308 = scalar_select %p307, %s304, 1
      %p309 = scmp.lt.s32.totalorder %s24, 0
      %s310 = scalar_select %p309, %s24, 0
      %s311 = sadd.s32 %s310, %s308
      %s312 = smul.addr %s306, 32
      %s313 = sadd.s32 %s311, %s312
      %s314 = smul.addr %s313, 8
      %s315 = scalar_lea.vmem %s2, %s314
      %p316 = pneg %p126
      %p317 = pneg %p123
      %s318 = smul.u32 2, %s23
      %p319 = scmp.lt.s32.totalorder %s21, 1
      %s320 = scalar_select %p319, %s21, 1
      %p321 = scmp.lt.s32.totalorder %s318, 1
      %s322 = scalar_select %p321, %s318, 1
      %p323 = scmp.lt.s32.totalorder %s24, 0
      %s324 = scalar_select %p323, %s24, 0
      %s325 = sadd.s32 %s324, %s322
      %s326 = smul.addr %s320, 32
      %s327 = sadd.s32 %s325, %s326
      %s328 = smul.addr %s327, 8
      %s329 = scalar_lea.vmem %s3, %s328
      %p330 = pneg %p156
      %p331 = pneg %p153
      %p332 = pneg %p186
      %p333 = pneg %p183
      %s334 = smul.u32 2, %s22
      %p335 = scmp.lt.s32.totalorder %s21, 1
      %s336 = scalar_select %p335, %s21, 1
      %p337 = scmp.lt.s32.totalorder %s334, 1
      %s338 = scalar_select %p337, %s334, 1
      %p339 = scmp.lt.s32.totalorder %s23, 0
      %s340 = scalar_select %p339, %s23, 0
      %s341 = sadd.s32 %s340, %s338
      %s342 = smul.addr %s336, 32
      %s343 = sadd.s32 %s341, %s342
      %s344 = smul.addr %s343, 8
      %s345 = scalar_lea.vmem %s4, %s344
      %s346 = smul.u32 2, %s22
      %p347 = scmp.lt.s32.totalorder %s21, 1
      %s348 = scalar_select %p347, %s21, 1
      %p349 = scmp.lt.s32.totalorder %s346, 1
      %s350 = scalar_select %p349, %s346, 1
      %p351 = scmp.lt.s32.totalorder %s24, 0
      %s352 = scalar_select %p351, %s24, 0
      %s353 = sadd.s32 %s352, %s350
      %s354 = smul.addr %s348, 32
      %s355 = sadd.s32 %s353, %s354
      %s356 = smul.addr %s355, 8
      %s357 = scalar_lea.vmem %s0, %s356
      %s358 = smul.u32 2, %s22
      %s359 = smul.u32 2, %s23
      %p360 = scmp.lt.s32.totalorder %s21, 1
      %s361 = scalar_select %p360, %s21, 1
      %p362 = scmp.lt.s32.totalorder %s359, 1
      %s363 = scalar_select %p362, %s359, 1
      %p364 = scmp.lt.s32.totalorder %s24, 0
      %s365 = scalar_select %p364, %s24, 0
      %s366 = sadd.s32 %s365, %s363
      %s367 = smul.addr %s361, 32
      %s368 = sadd.s32 %s366, %s367
      %s369 = smul.addr %s368, 8
      %s370 = scalar_lea.vmem %s1, %s369
      %s371 = smul.u32 2, %s23
      %s372 = smul.u32 2, %s22
      %p373 = scmp.lt.s32.totalorder %s21, 1
      %s374 = scalar_select %p373, %s21, 1
      %p375 = scmp.lt.s32.totalorder %s372, 1
      %s376 = scalar_select %p375, %s372, 1
      %p377 = scmp.lt.s32.totalorder %s24, 0
      %s378 = scalar_select %p377, %s24, 0
      %s379 = sadd.s32 %s378, %s376
      %s380 = smul.addr %s374, 32
      %s381 = sadd.s32 %s379, %s380
      %s382 = smul.addr %s381, 8
      %s383 = scalar_lea.vmem %s2, %s382
      %s384 = smul.u32 2, %s22
      %s385 = smul.u32 2, %s23
      %p386 = scmp.lt.s32.totalorder %s21, 1
      %s387 = scalar_select %p386, %s21, 1
      %p388 = scmp.lt.s32.totalorder %s385, 1
      %s389 = scalar_select %p388, %s385, 1
      %p390 = scmp.lt.s32.totalorder %s24, 0
      %s391 = scalar_select %p390, %s24, 0
      %s392 = sadd.s32 %s391, %s389
      %s393 = smul.addr %s387, 32
      %s394 = sadd.s32 %s392, %s393
      %s395 = smul.addr %s394, 8
      %s396 = scalar_lea.vmem %s3, %s395
      %s397 = smul.u32 2, %s23
      %s398 = smul.u32 2, %s22
      %p399 = scmp.lt.s32.totalorder %s21, 1
      %s400 = scalar_select %p399, %s21, 1
      %p401 = scmp.lt.s32.totalorder %s398, 1
      %s402 = scalar_select %p401, %s398, 1
      %p403 = scmp.lt.s32.totalorder %s23, 0
      %s404 = scalar_select %p403, %s23, 0
      %s405 = sadd.s32 %s404, %s402
      %s406 = smul.addr %s400, 32
      %s407 = sadd.s32 %s405, %s406
      %s408 = smul.addr %s407, 8
      %s409 = scalar_lea.vmem %s4, %s408
      %s410 = smul.u32 2, %s22
      %p411 = scmp.eq.s32.totalorder %s24, 0
      // Predicated region
      $region37: #{quadratic_edge_update_forward.4} parent=35 // pred_check
        %p412 = pneg %p411
      $region38: #{quadratic_edge_update_forward.4} parent=35 // pred_check_branch
        %414 = sbr.rel (%p412) target = $region40
      $region39: #{quadratic_edge_update_forward.4} parent=35 // pred_region
        %vm415 = vcmask 130048
        %416 = vst.msk [vmem:[#allocation2] sm:$0xff] %vm415, 0.0
        %417 = vst.msk [vmem:[#allocation2 + $0x8] sm:$0xff] %vm415, 0.0
        %418 = vst.msk [vmem:[#allocation2 + $0x10] sm:$0xff] %vm415, 0.0
        %419 = vst.msk [vmem:[#allocation2 + $0x18] sm:$0xff] %vm415, 0.0
        %420 = vst.msk [vmem:[#allocation2 + $0x20] sm:$0xff] %vm415, 0.0
        %421 = vst.msk [vmem:[#allocation2 + $0x28] sm:$0xff] %vm415, 0.0
        %422 = vst.msk [vmem:[#allocation2 + $0x30] sm:$0xff] %vm415, 0.0
        %423 = vst.msk [vmem:[#allocation2 + $0x38] sm:$0xff] %vm415, 0.0
        %424 = vst.msk [vmem:[#allocation2 + $0x40] sm:$0xff] %vm415, 0.0
        %425 = vst.msk [vmem:[#allocation2 + $0x48] sm:$0xff] %vm415, 0.0
        %426 = vst.msk [vmem:[#allocation2 + $0x50] sm:$0xff] %vm415, 0.0
        %427 = vst.msk [vmem:[#allocation2 + $0x58] sm:$0xff] %vm415, 0.0
        %428 = vst.msk [vmem:[#allocation2 + $0x60] sm:$0xff] %vm415, 0.0
        %429 = vst.msk [vmem:[#allocation2 + $0x68] sm:$0xff] %vm415, 0.0
        %430 = vst.msk [vmem:[#allocation2 + $0x70] sm:$0xff] %vm415, 0.0
        %431 = vst.msk [vmem:[#allocation2 + $0x78] sm:$0xff] %vm415, 0.0
        %432 = vst.msk [vmem:[#allocation2 + $0x80] sm:$0xff] %vm415, 0.0
        %433 = vst.msk [vmem:[#allocation2 + $0x88] sm:$0xff] %vm415, 0.0
        %434 = vst.msk [vmem:[#allocation2 + $0x90] sm:$0xff] %vm415, 0.0
        %435 = vst.msk [vmem:[#allocation2 + $0x98] sm:$0xff] %vm415, 0.0
        %436 = vst.msk [vmem:[#allocation2 + $0xa0] sm:$0xff] %vm415, 0.0
        %437 = vst.msk [vmem:[#allocation2 + $0xa8] sm:$0xff] %vm415, 0.0
        %438 = vst.msk [vmem:[#allocation2 + $0xb0] sm:$0xff] %vm415, 0.0
        %439 = vst.msk [vmem:[#allocation2 + $0xb8] sm:$0xff] %vm415, 0.0
        %440 = vst.msk [vmem:[#allocation2 + $0xc0] sm:$0xff] %vm415, 0.0
        %441 = vst.msk [vmem:[#allocation2 + $0xc8] sm:$0xff] %vm415, 0.0
        %442 = vst.msk [vmem:[#allocation2 + $0xd0] sm:$0xff] %vm415, 0.0
        %443 = vst.msk [vmem:[#allocation2 + $0xd8] sm:$0xff] %vm415, 0.0
        %444 = vst.msk [vmem:[#allocation2 + $0xe0] sm:$0xff] %vm415, 0.0
        %445 = vst.msk [vmem:[#allocation2 + $0xe8] sm:$0xff] %vm415, 0.0
        %446 = vst.msk [vmem:[#allocation2 + $0xf0] sm:$0xff] %vm415, 0.0
        %447 = vst.msk [vmem:[#allocation2 + $0xf8] sm:$0xff] %vm415, 0.0
        %448 = vst.msk [vmem:[#allocation3] sm:$0xff] %vm415, 0.0
        %449 = vst.msk [vmem:[#allocation3 + $0x8] sm:$0xff] %vm415, 0.0
        %450 = vst.msk [vmem:[#allocation3 + $0x10] sm:$0xff] %vm415, 0.0
        %451 = vst.msk [vmem:[#allocation3 + $0x18] sm:$0xff] %vm415, 0.0
        %452 = vst.msk [vmem:[#allocation3 + $0x20] sm:$0xff] %vm415, 0.0
        %453 = vst.msk [vmem:[#allocation3 + $0x28] sm:$0xff] %vm415, 0.0
        %454 = vst.msk [vmem:[#allocation3 + $0x30] sm:$0xff] %vm415, 0.0
        %455 = vst.msk [vmem:[#allocation3 + $0x38] sm:$0xff] %vm415, 0.0
        %456 = vst.msk [vmem:[#allocation3 + $0x40] sm:$0xff] %vm415, 0.0
        %457 = vst.msk [vmem:[#allocation3 + $0x48] sm:$0xff] %vm415, 0.0
        %458 = vst.msk [vmem:[#allocation3 + $0x50] sm:$0xff] %vm415, 0.0
        %459 = vst.msk [vmem:[#allocation3 + $0x58] sm:$0xff] %vm415, 0.0
        %460 = vst.msk [vmem:[#allocation3 + $0x60] sm:$0xff] %vm415, 0.0
        %461 = vst.msk [vmem:[#allocation3 + $0x68] sm:$0xff] %vm415, 0.0
        %462 = vst.msk [vmem:[#allocation3 + $0x70] sm:$0xff] %vm415, 0.0
        %463 = vst.msk [vmem:[#allocation3 + $0x78] sm:$0xff] %vm415, 0.0
        %464 = vst.msk [vmem:[#allocation3 + $0x80] sm:$0xff] %vm415, 0.0
        %465 = vst.msk [vmem:[#allocation3 + $0x88] sm:$0xff] %vm415, 0.0
        %466 = vst.msk [vmem:[#allocation3 + $0x90] sm:$0xff] %vm415, 0.0
        %467 = vst.msk [vmem:[#allocation3 + $0x98] sm:$0xff] %vm415, 0.0
        %468 = vst.msk [vmem:[#allocation3 + $0xa0] sm:$0xff] %vm415, 0.0
        %469 = vst.msk [vmem:[#allocation3 + $0xa8] sm:$0xff] %vm415, 0.0
        %470 = vst.msk [vmem:[#allocation3 + $0xb0] sm:$0xff] %vm415, 0.0
        %471 = vst.msk [vmem:[#allocation3 + $0xb8] sm:$0xff] %vm415, 0.0
        %472 = vst.msk [vmem:[#allocation3 + $0xc0] sm:$0xff] %vm415, 0.0
        %473 = vst.msk [vmem:[#allocation3 + $0xc8] sm:$0xff] %vm415, 0.0
        %474 = vst.msk [vmem:[#allocation3 + $0xd0] sm:$0xff] %vm415, 0.0
        %475 = vst.msk [vmem:[#allocation3 + $0xd8] sm:$0xff] %vm415, 0.0
        %476 = vst.msk [vmem:[#allocation3 + $0xe0] sm:$0xff] %vm415, 0.0
        %477 = vst.msk [vmem:[#allocation3 + $0xe8] sm:$0xff] %vm415, 0.0
        %478 = vst.msk [vmem:[#allocation3 + $0xf0] sm:$0xff] %vm415, 0.0
        %479 = vst.msk [vmem:[#allocation3 + $0xf8] sm:$0xff] %vm415, 0.0
      $region40: #{quadratic_edge_update_forward.4} parent=35 // pred_fallthru
        _
      %v480 = vld [vmem:[#allocation2] sm:$0xff]
      %v481 = vld [vmem:[#allocation2 + $0x8] sm:$0xff]
      %v482 = vld [vmem:[#allocation2 + $0x10] sm:$0xff]
      %v483 = vld [vmem:[#allocation2 + $0x18] sm:$0xff]
      %v484 = vld [vmem:[#allocation2 + $0x20] sm:$0xff]
      %v485 = vld [vmem:[#allocation2 + $0x28] sm:$0xff]
      %v486 = vld [vmem:[#allocation2 + $0x30] sm:$0xff]
      %v487 = vld [vmem:[#allocation2 + $0x38] sm:$0xff]
      %v488 = vld [vmem:[#allocation2 + $0x40] sm:$0xff]
      %v489 = vld [vmem:[#allocation2 + $0x48] sm:$0xff]
      %v490 = vld [vmem:[#allocation2 + $0x50] sm:$0xff]
      %v491 = vld [vmem:[#allocation2 + $0x58] sm:$0xff]
      %v492 = vld [vmem:[#allocation2 + $0x60] sm:$0xff]
      %v493 = vld [vmem:[#allocation2 + $0x68] sm:$0xff]
      %v494 = vld [vmem:[#allocation2 + $0x70] sm:$0xff]
      %v495 = vld [vmem:[#allocation2 + $0x78] sm:$0xff]
      %v496 = vld [vmem:[#allocation2 + $0x80] sm:$0xff]
      %v497 = vld [vmem:[#allocation2 + $0x88] sm:$0xff]
      %v498 = vld [vmem:[#allocation2 + $0x90] sm:$0xff]
      %v499 = vld [vmem:[#allocation2 + $0x98] sm:$0xff]
      %v500 = vld [vmem:[#allocation2 + $0xa0] sm:$0xff]
      %v501 = vld [vmem:[#allocation2 + $0xa8] sm:$0xff]
      %v502 = vld [vmem:[#allocation2 + $0xb0] sm:$0xff]
      %v503 = vld [vmem:[#allocation2 + $0xb8] sm:$0xff]
      %v504 = vld [vmem:[#allocation2 + $0xc0] sm:$0xff]
      %v505 = vld [vmem:[#allocation2 + $0xc8] sm:$0xff]
      %v506 = vld [vmem:[#allocation2 + $0xd0] sm:$0xff]
      %v507 = vld [vmem:[#allocation2 + $0xd8] sm:$0xff]
      %v508 = vld [vmem:[#allocation2 + $0xe0] sm:$0xff]
      %v509 = vld [vmem:[#allocation2 + $0xe8] sm:$0xff]
      %v510 = vld [vmem:[#allocation2 + $0xf0] sm:$0xff]
      %v511 = vld [vmem:[#allocation2 + $0xf8] sm:$0xff]
      %v512 = vld [vmem:[%s357] sm:$0xff]
      %v513 = vld [vmem:[%s357 + $0x8] sm:$0xff]
      %v514 = vld [vmem:[%s357 + $0x10] sm:$0xff]
      %v515 = vld [vmem:[%s357 + $0x18] sm:$0xff]
      %v516 = vld [vmem:[%s357 + $0x20] sm:$0xff]
      %v517 = vld [vmem:[%s357 + $0x28] sm:$0xff]
      %v518 = vld [vmem:[%s357 + $0x30] sm:$0xff]
      %v519 = vld [vmem:[%s357 + $0x38] sm:$0xff]
      %v520 = vld [vmem:[%s357 + $0x40] sm:$0xff]
      %v521 = vld [vmem:[%s357 + $0x48] sm:$0xff]
      %v522 = vld [vmem:[%s357 + $0x50] sm:$0xff]
      %v523 = vld [vmem:[%s357 + $0x58] sm:$0xff]
      %v524 = vld [vmem:[%s357 + $0x60] sm:$0xff]
      %v525 = vld [vmem:[%s357 + $0x68] sm:$0xff]
      %v526 = vld [vmem:[%s357 + $0x70] sm:$0xff]
      %v527 = vld [vmem:[%s357 + $0x78] sm:$0xff]
      %v528 = vld [vmem:[%s357 + $0x80] sm:$0xff]
      %v529 = vld [vmem:[%s357 + $0x88] sm:$0xff]
      %v530 = vld [vmem:[%s357 + $0x90] sm:$0xff]
      %v531 = vld [vmem:[%s357 + $0x98] sm:$0xff]
      %v532 = vld [vmem:[%s357 + $0xa0] sm:$0xff]
      %v533 = vld [vmem:[%s357 + $0xa8] sm:$0xff]
      %v534 = vld [vmem:[%s357 + $0xb0] sm:$0xff]
      %v535 = vld [vmem:[%s357 + $0xb8] sm:$0xff]
      %v536 = vld [vmem:[%s357 + $0xc0] sm:$0xff]
      %v537 = vld [vmem:[%s357 + $0xc8] sm:$0xff]
      %v538 = vld [vmem:[%s357 + $0xd0] sm:$0xff]
      %v539 = vld [vmem:[%s357 + $0xd8] sm:$0xff]
      %v540 = vld [vmem:[%s357 + $0xe0] sm:$0xff]
      %v541 = vld [vmem:[%s357 + $0xe8] sm:$0xff]
      %v542 = vld [vmem:[%s357 + $0xf0] sm:$0xff]
      %v543 = vld [vmem:[%s357 + $0xf8] sm:$0xff]
      %v544 = vld [vmem:[%s370] sm:$0xff]
      %v545 = vld [vmem:[%s370 + $0x8] sm:$0xff]
      %v546 = vld [vmem:[%s370 + $0x10] sm:$0xff]
      %v547 = vld [vmem:[%s370 + $0x18] sm:$0xff]
      %v548 = vld [vmem:[%s370 + $0x20] sm:$0xff]
      %v549 = vld [vmem:[%s370 + $0x28] sm:$0xff]
      %v550 = vld [vmem:[%s370 + $0x30] sm:$0xff]
      %v551 = vld [vmem:[%s370 + $0x38] sm:$0xff]
      %v552 = vld [vmem:[%s370 + $0x40] sm:$0xff]
      %v553 = vld [vmem:[%s370 + $0x48] sm:$0xff]
      %v554 = vld [vmem:[%s370 + $0x50] sm:$0xff]
      %v555 = vld [vmem:[%s370 + $0x58] sm:$0xff]
      %v556 = vld [vmem:[%s370 + $0x60] sm:$0xff]
      %v557 = vld [vmem:[%s370 + $0x68] sm:$0xff]
      %v558 = vld [vmem:[%s370 + $0x70] sm:$0xff]
      %v559 = vld [vmem:[%s370 + $0x78] sm:$0xff]
      %v560 = vld [vmem:[%s370 + $0x80] sm:$0xff]
      %v561 = vld [vmem:[%s370 + $0x88] sm:$0xff]
      %v562 = vld [vmem:[%s370 + $0x90] sm:$0xff]
      %v563 = vld [vmem:[%s370 + $0x98] sm:$0xff]
      %v564 = vld [vmem:[%s370 + $0xa0] sm:$0xff]
      %v565 = vld [vmem:[%s370 + $0xa8] sm:$0xff]
      %v566 = vld [vmem:[%s370 + $0xb0] sm:$0xff]
      %v567 = vld [vmem:[%s370 + $0xb8] sm:$0xff]
      %v568 = vld [vmem:[%s370 + $0xc0] sm:$0xff]
      %v569 = vld [vmem:[%s370 + $0xc8] sm:$0xff]
      %v570 = vld [vmem:[%s370 + $0xd0] sm:$0xff]
      %v571 = vld [vmem:[%s370 + $0xd8] sm:$0xff]
      %v572 = vld [vmem:[%s370 + $0xe0] sm:$0xff]
      %v573 = vld [vmem:[%s370 + $0xe8] sm:$0xff]
      %v574 = vld [vmem:[%s370 + $0xf0] sm:$0xff]
      %v575 = vld [vmem:[%s370 + $0xf8] sm:$0xff]
      %vm576 = vcmask 130048
      %v578 = vsel %vm576, %v512, 0
      %v581 = vsel %vm576, %v513, 0
      %v584 = vsel %vm576, %v544, 0
      %v587 = vsel %vm576, %v545, 0
      %589 = vmatprep.subr.mxu0 0.0
      %590 = vmatpush1.xpose.msra.mxu0 0.0
      %591 = vmatprep.subr.mxu0 0.0
      %592 = vmatpush1.xpose.msra.mxu0 0.0
      %593 = vmatprep.subr.mxu0 0.0
      %594 = vmatpush1.xpose.msra.mxu0 0.0
      %595 = vmatprep.subr.mxu0 0.0
      %596 = vmatpush1.xpose.msra.mxu0 0.0
      %597 = vmatprep.subr.mxu0 0.0
      %598 = vmatpush1.xpose.msra.mxu0 0.0
      %599 = vmatprep.subr.mxu0 0.0
      %600 = vmatpush1.xpose.msra.mxu0 0.0
      %601 = vmatprep.subr.mxu0 0.0
      %602 = vmatpush1.xpose.msra.mxu0 0.0
      %603 = vmatprep.subr.mxu0 0.0
      %604 = vmatpush1.xpose.msra.mxu0 0.0
      %605 = vmatprep.subr.mxu0 0.0
      %606 = vmatpush1.xpose.msra.mxu0 0.0
      %607 = vmatprep.subr.mxu0 0.0
      %608 = vmatpush1.xpose.msra.mxu0 0.0
      %609 = vmatprep.subr.mxu0 0.0
      %610 = vmatpush1.xpose.msra.mxu0 0.0
      %611 = vmatprep.subr.mxu0 0.0
      %612 = vmatpush1.xpose.msra.mxu0 0.0
      %613 = vmatprep.subr.mxu0 0.0
      %614 = vmatpush1.xpose.msra.mxu0 0.0
      %615 = vmatprep.subr.mxu0 0.0
      %616 = vmatpush1.xpose.msra.mxu0 0.0
      %617 = vmatprep.subr.mxu0 0.0
      %618 = vmatpush1.xpose.msra.mxu0 %v587
      %619 = vmatprep.subr.mxu0 0.0
      %620 = vmatpush1.xpose.msra.mxu0 %v584
      %621 = vmatprep.subr.mxu0 0.0
      %622 = vmatpush2.xpose.msra.mxu0 0.0
      %623 = vmatprep.subr.mxu0 0.0
      %624 = vmatpush2.xpose.msra.mxu0 0.0
      %625 = vmatprep.subr.mxu0 0.0
      %626 = vmatpush2.xpose.msra.mxu0 0.0
      %627 = vmatprep.subr.mxu0 0.0
      %628 = vmatpush2.xpose.msra.mxu0 0.0
      %629 = vmatprep.subr.mxu0 0.0
      %630 = vmatpush2.xpose.msra.mxu0 0.0
      %631 = vmatprep.subr.mxu0 0.0
      %632 = vmatpush2.xpose.msra.mxu0 0.0
      %633 = vmatprep.subr.mxu0 0.0
      %634 = vmatpush2.xpose.msra.mxu0 0.0
      %635 = vmatprep.subr.mxu0 0.0
      %636 = vmatpush2.xpose.msra.mxu0 0.0
      %637 = vmatprep.subr.mxu0 0.0
      %638 = vmatpush2.xpose.msra.mxu0 0.0
      %639 = vmatprep.subr.mxu0 0.0
      %640 = vmatpush2.xpose.msra.mxu0 0.0
      %641 = vmatprep.subr.mxu0 0.0
      %642 = vmatpush2.xpose.msra.mxu0 0.0
      %643 = vmatprep.subr.mxu0 0.0
      %644 = vmatpush2.xpose.msra.mxu0 0.0
      %645 = vmatprep.subr.mxu0 0.0
      %646 = vmatpush2.xpose.msra.mxu0 0.0
      %647 = vmatprep.subr.mxu0 0.0
      %648 = vmatpush2.xpose.msra.mxu0 0.0
      %649 = vmatprep.subr.mxu0 0.0
      %650 = vmatpush2.xpose.msra.mxu0 0.0
      %651 = vmatprep.subr.mxu0 0.0
      %652 = vmatpush2.xpose.msra.mxu0 0.0
      %653 = vmatprep.mubr.f32.mxu0 0.0
      %654 = vmatmul.mubr.f32.gmra.mxu0 %v578
      %v655 = vpop.f32.mrf.mxu0
      %v656 = vadd.f32 0.0, %v655
      %v657 = vpop.f32.mrf.mxu0
      %658 = vmatprep.mubr.f32.mxu0 0.0
      %659 = vmatmul.mubr.f32.gmra.mxu0 %v581
      %v660 = vpop.f32.mrf.mxu0
      %v661 = vadd.f32 0.0, %v660
      %v662 = vpop.f32.mrf.mxu0
      %663 = vdwg.mxu0
      %v665 = vsel %vm576, %v514, 0
      %v668 = vsel %vm576, %v515, 0
      %v671 = vsel %vm576, %v546, 0
      %v674 = vsel %vm576, %v547, 0
      %676 = vmatprep.subr.mxu0 0.0
      %677 = vmatpush1.xpose.msra.mxu0 0.0
      %678 = vmatprep.subr.mxu0 0.0
      %679 = vmatpush1.xpose.msra.mxu0 0.0
      %680 = vmatprep.subr.mxu0 0.0
      %681 = vmatpush1.xpose.msra.mxu0 0.0
      %682 = vmatprep.subr.mxu0 0.0
      %683 = vmatpush1.xpose.msra.mxu0 0.0
      %684 = vmatprep.subr.mxu0 0.0
      %685 = vmatpush1.xpose.msra.mxu0 0.0
      %686 = vmatprep.subr.mxu0 0.0
      %687 = vmatpush1.xpose.msra.mxu0 0.0
      %688 = vmatprep.subr.mxu0 0.0
      %689 = vmatpush1.xpose.msra.mxu0 0.0
      %690 = vmatprep.subr.mxu0 0.0
      %691 = vmatpush1.xpose.msra.mxu0 0.0
      %692 = vmatprep.subr.mxu0 0.0
      %693 = vmatpush1.xpose.msra.mxu0 0.0
      %694 = vmatprep.subr.mxu0 0.0
      %695 = vmatpush1.xpose.msra.mxu0 0.0
      %696 = vmatprep.subr.mxu0 0.0
      %697 = vmatpush1.xpose.msra.mxu0 0.0
      %698 = vmatprep.subr.mxu0 0.0
      %699 = vmatpush1.xpose.msra.mxu0 0.0
      %700 = vmatprep.subr.mxu0 0.0
      %701 = vmatpush1.xpose.msra.mxu0 0.0
      %702 = vmatprep.subr.mxu0 0.0
      %703 = vmatpush1.xpose.msra.mxu0 0.0
      %704 = vmatprep.subr.mxu0 0.0
      %705 = vmatpush1.xpose.msra.mxu0 %v674
      %706 = vmatprep.subr.mxu0 0.0
      %707 = vmatpush1.xpose.msra.mxu0 %v671
      %708 = vmatprep.subr.mxu0 0.0
      %709 = vmatpush2.xpose.msra.mxu0 0.0
      %710 = vmatprep.subr.mxu0 0.0
      %711 = vmatpush2.xpose.msra.mxu0 0.0
      %712 = vmatprep.subr.mxu0 0.0
      %713 = vmatpush2.xpose.msra.mxu0 0.0
      %714 = vmatprep.subr.mxu0 0.0
      %715 = vmatpush2.xpose.msra.mxu0 0.0
      %716 = vmatprep.subr.mxu0 0.0
      %717 = vmatpush2.xpose.msra.mxu0 0.0
      %718 = vmatprep.subr.mxu0 0.0
      %719 = vmatpush2.xpose.msra.mxu0 0.0
      %720 = vmatprep.subr.mxu0 0.0
      %721 = vmatpush2.xpose.msra.mxu0 0.0
      %722 = vmatprep.subr.mxu0 0.0
      %723 = vmatpush2.xpose.msra.mxu0 0.0
      %724 = vmatprep.subr.mxu0 0.0
      %725 = vmatpush2.xpose.msra.mxu0 0.0
      %726 = vmatprep.subr.mxu0 0.0
      %727 = vmatpush2.xpose.msra.mxu0 0.0
      %728 = vmatprep.subr.mxu0 0.0
      %729 = vmatpush2.xpose.msra.mxu0 0.0
      %730 = vmatprep.subr.mxu0 0.0
      %731 = vmatpush2.xpose.msra.mxu0 0.0
      %732 = vmatprep.subr.mxu0 0.0
      %733 = vmatpush2.xpose.msra.mxu0 0.0
      %734 = vmatprep.subr.mxu0 0.0
      %735 = vmatpush2.xpose.msra.mxu0 0.0
      %736 = vmatprep.subr.mxu0 0.0
      %737 = vmatpush2.xpose.msra.mxu0 0.0
      %738 = vmatprep.subr.mxu0 0.0
      %739 = vmatpush2.xpose.msra.mxu0 0.0
      %740 = vmatprep.mubr.f32.mxu0 0.0
      %741 = vmatmul.mubr.f32.gmra.mxu0 %v665
      %v742 = vpop.f32.mrf.mxu0
      %v743 = vadd.f32 0.0, %v742
      %v744 = vpop.f32.mrf.mxu0
      %745 = vmatprep.mubr.f32.mxu0 0.0
      %746 = vmatmul.mubr.f32.gmra.mxu0 %v668
      %v747 = vpop.f32.mrf.mxu0
      %v748 = vadd.f32 0.0, %v747
      %v749 = vpop.f32.mrf.mxu0
      %750 = vdwg.mxu0
      %v752 = vsel %vm576, %v516, 0
      %v755 = vsel %vm576, %v517, 0
      %v758 = vsel %vm576, %v548, 0
      %v761 = vsel %vm576, %v549, 0
      %763 = vmatprep.subr.mxu0 0.0
      %764 = vmatpush1.xpose.msra.mxu0 0.0
      %765 = vmatprep.subr.mxu0 0.0
      %766 = vmatpush1.xpose.msra.mxu0 0.0
      %767 = vmatprep.subr.mxu0 0.0
      %768 = vmatpush1.xpose.msra.mxu0 0.0
      %769 = vmatprep.subr.mxu0 0.0
      %770 = vmatpush1.xpose.msra.mxu0 0.0
      %771 = vmatprep.subr.mxu0 0.0
      %772 = vmatpush1.xpose.msra.mxu0 0.0
      %773 = vmatprep.subr.mxu0 0.0
      %774 = vmatpush1.xpose.msra.mxu0 0.0
      %775 = vmatprep.subr.mxu0 0.0
      %776 = vmatpush1.xpose.msra.mxu0 0.0
      %777 = vmatprep.subr.mxu0 0.0
      %778 = vmatpush1.xpose.msra.mxu0 0.0
      %779 = vmatprep.subr.mxu0 0.0
      %780 = vmatpush1.xpose.msra.mxu0 0.0
      %781 = vmatprep.subr.mxu0 0.0
      %782 = vmatpush1.xpose.msra.mxu0 0.0
      %783 = vmatprep.subr.mxu0 0.0
      %784 = vmatpush1.xpose.msra.mxu0 0.0
      %785 = vmatprep.subr.mxu0 0.0
      %786 = vmatpush1.xpose.msra.mxu0 0.0
      %787 = vmatprep.subr.mxu0 0.0
      %788 = vmatpush1.xpose.msra.mxu0 0.0
      %789 = vmatprep.subr.mxu0 0.0
      %790 = vmatpush1.xpose.msra.mxu0 0.0
      %791 = vmatprep.subr.mxu0 0.0
      %792 = vmatpush1.xpose.msra.mxu0 %v761
      %793 = vmatprep.subr.mxu0 0.0
      %794 = vmatpush1.xpose.msra.mxu0 %v758
      %795 = vmatprep.subr.mxu0 0.0
      %796 = vmatpush2.xpose.msra.mxu0 0.0
      %797 = vmatprep.subr.mxu0 0.0
      %798 = vmatpush2.xpose.msra.mxu0 0.0
      %799 = vmatprep.subr.mxu0 0.0
      %800 = vmatpush2.xpose.msra.mxu0 0.0
      %801 = vmatprep.subr.mxu0 0.0
      %802 = vmatpush2.xpose.msra.mxu0 0.0
      %803 = vmatprep.subr.mxu0 0.0
      %804 = vmatpush2.xpose.msra.mxu0 0.0
      %805 = vmatprep.subr.mxu0 0.0
      %806 = vmatpush2.xpose.msra.mxu0 0.0
      %807 = vmatprep.subr.mxu0 0.0
      %808 = vmatpush2.xpose.msra.mxu0 0.0
      %809 = vmatprep.subr.mxu0 0.0
      %810 = vmatpush2.xpose.msra.mxu0 0.0
      %811 = vmatprep.subr.mxu0 0.0
      %812 = vmatpush2.xpose.msra.mxu0 0.0
      %813 = vmatprep.subr.mxu0 0.0
      %814 = vmatpush2.xpose.msra.mxu0 0.0
      %815 = vmatprep.subr.mxu0 0.0
      %816 = vmatpush2.xpose.msra.mxu0 0.0
      %817 = vmatprep.subr.mxu0 0.0
      %818 = vmatpush2.xpose.msra.mxu0 0.0
      %819 = vmatprep.subr.mxu0 0.0
      %820 = vmatpush2.xpose.msra.mxu0 0.0
      %821 = vmatprep.subr.mxu0 0.0
      %822 = vmatpush2.xpose.msra.mxu0 0.0
      %823 = vmatprep.subr.mxu0 0.0
      %824 = vmatpush2.xpose.msra.mxu0 0.0
      %825 = vmatprep.subr.mxu0 0.0
      %826 = vmatpush2.xpose.msra.mxu0 0.0
      %827 = vmatprep.mubr.f32.mxu0 0.0
      %828 = vmatmul.mubr.f32.gmra.mxu0 %v752
      %v829 = vpop.f32.mrf.mxu0
      %v830 = vadd.f32 0.0, %v829
      %v831 = vpop.f32.mrf.mxu0
      %832 = vmatprep.mubr.f32.mxu0 0.0
      %833 = vmatmul.mubr.f32.gmra.mxu0 %v755
      %v834 = vpop.f32.mrf.mxu0
      %v835 = vadd.f32 0.0, %v834
      %v836 = vpop.f32.mrf.mxu0
      %837 = vdwg.mxu0
      %v839 = vsel %vm576, %v518, 0
      %v842 = vsel %vm576, %v519, 0
      %v845 = vsel %vm576, %v550, 0
      %v848 = vsel %vm576, %v551, 0
      %850 = vmatprep.subr.mxu0 0.0
      %851 = vmatpush1.xpose.msra.mxu0 0.0
      %852 = vmatprep.subr.mxu0 0.0
      %853 = vmatpush1.xpose.msra.mxu0 0.0
      %854 = vmatprep.subr.mxu0 0.0
      %855 = vmatpush1.xpose.msra.mxu0 0.0
      %856 = vmatprep.subr.mxu0 0.0
      %857 = vmatpush1.xpose.msra.mxu0 0.0
      %858 = vmatprep.subr.mxu0 0.0
      %859 = vmatpush1.xpose.msra.mxu0 0.0
      %860 = vmatprep.subr.mxu0 0.0
      %861 = vmatpush1.xpose.msra.mxu0 0.0
      %862 = vmatprep.subr.mxu0 0.0
      %863 = vmatpush1.xpose.msra.mxu0 0.0
      %864 = vmatprep.subr.mxu0 0.0
      %865 = vmatpush1.xpose.msra.mxu0 0.0
      %866 = vmatprep.subr.mxu0 0.0
      %867 = vmatpush1.xpose.msra.mxu0 0.0
      %868 = vmatprep.subr.mxu0 0.0
      %869 = vmatpush1.xpose.msra.mxu0 0.0
      %870 = vmatprep.subr.mxu0 0.0
      %871 = vmatpush1.xpose.msra.mxu0 0.0
      %872 = vmatprep.subr.mxu0 0.0
      %873 = vmatpush1.xpose.msra.mxu0 0.0
      %874 = vmatprep.subr.mxu0 0.0
      %875 = vmatpush1.xpose.msra.mxu0 0.0
      %876 = vmatprep.subr.mxu0 0.0
      %877 = vmatpush1.xpose.msra.mxu0 0.0
      %878 = vmatprep.subr.mxu0 0.0
      %879 = vmatpush1.xpose.msra.mxu0 %v848
      %880 = vmatprep.subr.mxu0 0.0
      %881 = vmatpush1.xpose.msra.mxu0 %v845
      %882 = vmatprep.subr.mxu0 0.0
      %883 = vmatpush2.xpose.msra.mxu0 0.0
      %884 = vmatprep.subr.mxu0 0.0
      %885 = vmatpush2.xpose.msra.mxu0 0.0
      %886 = vmatprep.subr.mxu0 0.0
      %887 = vmatpush2.xpose.msra.mxu0 0.0
      %888 = vmatprep.subr.mxu0 0.0
      %889 = vmatpush2.xpose.msra.mxu0 0.0
      %890 = vmatprep.subr.mxu0 0.0
      %891 = vmatpush2.xpose.msra.mxu0 0.0
      %892 = vmatprep.subr.mxu0 0.0
      %893 = vmatpush2.xpose.msra.mxu0 0.0
      %894 = vmatprep.subr.mxu0 0.0
      %895 = vmatpush2.xpose.msra.mxu0 0.0
      %896 = vmatprep.subr.mxu0 0.0
      %897 = vmatpush2.xpose.msra.mxu0 0.0
      %898 = vmatprep.subr.mxu0 0.0
      %899 = vmatpush2.xpose.msra.mxu0 0.0
      %900 = vmatprep.subr.mxu0 0.0
      %901 = vmatpush2.xpose.msra.mxu0 0.0
      %902 = vmatprep.subr.mxu0 0.0
      %903 = vmatpush2.xpose.msra.mxu0 0.0
      %904 = vmatprep.subr.mxu0 0.0
      %905 = vmatpush2.xpose.msra.mxu0 0.0
      %906 = vmatprep.subr.mxu0 0.0
      %907 = vmatpush2.xpose.msra.mxu0 0.0
      %908 = vmatprep.subr.mxu0 0.0
      %909 = vmatpush2.xpose.msra.mxu0 0.0
      %910 = vmatprep.subr.mxu0 0.0
      %911 = vmatpush2.xpose.msra.mxu0 0.0
      %912 = vmatprep.subr.mxu0 0.0
      %913 = vmatpush2.xpose.msra.mxu0 0.0
      %914 = vmatprep.mubr.f32.mxu0 0.0
      %915 = vmatmul.mubr.f32.gmra.mxu0 %v839
      %v916 = vpop.f32.mrf.mxu0
      %v917 = vadd.f32 0.0, %v916
      %v918 = vpop.f32.mrf.mxu0
      %919 = vmatprep.mubr.f32.mxu0 0.0
      %920 = vmatmul.mubr.f32.gmra.mxu0 %v842
      %v921 = vpop.f32.mrf.mxu0
      %v922 = vadd.f32 0.0, %v921
      %v923 = vpop.f32.mrf.mxu0
      %924 = vdwg.mxu0
      %v926 = vsel %vm576, %v520, 0
      %v929 = vsel %vm576, %v521, 0
      %v932 = vsel %vm576, %v552, 0
      %v935 = vsel %vm576, %v553, 0
      %937 = vmatprep.subr.mxu0 0.0
      %938 = vmatpush1.xpose.msra.mxu0 0.0
      %939 = vmatprep.subr.mxu0 0.0
      %940 = vmatpush1.xpose.msra.mxu0 0.0
      %941 = vmatprep.subr.mxu0 0.0
      %942 = vmatpush1.xpose.msra.mxu0 0.0
      %943 = vmatprep.subr.mxu0 0.0
      %944 = vmatpush1.xpose.msra.mxu0 0.0
      %945 = vmatprep.subr.mxu0 0.0
      %946 = vmatpush1.xpose.msra.mxu0 0.0
      %947 = vmatprep.subr.mxu0 0.0
      %948 = vmatpush1.xpose.msra.mxu0 0.0
      %949 = vmatprep.subr.mxu0 0.0
      %950 = vmatpush1.xpose.msra.mxu0 0.0
      %951 = vmatprep.subr.mxu0 0.0
      %952 = vmatpush1.xpose.msra.mxu0 0.0
      %953 = vmatprep.subr.mxu0 0.0
      %954 = vmatpush1.xpose.msra.mxu0 0.0
      %955 = vmatprep.subr.mxu0 0.0
      %956 = vmatpush1.xpose.msra.mxu0 0.0
      %957 = vmatprep.subr.mxu0 0.0
      %958 = vmatpush1.xpose.msra.mxu0 0.0
      %959 = vmatprep.subr.mxu0 0.0
      %960 = vmatpush1.xpose.msra.mxu0 0.0
      %961 = vmatprep.subr.mxu0 0.0
      %962 = vmatpush1.xpose.msra.mxu0 0.0
      %963 = vmatprep.subr.mxu0 0.0
      %964 = vmatpush1.xpose.msra.mxu0 0.0
      %965 = vmatprep.subr.mxu0 0.0
      %966 = vmatpush1.xpose.msra.mxu0 %v935
      %967 = vmatprep.subr.mxu0 0.0
      %968 = vmatpush1.xpose.msra.mxu0 %v932
      %969 = vmatprep.subr.mxu0 0.0
      %970 = vmatpush2.xpose.msra.mxu0 0.0
      %971 = vmatprep.subr.mxu0 0.0
      %972 = vmatpush2.xpose.msra.mxu0 0.0
      %973 = vmatprep.subr.mxu0 0.0
      %974 = vmatpush2.xpose.msra.mxu0 0.0
      %975 = vmatprep.subr.mxu0 0.0
      %976 = vmatpush2.xpose.msra.mxu0 0.0
      %977 = vmatprep.subr.mxu0 0.0
      %978 = vmatpush2.xpose.msra.mxu0 0.0
      %979 = vmatprep.subr.mxu0 0.0
      %980 = vmatpush2.xpose.msra.mxu0 0.0
      %981 = vmatprep.subr.mxu0 0.0
      %982 = vmatpush2.xpose.msra.mxu0 0.0
      %983 = vmatprep.subr.mxu0 0.0
      %984 = vmatpush2.xpose.msra.mxu0 0.0
      %985 = vmatprep.subr.mxu0 0.0
      %986 = vmatpush2.xpose.msra.mxu0 0.0
      %987 = vmatprep.subr.mxu0 0.0
      %988 = vmatpush2.xpose.msra.mxu0 0.0
      %989 = vmatprep.subr.mxu0 0.0
      %990 = vmatpush2.xpose.msra.mxu0 0.0
      %991 = vmatprep.subr.mxu0 0.0
      %992 = vmatpush2.xpose.msra.mxu0 0.0
      %993 = vmatprep.subr.mxu0 0.0
      %994 = vmatpush2.xpose.msra.mxu0 0.0
      %995 = vmatprep.subr.mxu0 0.0
      %996 = vmatpush2.xpose.msra.mxu0 0.0
      %997 = vmatprep.subr.mxu0 0.0
      %998 = vmatpush2.xpose.msra.mxu0 0.0
      %999 = vmatprep.subr.mxu0 0.0
      %1000 = vmatpush2.xpose.msra.mxu0 0.0
      %1001 = vmatprep.mubr.f32.mxu0 0.0
      %1002 = vmatmul.mubr.f32.gmra.mxu0 %v926
      %v1003 = vpop.f32.mrf.mxu0
      %v1004 = vadd.f32 0.0, %v1003
      %v1005 = vpop.f32.mrf.mxu0
      %1006 = vmatprep.mubr.f32.mxu0 0.0
      %1007 = vmatmul.mubr.f32.gmra.mxu0 %v929
      %v1008 = vpop.f32.mrf.mxu0
      %v1009 = vadd.f32 0.0, %v1008
      %v1010 = vpop.f32.mrf.mxu0
      %1011 = vdwg.mxu0
      %v1013 = vsel %vm576, %v522, 0
      %v1016 = vsel %vm576, %v523, 0
      %v1019 = vsel %vm576, %v554, 0
      %v1022 = vsel %vm576, %v555, 0
      %1024 = vmatprep.subr.mxu0 0.0
      %1025 = vmatpush1.xpose.msra.mxu0 0.0
      %1026 = vmatprep.subr.mxu0 0.0
      %1027 = vmatpush1.xpose.msra.mxu0 0.0
      %1028 = vmatprep.subr.mxu0 0.0
      %1029 = vmatpush1.xpose.msra.mxu0 0.0
      %1030 = vmatprep.subr.mxu0 0.0
      %1031 = vmatpush1.xpose.msra.mxu0 0.0
      %1032 = vmatprep.subr.mxu0 0.0
      %1033 = vmatpush1.xpose.msra.mxu0 0.0
      %1034 = vmatprep.subr.mxu0 0.0
      %1035 = vmatpush1.xpose.msra.mxu0 0.0
      %1036 = vmatprep.subr.mxu0 0.0
      %1037 = vmatpush1.xpose.msra.mxu0 0.0
      %1038 = vmatprep.subr.mxu0 0.0
      %1039 = vmatpush1.xpose.msra.mxu0 0.0
      %1040 = vmatprep.subr.mxu0 0.0
      %1041 = vmatpush1.xpose.msra.mxu0 0.0
      %1042 = vmatprep.subr.mxu0 0.0
      %1043 = vmatpush1.xpose.msra.mxu0 0.0
      %1044 = vmatprep.subr.mxu0 0.0
      %1045 = vmatpush1.xpose.msra.mxu0 0.0
      %1046 = vmatprep.subr.mxu0 0.0
      %1047 = vmatpush1.xpose.msra.mxu0 0.0
      %1048 = vmatprep.subr.mxu0 0.0
      %1049 = vmatpush1.xpose.msra.mxu0 0.0
      %1050 = vmatprep.subr.mxu0 0.0
      %1051 = vmatpush1.xpose.msra.mxu0 0.0
      %1052 = vmatprep.subr.mxu0 0.0
      %1053 = vmatpush1.xpose.msra.mxu0 %v1022
      %1054 = vmatprep.subr.mxu0 0.0
      %1055 = vmatpush1.xpose.msra.mxu0 %v1019
      %1056 = vmatprep.subr.mxu0 0.0
      %1057 = vmatpush2.xpose.msra.mxu0 0.0
      %1058 = vmatprep.subr.mxu0 0.0
      %1059 = vmatpush2.xpose.msra.mxu0 0.0
      %1060 = vmatprep.subr.mxu0 0.0
      %1061 = vmatpush2.xpose.msra.mxu0 0.0
      %1062 = vmatprep.subr.mxu0 0.0
      %1063 = vmatpush2.xpose.msra.mxu0 0.0
      %1064 = vmatprep.subr.mxu0 0.0
      %1065 = vmatpush2.xpose.msra.mxu0 0.0
      %1066 = vmatprep.subr.mxu0 0.0
      %1067 = vmatpush2.xpose.msra.mxu0 0.0
      %1068 = vmatprep.subr.mxu0 0.0
      %1069 = vmatpush2.xpose.msra.mxu0 0.0
      %1070 = vmatprep.subr.mxu0 0.0
      %1071 = vmatpush2.xpose.msra.mxu0 0.0
      %1072 = vmatprep.subr.mxu0 0.0
      %1073 = vmatpush2.xpose.msra.mxu0 0.0
      %1074 = vmatprep.subr.mxu0 0.0
      %1075 = vmatpush2.xpose.msra.mxu0 0.0
      %1076 = vmatprep.subr.mxu0 0.0
      %1077 = vmatpush2.xpose.msra.mxu0 0.0
      %1078 = vmatprep.subr.mxu0 0.0
      %1079 = vmatpush2.xpose.msra.mxu0 0.0
      %1080 = vmatprep.subr.mxu0 0.0
      %1081 = vmatpush2.xpose.msra.mxu0 0.0
      %1082 = vmatprep.subr.mxu0 0.0
      %1083 = vmatpush2.xpose.msra.mxu0 0.0
      %1084 = vmatprep.subr.mxu0 0.0
      %1085 = vmatpush2.xpose.msra.mxu0 0.0
      %1086 = vmatprep.subr.mxu0 0.0
      %1087 = vmatpush2.xpose.msra.mxu0 0.0
      %1088 = vmatprep.mubr.f32.mxu0 0.0
      %1089 = vmatmul.mubr.f32.gmra.mxu0 %v1013
      %v1090 = vpop.f32.mrf.mxu0
      %v1091 = vadd.f32 0.0, %v1090
      %v1092 = vpop.f32.mrf.mxu0
      %1093 = vmatprep.mubr.f32.mxu0 0.0
      %1094 = vmatmul.mubr.f32.gmra.mxu0 %v1016
      %v1095 = vpop.f32.mrf.mxu0
      %v1096 = vadd.f32 0.0, %v1095
      %v1097 = vpop.f32.mrf.mxu0
      %1098 = vdwg.mxu0
      %v1100 = vsel %vm576, %v524, 0
      %v1103 = vsel %vm576, %v525, 0
      %v1106 = vsel %vm576, %v556, 0
      %v1109 = vsel %vm576, %v557, 0
      %1111 = vmatprep.subr.mxu0 0.0
      %1112 = vmatpush1.xpose.msra.mxu0 0.0
      %1113 = vmatprep.subr.mxu0 0.0
      %1114 = vmatpush1.xpose.msra.mxu0 0.0
      %1115 = vmatprep.subr.mxu0 0.0
      %1116 = vmatpush1.xpose.msra.mxu0 0.0
      %1117 = vmatprep.subr.mxu0 0.0
      %1118 = vmatpush1.xpose.msra.mxu0 0.0
      %1119 = vmatprep.subr.mxu0 0.0
      %1120 = vmatpush1.xpose.msra.mxu0 0.0
      %1121 = vmatprep.subr.mxu0 0.0
      %1122 = vmatpush1.xpose.msra.mxu0 0.0
      %1123 = vmatprep.subr.mxu0 0.0
      %1124 = vmatpush1.xpose.msra.mxu0 0.0
      %1125 = vmatprep.subr.mxu0 0.0
      %1126 = vmatpush1.xpose.msra.mxu0 0.0
      %1127 = vmatprep.subr.mxu0 0.0
      %1128 = vmatpush1.xpose.msra.mxu0 0.0
      %1129 = vmatprep.subr.mxu0 0.0
      %1130 = vmatpush1.xpose.msra.mxu0 0.0
      %1131 = vmatprep.subr.mxu0 0.0
      %1132 = vmatpush1.xpose.msra.mxu0 0.0
      %1133 = vmatprep.subr.mxu0 0.0
      %1134 = vmatpush1.xpose.msra.mxu0 0.0
      %1135 = vmatprep.subr.mxu0 0.0
      %1136 = vmatpush1.xpose.msra.mxu0 0.0
      %1137 = vmatprep.subr.mxu0 0.0
      %1138 = vmatpush1.xpose.msra.mxu0 0.0
      %1139 = vmatprep.subr.mxu0 0.0
      %1140 = vmatpush1.xpose.msra.mxu0 %v1109
      %1141 = vmatprep.subr.mxu0 0.0
      %1142 = vmatpush1.xpose.msra.mxu0 %v1106
      %1143 = vmatprep.subr.mxu0 0.0
      %1144 = vmatpush2.xpose.msra.mxu0 0.0
      %1145 = vmatprep.subr.mxu0 0.0
      %1146 = vmatpush2.xpose.msra.mxu0 0.0
      %1147 = vmatprep.subr.mxu0 0.0
      %1148 = vmatpush2.xpose.msra.mxu0 0.0
      %1149 = vmatprep.subr.mxu0 0.0
      %1150 = vmatpush2.xpose.msra.mxu0 0.0
      %1151 = vmatprep.subr.mxu0 0.0
      %1152 = vmatpush2.xpose.msra.mxu0 0.0
      %1153 = vmatprep.subr.mxu0 0.0
      %1154 = vmatpush2.xpose.msra.mxu0 0.0
      %1155 = vmatprep.subr.mxu0 0.0
      %1156 = vmatpush2.xpose.msra.mxu0 0.0
      %1157 = vmatprep.subr.mxu0 0.0
      %1158 = vmatpush2.xpose.msra.mxu0 0.0
      %1159 = vmatprep.subr.mxu0 0.0
      %1160 = vmatpush2.xpose.msra.mxu0 0.0
      %1161 = vmatprep.subr.mxu0 0.0
      %1162 = vmatpush2.xpose.msra.mxu0 0.0
      %1163 = vmatprep.subr.mxu0 0.0
      %1164 = vmatpush2.xpose.msra.mxu0 0.0
      %1165 = vmatprep.subr.mxu0 0.0
      %1166 = vmatpush2.xpose.msra.mxu0 0.0
      %1167 = vmatprep.subr.mxu0 0.0
      %1168 = vmatpush2.xpose.msra.mxu0 0.0
      %1169 = vmatprep.subr.mxu0 0.0
      %1170 = vmatpush2.xpose.msra.mxu0 0.0
      %1171 = vmatprep.subr.mxu0 0.0
      %1172 = vmatpush2.xpose.msra.mxu0 0.0
      %1173 = vmatprep.subr.mxu0 0.0
      %1174 = vmatpush2.xpose.msra.mxu0 0.0
      %1175 = vmatprep.mubr.f32.mxu0 0.0
      %1176 = vmatmul.mubr.f32.gmra.mxu0 %v1100
      %v1177 = vpop.f32.mrf.mxu0
      %v1178 = vadd.f32 0.0, %v1177
      %v1179 = vpop.f32.mrf.mxu0
      %1180 = vmatprep.mubr.f32.mxu0 0.0
      %1181 = vmatmul.mubr.f32.gmra.mxu0 %v1103
      %v1182 = vpop.f32.mrf.mxu0
      %v1183 = vadd.f32 0.0, %v1182
      %v1184 = vpop.f32.mrf.mxu0
      %1185 = vdwg.mxu0
      %v1187 = vsel %vm576, %v526, 0
      %v1190 = vsel %vm576, %v527, 0
      %v1193 = vsel %vm576, %v558, 0
      %v1196 = vsel %vm576, %v559, 0
      %1198 = vmatprep.subr.mxu0 0.0
      %1199 = vmatpush1.xpose.msra.mxu0 0.0
      %1200 = vmatprep.subr.mxu0 0.0
      %1201 = vmatpush1.xpose.msra.mxu0 0.0
      %1202 = vmatprep.subr.mxu0 0.0
      %1203 = vmatpush1.xpose.msra.mxu0 0.0
      %1204 = vmatprep.subr.mxu0 0.0
      %1205 = vmatpush1.xpose.msra.mxu0 0.0
      %1206 = vmatprep.subr.mxu0 0.0
      %1207 = vmatpush1.xpose.msra.mxu0 0.0
      %1208 = vmatprep.subr.mxu0 0.0
      %1209 = vmatpush1.xpose.msra.mxu0 0.0
      %1210 = vmatprep.subr.mxu0 0.0
      %1211 = vmatpush1.xpose.msra.mxu0 0.0
      %1212 = vmatprep.subr.mxu0 0.0
      %1213 = vmatpush1.xpose.msra.mxu0 0.0
      %1214 = vmatprep.subr.mxu0 0.0
      %1215 = vmatpush1.xpose.msra.mxu0 0.0
      %1216 = vmatprep.subr.mxu0 0.0
      %1217 = vmatpush1.xpose.msra.mxu0 0.0
      %1218 = vmatprep.subr.mxu0 0.0
      %1219 = vmatpush1.xpose.msra.mxu0 0.0
      %1220 = vmatprep.subr.mxu0 0.0
      %1221 = vmatpush1.xpose.msra.mxu0 0.0
      %1222 = vmatprep.subr.mxu0 0.0
      %1223 = vmatpush1.xpose.msra.mxu0 0.0
      %1224 = vmatprep.subr.mxu0 0.0
      %1225 = vmatpush1.xpose.msra.mxu0 0.0
      %1226 = vmatprep.subr.mxu0 0.0
      %1227 = vmatpush1.xpose.msra.mxu0 %v1196
      %1228 = vmatprep.subr.mxu0 0.0
      %1229 = vmatpush1.xpose.msra.mxu0 %v1193
      %1230 = vmatprep.subr.mxu0 0.0
      %1231 = vmatpush2.xpose.msra.mxu0 0.0
      %1232 = vmatprep.subr.mxu0 0.0
      %1233 = vmatpush2.xpose.msra.mxu0 0.0
      %1234 = vmatprep.subr.mxu0 0.0
      %1235 = vmatpush2.xpose.msra.mxu0 0.0
      %1236 = vmatprep.subr.mxu0 0.0
      %1237 = vmatpush2.xpose.msra.mxu0 0.0
      %1238 = vmatprep.subr.mxu0 0.0
      %1239 = vmatpush2.xpose.msra.mxu0 0.0
      %1240 = vmatprep.subr.mxu0 0.0
      %1241 = vmatpush2.xpose.msra.mxu0 0.0
      %1242 = vmatprep.subr.mxu0 0.0
      %1243 = vmatpush2.xpose.msra.mxu0 0.0
      %1244 = vmatprep.subr.mxu0 0.0
      %1245 = vmatpush2.xpose.msra.mxu0 0.0
      %1246 = vmatprep.subr.mxu0 0.0
      %1247 = vmatpush2.xpose.msra.mxu0 0.0
      %1248 = vmatprep.subr.mxu0 0.0
      %1249 = vmatpush2.xpose.msra.mxu0 0.0
      %1250 = vmatprep.subr.mxu0 0.0
      %1251 = vmatpush2.xpose.msra.mxu0 0.0
      %1252 = vmatprep.subr.mxu0 0.0
      %1253 = vmatpush2.xpose.msra.mxu0 0.0
      %1254 = vmatprep.subr.mxu0 0.0
      %1255 = vmatpush2.xpose.msra.mxu0 0.0
      %1256 = vmatprep.subr.mxu0 0.0
      %1257 = vmatpush2.xpose.msra.mxu0 0.0
      %1258 = vmatprep.subr.mxu0 0.0
      %1259 = vmatpush2.xpose.msra.mxu0 0.0
      %1260 = vmatprep.subr.mxu0 0.0
      %1261 = vmatpush2.xpose.msra.mxu0 0.0
      %1262 = vmatprep.mubr.f32.mxu0 0.0
      %1263 = vmatmul.mubr.f32.gmra.mxu0 %v1187
      %v1264 = vpop.f32.mrf.mxu0
      %v1265 = vadd.f32 0.0, %v1264
      %v1266 = vpop.f32.mrf.mxu0
      %1267 = vmatprep.mubr.f32.mxu0 0.0
      %1268 = vmatmul.mubr.f32.gmra.mxu0 %v1190
      %v1269 = vpop.f32.mrf.mxu0
      %v1270 = vadd.f32 0.0, %v1269
      %v1271 = vpop.f32.mrf.mxu0
      %1272 = vdwg.mxu0
      %v1274 = vsel %vm576, %v528, 0
      %v1277 = vsel %vm576, %v529, 0
      %v1280 = vsel %vm576, %v560, 0
      %v1283 = vsel %vm576, %v561, 0
      %1285 = vmatprep.subr.mxu0 0.0
      %1286 = vmatpush1.xpose.msra.mxu0 0.0
      %1287 = vmatprep.subr.mxu0 0.0
      %1288 = vmatpush1.xpose.msra.mxu0 0.0
      %1289 = vmatprep.subr.mxu0 0.0
      %1290 = vmatpush1.xpose.msra.mxu0 0.0
      %1291 = vmatprep.subr.mxu0 0.0
      %1292 = vmatpush1.xpose.msra.mxu0 0.0
      %1293 = vmatprep.subr.mxu0 0.0
      %1294 = vmatpush1.xpose.msra.mxu0 0.0
      %1295 = vmatprep.subr.mxu0 0.0
      %1296 = vmatpush1.xpose.msra.mxu0 0.0
      %1297 = vmatprep.subr.mxu0 0.0
      %1298 = vmatpush1.xpose.msra.mxu0 0.0
      %1299 = vmatprep.subr.mxu0 0.0
      %1300 = vmatpush1.xpose.msra.mxu0 0.0
      %1301 = vmatprep.subr.mxu0 0.0
      %1302 = vmatpush1.xpose.msra.mxu0 0.0
      %1303 = vmatprep.subr.mxu0 0.0
      %1304 = vmatpush1.xpose.msra.mxu0 0.0
      %1305 = vmatprep.subr.mxu0 0.0
      %1306 = vmatpush1.xpose.msra.mxu0 0.0
      %1307 = vmatprep.subr.mxu0 0.0
      %1308 = vmatpush1.xpose.msra.mxu0 0.0
      %1309 = vmatprep.subr.mxu0 0.0
      %1310 = vmatpush1.xpose.msra.mxu0 0.0
      %1311 = vmatprep.subr.mxu0 0.0
      %1312 = vmatpush1.xpose.msra.mxu0 0.0
      %1313 = vmatprep.subr.mxu0 0.0
      %1314 = vmatpush1.xpose.msra.mxu0 %v1283
      %1315 = vmatprep.subr.mxu0 0.0
      %1316 = vmatpush1.xpose.msra.mxu0 %v1280
      %1317 = vmatprep.subr.mxu0 0.0
      %1318 = vmatpush2.xpose.msra.mxu0 0.0
      %1319 = vmatprep.subr.mxu0 0.0
      %1320 = vmatpush2.xpose.msra.mxu0 0.0
      %1321 = vmatprep.subr.mxu0 0.0
      %1322 = vmatpush2.xpose.msra.mxu0 0.0
      %1323 = vmatprep.subr.mxu0 0.0
      %1324 = vmatpush2.xpose.msra.mxu0 0.0
      %1325 = vmatprep.subr.mxu0 0.0
      %1326 = vmatpush2.xpose.msra.mxu0 0.0
      %1327 = vmatprep.subr.mxu0 0.0
      %1328 = vmatpush2.xpose.msra.mxu0 0.0
      %1329 = vmatprep.subr.mxu0 0.0
      %1330 = vmatpush2.xpose.msra.mxu0 0.0
      %1331 = vmatprep.subr.mxu0 0.0
      %1332 = vmatpush2.xpose.msra.mxu0 0.0
      %1333 = vmatprep.subr.mxu0 0.0
      %1334 = vmatpush2.xpose.msra.mxu0 0.0
      %1335 = vmatprep.subr.mxu0 0.0
      %1336 = vmatpush2.xpose.msra.mxu0 0.0
      %1337 = vmatprep.subr.mxu0 0.0
      %1338 = vmatpush2.xpose.msra.mxu0 0.0
      %1339 = vmatprep.subr.mxu0 0.0
      %1340 = vmatpush2.xpose.msra.mxu0 0.0
      %1341 = vmatprep.subr.mxu0 0.0
      %1342 = vmatpush2.xpose.msra.mxu0 0.0
      %1343 = vmatprep.subr.mxu0 0.0
      %1344 = vmatpush2.xpose.msra.mxu0 0.0
      %1345 = vmatprep.subr.mxu0 0.0
      %1346 = vmatpush2.xpose.msra.mxu0 0.0
      %1347 = vmatprep.subr.mxu0 0.0
      %1348 = vmatpush2.xpose.msra.mxu0 0.0
      %1349 = vmatprep.mubr.f32.mxu0 0.0
      %1350 = vmatmul.mubr.f32.gmra.mxu0 %v1274
      %v1351 = vpop.f32.mrf.mxu0
      %v1352 = vadd.f32 0.0, %v1351
      %v1353 = vpop.f32.mrf.mxu0
      %1354 = vmatprep.mubr.f32.mxu0 0.0
      %1355 = vmatmul.mubr.f32.gmra.mxu0 %v1277
      %v1356 = vpop.f32.mrf.mxu0
      %v1357 = vadd.f32 0.0, %v1356
      %v1358 = vpop.f32.mrf.mxu0
      %1359 = vdwg.mxu0
      %v1361 = vsel %vm576, %v530, 0
      %v1364 = vsel %vm576, %v531, 0
      %v1367 = vsel %vm576, %v562, 0
      %v1370 = vsel %vm576, %v563, 0
      %1372 = vmatprep.subr.mxu0 0.0
      %1373 = vmatpush1.xpose.msra.mxu0 0.0
      %1374 = vmatprep.subr.mxu0 0.0
      %1375 = vmatpush1.xpose.msra.mxu0 0.0
      %1376 = vmatprep.subr.mxu0 0.0
      %1377 = vmatpush1.xpose.msra.mxu0 0.0
      %1378 = vmatprep.subr.mxu0 0.0
      %1379 = vmatpush1.xpose.msra.mxu0 0.0
      %1380 = vmatprep.subr.mxu0 0.0
      %1381 = vmatpush1.xpose.msra.mxu0 0.0
      %1382 = vmatprep.subr.mxu0 0.0
      %1383 = vmatpush1.xpose.msra.mxu0 0.0
      %1384 = vmatprep.subr.mxu0 0.0
      %1385 = vmatpush1.xpose.msra.mxu0 0.0
      %1386 = vmatprep.subr.mxu0 0.0
      %1387 = vmatpush1.xpose.msra.mxu0 0.0
      %1388 = vmatprep.subr.mxu0 0.0
      %1389 = vmatpush1.xpose.msra.mxu0 0.0
      %1390 = vmatprep.subr.mxu0 0.0
      %1391 = vmatpush1.xpose.msra.mxu0 0.0
      %1392 = vmatprep.subr.mxu0 0.0
      %1393 = vmatpush1.xpose.msra.mxu0 0.0
      %1394 = vmatprep.subr.mxu0 0.0
      %1395 = vmatpush1.xpose.msra.mxu0 0.0
      %1396 = vmatprep.subr.mxu0 0.0
      %1397 = vmatpush1.xpose.msra.mxu0 0.0
      %1398 = vmatprep.subr.mxu0 0.0
      %1399 = vmatpush1.xpose.msra.mxu0 0.0
      %1400 = vmatprep.subr.mxu0 0.0
      %1401 = vmatpush1.xpose.msra.mxu0 %v1370
      %1402 = vmatprep.subr.mxu0 0.0
      %1403 = vmatpush1.xpose.msra.mxu0 %v1367
      %1404 = vmatprep.subr.mxu0 0.0
      %1405 = vmatpush2.xpose.msra.mxu0 0.0
      %1406 = vmatprep.subr.mxu0 0.0
      %1407 = vmatpush2.xpose.msra.mxu0 0.0
      %1408 = vmatprep.subr.mxu0 0.0
      %1409 = vmatpush2.xpose.msra.mxu0 0.0
      %1410 = vmatprep.subr.mxu0 0.0
      %1411 = vmatpush2.xpose.msra.mxu0 0.0
      %1412 = vmatprep.subr.mxu0 0.0
      %1413 = vmatpush2.xpose.msra.mxu0 0.0
      %1414 = vmatprep.subr.mxu0 0.0
      %1415 = vmatpush2.xpose.msra.mxu0 0.0
      %1416 = vmatprep.subr.mxu0 0.0
      %1417 = vmatpush2.xpose.msra.mxu0 0.0
      %1418 = vmatprep.subr.mxu0 0.0
      %1419 = vmatpush2.xpose.msra.mxu0 0.0
      %1420 = vmatprep.subr.mxu0 0.0
      %1421 = vmatpush2.xpose.msra.mxu0 0.0
      %1422 = vmatprep.subr.mxu0 0.0
      %1423 = vmatpush2.xpose.msra.mxu0 0.0
      %1424 = vmatprep.subr.mxu0 0.0
      %1425 = vmatpush2.xpose.msra.mxu0 0.0
      %1426 = vmatprep.subr.mxu0 0.0
      %1427 = vmatpush2.xpose.msra.mxu0 0.0
      %1428 = vmatprep.subr.mxu0 0.0
      %1429 = vmatpush2.xpose.msra.mxu0 0.0
      %1430 = vmatprep.subr.mxu0 0.0
      %1431 = vmatpush2.xpose.msra.mxu0 0.0
      %1432 = vmatprep.subr.mxu0 0.0
      %1433 = vmatpush2.xpose.msra.mxu0 0.0
      %1434 = vmatprep.subr.mxu0 0.0
      %1435 = vmatpush2.xpose.msra.mxu0 0.0
      %1436 = vmatprep.mubr.f32.mxu0 0.0
      %1437 = vmatmul.mubr.f32.gmra.mxu0 %v1361
      %v1438 = vpop.f32.mrf.mxu0
      %v1439 = vadd.f32 0.0, %v1438
      %v1440 = vpop.f32.mrf.mxu0
      %1441 = vmatprep.mubr.f32.mxu0 0.0
      %1442 = vmatmul.mubr.f32.gmra.mxu0 %v1364
      %v1443 = vpop.f32.mrf.mxu0
      %v1444 = vadd.f32 0.0, %v1443
      %v1445 = vpop.f32.mrf.mxu0
      %1446 = vdwg.mxu0
      %v1448 = vsel %vm576, %v532, 0
      %v1451 = vsel %vm576, %v533, 0
      %v1454 = vsel %vm576, %v564, 0
      %v1457 = vsel %vm576, %v565, 0
      %1459 = vmatprep.subr.mxu0 0.0
      %1460 = vmatpush1.xpose.msra.mxu0 0.0
      %1461 = vmatprep.subr.mxu0 0.0
      %1462 = vmatpush1.xpose.msra.mxu0 0.0
      %1463 = vmatprep.subr.mxu0 0.0
      %1464 = vmatpush1.xpose.msra.mxu0 0.0
      %1465 = vmatprep.subr.mxu0 0.0
      %1466 = vmatpush1.xpose.msra.mxu0 0.0
      %1467 = vmatprep.subr.mxu0 0.0
      %1468 = vmatpush1.xpose.msra.mxu0 0.0
      %1469 = vmatprep.subr.mxu0 0.0
      %1470 = vmatpush1.xpose.msra.mxu0 0.0
      %1471 = vmatprep.subr.mxu0 0.0
      %1472 = vmatpush1.xpose.msra.mxu0 0.0
      %1473 = vmatprep.subr.mxu0 0.0
      %1474 = vmatpush1.xpose.msra.mxu0 0.0
      %1475 = vmatprep.subr.mxu0 0.0
      %1476 = vmatpush1.xpose.msra.mxu0 0.0
      %1477 = vmatprep.subr.mxu0 0.0
      %1478 = vmatpush1.xpose.msra.mxu0 0.0
      %1479 = vmatprep.subr.mxu0 0.0
      %1480 = vmatpush1.xpose.msra.mxu0 0.0
      %1481 = vmatprep.subr.mxu0 0.0
      %1482 = vmatpush1.xpose.msra.mxu0 0.0
      %1483 = vmatprep.subr.mxu0 0.0
      %1484 = vmatpush1.xpose.msra.mxu0 0.0
      %1485 = vmatprep.subr.mxu0 0.0
      %1486 = vmatpush1.xpose.msra.mxu0 0.0
      %1487 = vmatprep.subr.mxu0 0.0
      %1488 = vmatpush1.xpose.msra.mxu0 %v1457
      %1489 = vmatprep.subr.mxu0 0.0
      %1490 = vmatpush1.xpose.msra.mxu0 %v1454
      %1491 = vmatprep.subr.mxu0 0.0
      %1492 = vmatpush2.xpose.msra.mxu0 0.0
      %1493 = vmatprep.subr.mxu0 0.0
      %1494 = vmatpush2.xpose.msra.mxu0 0.0
      %1495 = vmatprep.subr.mxu0 0.0
      %1496 = vmatpush2.xpose.msra.mxu0 0.0
      %1497 = vmatprep.subr.mxu0 0.0
      %1498 = vmatpush2.xpose.msra.mxu0 0.0
      %1499 = vmatprep.subr.mxu0 0.0
      %1500 = vmatpush2.xpose.msra.mxu0 0.0
      %1501 = vmatprep.subr.mxu0 0.0
      %1502 = vmatpush2.xpose.msra.mxu0 0.0
      %1503 = vmatprep.subr.mxu0 0.0
      %1504 = vmatpush2.xpose.msra.mxu0 0.0
      %1505 = vmatprep.subr.mxu0 0.0
      %1506 = vmatpush2.xpose.msra.mxu0 0.0
      %1507 = vmatprep.subr.mxu0 0.0
      %1508 = vmatpush2.xpose.msra.mxu0 0.0
      %1509 = vmatprep.subr.mxu0 0.0
      %1510 = vmatpush2.xpose.msra.mxu0 0.0
      %1511 = vmatprep.subr.mxu0 0.0
      %1512 = vmatpush2.xpose.msra.mxu0 0.0
      %1513 = vmatprep.subr.mxu0 0.0
      %1514 = vmatpush2.xpose.msra.mxu0 0.0
      %1515 = vmatprep.subr.mxu0 0.0
      %1516 = vmatpush2.xpose.msra.mxu0 0.0
      %1517 = vmatprep.subr.mxu0 0.0
      %1518 = vmatpush2.xpose.msra.mxu0 0.0
      %1519 = vmatprep.subr.mxu0 0.0
      %1520 = vmatpush2.xpose.msra.mxu0 0.0
      %1521 = vmatprep.subr.mxu0 0.0
      %1522 = vmatpush2.xpose.msra.mxu0 0.0
      %1523 = vmatprep.mubr.f32.mxu0 0.0
      %1524 = vmatmul.mubr.f32.gmra.mxu0 %v1448
      %v1525 = vpop.f32.mrf.mxu0
      %v1526 = vadd.f32 0.0, %v1525
      %v1527 = vpop.f32.mrf.mxu0
      %1528 = vmatprep.mubr.f32.mxu0 0.0
      %1529 = vmatmul.mubr.f32.gmra.mxu0 %v1451
      %v1530 = vpop.f32.mrf.mxu0
      %v1531 = vadd.f32 0.0, %v1530
      %v1532 = vpop.f32.mrf.mxu0
      %1533 = vdwg.mxu0
      %v1535 = vsel %vm576, %v534, 0
      %v1538 = vsel %vm576, %v535, 0
      %v1541 = vsel %vm576, %v566, 0
      %v1544 = vsel %vm576, %v567, 0
      %1546 = vmatprep.subr.mxu0 0.0
      %1547 = vmatpush1.xpose.msra.mxu0 0.0
      %1548 = vmatprep.subr.mxu0 0.0
      %1549 = vmatpush1.xpose.msra.mxu0 0.0
      %1550 = vmatprep.subr.mxu0 0.0
      %1551 = vmatpush1.xpose.msra.mxu0 0.0
      %1552 = vmatprep.subr.mxu0 0.0
      %1553 = vmatpush1.xpose.msra.mxu0 0.0
      %1554 = vmatprep.subr.mxu0 0.0
      %1555 = vmatpush1.xpose.msra.mxu0 0.0
      %1556 = vmatprep.subr.mxu0 0.0
      %1557 = vmatpush1.xpose.msra.mxu0 0.0
      %1558 = vmatprep.subr.mxu0 0.0
      %1559 = vmatpush1.xpose.msra.mxu0 0.0
      %1560 = vmatprep.subr.mxu0 0.0
      %1561 = vmatpush1.xpose.msra.mxu0 0.0
      %1562 = vmatprep.subr.mxu0 0.0
      %1563 = vmatpush1.xpose.msra.mxu0 0.0
      %1564 = vmatprep.subr.mxu0 0.0
      %1565 = vmatpush1.xpose.msra.mxu0 0.0
      %1566 = vmatprep.subr.mxu0 0.0
      %1567 = vmatpush1.xpose.msra.mxu0 0.0
      %1568 = vmatprep.subr.mxu0 0.0
      %1569 = vmatpush1.xpose.msra.mxu0 0.0
      %1570 = vmatprep.subr.mxu0 0.0
      %1571 = vmatpush1.xpose.msra.mxu0 0.0
      %1572 = vmatprep.subr.mxu0 0.0
      %1573 = vmatpush1.xpose.msra.mxu0 0.0
      %1574 = vmatprep.subr.mxu0 0.0
      %1575 = vmatpush1.xpose.msra.mxu0 %v1544
      %1576 = vmatprep.subr.mxu0 0.0
      %1577 = vmatpush1.xpose.msra.mxu0 %v1541
      %1578 = vmatprep.subr.mxu0 0.0
      %1579 = vmatpush2.xpose.msra.mxu0 0.0
      %1580 = vmatprep.subr.mxu0 0.0
      %1581 = vmatpush2.xpose.msra.mxu0 0.0
      %1582 = vmatprep.subr.mxu0 0.0
      %1583 = vmatpush2.xpose.msra.mxu0 0.0
      %1584 = vmatprep.subr.mxu0 0.0
      %1585 = vmatpush2.xpose.msra.mxu0 0.0
      %1586 = vmatprep.subr.mxu0 0.0
      %1587 = vmatpush2.xpose.msra.mxu0 0.0
      %1588 = vmatprep.subr.mxu0 0.0
      %1589 = vmatpush2.xpose.msra.mxu0 0.0
      %1590 = vmatprep.subr.mxu0 0.0
      %1591 = vmatpush2.xpose.msra.mxu0 0.0
      %1592 = vmatprep.subr.mxu0 0.0
      %1593 = vmatpush2.xpose.msra.mxu0 0.0
      %1594 = vmatprep.subr.mxu0 0.0
      %1595 = vmatpush2.xpose.msra.mxu0 0.0
      %1596 = vmatprep.subr.mxu0 0.0
      %1597 = vmatpush2.xpose.msra.mxu0 0.0
      %1598 = vmatprep.subr.mxu0 0.0
      %1599 = vmatpush2.xpose.msra.mxu0 0.0
      %1600 = vmatprep.subr.mxu0 0.0
      %1601 = vmatpush2.xpose.msra.mxu0 0.0
      %1602 = vmatprep.subr.mxu0 0.0
      %1603 = vmatpush2.xpose.msra.mxu0 0.0
      %1604 = vmatprep.subr.mxu0 0.0
      %1605 = vmatpush2.xpose.msra.mxu0 0.0
      %1606 = vmatprep.subr.mxu0 0.0
      %1607 = vmatpush2.xpose.msra.mxu0 0.0
      %1608 = vmatprep.subr.mxu0 0.0
      %1609 = vmatpush2.xpose.msra.mxu0 0.0
      %1610 = vmatprep.mubr.f32.mxu0 0.0
      %1611 = vmatmul.mubr.f32.gmra.mxu0 %v1535
      %v1612 = vpop.f32.mrf.mxu0
      %v1613 = vadd.f32 0.0, %v1612
      %v1614 = vpop.f32.mrf.mxu0
      %1615 = vmatprep.mubr.f32.mxu0 0.0
      %1616 = vmatmul.mubr.f32.gmra.mxu0 %v1538
      %v1617 = vpop.f32.mrf.mxu0
      %v1618 = vadd.f32 0.0, %v1617
      %v1619 = vpop.f32.mrf.mxu0
      %1620 = vdwg.mxu0
      %v1622 = vsel %vm576, %v536, 0
      %v1625 = vsel %vm576, %v537, 0
      %v1628 = vsel %vm576, %v568, 0
      %v1631 = vsel %vm576, %v569, 0
      %1633 = vmatprep.subr.mxu0 0.0
      %1634 = vmatpush1.xpose.msra.mxu0 0.0
      %1635 = vmatprep.subr.mxu0 0.0
      %1636 = vmatpush1.xpose.msra.mxu0 0.0
      %1637 = vmatprep.subr.mxu0 0.0
      %1638 = vmatpush1.xpose.msra.mxu0 0.0
      %1639 = vmatprep.subr.mxu0 0.0
      %1640 = vmatpush1.xpose.msra.mxu0 0.0
      %1641 = vmatprep.subr.mxu0 0.0
      %1642 = vmatpush1.xpose.msra.mxu0 0.0
      %1643 = vmatprep.subr.mxu0 0.0
      %1644 = vmatpush1.xpose.msra.mxu0 0.0
      %1645 = vmatprep.subr.mxu0 0.0
      %1646 = vmatpush1.xpose.msra.mxu0 0.0
      %1647 = vmatprep.subr.mxu0 0.0
      %1648 = vmatpush1.xpose.msra.mxu0 0.0
      %1649 = vmatprep.subr.mxu0 0.0
      %1650 = vmatpush1.xpose.msra.mxu0 0.0
      %1651 = vmatprep.subr.mxu0 0.0
      %1652 = vmatpush1.xpose.msra.mxu0 0.0
      %1653 = vmatprep.subr.mxu0 0.0
      %1654 = vmatpush1.xpose.msra.mxu0 0.0
      %1655 = vmatprep.subr.mxu0 0.0
      %1656 = vmatpush1.xpose.msra.mxu0 0.0
      %1657 = vmatprep.subr.mxu0 0.0
      %1658 = vmatpush1.xpose.msra.mxu0 0.0
      %1659 = vmatprep.subr.mxu0 0.0
      %1660 = vmatpush1.xpose.msra.mxu0 0.0
      %1661 = vmatprep.subr.mxu0 0.0
      %1662 = vmatpush1.xpose.msra.mxu0 %v1631
      %1663 = vmatprep.subr.mxu0 0.0
      %1664 = vmatpush1.xpose.msra.mxu0 %v1628
      %1665 = vmatprep.subr.mxu0 0.0
      %1666 = vmatpush2.xpose.msra.mxu0 0.0
      %1667 = vmatprep.subr.mxu0 0.0
      %1668 = vmatpush2.xpose.msra.mxu0 0.0
      %1669 = vmatprep.subr.mxu0 0.0
      %1670 = vmatpush2.xpose.msra.mxu0 0.0
      %1671 = vmatprep.subr.mxu0 0.0
      %1672 = vmatpush2.xpose.msra.mxu0 0.0
      %1673 = vmatprep.subr.mxu0 0.0
      %1674 = vmatpush2.xpose.msra.mxu0 0.0
      %1675 = vmatprep.subr.mxu0 0.0
      %1676 = vmatpush2.xpose.msra.mxu0 0.0
      %1677 = vmatprep.subr.mxu0 0.0
      %1678 = vmatpush2.xpose.msra.mxu0 0.0
      %1679 = vmatprep.subr.mxu0 0.0
      %1680 = vmatpush2.xpose.msra.mxu0 0.0
      %1681 = vmatprep.subr.mxu0 0.0
      %1682 = vmatpush2.xpose.msra.mxu0 0.0
      %1683 = vmatprep.subr.mxu0 0.0
      %1684 = vmatpush2.xpose.msra.mxu0 0.0
      %1685 = vmatprep.subr.mxu0 0.0
      %1686 = vmatpush2.xpose.msra.mxu0 0.0
      %1687 = vmatprep.subr.mxu0 0.0
      %1688 = vmatpush2.xpose.msra.mxu0 0.0
      %1689 = vmatprep.subr.mxu0 0.0
      %1690 = vmatpush2.xpose.msra.mxu0 0.0
      %1691 = vmatprep.subr.mxu0 0.0
      %1692 = vmatpush2.xpose.msra.mxu0 0.0
      %1693 = vmatprep.subr.mxu0 0.0
      %1694 = vmatpush2.xpose.msra.mxu0 0.0
      %1695 = vmatprep.subr.mxu0 0.0
      %1696 = vmatpush2.xpose.msra.mxu0 0.0
      %1697 = vmatprep.mubr.f32.mxu0 0.0
      %1698 = vmatmul.mubr.f32.gmra.mxu0 %v1622
      %v1699 = vpop.f32.mrf.mxu0
      %v1700 = vadd.f32 0.0, %v1699
      %v1701 = vpop.f32.mrf.mxu0
      %1702 = vmatprep.mubr.f32.mxu0 0.0
      %1703 = vmatmul.mubr.f32.gmra.mxu0 %v1625
      %v1704 = vpop.f32.mrf.mxu0
      %v1705 = vadd.f32 0.0, %v1704
      %v1706 = vpop.f32.mrf.mxu0
      %1707 = vdwg.mxu0
      %v1709 = vsel %vm576, %v538, 0
      %v1712 = vsel %vm576, %v539, 0
      %v1715 = vsel %vm576, %v570, 0
      %v1718 = vsel %vm576, %v571, 0
      %1720 = vmatprep.subr.mxu0 0.0
      %1721 = vmatpush1.xpose.msra.mxu0 0.0
      %1722 = vmatprep.subr.mxu0 0.0
      %1723 = vmatpush1.xpose.msra.mxu0 0.0
      %1724 = vmatprep.subr.mxu0 0.0
      %1725 = vmatpush1.xpose.msra.mxu0 0.0
      %1726 = vmatprep.subr.mxu0 0.0
      %1727 = vmatpush1.xpose.msra.mxu0 0.0
      %1728 = vmatprep.subr.mxu0 0.0
      %1729 = vmatpush1.xpose.msra.mxu0 0.0
      %1730 = vmatprep.subr.mxu0 0.0
      %1731 = vmatpush1.xpose.msra.mxu0 0.0
      %1732 = vmatprep.subr.mxu0 0.0
      %1733 = vmatpush1.xpose.msra.mxu0 0.0
      %1734 = vmatprep.subr.mxu0 0.0
      %1735 = vmatpush1.xpose.msra.mxu0 0.0
      %1736 = vmatprep.subr.mxu0 0.0
      %1737 = vmatpush1.xpose.msra.mxu0 0.0
      %1738 = vmatprep.subr.mxu0 0.0
      %1739 = vmatpush1.xpose.msra.mxu0 0.0
      %1740 = vmatprep.subr.mxu0 0.0
      %1741 = vmatpush1.xpose.msra.mxu0 0.0
      %1742 = vmatprep.subr.mxu0 0.0
      %1743 = vmatpush1.xpose.msra.mxu0 0.0
      %1744 = vmatprep.subr.mxu0 0.0
      %1745 = vmatpush1.xpose.msra.mxu0 0.0
      %1746 = vmatprep.subr.mxu0 0.0
      %1747 = vmatpush1.xpose.msra.mxu0 0.0
      %1748 = vmatprep.subr.mxu0 0.0
      %1749 = vmatpush1.xpose.msra.mxu0 %v1718
      %1750 = vmatprep.subr.mxu0 0.0
      %1751 = vmatpush1.xpose.msra.mxu0 %v1715
      %1752 = vmatprep.subr.mxu0 0.0
      %1753 = vmatpush2.xpose.msra.mxu0 0.0
      %1754 = vmatprep.subr.mxu0 0.0
      %1755 = vmatpush2.xpose.msra.mxu0 0.0
      %1756 = vmatprep.subr.mxu0 0.0
      %1757 = vmatpush2.xpose.msra.mxu0 0.0
      %1758 = vmatprep.subr.mxu0 0.0
      %1759 = vmatpush2.xpose.msra.mxu0 0.0
      %1760 = vmatprep.subr.mxu0 0.0
      %1761 = vmatpush2.xpose.msra.mxu0 0.0
      %1762 = vmatprep.subr.mxu0 0.0
      %1763 = vmatpush2.xpose.msra.mxu0 0.0
      %1764 = vmatprep.subr.mxu0 0.0
      %1765 = vmatpush2.xpose.msra.mxu0 0.0
      %1766 = vmatprep.subr.mxu0 0.0
      %1767 = vmatpush2.xpose.msra.mxu0 0.0
      %1768 = vmatprep.subr.mxu0 0.0
      %1769 = vmatpush2.xpose.msra.mxu0 0.0
      %1770 = vmatprep.subr.mxu0 0.0
      %1771 = vmatpush2.xpose.msra.mxu0 0.0
      %1772 = vmatprep.subr.mxu0 0.0
      %1773 = vmatpush2.xpose.msra.mxu0 0.0
      %1774 = vmatprep.subr.mxu0 0.0
      %1775 = vmatpush2.xpose.msra.mxu0 0.0
      %1776 = vmatprep.subr.mxu0 0.0
      %1777 = vmatpush2.xpose.msra.mxu0 0.0
      %1778 = vmatprep.subr.mxu0 0.0
      %1779 = vmatpush2.xpose.msra.mxu0 0.0
      %1780 = vmatprep.subr.mxu0 0.0
      %1781 = vmatpush2.xpose.msra.mxu0 0.0
      %1782 = vmatprep.subr.mxu0 0.0
      %1783 = vmatpush2.xpose.msra.mxu0 0.0
      %1784 = vmatprep.mubr.f32.mxu0 0.0
      %1785 = vmatmul.mubr.f32.gmra.mxu0 %v1709
      %v1786 = vpop.f32.mrf.mxu0
      %v1787 = vadd.f32 0.0, %v1786
      %v1788 = vpop.f32.mrf.mxu0
      %1789 = vmatprep.mubr.f32.mxu0 0.0
      %1790 = vmatmul.mubr.f32.gmra.mxu0 %v1712
      %v1791 = vpop.f32.mrf.mxu0
      %v1792 = vadd.f32 0.0, %v1791
      %v1793 = vpop.f32.mrf.mxu0
      %1794 = vdwg.mxu0
      %v1796 = vsel %vm576, %v540, 0
      %v1799 = vsel %vm576, %v541, 0
      %v1802 = vsel %vm576, %v572, 0
      %v1805 = vsel %vm576, %v573, 0
      %1807 = vmatprep.subr.mxu0 0.0
      %1808 = vmatpush1.xpose.msra.mxu0 0.0
      %1809 = vmatprep.subr.mxu0 0.0
      %1810 = vmatpush1.xpose.msra.mxu0 0.0
      %1811 = vmatprep.subr.mxu0 0.0
      %1812 = vmatpush1.xpose.msra.mxu0 0.0
      %1813 = vmatprep.subr.mxu0 0.0
      %1814 = vmatpush1.xpose.msra.mxu0 0.0
      %1815 = vmatprep.subr.mxu0 0.0
      %1816 = vmatpush1.xpose.msra.mxu0 0.0
      %1817 = vmatprep.subr.mxu0 0.0
      %1818 = vmatpush1.xpose.msra.mxu0 0.0
      %1819 = vmatprep.subr.mxu0 0.0
      %1820 = vmatpush1.xpose.msra.mxu0 0.0
      %1821 = vmatprep.subr.mxu0 0.0
      %1822 = vmatpush1.xpose.msra.mxu0 0.0
      %1823 = vmatprep.subr.mxu0 0.0
      %1824 = vmatpush1.xpose.msra.mxu0 0.0
      %1825 = vmatprep.subr.mxu0 0.0
      %1826 = vmatpush1.xpose.msra.mxu0 0.0
      %1827 = vmatprep.subr.mxu0 0.0
      %1828 = vmatpush1.xpose.msra.mxu0 0.0
      %1829 = vmatprep.subr.mxu0 0.0
      %1830 = vmatpush1.xpose.msra.mxu0 0.0
      %1831 = vmatprep.subr.mxu0 0.0
      %1832 = vmatpush1.xpose.msra.mxu0 0.0
      %1833 = vmatprep.subr.mxu0 0.0
      %1834 = vmatpush1.xpose.msra.mxu0 0.0
      %1835 = vmatprep.subr.mxu0 0.0
      %1836 = vmatpush1.xpose.msra.mxu0 %v1805
      %1837 = vmatprep.subr.mxu0 0.0
      %1838 = vmatpush1.xpose.msra.mxu0 %v1802
      %1839 = vmatprep.subr.mxu0 0.0
      %1840 = vmatpush2.xpose.msra.mxu0 0.0
      %1841 = vmatprep.subr.mxu0 0.0
      %1842 = vmatpush2.xpose.msra.mxu0 0.0
      %1843 = vmatprep.subr.mxu0 0.0
      %1844 = vmatpush2.xpose.msra.mxu0 0.0
      %1845 = vmatprep.subr.mxu0 0.0
      %1846 = vmatpush2.xpose.msra.mxu0 0.0
      %1847 = vmatprep.subr.mxu0 0.0
      %1848 = vmatpush2.xpose.msra.mxu0 0.0
      %1849 = vmatprep.subr.mxu0 0.0
      %1850 = vmatpush2.xpose.msra.mxu0 0.0
      %1851 = vmatprep.subr.mxu0 0.0
      %1852 = vmatpush2.xpose.msra.mxu0 0.0
      %1853 = vmatprep.subr.mxu0 0.0
      %1854 = vmatpush2.xpose.msra.mxu0 0.0
      %1855 = vmatprep.subr.mxu0 0.0
      %1856 = vmatpush2.xpose.msra.mxu0 0.0
      %1857 = vmatprep.subr.mxu0 0.0
      %1858 = vmatpush2.xpose.msra.mxu0 0.0
      %1859 = vmatprep.subr.mxu0 0.0
      %1860 = vmatpush2.xpose.msra.mxu0 0.0
      %1861 = vmatprep.subr.mxu0 0.0
      %1862 = vmatpush2.xpose.msra.mxu0 0.0
      %1863 = vmatprep.subr.mxu0 0.0
      %1864 = vmatpush2.xpose.msra.mxu0 0.0
      %1865 = vmatprep.subr.mxu0 0.0
      %1866 = vmatpush2.xpose.msra.mxu0 0.0
      %1867 = vmatprep.subr.mxu0 0.0
      %1868 = vmatpush2.xpose.msra.mxu0 0.0
      %1869 = vmatprep.subr.mxu0 0.0
      %1870 = vmatpush2.xpose.msra.mxu0 0.0
      %1871 = vmatprep.mubr.f32.mxu0 0.0
      %1872 = vmatmul.mubr.f32.gmra.mxu0 %v1796
      %v1873 = vpop.f32.mrf.mxu0
      %v1874 = vadd.f32 0.0, %v1873
      %v1875 = vpop.f32.mrf.mxu0
      %1876 = vmatprep.mubr.f32.mxu0 0.0
      %1877 = vmatmul.mubr.f32.gmra.mxu0 %v1799
      %v1878 = vpop.f32.mrf.mxu0
      %v1879 = vadd.f32 0.0, %v1878
      %v1880 = vpop.f32.mrf.mxu0
      %1881 = vdwg.mxu0
      %v1883 = vsel %vm576, %v542, 0
      %v1886 = vsel %vm576, %v543, 0
      %v1889 = vsel %vm576, %v574, 0
      %v1892 = vsel %vm576, %v575, 0
      %1894 = vmatprep.subr.mxu0 0.0
      %1895 = vmatpush1.xpose.msra.mxu0 0.0
      %1896 = vmatprep.subr.mxu0 0.0
      %1897 = vmatpush1.xpose.msra.mxu0 0.0
      %1898 = vmatprep.subr.mxu0 0.0
      %1899 = vmatpush1.xpose.msra.mxu0 0.0
      %1900 = vmatprep.subr.mxu0 0.0
      %1901 = vmatpush1.xpose.msra.mxu0 0.0
      %1902 = vmatprep.subr.mxu0 0.0
      %1903 = vmatpush1.xpose.msra.mxu0 0.0
      %1904 = vmatprep.subr.mxu0 0.0
      %1905 = vmatpush1.xpose.msra.mxu0 0.0
      %1906 = vmatprep.subr.mxu0 0.0
      %1907 = vmatpush1.xpose.msra.mxu0 0.0
      %1908 = vmatprep.subr.mxu0 0.0
      %1909 = vmatpush1.xpose.msra.mxu0 0.0
      %1910 = vmatprep.subr.mxu0 0.0
      %1911 = vmatpush1.xpose.msra.mxu0 0.0
      %1912 = vmatprep.subr.mxu0 0.0
      %1913 = vmatpush1.xpose.msra.mxu0 0.0
      %1914 = vmatprep.subr.mxu0 0.0
      %1915 = vmatpush1.xpose.msra.mxu0 0.0
      %1916 = vmatprep.subr.mxu0 0.0
      %1917 = vmatpush1.xpose.msra.mxu0 0.0
      %1918 = vmatprep.subr.mxu0 0.0
      %1919 = vmatpush1.xpose.msra.mxu0 0.0
      %1920 = vmatprep.subr.mxu0 0.0
      %1921 = vmatpush1.xpose.msra.mxu0 0.0
      %1922 = vmatprep.subr.mxu0 0.0
      %1923 = vmatpush1.xpose.msra.mxu0 %v1892
      %1924 = vmatprep.subr.mxu0 0.0
      %1925 = vmatpush1.xpose.msra.mxu0 %v1889
      %1926 = vmatprep.subr.mxu0 0.0
      %1927 = vmatpush2.xpose.msra.mxu0 0.0
      %1928 = vmatprep.subr.mxu0 0.0
      %1929 = vmatpush2.xpose.msra.mxu0 0.0
      %1930 = vmatprep.subr.mxu0 0.0
      %1931 = vmatpush2.xpose.msra.mxu0 0.0
      %1932 = vmatprep.subr.mxu0 0.0
      %1933 = vmatpush2.xpose.msra.mxu0 0.0
      %1934 = vmatprep.subr.mxu0 0.0
      %1935 = vmatpush2.xpose.msra.mxu0 0.0
      %1936 = vmatprep.subr.mxu0 0.0
      %1937 = vmatpush2.xpose.msra.mxu0 0.0
      %1938 = vmatprep.subr.mxu0 0.0
      %1939 = vmatpush2.xpose.msra.mxu0 0.0
      %1940 = vmatprep.subr.mxu0 0.0
      %1941 = vmatpush2.xpose.msra.mxu0 0.0
      %1942 = vmatprep.subr.mxu0 0.0
      %1943 = vmatpush2.xpose.msra.mxu0 0.0
      %1944 = vmatprep.subr.mxu0 0.0
      %1945 = vmatpush2.xpose.msra.mxu0 0.0
      %1946 = vmatprep.subr.mxu0 0.0
      %1947 = vmatpush2.xpose.msra.mxu0 0.0
      %1948 = vmatprep.subr.mxu0 0.0
      %1949 = vmatpush2.xpose.msra.mxu0 0.0
      %1950 = vmatprep.subr.mxu0 0.0
      %1951 = vmatpush2.xpose.msra.mxu0 0.0
      %1952 = vmatprep.subr.mxu0 0.0
      %1953 = vmatpush2.xpose.msra.mxu0 0.0
      %1954 = vmatprep.subr.mxu0 0.0
      %1955 = vmatpush2.xpose.msra.mxu0 0.0
      %1956 = vmatprep.subr.mxu0 0.0
      %1957 = vmatpush2.xpose.msra.mxu0 0.0
      %1958 = vmatprep.mubr.f32.mxu0 0.0
      %1959 = vmatmul.mubr.f32.gmra.mxu0 %v1883
      %v1960 = vpop.f32.mrf.mxu0
      %v1961 = vadd.f32 0.0, %v1960
      %v1962 = vpop.f32.mrf.mxu0
      %1963 = vmatprep.mubr.f32.mxu0 0.0
      %1964 = vmatmul.mubr.f32.gmra.mxu0 %v1886
      %v1965 = vpop.f32.mrf.mxu0
      %v1966 = vadd.f32 0.0, %v1965
      %v1967 = vpop.f32.mrf.mxu0
      %1968 = vdwg.mxu0
      %v1969 = vadd.f32 %v480, %v656
      %v1970 = vadd.f32 %v481, %v661
      %v1971 = vadd.f32 %v482, %v743
      %v1972 = vadd.f32 %v483, %v748
      %v1973 = vadd.f32 %v484, %v830
      %v1974 = vadd.f32 %v485, %v835
      %v1975 = vadd.f32 %v486, %v917
      %v1976 = vadd.f32 %v487, %v922
      %v1977 = vadd.f32 %v488, %v1004
      %v1978 = vadd.f32 %v489, %v1009
      %v1979 = vadd.f32 %v490, %v1091
      %v1980 = vadd.f32 %v491, %v1096
      %v1981 = vadd.f32 %v492, %v1178
      %v1982 = vadd.f32 %v493, %v1183
      %v1983 = vadd.f32 %v494, %v1265
      %v1984 = vadd.f32 %v495, %v1270
      %v1985 = vadd.f32 %v496, %v1352
      %v1986 = vadd.f32 %v497, %v1357
      %v1987 = vadd.f32 %v498, %v1439
      %v1988 = vadd.f32 %v499, %v1444
      %v1989 = vadd.f32 %v500, %v1526
      %v1990 = vadd.f32 %v501, %v1531
      %v1991 = vadd.f32 %v502, %v1613
      %v1992 = vadd.f32 %v503, %v1618
      %v1993 = vadd.f32 %v504, %v1700
      %v1994 = vadd.f32 %v505, %v1705
      %v1995 = vadd.f32 %v506, %v1787
      %v1996 = vadd.f32 %v507, %v1792
      %v1997 = vadd.f32 %v508, %v1874
      %v1998 = vadd.f32 %v509, %v1879
      %v1999 = vadd.f32 %v510, %v1961
      %v2000 = vadd.f32 %v511, %v1966
      %2001 = vst.msk [vmem:[#allocation2] sm:$0xff] %vm576, %v1969
      %2002 = vst.msk [vmem:[#allocation2 + $0x8] sm:$0xff] %vm576, %v1970
      %2003 = vst.msk [vmem:[#allocation2 + $0x10] sm:$0xff] %vm576, %v1971
      %2004 = vst.msk [vmem:[#allocation2 + $0x18] sm:$0xff] %vm576, %v1972
      %2005 = vst.msk [vmem:[#allocation2 + $0x20] sm:$0xff] %vm576, %v1973
      %2006 = vst.msk [vmem:[#allocation2 + $0x28] sm:$0xff] %vm576, %v1974
      %2007 = vst.msk [vmem:[#allocation2 + $0x30] sm:$0xff] %vm576, %v1975
      %2008 = vst.msk [vmem:[#allocation2 + $0x38] sm:$0xff] %vm576, %v1976
      %2009 = vst.msk [vmem:[#allocation2 + $0x40] sm:$0xff] %vm576, %v1977
      %2010 = vst.msk [vmem:[#allocation2 + $0x48] sm:$0xff] %vm576, %v1978
      %2011 = vst.msk [vmem:[#allocation2 + $0x50] sm:$0xff] %vm576, %v1979
      %2012 = vst.msk [vmem:[#allocation2 + $0x58] sm:$0xff] %vm576, %v1980
      %2013 = vst.msk [vmem:[#allocation2 + $0x60] sm:$0xff] %vm576, %v1981
      %2014 = vst.msk [vmem:[#allocation2 + $0x68] sm:$0xff] %vm576, %v1982
      %2015 = vst.msk [vmem:[#allocation2 + $0x70] sm:$0xff] %vm576, %v1983
      %2016 = vst.msk [vmem:[#allocation2 + $0x78] sm:$0xff] %vm576, %v1984
      %2017 = vst.msk [vmem:[#allocation2 + $0x80] sm:$0xff] %vm576, %v1985
      %2018 = vst.msk [vmem:[#allocation2 + $0x88] sm:$0xff] %vm576, %v1986
      %2019 = vst.msk [vmem:[#allocation2 + $0x90] sm:$0xff] %vm576, %v1987
      %2020 = vst.msk [vmem:[#allocation2 + $0x98] sm:$0xff] %vm576, %v1988
      %2021 = vst.msk [vmem:[#allocation2 + $0xa0] sm:$0xff] %vm576, %v1989
      %2022 = vst.msk [vmem:[#allocation2 + $0xa8] sm:$0xff] %vm576, %v1990
      %2023 = vst.msk [vmem:[#allocation2 + $0xb0] sm:$0xff] %vm576, %v1991
      %2024 = vst.msk [vmem:[#allocation2 + $0xb8] sm:$0xff] %vm576, %v1992
      %2025 = vst.msk [vmem:[#allocation2 + $0xc0] sm:$0xff] %vm576, %v1993
      %2026 = vst.msk [vmem:[#allocation2 + $0xc8] sm:$0xff] %vm576, %v1994
      %2027 = vst.msk [vmem:[#allocation2 + $0xd0] sm:$0xff] %vm576, %v1995
      %2028 = vst.msk [vmem:[#allocation2 + $0xd8] sm:$0xff] %vm576, %v1996
      %2029 = vst.msk [vmem:[#allocation2 + $0xe0] sm:$0xff] %vm576, %v1997
      %2030 = vst.msk [vmem:[#allocation2 + $0xe8] sm:$0xff] %vm576, %v1998
      %2031 = vst.msk [vmem:[#allocation2 + $0xf0] sm:$0xff] %vm576, %v1999
      %2032 = vst.msk [vmem:[#allocation2 + $0xf8] sm:$0xff] %vm576, %v2000
      %v2033 = vld [vmem:[#allocation3] sm:$0xff]
      %v2034 = vld [vmem:[#allocation3 + $0x8] sm:$0xff]
      %v2035 = vld [vmem:[#allocation3 + $0x10] sm:$0xff]
      %v2036 = vld [vmem:[#allocation3 + $0x18] sm:$0xff]
      %v2037 = vld [vmem:[#allocation3 + $0x20] sm:$0xff]
      %v2038 = vld [vmem:[#allocation3 + $0x28] sm:$0xff]
      %v2039 = vld [vmem:[#allocation3 + $0x30] sm:$0xff]
      %v2040 = vld [vmem:[#allocation3 + $0x38] sm:$0xff]
      %v2041 = vld [vmem:[#allocation3 + $0x40] sm:$0xff]
      %v2042 = vld [vmem:[#allocation3 + $0x48] sm:$0xff]
      %v2043 = vld [vmem:[#allocation3 + $0x50] sm:$0xff]
      %v2044 = vld [vmem:[#allocation3 + $0x58] sm:$0xff]
      %v2045 = vld [vmem:[#allocation3 + $0x60] sm:$0xff]
      %v2046 = vld [vmem:[#allocation3 + $0x68] sm:$0xff]
      %v2047 = vld [vmem:[#allocation3 + $0x70] sm:$0xff]
      %v2048 = vld [vmem:[#allocation3 + $0x78] sm:$0xff]
      %v2049 = vld [vmem:[#allocation3 + $0x80] sm:$0xff]
      %v2050 = vld [vmem:[#allocation3 + $0x88] sm:$0xff]
      %v2051 = vld [vmem:[#allocation3 + $0x90] sm:$0xff]
      %v2052 = vld [vmem:[#allocation3 + $0x98] sm:$0xff]
      %v2053 = vld [vmem:[#allocation3 + $0xa0] sm:$0xff]
      %v2054 = vld [vmem:[#allocation3 + $0xa8] sm:$0xff]
      %v2055 = vld [vmem:[#allocation3 + $0xb0] sm:$0xff]
      %v2056 = vld [vmem:[#allocation3 + $0xb8] sm:$0xff]
      %v2057 = vld [vmem:[#allocation3 + $0xc0] sm:$0xff]
      %v2058 = vld [vmem:[#allocation3 + $0xc8] sm:$0xff]
      %v2059 = vld [vmem:[#allocation3 + $0xd0] sm:$0xff]
      %v2060 = vld [vmem:[#allocation3 + $0xd8] sm:$0xff]
      %v2061 = vld [vmem:[#allocation3 + $0xe0] sm:$0xff]
      %v2062 = vld [vmem:[#allocation3 + $0xe8] sm:$0xff]
      %v2063 = vld [vmem:[#allocation3 + $0xf0] sm:$0xff]
      %v2064 = vld [vmem:[#allocation3 + $0xf8] sm:$0xff]
      %v2065 = vld [vmem:[%s383] sm:$0xff]
      %v2066 = vld [vmem:[%s383 + $0x8] sm:$0xff]
      %v2067 = vld [vmem:[%s383 + $0x10] sm:$0xff]
      %v2068 = vld [vmem:[%s383 + $0x18] sm:$0xff]
      %v2069 = vld [vmem:[%s383 + $0x20] sm:$0xff]
      %v2070 = vld [vmem:[%s383 + $0x28] sm:$0xff]
      %v2071 = vld [vmem:[%s383 + $0x30] sm:$0xff]
      %v2072 = vld [vmem:[%s383 + $0x38] sm:$0xff]
      %v2073 = vld [vmem:[%s383 + $0x40] sm:$0xff]
      %v2074 = vld [vmem:[%s383 + $0x48] sm:$0xff]
      %v2075 = vld [vmem:[%s383 + $0x50] sm:$0xff]
      %v2076 = vld [vmem:[%s383 + $0x58] sm:$0xff]
      %v2077 = vld [vmem:[%s383 + $0x60] sm:$0xff]
      %v2078 = vld [vmem:[%s383 + $0x68] sm:$0xff]
      %v2079 = vld [vmem:[%s383 + $0x70] sm:$0xff]
      %v2080 = vld [vmem:[%s383 + $0x78] sm:$0xff]
      %v2081 = vld [vmem:[%s383 + $0x80] sm:$0xff]
      %v2082 = vld [vmem:[%s383 + $0x88] sm:$0xff]
      %v2083 = vld [vmem:[%s383 + $0x90] sm:$0xff]
      %v2084 = vld [vmem:[%s383 + $0x98] sm:$0xff]
      %v2085 = vld [vmem:[%s383 + $0xa0] sm:$0xff]
      %v2086 = vld [vmem:[%s383 + $0xa8] sm:$0xff]
      %v2087 = vld [vmem:[%s383 + $0xb0] sm:$0xff]
      %v2088 = vld [vmem:[%s383 + $0xb8] sm:$0xff]
      %v2089 = vld [vmem:[%s383 + $0xc0] sm:$0xff]
      %v2090 = vld [vmem:[%s383 + $0xc8] sm:$0xff]
      %v2091 = vld [vmem:[%s383 + $0xd0] sm:$0xff]
      %v2092 = vld [vmem:[%s383 + $0xd8] sm:$0xff]
      %v2093 = vld [vmem:[%s383 + $0xe0] sm:$0xff]
      %v2094 = vld [vmem:[%s383 + $0xe8] sm:$0xff]
      %v2095 = vld [vmem:[%s383 + $0xf0] sm:$0xff]
      %v2096 = vld [vmem:[%s383 + $0xf8] sm:$0xff]
      %v2097 = vld [vmem:[%s396] sm:$0xff]
      %v2098 = vld [vmem:[%s396 + $0x8] sm:$0xff]
      %v2099 = vld [vmem:[%s396 + $0x10] sm:$0xff]
      %v2100 = vld [vmem:[%s396 + $0x18] sm:$0xff]
      %v2101 = vld [vmem:[%s396 + $0x20] sm:$0xff]
      %v2102 = vld [vmem:[%s396 + $0x28] sm:$0xff]
      %v2103 = vld [vmem:[%s396 + $0x30] sm:$0xff]
      %v2104 = vld [vmem:[%s396 + $0x38] sm:$0xff]
      %v2105 = vld [vmem:[%s396 + $0x40] sm:$0xff]
      %v2106 = vld [vmem:[%s396 + $0x48] sm:$0xff]
      %v2107 = vld [vmem:[%s396 + $0x50] sm:$0xff]
      %v2108 = vld [vmem:[%s396 + $0x58] sm:$0xff]
      %v2109 = vld [vmem:[%s396 + $0x60] sm:$0xff]
      %v2110 = vld [vmem:[%s396 + $0x68] sm:$0xff]
      %v2111 = vld [vmem:[%s396 + $0x70] sm:$0xff]
      %v2112 = vld [vmem:[%s396 + $0x78] sm:$0xff]
      %v2113 = vld [vmem:[%s396 + $0x80] sm:$0xff]
      %v2114 = vld [vmem:[%s396 + $0x88] sm:$0xff]
      %v2115 = vld [vmem:[%s396 + $0x90] sm:$0xff]
      %v2116 = vld [vmem:[%s396 + $0x98] sm:$0xff]
      %v2117 = vld [vmem:[%s396 + $0xa0] sm:$0xff]
      %v2118 = vld [vmem:[%s396 + $0xa8] sm:$0xff]
      %v2119 = vld [vmem:[%s396 + $0xb0] sm:$0xff]
      %v2120 = vld [vmem:[%s396 + $0xb8] sm:$0xff]
      %v2121 = vld [vmem:[%s396 + $0xc0] sm:$0xff]
      %v2122 = vld [vmem:[%s396 + $0xc8] sm:$0xff]
      %v2123 = vld [vmem:[%s396 + $0xd0] sm:$0xff]
      %v2124 = vld [vmem:[%s396 + $0xd8] sm:$0xff]
      %v2125 = vld [vmem:[%s396 + $0xe0] sm:$0xff]
      %v2126 = vld [vmem:[%s396 + $0xe8] sm:$0xff]
      %v2127 = vld [vmem:[%s396 + $0xf0] sm:$0xff]
      %v2128 = vld [vmem:[%s396 + $0xf8] sm:$0xff]
      %v2130 = vsel %vm576, %v2065, 0
      %v2133 = vsel %vm576, %v2066, 0
      %v2136 = vsel %vm576, %v2097, 0
      %v2139 = vsel %vm576, %v2098, 0
      %2141 = vmatprep.subr.mxu0 0.0
      %2142 = vmatpush1.xpose.msra.mxu0 0.0
      %2143 = vmatprep.subr.mxu0 0.0
      %2144 = vmatpush1.xpose.msra.mxu0 0.0
      %2145 = vmatprep.subr.mxu0 0.0
      %2146 = vmatpush1.xpose.msra.mxu0 0.0
      %2147 = vmatprep.subr.mxu0 0.0
      %2148 = vmatpush1.xpose.msra.mxu0 0.0
      %2149 = vmatprep.subr.mxu0 0.0
      %2150 = vmatpush1.xpose.msra.mxu0 0.0
      %2151 = vmatprep.subr.mxu0 0.0
      %2152 = vmatpush1.xpose.msra.mxu0 0.0
      %2153 = vmatprep.subr.mxu0 0.0
      %2154 = vmatpush1.xpose.msra.mxu0 0.0
      %2155 = vmatprep.subr.mxu0 0.0
      %2156 = vmatpush1.xpose.msra.mxu0 0.0
      %2157 = vmatprep.subr.mxu0 0.0
      %2158 = vmatpush1.xpose.msra.mxu0 0.0
      %2159 = vmatprep.subr.mxu0 0.0
      %2160 = vmatpush1.xpose.msra.mxu0 0.0
      %2161 = vmatprep.subr.mxu0 0.0
      %2162 = vmatpush1.xpose.msra.mxu0 0.0
      %2163 = vmatprep.subr.mxu0 0.0
      %2164 = vmatpush1.xpose.msra.mxu0 0.0
      %2165 = vmatprep.subr.mxu0 0.0
      %2166 = vmatpush1.xpose.msra.mxu0 0.0
      %2167 = vmatprep.subr.mxu0 0.0
      %2168 = vmatpush1.xpose.msra.mxu0 0.0
      %2169 = vmatprep.subr.mxu0 0.0
      %2170 = vmatpush1.xpose.msra.mxu0 %v2139
      %2171 = vmatprep.subr.mxu0 0.0
      %2172 = vmatpush1.xpose.msra.mxu0 %v2136
      %2173 = vmatprep.subr.mxu0 0.0
      %2174 = vmatpush2.xpose.msra.mxu0 0.0
      %2175 = vmatprep.subr.mxu0 0.0
      %2176 = vmatpush2.xpose.msra.mxu0 0.0
      %2177 = vmatprep.subr.mxu0 0.0
      %2178 = vmatpush2.xpose.msra.mxu0 0.0
      %2179 = vmatprep.subr.mxu0 0.0
      %2180 = vmatpush2.xpose.msra.mxu0 0.0
      %2181 = vmatprep.subr.mxu0 0.0
      %2182 = vmatpush2.xpose.msra.mxu0 0.0
      %2183 = vmatprep.subr.mxu0 0.0
      %2184 = vmatpush2.xpose.msra.mxu0 0.0
      %2185 = vmatprep.subr.mxu0 0.0
      %2186 = vmatpush2.xpose.msra.mxu0 0.0
      %2187 = vmatprep.subr.mxu0 0.0
      %2188 = vmatpush2.xpose.msra.mxu0 0.0
      %2189 = vmatprep.subr.mxu0 0.0
      %2190 = vmatpush2.xpose.msra.mxu0 0.0
      %2191 = vmatprep.subr.mxu0 0.0
      %2192 = vmatpush2.xpose.msra.mxu0 0.0
      %2193 = vmatprep.subr.mxu0 0.0
      %2194 = vmatpush2.xpose.msra.mxu0 0.0
      %2195 = vmatprep.subr.mxu0 0.0
      %2196 = vmatpush2.xpose.msra.mxu0 0.0
      %2197 = vmatprep.subr.mxu0 0.0
      %2198 = vmatpush2.xpose.msra.mxu0 0.0
      %2199 = vmatprep.subr.mxu0 0.0
      %2200 = vmatpush2.xpose.msra.mxu0 0.0
      %2201 = vmatprep.subr.mxu0 0.0
      %2202 = vmatpush2.xpose.msra.mxu0 0.0
      %2203 = vmatprep.subr.mxu0 0.0
      %2204 = vmatpush2.xpose.msra.mxu0 0.0
      %2205 = vmatprep.mubr.f32.mxu0 0.0
      %2206 = vmatmul.mubr.f32.gmra.mxu0 %v2130
      %v2207 = vpop.f32.mrf.mxu0
      %v2208 = vadd.f32 0.0, %v2207
      %v2209 = vpop.f32.mrf.mxu0
      %2210 = vmatprep.mubr.f32.mxu0 0.0
      %2211 = vmatmul.mubr.f32.gmra.mxu0 %v2133
      %v2212 = vpop.f32.mrf.mxu0
      %v2213 = vadd.f32 0.0, %v2212
      %v2214 = vpop.f32.mrf.mxu0
      %2215 = vdwg.mxu0
      %v2217 = vsel %vm576, %v2067, 0
      %v2220 = vsel %vm576, %v2068, 0
      %v2223 = vsel %vm576, %v2099, 0
      %v2226 = vsel %vm576, %v2100, 0
      %2228 = vmatprep.subr.mxu0 0.0
      %2229 = vmatpush1.xpose.msra.mxu0 0.0
      %2230 = vmatprep.subr.mxu0 0.0
      %2231 = vmatpush1.xpose.msra.mxu0 0.0
      %2232 = vmatprep.subr.mxu0 0.0
      %2233 = vmatpush1.xpose.msra.mxu0 0.0
      %2234 = vmatprep.subr.mxu0 0.0
      %2235 = vmatpush1.xpose.msra.mxu0 0.0
      %2236 = vmatprep.subr.mxu0 0.0
      %2237 = vmatpush1.xpose.msra.mxu0 0.0
      %2238 = vmatprep.subr.mxu0 0.0
      %2239 = vmatpush1.xpose.msra.mxu0 0.0
      %2240 = vmatprep.subr.mxu0 0.0
      %2241 = vmatpush1.xpose.msra.mxu0 0.0
      %2242 = vmatprep.subr.mxu0 0.0
      %2243 = vmatpush1.xpose.msra.mxu0 0.0
      %2244 = vmatprep.subr.mxu0 0.0
      %2245 = vmatpush1.xpose.msra.mxu0 0.0
      %2246 = vmatprep.subr.mxu0 0.0
      %2247 = vmatpush1.xpose.msra.mxu0 0.0
      %2248 = vmatprep.subr.mxu0 0.0
      %2249 = vmatpush1.xpose.msra.mxu0 0.0
      %2250 = vmatprep.subr.mxu0 0.0
      %2251 = vmatpush1.xpose.msra.mxu0 0.0
      %2252 = vmatprep.subr.mxu0 0.0
      %2253 = vmatpush1.xpose.msra.mxu0 0.0
      %2254 = vmatprep.subr.mxu0 0.0
      %2255 = vmatpush1.xpose.msra.mxu0 0.0
      %2256 = vmatprep.subr.mxu0 0.0
      %2257 = vmatpush1.xpose.msra.mxu0 %v2226
      %2258 = vmatprep.subr.mxu0 0.0
      %2259 = vmatpush1.xpose.msra.mxu0 %v2223
      %2260 = vmatprep.subr.mxu0 0.0
      %2261 = vmatpush2.xpose.msra.mxu0 0.0
      %2262 = vmatprep.subr.mxu0 0.0
      %2263 = vmatpush2.xpose.msra.mxu0 0.0
      %2264 = vmatprep.subr.mxu0 0.0
      %2265 = vmatpush2.xpose.msra.mxu0 0.0
      %2266 = vmatprep.subr.mxu0 0.0
      %2267 = vmatpush2.xpose.msra.mxu0 0.0
      %2268 = vmatprep.subr.mxu0 0.0
      %2269 = vmatpush2.xpose.msra.mxu0 0.0
      %2270 = vmatprep.subr.mxu0 0.0
      %2271 = vmatpush2.xpose.msra.mxu0 0.0
      %2272 = vmatprep.subr.mxu0 0.0
      %2273 = vmatpush2.xpose.msra.mxu0 0.0
      %2274 = vmatprep.subr.mxu0 0.0
      %2275 = vmatpush2.xpose.msra.mxu0 0.0
      %2276 = vmatprep.subr.mxu0 0.0
      %2277 = vmatpush2.xpose.msra.mxu0 0.0
      %2278 = vmatprep.subr.mxu0 0.0
      %2279 = vmatpush2.xpose.msra.mxu0 0.0
      %2280 = vmatprep.subr.mxu0 0.0
      %2281 = vmatpush2.xpose.msra.mxu0 0.0
      %2282 = vmatprep.subr.mxu0 0.0
      %2283 = vmatpush2.xpose.msra.mxu0 0.0
      %2284 = vmatprep.subr.mxu0 0.0
      %2285 = vmatpush2.xpose.msra.mxu0 0.0
      %2286 = vmatprep.subr.mxu0 0.0
      %2287 = vmatpush2.xpose.msra.mxu0 0.0
      %2288 = vmatprep.subr.mxu0 0.0
      %2289 = vmatpush2.xpose.msra.mxu0 0.0
      %2290 = vmatprep.subr.mxu0 0.0
      %2291 = vmatpush2.xpose.msra.mxu0 0.0
      %2292 = vmatprep.mubr.f32.mxu0 0.0
      %2293 = vmatmul.mubr.f32.gmra.mxu0 %v2217
      %v2294 = vpop.f32.mrf.mxu0
      %v2295 = vadd.f32 0.0, %v2294
      %v2296 = vpop.f32.mrf.mxu0
      %2297 = vmatprep.mubr.f32.mxu0 0.0
      %2298 = vmatmul.mubr.f32.gmra.mxu0 %v2220
      %v2299 = vpop.f32.mrf.mxu0
      %v2300 = vadd.f32 0.0, %v2299
      %v2301 = vpop.f32.mrf.mxu0
      %2302 = vdwg.mxu0
      %v2304 = vsel %vm576, %v2069, 0
      %v2307 = vsel %vm576, %v2070, 0
      %v2310 = vsel %vm576, %v2101, 0
      %v2313 = vsel %vm576, %v2102, 0
      %2315 = vmatprep.subr.mxu0 0.0
      %2316 = vmatpush1.xpose.msra.mxu0 0.0
      %2317 = vmatprep.subr.mxu0 0.0
      %2318 = vmatpush1.xpose.msra.mxu0 0.0
      %2319 = vmatprep.subr.mxu0 0.0
      %2320 = vmatpush1.xpose.msra.mxu0 0.0
      %2321 = vmatprep.subr.mxu0 0.0
      %2322 = vmatpush1.xpose.msra.mxu0 0.0
      %2323 = vmatprep.subr.mxu0 0.0
      %2324 = vmatpush1.xpose.msra.mxu0 0.0
      %2325 = vmatprep.subr.mxu0 0.0
      %2326 = vmatpush1.xpose.msra.mxu0 0.0
      %2327 = vmatprep.subr.mxu0 0.0
      %2328 = vmatpush1.xpose.msra.mxu0 0.0
      %2329 = vmatprep.subr.mxu0 0.0
      %2330 = vmatpush1.xpose.msra.mxu0 0.0
      %2331 = vmatprep.subr.mxu0 0.0
      %2332 = vmatpush1.xpose.msra.mxu0 0.0
      %2333 = vmatprep.subr.mxu0 0.0
      %2334 = vmatpush1.xpose.msra.mxu0 0.0
      %2335 = vmatprep.subr.mxu0 0.0
      %2336 = vmatpush1.xpose.msra.mxu0 0.0
      %2337 = vmatprep.subr.mxu0 0.0
      %2338 = vmatpush1.xpose.msra.mxu0 0.0
      %2339 = vmatprep.subr.mxu0 0.0
      %2340 = vmatpush1.xpose.msra.mxu0 0.0
      %2341 = vmatprep.subr.mxu0 0.0
      %2342 = vmatpush1.xpose.msra.mxu0 0.0
      %2343 = vmatprep.subr.mxu0 0.0
      %2344 = vmatpush1.xpose.msra.mxu0 %v2313
      %2345 = vmatprep.subr.mxu0 0.0
      %2346 = vmatpush1.xpose.msra.mxu0 %v2310
      %2347 = vmatprep.subr.mxu0 0.0
      %2348 = vmatpush2.xpose.msra.mxu0 0.0
      %2349 = vmatprep.subr.mxu0 0.0
      %2350 = vmatpush2.xpose.msra.mxu0 0.0
      %2351 = vmatprep.subr.mxu0 0.0
      %2352 = vmatpush2.xpose.msra.mxu0 0.0
      %2353 = vmatprep.subr.mxu0 0.0
      %2354 = vmatpush2.xpose.msra.mxu0 0.0
      %2355 = vmatprep.subr.mxu0 0.0
      %2356 = vmatpush2.xpose.msra.mxu0 0.0
      %2357 = vmatprep.subr.mxu0 0.0
      %2358 = vmatpush2.xpose.msra.mxu0 0.0
      %2359 = vmatprep.subr.mxu0 0.0
      %2360 = vmatpush2.xpose.msra.mxu0 0.0
      %2361 = vmatprep.subr.mxu0 0.0
      %2362 = vmatpush2.xpose.msra.mxu0 0.0
      %2363 = vmatprep.subr.mxu0 0.0
      %2364 = vmatpush2.xpose.msra.mxu0 0.0
      %2365 = vmatprep.subr.mxu0 0.0
      %2366 = vmatpush2.xpose.msra.mxu0 0.0
      %2367 = vmatprep.subr.mxu0 0.0
      %2368 = vmatpush2.xpose.msra.mxu0 0.0
      %2369 = vmatprep.subr.mxu0 0.0
      %2370 = vmatpush2.xpose.msra.mxu0 0.0
      %2371 = vmatprep.subr.mxu0 0.0
      %2372 = vmatpush2.xpose.msra.mxu0 0.0
      %2373 = vmatprep.subr.mxu0 0.0
      %2374 = vmatpush2.xpose.msra.mxu0 0.0
      %2375 = vmatprep.subr.mxu0 0.0
      %2376 = vmatpush2.xpose.msra.mxu0 0.0
      %2377 = vmatprep.subr.mxu0 0.0
      %2378 = vmatpush2.xpose.msra.mxu0 0.0
      %2379 = vmatprep.mubr.f32.mxu0 0.0
      %2380 = vmatmul.mubr.f32.gmra.mxu0 %v2304
      %v2381 = vpop.f32.mrf.mxu0
      %v2382 = vadd.f32 0.0, %v2381
      %v2383 = vpop.f32.mrf.mxu0
      %2384 = vmatprep.mubr.f32.mxu0 0.0
      %2385 = vmatmul.mubr.f32.gmra.mxu0 %v2307
      %v2386 = vpop.f32.mrf.mxu0
      %v2387 = vadd.f32 0.0, %v2386
      %v2388 = vpop.f32.mrf.mxu0
      %2389 = vdwg.mxu0
      %v2391 = vsel %vm576, %v2071, 0
      %v2394 = vsel %vm576, %v2072, 0
      %v2397 = vsel %vm576, %v2103, 0
      %v2400 = vsel %vm576, %v2104, 0
      %2402 = vmatprep.subr.mxu0 0.0
      %2403 = vmatpush1.xpose.msra.mxu0 0.0
      %2404 = vmatprep.subr.mxu0 0.0
      %2405 = vmatpush1.xpose.msra.mxu0 0.0
      %2406 = vmatprep.subr.mxu0 0.0
      %2407 = vmatpush1.xpose.msra.mxu0 0.0
      %2408 = vmatprep.subr.mxu0 0.0
      %2409 = vmatpush1.xpose.msra.mxu0 0.0
      %2410 = vmatprep.subr.mxu0 0.0
      %2411 = vmatpush1.xpose.msra.mxu0 0.0
      %2412 = vmatprep.subr.mxu0 0.0
      %2413 = vmatpush1.xpose.msra.mxu0 0.0
      %2414 = vmatprep.subr.mxu0 0.0
      %2415 = vmatpush1.xpose.msra.mxu0 0.0
      %2416 = vmatprep.subr.mxu0 0.0
      %2417 = vmatpush1.xpose.msra.mxu0 0.0
      %2418 = vmatprep.subr.mxu0 0.0
      %2419 = vmatpush1.xpose.msra.mxu0 0.0
      %2420 = vmatprep.subr.mxu0 0.0
      %2421 = vmatpush1.xpose.msra.mxu0 0.0
      %2422 = vmatprep.subr.mxu0 0.0
      %2423 = vmatpush1.xpose.msra.mxu0 0.0
      %2424 = vmatprep.subr.mxu0 0.0
      %2425 = vmatpush1.xpose.msra.mxu0 0.0
      %2426 = vmatprep.subr.mxu0 0.0
      %2427 = vmatpush1.xpose.msra.mxu0 0.0
      %2428 = vmatprep.subr.mxu0 0.0
      %2429 = vmatpush1.xpose.msra.mxu0 0.0
      %2430 = vmatprep.subr.mxu0 0.0
      %2431 = vmatpush1.xpose.msra.mxu0 %v2400
      %2432 = vmatprep.subr.mxu0 0.0
      %2433 = vmatpush1.xpose.msra.mxu0 %v2397
      %2434 = vmatprep.subr.mxu0 0.0
      %2435 = vmatpush2.xpose.msra.mxu0 0.0
      %2436 = vmatprep.subr.mxu0 0.0
      %2437 = vmatpush2.xpose.msra.mxu0 0.0
      %2438 = vmatprep.subr.mxu0 0.0
      %2439 = vmatpush2.xpose.msra.mxu0 0.0
      %2440 = vmatprep.subr.mxu0 0.0
      %2441 = vmatpush2.xpose.msra.mxu0 0.0
      %2442 = vmatprep.subr.mxu0 0.0
      %2443 = vmatpush2.xpose.msra.mxu0 0.0
      %2444 = vmatprep.subr.mxu0 0.0
      %2445 = vmatpush2.xpose.msra.mxu0 0.0
      %2446 = vmatprep.subr.mxu0 0.0
      %2447 = vmatpush2.xpose.msra.mxu0 0.0
      %2448 = vmatprep.subr.mxu0 0.0
      %2449 = vmatpush2.xpose.msra.mxu0 0.0
      %2450 = vmatprep.subr.mxu0 0.0
      %2451 = vmatpush2.xpose.msra.mxu0 0.0
      %2452 = vmatprep.subr.mxu0 0.0
      %2453 = vmatpush2.xpose.msra.mxu0 0.0
      %2454 = vmatprep.subr.mxu0 0.0
      %2455 = vmatpush2.xpose.msra.mxu0 0.0
      %2456 = vmatprep.subr.mxu0 0.0
      %2457 = vmatpush2.xpose.msra.mxu0 0.0
      %2458 = vmatprep.subr.mxu0 0.0
      %2459 = vmatpush2.xpose.msra.mxu0 0.0
      %2460 = vmatprep.subr.mxu0 0.0
      %2461 = vmatpush2.xpose.msra.mxu0 0.0
      %2462 = vmatprep.subr.mxu0 0.0
      %2463 = vmatpush2.xpose.msra.mxu0 0.0
      %2464 = vmatprep.subr.mxu0 0.0
      %2465 = vmatpush2.xpose.msra.mxu0 0.0
      %2466 = vmatprep.mubr.f32.mxu0 0.0
      %2467 = vmatmul.mubr.f32.gmra.mxu0 %v2391
      %v2468 = vpop.f32.mrf.mxu0
      %v2469 = vadd.f32 0.0, %v2468
      %v2470 = vpop.f32.mrf.mxu0
      %2471 = vmatprep.mubr.f32.mxu0 0.0
      %2472 = vmatmul.mubr.f32.gmra.mxu0 %v2394
      %v2473 = vpop.f32.mrf.mxu0
      %v2474 = vadd.f32 0.0, %v2473
      %v2475 = vpop.f32.mrf.mxu0
      %2476 = vdwg.mxu0
      %v2478 = vsel %vm576, %v2073, 0
      %v2481 = vsel %vm576, %v2074, 0
      %v2484 = vsel %vm576, %v2105, 0
      %v2487 = vsel %vm576, %v2106, 0
      %2489 = vmatprep.subr.mxu0 0.0
      %2490 = vmatpush1.xpose.msra.mxu0 0.0
      %2491 = vmatprep.subr.mxu0 0.0
      %2492 = vmatpush1.xpose.msra.mxu0 0.0
      %2493 = vmatprep.subr.mxu0 0.0
      %2494 = vmatpush1.xpose.msra.mxu0 0.0
      %2495 = vmatprep.subr.mxu0 0.0
      %2496 = vmatpush1.xpose.msra.mxu0 0.0
      %2497 = vmatprep.subr.mxu0 0.0
      %2498 = vmatpush1.xpose.msra.mxu0 0.0
      %2499 = vmatprep.subr.mxu0 0.0
      %2500 = vmatpush1.xpose.msra.mxu0 0.0
      %2501 = vmatprep.subr.mxu0 0.0
      %2502 = vmatpush1.xpose.msra.mxu0 0.0
      %2503 = vmatprep.subr.mxu0 0.0
      %2504 = vmatpush1.xpose.msra.mxu0 0.0
      %2505 = vmatprep.subr.mxu0 0.0
      %2506 = vmatpush1.xpose.msra.mxu0 0.0
      %2507 = vmatprep.subr.mxu0 0.0
      %2508 = vmatpush1.xpose.msra.mxu0 0.0
      %2509 = vmatprep.subr.mxu0 0.0
      %2510 = vmatpush1.xpose.msra.mxu0 0.0
      %2511 = vmatprep.subr.mxu0 0.0
      %2512 = vmatpush1.xpose.msra.mxu0 0.0
      %2513 = vmatprep.subr.mxu0 0.0
      %2514 = vmatpush1.xpose.msra.mxu0 0.0
      %2515 = vmatprep.subr.mxu0 0.0
      %2516 = vmatpush1.xpose.msra.mxu0 0.0
      %2517 = vmatprep.subr.mxu0 0.0
      %2518 = vmatpush1.xpose.msra.mxu0 %v2487
      %2519 = vmatprep.subr.mxu0 0.0
      %2520 = vmatpush1.xpose.msra.mxu0 %v2484
      %2521 = vmatprep.subr.mxu0 0.0
      %2522 = vmatpush2.xpose.msra.mxu0 0.0
      %2523 = vmatprep.subr.mxu0 0.0
      %2524 = vmatpush2.xpose.msra.mxu0 0.0
      %2525 = vmatprep.subr.mxu0 0.0
      %2526 = vmatpush2.xpose.msra.mxu0 0.0
      %2527 = vmatprep.subr.mxu0 0.0
      %2528 = vmatpush2.xpose.msra.mxu0 0.0
      %2529 = vmatprep.subr.mxu0 0.0
      %2530 = vmatpush2.xpose.msra.mxu0 0.0
      %2531 = vmatprep.subr.mxu0 0.0
      %2532 = vmatpush2.xpose.msra.mxu0 0.0
      %2533 = vmatprep.subr.mxu0 0.0
      %2534 = vmatpush2.xpose.msra.mxu0 0.0
      %2535 = vmatprep.subr.mxu0 0.0
      %2536 = vmatpush2.xpose.msra.mxu0 0.0
      %2537 = vmatprep.subr.mxu0 0.0
      %2538 = vmatpush2.xpose.msra.mxu0 0.0
      %2539 = vmatprep.subr.mxu0 0.0
      %2540 = vmatpush2.xpose.msra.mxu0 0.0
      %2541 = vmatprep.subr.mxu0 0.0
      %2542 = vmatpush2.xpose.msra.mxu0 0.0
      %2543 = vmatprep.subr.mxu0 0.0
      %2544 = vmatpush2.xpose.msra.mxu0 0.0
      %2545 = vmatprep.subr.mxu0 0.0
      %2546 = vmatpush2.xpose.msra.mxu0 0.0
      %2547 = vmatprep.subr.mxu0 0.0
      %2548 = vmatpush2.xpose.msra.mxu0 0.0
      %2549 = vmatprep.subr.mxu0 0.0
      %2550 = vmatpush2.xpose.msra.mxu0 0.0
      %2551 = vmatprep.subr.mxu0 0.0
      %2552 = vmatpush2.xpose.msra.mxu0 0.0
      %2553 = vmatprep.mubr.f32.mxu0 0.0
      %2554 = vmatmul.mubr.f32.gmra.mxu0 %v2478
      %v2555 = vpop.f32.mrf.mxu0
      %v2556 = vadd.f32 0.0, %v2555
      %v2557 = vpop.f32.mrf.mxu0
      %2558 = vmatprep.mubr.f32.mxu0 0.0
      %2559 = vmatmul.mubr.f32.gmra.mxu0 %v2481
      %v2560 = vpop.f32.mrf.mxu0
      %v2561 = vadd.f32 0.0, %v2560
      %v2562 = vpop.f32.mrf.mxu0
      %2563 = vdwg.mxu0
      %v2565 = vsel %vm576, %v2075, 0
      %v2568 = vsel %vm576, %v2076, 0
      %v2571 = vsel %vm576, %v2107, 0
      %v2574 = vsel %vm576, %v2108, 0
      %2576 = vmatprep.subr.mxu0 0.0
      %2577 = vmatpush1.xpose.msra.mxu0 0.0
      %2578 = vmatprep.subr.mxu0 0.0
      %2579 = vmatpush1.xpose.msra.mxu0 0.0
      %2580 = vmatprep.subr.mxu0 0.0
      %2581 = vmatpush1.xpose.msra.mxu0 0.0
      %2582 = vmatprep.subr.mxu0 0.0
      %2583 = vmatpush1.xpose.msra.mxu0 0.0
      %2584 = vmatprep.subr.mxu0 0.0
      %2585 = vmatpush1.xpose.msra.mxu0 0.0
      %2586 = vmatprep.subr.mxu0 0.0
      %2587 = vmatpush1.xpose.msra.mxu0 0.0
      %2588 = vmatprep.subr.mxu0 0.0
      %2589 = vmatpush1.xpose.msra.mxu0 0.0
      %2590 = vmatprep.subr.mxu0 0.0
      %2591 = vmatpush1.xpose.msra.mxu0 0.0
      %2592 = vmatprep.subr.mxu0 0.0
      %2593 = vmatpush1.xpose.msra.mxu0 0.0
      %2594 = vmatprep.subr.mxu0 0.0
      %2595 = vmatpush1.xpose.msra.mxu0 0.0
      %2596 = vmatprep.subr.mxu0 0.0
      %2597 = vmatpush1.xpose.msra.mxu0 0.0
      %2598 = vmatprep.subr.mxu0 0.0
      %2599 = vmatpush1.xpose.msra.mxu0 0.0
      %2600 = vmatprep.subr.mxu0 0.0
      %2601 = vmatpush1.xpose.msra.mxu0 0.0
      %2602 = vmatprep.subr.mxu0 0.0
      %2603 = vmatpush1.xpose.msra.mxu0 0.0
      %2604 = vmatprep.subr.mxu0 0.0
      %2605 = vmatpush1.xpose.msra.mxu0 %v2574
      %2606 = vmatprep.subr.mxu0 0.0
      %2607 = vmatpush1.xpose.msra.mxu0 %v2571
      %2608 = vmatprep.subr.mxu0 0.0
      %2609 = vmatpush2.xpose.msra.mxu0 0.0
      %2610 = vmatprep.subr.mxu0 0.0
      %2611 = vmatpush2.xpose.msra.mxu0 0.0
      %2612 = vmatprep.subr.mxu0 0.0
      %2613 = vmatpush2.xpose.msra.mxu0 0.0
      %2614 = vmatprep.subr.mxu0 0.0
      %2615 = vmatpush2.xpose.msra.mxu0 0.0
      %2616 = vmatprep.subr.mxu0 0.0
      %2617 = vmatpush2.xpose.msra.mxu0 0.0
      %2618 = vmatprep.subr.mxu0 0.0
      %2619 = vmatpush2.xpose.msra.mxu0 0.0
      %2620 = vmatprep.subr.mxu0 0.0
      %2621 = vmatpush2.xpose.msra.mxu0 0.0
      %2622 = vmatprep.subr.mxu0 0.0
      %2623 = vmatpush2.xpose.msra.mxu0 0.0
      %2624 = vmatprep.subr.mxu0 0.0
      %2625 = vmatpush2.xpose.msra.mxu0 0.0
      %2626 = vmatprep.subr.mxu0 0.0
      %2627 = vmatpush2.xpose.msra.mxu0 0.0
      %2628 = vmatprep.subr.mxu0 0.0
      %2629 = vmatpush2.xpose.msra.mxu0 0.0
      %2630 = vmatprep.subr.mxu0 0.0
      %2631 = vmatpush2.xpose.msra.mxu0 0.0
      %2632 = vmatprep.subr.mxu0 0.0
      %2633 = vmatpush2.xpose.msra.mxu0 0.0
      %2634 = vmatprep.subr.mxu0 0.0
      %2635 = vmatpush2.xpose.msra.mxu0 0.0
      %2636 = vmatprep.subr.mxu0 0.0
      %2637 = vmatpush2.xpose.msra.mxu0 0.0
      %2638 = vmatprep.subr.mxu0 0.0
      %2639 = vmatpush2.xpose.msra.mxu0 0.0
      %2640 = vmatprep.mubr.f32.mxu0 0.0
      %2641 = vmatmul.mubr.f32.gmra.mxu0 %v2565
      %v2642 = vpop.f32.mrf.mxu0
      %v2643 = vadd.f32 0.0, %v2642
      %v2644 = vpop.f32.mrf.mxu0
      %2645 = vmatprep.mubr.f32.mxu0 0.0
      %2646 = vmatmul.mubr.f32.gmra.mxu0 %v2568
      %v2647 = vpop.f32.mrf.mxu0
      %v2648 = vadd.f32 0.0, %v2647
      %v2649 = vpop.f32.mrf.mxu0
      %2650 = vdwg.mxu0
      %v2652 = vsel %vm576, %v2077, 0
      %v2655 = vsel %vm576, %v2078, 0
      %v2658 = vsel %vm576, %v2109, 0
      %v2661 = vsel %vm576, %v2110, 0
      %2663 = vmatprep.subr.mxu0 0.0
      %2664 = vmatpush1.xpose.msra.mxu0 0.0
      %2665 = vmatprep.subr.mxu0 0.0
      %2666 = vmatpush1.xpose.msra.mxu0 0.0
      %2667 = vmatprep.subr.mxu0 0.0
      %2668 = vmatpush1.xpose.msra.mxu0 0.0
      %2669 = vmatprep.subr.mxu0 0.0
      %2670 = vmatpush1.xpose.msra.mxu0 0.0
      %2671 = vmatprep.subr.mxu0 0.0
      %2672 = vmatpush1.xpose.msra.mxu0 0.0
      %2673 = vmatprep.subr.mxu0 0.0
      %2674 = vmatpush1.xpose.msra.mxu0 0.0
      %2675 = vmatprep.subr.mxu0 0.0
      %2676 = vmatpush1.xpose.msra.mxu0 0.0
      %2677 = vmatprep.subr.mxu0 0.0
      %2678 = vmatpush1.xpose.msra.mxu0 0.0
      %2679 = vmatprep.subr.mxu0 0.0
      %2680 = vmatpush1.xpose.msra.mxu0 0.0
      %2681 = vmatprep.subr.mxu0 0.0
      %2682 = vmatpush1.xpose.msra.mxu0 0.0
      %2683 = vmatprep.subr.mxu0 0.0
      %2684 = vmatpush1.xpose.msra.mxu0 0.0
      %2685 = vmatprep.subr.mxu0 0.0
      %2686 = vmatpush1.xpose.msra.mxu0 0.0
      %2687 = vmatprep.subr.mxu0 0.0
      %2688 = vmatpush1.xpose.msra.mxu0 0.0
      %2689 = vmatprep.subr.mxu0 0.0
      %2690 = vmatpush1.xpose.msra.mxu0 0.0
      %2691 = vmatprep.subr.mxu0 0.0
      %2692 = vmatpush1.xpose.msra.mxu0 %v2661
      %2693 = vmatprep.subr.mxu0 0.0
      %2694 = vmatpush1.xpose.msra.mxu0 %v2658
      %2695 = vmatprep.subr.mxu0 0.0
      %2696 = vmatpush2.xpose.msra.mxu0 0.0
      %2697 = vmatprep.subr.mxu0 0.0
      %2698 = vmatpush2.xpose.msra.mxu0 0.0
      %2699 = vmatprep.subr.mxu0 0.0
      %2700 = vmatpush2.xpose.msra.mxu0 0.0
      %2701 = vmatprep.subr.mxu0 0.0
      %2702 = vmatpush2.xpose.msra.mxu0 0.0
      %2703 = vmatprep.subr.mxu0 0.0
      %2704 = vmatpush2.xpose.msra.mxu0 0.0
      %2705 = vmatprep.subr.mxu0 0.0
      %2706 = vmatpush2.xpose.msra.mxu0 0.0
      %2707 = vmatprep.subr.mxu0 0.0
      %2708 = vmatpush2.xpose.msra.mxu0 0.0
      %2709 = vmatprep.subr.mxu0 0.0
      %2710 = vmatpush2.xpose.msra.mxu0 0.0
      %2711 = vmatprep.subr.mxu0 0.0
      %2712 = vmatpush2.xpose.msra.mxu0 0.0
      %2713 = vmatprep.subr.mxu0 0.0
      %2714 = vmatpush2.xpose.msra.mxu0 0.0
      %2715 = vmatprep.subr.mxu0 0.0
      %2716 = vmatpush2.xpose.msra.mxu0 0.0
      %2717 = vmatprep.subr.mxu0 0.0
      %2718 = vmatpush2.xpose.msra.mxu0 0.0
      %2719 = vmatprep.subr.mxu0 0.0
      %2720 = vmatpush2.xpose.msra.mxu0 0.0
      %2721 = vmatprep.subr.mxu0 0.0
      %2722 = vmatpush2.xpose.msra.mxu0 0.0
      %2723 = vmatprep.subr.mxu0 0.0
      %2724 = vmatpush2.xpose.msra.mxu0 0.0
      %2725 = vmatprep.subr.mxu0 0.0
      %2726 = vmatpush2.xpose.msra.mxu0 0.0
      %2727 = vmatprep.mubr.f32.mxu0 0.0
      %2728 = vmatmul.mubr.f32.gmra.mxu0 %v2652
      %v2729 = vpop.f32.mrf.mxu0
      %v2730 = vadd.f32 0.0, %v2729
      %v2731 = vpop.f32.mrf.mxu0
      %2732 = vmatprep.mubr.f32.mxu0 0.0
      %2733 = vmatmul.mubr.f32.gmra.mxu0 %v2655
      %v2734 = vpop.f32.mrf.mxu0
      %v2735 = vadd.f32 0.0, %v2734
      %v2736 = vpop.f32.mrf.mxu0
      %2737 = vdwg.mxu0
      %v2739 = vsel %vm576, %v2079, 0
      %v2742 = vsel %vm576, %v2080, 0
      %v2745 = vsel %vm576, %v2111, 0
      %v2748 = vsel %vm576, %v2112, 0
      %2750 = vmatprep.subr.mxu0 0.0
      %2751 = vmatpush1.xpose.msra.mxu0 0.0
      %2752 = vmatprep.subr.mxu0 0.0
      %2753 = vmatpush1.xpose.msra.mxu0 0.0
      %2754 = vmatprep.subr.mxu0 0.0
      %2755 = vmatpush1.xpose.msra.mxu0 0.0
      %2756 = vmatprep.subr.mxu0 0.0
      %2757 = vmatpush1.xpose.msra.mxu0 0.0
      %2758 = vmatprep.subr.mxu0 0.0
      %2759 = vmatpush1.xpose.msra.mxu0 0.0
      %2760 = vmatprep.subr.mxu0 0.0
      %2761 = vmatpush1.xpose.msra.mxu0 0.0
      %2762 = vmatprep.subr.mxu0 0.0
      %2763 = vmatpush1.xpose.msra.mxu0 0.0
      %2764 = vmatprep.subr.mxu0 0.0
      %2765 = vmatpush1.xpose.msra.mxu0 0.0
      %2766 = vmatprep.subr.mxu0 0.0
      %2767 = vmatpush1.xpose.msra.mxu0 0.0
      %2768 = vmatprep.subr.mxu0 0.0
      %2769 = vmatpush1.xpose.msra.mxu0 0.0
      %2770 = vmatprep.subr.mxu0 0.0
      %2771 = vmatpush1.xpose.msra.mxu0 0.0
      %2772 = vmatprep.subr.mxu0 0.0
      %2773 = vmatpush1.xpose.msra.mxu0 0.0
      %2774 = vmatprep.subr.mxu0 0.0
      %2775 = vmatpush1.xpose.msra.mxu0 0.0
      %2776 = vmatprep.subr.mxu0 0.0
      %2777 = vmatpush1.xpose.msra.mxu0 0.0
      %2778 = vmatprep.subr.mxu0 0.0
      %2779 = vmatpush1.xpose.msra.mxu0 %v2748
      %2780 = vmatprep.subr.mxu0 0.0
      %2781 = vmatpush1.xpose.msra.mxu0 %v2745
      %2782 = vmatprep.subr.mxu0 0.0
      %2783 = vmatpush2.xpose.msra.mxu0 0.0
      %2784 = vmatprep.subr.mxu0 0.0
      %2785 = vmatpush2.xpose.msra.mxu0 0.0
      %2786 = vmatprep.subr.mxu0 0.0
      %2787 = vmatpush2.xpose.msra.mxu0 0.0
      %2788 = vmatprep.subr.mxu0 0.0
      %2789 = vmatpush2.xpose.msra.mxu0 0.0
      %2790 = vmatprep.subr.mxu0 0.0
      %2791 = vmatpush2.xpose.msra.mxu0 0.0
      %2792 = vmatprep.subr.mxu0 0.0
      %2793 = vmatpush2.xpose.msra.mxu0 0.0
      %2794 = vmatprep.subr.mxu0 0.0
      %2795 = vmatpush2.xpose.msra.mxu0 0.0
      %2796 = vmatprep.subr.mxu0 0.0
      %2797 = vmatpush2.xpose.msra.mxu0 0.0
      %2798 = vmatprep.subr.mxu0 0.0
      %2799 = vmatpush2.xpose.msra.mxu0 0.0
      %2800 = vmatprep.subr.mxu0 0.0
      %2801 = vmatpush2.xpose.msra.mxu0 0.0
      %2802 = vmatprep.subr.mxu0 0.0
      %2803 = vmatpush2.xpose.msra.mxu0 0.0
      %2804 = vmatprep.subr.mxu0 0.0
      %2805 = vmatpush2.xpose.msra.mxu0 0.0
      %2806 = vmatprep.subr.mxu0 0.0
      %2807 = vmatpush2.xpose.msra.mxu0 0.0
      %2808 = vmatprep.subr.mxu0 0.0
      %2809 = vmatpush2.xpose.msra.mxu0 0.0
      %2810 = vmatprep.subr.mxu0 0.0
      %2811 = vmatpush2.xpose.msra.mxu0 0.0
      %2812 = vmatprep.subr.mxu0 0.0
      %2813 = vmatpush2.xpose.msra.mxu0 0.0
      %2814 = vmatprep.mubr.f32.mxu0 0.0
      %2815 = vmatmul.mubr.f32.gmra.mxu0 %v2739
      %v2816 = vpop.f32.mrf.mxu0
      %v2817 = vadd.f32 0.0, %v2816
      %v2818 = vpop.f32.mrf.mxu0
      %2819 = vmatprep.mubr.f32.mxu0 0.0
      %2820 = vmatmul.mubr.f32.gmra.mxu0 %v2742
      %v2821 = vpop.f32.mrf.mxu0
      %v2822 = vadd.f32 0.0, %v2821
      %v2823 = vpop.f32.mrf.mxu0
      %2824 = vdwg.mxu0
      %v2826 = vsel %vm576, %v2081, 0
      %v2829 = vsel %vm576, %v2082, 0
      %v2832 = vsel %vm576, %v2113, 0
      %v2835 = vsel %vm576, %v2114, 0
      %2837 = vmatprep.subr.mxu0 0.0
      %2838 = vmatpush1.xpose.msra.mxu0 0.0
      %2839 = vmatprep.subr.mxu0 0.0
      %2840 = vmatpush1.xpose.msra.mxu0 0.0
      %2841 = vmatprep.subr.mxu0 0.0
      %2842 = vmatpush1.xpose.msra.mxu0 0.0
      %2843 = vmatprep.subr.mxu0 0.0
      %2844 = vmatpush1.xpose.msra.mxu0 0.0
      %2845 = vmatprep.subr.mxu0 0.0
      %2846 = vmatpush1.xpose.msra.mxu0 0.0
      %2847 = vmatprep.subr.mxu0 0.0
      %2848 = vmatpush1.xpose.msra.mxu0 0.0
      %2849 = vmatprep.subr.mxu0 0.0
      %2850 = vmatpush1.xpose.msra.mxu0 0.0
      %2851 = vmatprep.subr.mxu0 0.0
      %2852 = vmatpush1.xpose.msra.mxu0 0.0
      %2853 = vmatprep.subr.mxu0 0.0
      %2854 = vmatpush1.xpose.msra.mxu0 0.0
      %2855 = vmatprep.subr.mxu0 0.0
      %2856 = vmatpush1.xpose.msra.mxu0 0.0
      %2857 = vmatprep.subr.mxu0 0.0
      %2858 = vmatpush1.xpose.msra.mxu0 0.0
      %2859 = vmatprep.subr.mxu0 0.0
      %2860 = vmatpush1.xpose.msra.mxu0 0.0
      %2861 = vmatprep.subr.mxu0 0.0
      %2862 = vmatpush1.xpose.msra.mxu0 0.0
      %2863 = vmatprep.subr.mxu0 0.0
      %2864 = vmatpush1.xpose.msra.mxu0 0.0
      %2865 = vmatprep.subr.mxu0 0.0
      %2866 = vmatpush1.xpose.msra.mxu0 %v2835
      %2867 = vmatprep.subr.mxu0 0.0
      %2868 = vmatpush1.xpose.msra.mxu0 %v2832
      %2869 = vmatprep.subr.mxu0 0.0
      %2870 = vmatpush2.xpose.msra.mxu0 0.0
      %2871 = vmatprep.subr.mxu0 0.0
      %2872 = vmatpush2.xpose.msra.mxu0 0.0
      %2873 = vmatprep.subr.mxu0 0.0
      %2874 = vmatpush2.xpose.msra.mxu0 0.0
      %2875 = vmatprep.subr.mxu0 0.0
      %2876 = vmatpush2.xpose.msra.mxu0 0.0
      %2877 = vmatprep.subr.mxu0 0.0
      %2878 = vmatpush2.xpose.msra.mxu0 0.0
      %2879 = vmatprep.subr.mxu0 0.0
      %2880 = vmatpush2.xpose.msra.mxu0 0.0
      %2881 = vmatprep.subr.mxu0 0.0
      %2882 = vmatpush2.xpose.msra.mxu0 0.0
      %2883 = vmatprep.subr.mxu0 0.0
      %2884 = vmatpush2.xpose.msra.mxu0 0.0
      %2885 = vmatprep.subr.mxu0 0.0
      %2886 = vmatpush2.xpose.msra.mxu0 0.0
      %2887 = vmatprep.subr.mxu0 0.0
      %2888 = vmatpush2.xpose.msra.mxu0 0.0
      %2889 = vmatprep.subr.mxu0 0.0
      %2890 = vmatpush2.xpose.msra.mxu0 0.0
      %2891 = vmatprep.subr.mxu0 0.0
      %2892 = vmatpush2.xpose.msra.mxu0 0.0
      %2893 = vmatprep.subr.mxu0 0.0
      %2894 = vmatpush2.xpose.msra.mxu0 0.0
      %2895 = vmatprep.subr.mxu0 0.0
      %2896 = vmatpush2.xpose.msra.mxu0 0.0
      %2897 = vmatprep.subr.mxu0 0.0
      %2898 = vmatpush2.xpose.msra.mxu0 0.0
      %2899 = vmatprep.subr.mxu0 0.0
      %2900 = vmatpush2.xpose.msra.mxu0 0.0
      %2901 = vmatprep.mubr.f32.mxu0 0.0
      %2902 = vmatmul.mubr.f32.gmra.mxu0 %v2826
      %v2903 = vpop.f32.mrf.mxu0
      %v2904 = vadd.f32 0.0, %v2903
      %v2905 = vpop.f32.mrf.mxu0
      %2906 = vmatprep.mubr.f32.mxu0 0.0
      %2907 = vmatmul.mubr.f32.gmra.mxu0 %v2829
      %v2908 = vpop.f32.mrf.mxu0
      %v2909 = vadd.f32 0.0, %v2908
      %v2910 = vpop.f32.mrf.mxu0
      %2911 = vdwg.mxu0
      %v2913 = vsel %vm576, %v2083, 0
      %v2916 = vsel %vm576, %v2084, 0
      %v2919 = vsel %vm576, %v2115, 0
      %v2922 = vsel %vm576, %v2116, 0
      %2924 = vmatprep.subr.mxu0 0.0
      %2925 = vmatpush1.xpose.msra.mxu0 0.0
      %2926 = vmatprep.subr.mxu0 0.0
      %2927 = vmatpush1.xpose.msra.mxu0 0.0
      %2928 = vmatprep.subr.mxu0 0.0
      %2929 = vmatpush1.xpose.msra.mxu0 0.0
      %2930 = vmatprep.subr.mxu0 0.0
      %2931 = vmatpush1.xpose.msra.mxu0 0.0
      %2932 = vmatprep.subr.mxu0 0.0
      %2933 = vmatpush1.xpose.msra.mxu0 0.0
      %2934 = vmatprep.subr.mxu0 0.0
      %2935 = vmatpush1.xpose.msra.mxu0 0.0
      %2936 = vmatprep.subr.mxu0 0.0
      %2937 = vmatpush1.xpose.msra.mxu0 0.0
      %2938 = vmatprep.subr.mxu0 0.0
      %2939 = vmatpush1.xpose.msra.mxu0 0.0
      %2940 = vmatprep.subr.mxu0 0.0
      %2941 = vmatpush1.xpose.msra.mxu0 0.0
      %2942 = vmatprep.subr.mxu0 0.0
      %2943 = vmatpush1.xpose.msra.mxu0 0.0
      %2944 = vmatprep.subr.mxu0 0.0
      %2945 = vmatpush1.xpose.msra.mxu0 0.0
      %2946 = vmatprep.subr.mxu0 0.0
      %2947 = vmatpush1.xpose.msra.mxu0 0.0
      %2948 = vmatprep.subr.mxu0 0.0
      %2949 = vmatpush1.xpose.msra.mxu0 0.0
      %2950 = vmatprep.subr.mxu0 0.0
      %2951 = vmatpush1.xpose.msra.mxu0 0.0
      %2952 = vmatprep.subr.mxu0 0.0
      %2953 = vmatpush1.xpose.msra.mxu0 %v2922
      %2954 = vmatprep.subr.mxu0 0.0
      %2955 = vmatpush1.xpose.msra.mxu0 %v2919
      %2956 = vmatprep.subr.mxu0 0.0
      %2957 = vmatpush2.xpose.msra.mxu0 0.0
      %2958 = vmatprep.subr.mxu0 0.0
      %2959 = vmatpush2.xpose.msra.mxu0 0.0
      %2960 = vmatprep.subr.mxu0 0.0
      %2961 = vmatpush2.xpose.msra.mxu0 0.0
      %2962 = vmatprep.subr.mxu0 0.0
      %2963 = vmatpush2.xpose.msra.mxu0 0.0
      %2964 = vmatprep.subr.mxu0 0.0
      %2965 = vmatpush2.xpose.msra.mxu0 0.0
      %2966 = vmatprep.subr.mxu0 0.0
      %2967 = vmatpush2.xpose.msra.mxu0 0.0
      %2968 = vmatprep.subr.mxu0 0.0
      %2969 = vmatpush2.xpose.msra.mxu0 0.0
      %2970 = vmatprep.subr.mxu0 0.0
      %2971 = vmatpush2.xpose.msra.mxu0 0.0
      %2972 = vmatprep.subr.mxu0 0.0
      %2973 = vmatpush2.xpose.msra.mxu0 0.0
      %2974 = vmatprep.subr.mxu0 0.0
      %2975 = vmatpush2.xpose.msra.mxu0 0.0
      %2976 = vmatprep.subr.mxu0 0.0
      %2977 = vmatpush2.xpose.msra.mxu0 0.0
      %2978 = vmatprep.subr.mxu0 0.0
      %2979 = vmatpush2.xpose.msra.mxu0 0.0
      %2980 = vmatprep.subr.mxu0 0.0
      %2981 = vmatpush2.xpose.msra.mxu0 0.0
      %2982 = vmatprep.subr.mxu0 0.0
      %2983 = vmatpush2.xpose.msra.mxu0 0.0
      %2984 = vmatprep.subr.mxu0 0.0
      %2985 = vmatpush2.xpose.msra.mxu0 0.0
      %2986 = vmatprep.subr.mxu0 0.0
      %2987 = vmatpush2.xpose.msra.mxu0 0.0
      %2988 = vmatprep.mubr.f32.mxu0 0.0
      %2989 = vmatmul.mubr.f32.gmra.mxu0 %v2913
      %v2990 = vpop.f32.mrf.mxu0
      %v2991 = vadd.f32 0.0, %v2990
      %v2992 = vpop.f32.mrf.mxu0
      %2993 = vmatprep.mubr.f32.mxu0 0.0
      %2994 = vmatmul.mubr.f32.gmra.mxu0 %v2916
      %v2995 = vpop.f32.mrf.mxu0
      %v2996 = vadd.f32 0.0, %v2995
      %v2997 = vpop.f32.mrf.mxu0
      %2998 = vdwg.mxu0
      %v3000 = vsel %vm576, %v2085, 0
      %v3003 = vsel %vm576, %v2086, 0
      %v3006 = vsel %vm576, %v2117, 0
      %v3009 = vsel %vm576, %v2118, 0
      %3011 = vmatprep.subr.mxu0 0.0
      %3012 = vmatpush1.xpose.msra.mxu0 0.0
      %3013 = vmatprep.subr.mxu0 0.0
      %3014 = vmatpush1.xpose.msra.mxu0 0.0
      %3015 = vmatprep.subr.mxu0 0.0
      %3016 = vmatpush1.xpose.msra.mxu0 0.0
      %3017 = vmatprep.subr.mxu0 0.0
      %3018 = vmatpush1.xpose.msra.mxu0 0.0
      %3019 = vmatprep.subr.mxu0 0.0
      %3020 = vmatpush1.xpose.msra.mxu0 0.0
      %3021 = vmatprep.subr.mxu0 0.0
      %3022 = vmatpush1.xpose.msra.mxu0 0.0
      %3023 = vmatprep.subr.mxu0 0.0
      %3024 = vmatpush1.xpose.msra.mxu0 0.0
      %3025 = vmatprep.subr.mxu0 0.0
      %3026 = vmatpush1.xpose.msra.mxu0 0.0
      %3027 = vmatprep.subr.mxu0 0.0
      %3028 = vmatpush1.xpose.msra.mxu0 0.0
      %3029 = vmatprep.subr.mxu0 0.0
      %3030 = vmatpush1.xpose.msra.mxu0 0.0
      %3031 = vmatprep.subr.mxu0 0.0
      %3032 = vmatpush1.xpose.msra.mxu0 0.0
      %3033 = vmatprep.subr.mxu0 0.0
      %3034 = vmatpush1.xpose.msra.mxu0 0.0
      %3035 = vmatprep.subr.mxu0 0.0
      %3036 = vmatpush1.xpose.msra.mxu0 0.0
      %3037 = vmatprep.subr.mxu0 0.0
      %3038 = vmatpush1.xpose.msra.mxu0 0.0
      %3039 = vmatprep.subr.mxu0 0.0
      %3040 = vmatpush1.xpose.msra.mxu0 %v3009
      %3041 = vmatprep.subr.mxu0 0.0
      %3042 = vmatpush1.xpose.msra.mxu0 %v3006
      %3043 = vmatprep.subr.mxu0 0.0
      %3044 = vmatpush2.xpose.msra.mxu0 0.0
      %3045 = vmatprep.subr.mxu0 0.0
      %3046 = vmatpush2.xpose.msra.mxu0 0.0
      %3047 = vmatprep.subr.mxu0 0.0
      %3048 = vmatpush2.xpose.msra.mxu0 0.0
      %3049 = vmatprep.subr.mxu0 0.0
      %3050 = vmatpush2.xpose.msra.mxu0 0.0
      %3051 = vmatprep.subr.mxu0 0.0
      %3052 = vmatpush2.xpose.msra.mxu0 0.0
      %3053 = vmatprep.subr.mxu0 0.0
      %3054 = vmatpush2.xpose.msra.mxu0 0.0
      %3055 = vmatprep.subr.mxu0 0.0
      %3056 = vmatpush2.xpose.msra.mxu0 0.0
      %3057 = vmatprep.subr.mxu0 0.0
      %3058 = vmatpush2.xpose.msra.mxu0 0.0
      %3059 = vmatprep.subr.mxu0 0.0
      %3060 = vmatpush2.xpose.msra.mxu0 0.0
      %3061 = vmatprep.subr.mxu0 0.0
      %3062 = vmatpush2.xpose.msra.mxu0 0.0
      %3063 = vmatprep.subr.mxu0 0.0
      %3064 = vmatpush2.xpose.msra.mxu0 0.0
      %3065 = vmatprep.subr.mxu0 0.0
      %3066 = vmatpush2.xpose.msra.mxu0 0.0
      %3067 = vmatprep.subr.mxu0 0.0
      %3068 = vmatpush2.xpose.msra.mxu0 0.0
      %3069 = vmatprep.subr.mxu0 0.0
      %3070 = vmatpush2.xpose.msra.mxu0 0.0
      %3071 = vmatprep.subr.mxu0 0.0
      %3072 = vmatpush2.xpose.msra.mxu0 0.0
      %3073 = vmatprep.subr.mxu0 0.0
      %3074 = vmatpush2.xpose.msra.mxu0 0.0
      %3075 = vmatprep.mubr.f32.mxu0 0.0
      %3076 = vmatmul.mubr.f32.gmra.mxu0 %v3000
      %v3077 = vpop.f32.mrf.mxu0
      %v3078 = vadd.f32 0.0, %v3077
      %v3079 = vpop.f32.mrf.mxu0
      %3080 = vmatprep.mubr.f32.mxu0 0.0
      %3081 = vmatmul.mubr.f32.gmra.mxu0 %v3003
      %v3082 = vpop.f32.mrf.mxu0
      %v3083 = vadd.f32 0.0, %v3082
      %v3084 = vpop.f32.mrf.mxu0
      %3085 = vdwg.mxu0
      %v3087 = vsel %vm576, %v2087, 0
      %v3090 = vsel %vm576, %v2088, 0
      %v3093 = vsel %vm576, %v2119, 0
      %v3096 = vsel %vm576, %v2120, 0
      %3098 = vmatprep.subr.mxu0 0.0
      %3099 = vmatpush1.xpose.msra.mxu0 0.0
      %3100 = vmatprep.subr.mxu0 0.0
      %3101 = vmatpush1.xpose.msra.mxu0 0.0
      %3102 = vmatprep.subr.mxu0 0.0
      %3103 = vmatpush1.xpose.msra.mxu0 0.0
      %3104 = vmatprep.subr.mxu0 0.0
      %3105 = vmatpush1.xpose.msra.mxu0 0.0
      %3106 = vmatprep.subr.mxu0 0.0
      %3107 = vmatpush1.xpose.msra.mxu0 0.0
      %3108 = vmatprep.subr.mxu0 0.0
      %3109 = vmatpush1.xpose.msra.mxu0 0.0
      %3110 = vmatprep.subr.mxu0 0.0
      %3111 = vmatpush1.xpose.msra.mxu0 0.0
      %3112 = vmatprep.subr.mxu0 0.0
      %3113 = vmatpush1.xpose.msra.mxu0 0.0
      %3114 = vmatprep.subr.mxu0 0.0
      %3115 = vmatpush1.xpose.msra.mxu0 0.0
      %3116 = vmatprep.subr.mxu0 0.0
      %3117 = vmatpush1.xpose.msra.mxu0 0.0
      %3118 = vmatprep.subr.mxu0 0.0
      %3119 = vmatpush1.xpose.msra.mxu0 0.0
      %3120 = vmatprep.subr.mxu0 0.0
      %3121 = vmatpush1.xpose.msra.mxu0 0.0
      %3122 = vmatprep.subr.mxu0 0.0
      %3123 = vmatpush1.xpose.msra.mxu0 0.0
      %3124 = vmatprep.subr.mxu0 0.0
      %3125 = vmatpush1.xpose.msra.mxu0 0.0
      %3126 = vmatprep.subr.mxu0 0.0
      %3127 = vmatpush1.xpose.msra.mxu0 %v3096
      %3128 = vmatprep.subr.mxu0 0.0
      %3129 = vmatpush1.xpose.msra.mxu0 %v3093
      %3130 = vmatprep.subr.mxu0 0.0
      %3131 = vmatpush2.xpose.msra.mxu0 0.0
      %3132 = vmatprep.subr.mxu0 0.0
      %3133 = vmatpush2.xpose.msra.mxu0 0.0
      %3134 = vmatprep.subr.mxu0 0.0
      %3135 = vmatpush2.xpose.msra.mxu0 0.0
      %3136 = vmatprep.subr.mxu0 0.0
      %3137 = vmatpush2.xpose.msra.mxu0 0.0
      %3138 = vmatprep.subr.mxu0 0.0
      %3139 = vmatpush2.xpose.msra.mxu0 0.0
      %3140 = vmatprep.subr.mxu0 0.0
      %3141 = vmatpush2.xpose.msra.mxu0 0.0
      %3142 = vmatprep.subr.mxu0 0.0
      %3143 = vmatpush2.xpose.msra.mxu0 0.0
      %3144 = vmatprep.subr.mxu0 0.0
      %3145 = vmatpush2.xpose.msra.mxu0 0.0
      %3146 = vmatprep.subr.mxu0 0.0
      %3147 = vmatpush2.xpose.msra.mxu0 0.0
      %3148 = vmatprep.subr.mxu0 0.0
      %3149 = vmatpush2.xpose.msra.mxu0 0.0
      %3150 = vmatprep.subr.mxu0 0.0
      %3151 = vmatpush2.xpose.msra.mxu0 0.0
      %3152 = vmatprep.subr.mxu0 0.0
      %3153 = vmatpush2.xpose.msra.mxu0 0.0
      %3154 = vmatprep.subr.mxu0 0.0
      %3155 = vmatpush2.xpose.msra.mxu0 0.0
      %3156 = vmatprep.subr.mxu0 0.0
      %3157 = vmatpush2.xpose.msra.mxu0 0.0
      %3158 = vmatprep.subr.mxu0 0.0
      %3159 = vmatpush2.xpose.msra.mxu0 0.0
      %3160 = vmatprep.subr.mxu0 0.0
      %3161 = vmatpush2.xpose.msra.mxu0 0.0
      %3162 = vmatprep.mubr.f32.mxu0 0.0
      %3163 = vmatmul.mubr.f32.gmra.mxu0 %v3087
      %v3164 = vpop.f32.mrf.mxu0
      %v3165 = vadd.f32 0.0, %v3164
      %v3166 = vpop.f32.mrf.mxu0
      %3167 = vmatprep.mubr.f32.mxu0 0.0
      %3168 = vmatmul.mubr.f32.gmra.mxu0 %v3090
      %v3169 = vpop.f32.mrf.mxu0
      %v3170 = vadd.f32 0.0, %v3169
      %v3171 = vpop.f32.mrf.mxu0
      %3172 = vdwg.mxu0
      %v3174 = vsel %vm576, %v2089, 0
      %v3177 = vsel %vm576, %v2090, 0
      %v3180 = vsel %vm576, %v2121, 0
      %v3183 = vsel %vm576, %v2122, 0
      %3185 = vmatprep.subr.mxu0 0.0
      %3186 = vmatpush1.xpose.msra.mxu0 0.0
      %3187 = vmatprep.subr.mxu0 0.0
      %3188 = vmatpush1.xpose.msra.mxu0 0.0
      %3189 = vmatprep.subr.mxu0 0.0
      %3190 = vmatpush1.xpose.msra.mxu0 0.0
      %3191 = vmatprep.subr.mxu0 0.0
      %3192 = vmatpush1.xpose.msra.mxu0 0.0
      %3193 = vmatprep.subr.mxu0 0.0
      %3194 = vmatpush1.xpose.msra.mxu0 0.0
      %3195 = vmatprep.subr.mxu0 0.0
      %3196 = vmatpush1.xpose.msra.mxu0 0.0
      %3197 = vmatprep.subr.mxu0 0.0
      %3198 = vmatpush1.xpose.msra.mxu0 0.0
      %3199 = vmatprep.subr.mxu0 0.0
      %3200 = vmatpush1.xpose.msra.mxu0 0.0
      %3201 = vmatprep.subr.mxu0 0.0
      %3202 = vmatpush1.xpose.msra.mxu0 0.0
      %3203 = vmatprep.subr.mxu0 0.0
      %3204 = vmatpush1.xpose.msra.mxu0 0.0
      %3205 = vmatprep.subr.mxu0 0.0
      %3206 = vmatpush1.xpose.msra.mxu0 0.0
      %3207 = vmatprep.subr.mxu0 0.0
      %3208 = vmatpush1.xpose.msra.mxu0 0.0
      %3209 = vmatprep.subr.mxu0 0.0
      %3210 = vmatpush1.xpose.msra.mxu0 0.0
      %3211 = vmatprep.subr.mxu0 0.0
      %3212 = vmatpush1.xpose.msra.mxu0 0.0
      %3213 = vmatprep.subr.mxu0 0.0
      %3214 = vmatpush1.xpose.msra.mxu0 %v3183
      %3215 = vmatprep.subr.mxu0 0.0
      %3216 = vmatpush1.xpose.msra.mxu0 %v3180
      %3217 = vmatprep.subr.mxu0 0.0
      %3218 = vmatpush2.xpose.msra.mxu0 0.0
      %3219 = vmatprep.subr.mxu0 0.0
      %3220 = vmatpush2.xpose.msra.mxu0 0.0
      %3221 = vmatprep.subr.mxu0 0.0
      %3222 = vmatpush2.xpose.msra.mxu0 0.0
      %3223 = vmatprep.subr.mxu0 0.0
      %3224 = vmatpush2.xpose.msra.mxu0 0.0
      %3225 = vmatprep.subr.mxu0 0.0
      %3226 = vmatpush2.xpose.msra.mxu0 0.0
      %3227 = vmatprep.subr.mxu0 0.0
      %3228 = vmatpush2.xpose.msra.mxu0 0.0
      %3229 = vmatprep.subr.mxu0 0.0
      %3230 = vmatpush2.xpose.msra.mxu0 0.0
      %3231 = vmatprep.subr.mxu0 0.0
      %3232 = vmatpush2.xpose.msra.mxu0 0.0
      %3233 = vmatprep.subr.mxu0 0.0
      %3234 = vmatpush2.xpose.msra.mxu0 0.0
      %3235 = vmatprep.subr.mxu0 0.0
      %3236 = vmatpush2.xpose.msra.mxu0 0.0
      %3237 = vmatprep.subr.mxu0 0.0
      %3238 = vmatpush2.xpose.msra.mxu0 0.0
      %3239 = vmatprep.subr.mxu0 0.0
      %3240 = vmatpush2.xpose.msra.mxu0 0.0
      %3241 = vmatprep.subr.mxu0 0.0
      %3242 = vmatpush2.xpose.msra.mxu0 0.0
      %3243 = vmatprep.subr.mxu0 0.0
      %3244 = vmatpush2.xpose.msra.mxu0 0.0
      %3245 = vmatprep.subr.mxu0 0.0
      %3246 = vmatpush2.xpose.msra.mxu0 0.0
      %3247 = vmatprep.subr.mxu0 0.0
      %3248 = vmatpush2.xpose.msra.mxu0 0.0
      %3249 = vmatprep.mubr.f32.mxu0 0.0
      %3250 = vmatmul.mubr.f32.gmra.mxu0 %v3174
      %v3251 = vpop.f32.mrf.mxu0
      %v3252 = vadd.f32 0.0, %v3251
      %v3253 = vpop.f32.mrf.mxu0
      %3254 = vmatprep.mubr.f32.mxu0 0.0
      %3255 = vmatmul.mubr.f32.gmra.mxu0 %v3177
      %v3256 = vpop.f32.mrf.mxu0
      %v3257 = vadd.f32 0.0, %v3256
      %v3258 = vpop.f32.mrf.mxu0
      %3259 = vdwg.mxu0
      %v3261 = vsel %vm576, %v2091, 0
      %v3264 = vsel %vm576, %v2092, 0
      %v3267 = vsel %vm576, %v2123, 0
      %v3270 = vsel %vm576, %v2124, 0
      %3272 = vmatprep.subr.mxu0 0.0
      %3273 = vmatpush1.xpose.msra.mxu0 0.0
      %3274 = vmatprep.subr.mxu0 0.0
      %3275 = vmatpush1.xpose.msra.mxu0 0.0
      %3276 = vmatprep.subr.mxu0 0.0
      %3277 = vmatpush1.xpose.msra.mxu0 0.0
      %3278 = vmatprep.subr.mxu0 0.0
      %3279 = vmatpush1.xpose.msra.mxu0 0.0
      %3280 = vmatprep.subr.mxu0 0.0
      %3281 = vmatpush1.xpose.msra.mxu0 0.0
      %3282 = vmatprep.subr.mxu0 0.0
      %3283 = vmatpush1.xpose.msra.mxu0 0.0
      %3284 = vmatprep.subr.mxu0 0.0
      %3285 = vmatpush1.xpose.msra.mxu0 0.0
      %3286 = vmatprep.subr.mxu0 0.0
      %3287 = vmatpush1.xpose.msra.mxu0 0.0
      %3288 = vmatprep.subr.mxu0 0.0
      %3289 = vmatpush1.xpose.msra.mxu0 0.0
      %3290 = vmatprep.subr.mxu0 0.0
      %3291 = vmatpush1.xpose.msra.mxu0 0.0
      %3292 = vmatprep.subr.mxu0 0.0
      %3293 = vmatpush1.xpose.msra.mxu0 0.0
      %3294 = vmatprep.subr.mxu0 0.0
      %3295 = vmatpush1.xpose.msra.mxu0 0.0
      %3296 = vmatprep.subr.mxu0 0.0
      %3297 = vmatpush1.xpose.msra.mxu0 0.0
      %3298 = vmatprep.subr.mxu0 0.0
      %3299 = vmatpush1.xpose.msra.mxu0 0.0
      %3300 = vmatprep.subr.mxu0 0.0
      %3301 = vmatpush1.xpose.msra.mxu0 %v3270
      %3302 = vmatprep.subr.mxu0 0.0
      %3303 = vmatpush1.xpose.msra.mxu0 %v3267
      %3304 = vmatprep.subr.mxu0 0.0
      %3305 = vmatpush2.xpose.msra.mxu0 0.0
      %3306 = vmatprep.subr.mxu0 0.0
      %3307 = vmatpush2.xpose.msra.mxu0 0.0
      %3308 = vmatprep.subr.mxu0 0.0
      %3309 = vmatpush2.xpose.msra.mxu0 0.0
      %3310 = vmatprep.subr.mxu0 0.0
      %3311 = vmatpush2.xpose.msra.mxu0 0.0
      %3312 = vmatprep.subr.mxu0 0.0
      %3313 = vmatpush2.xpose.msra.mxu0 0.0
      %3314 = vmatprep.subr.mxu0 0.0
      %3315 = vmatpush2.xpose.msra.mxu0 0.0
      %3316 = vmatprep.subr.mxu0 0.0
      %3317 = vmatpush2.xpose.msra.mxu0 0.0
      %3318 = vmatprep.subr.mxu0 0.0
      %3319 = vmatpush2.xpose.msra.mxu0 0.0
      %3320 = vmatprep.subr.mxu0 0.0
      %3321 = vmatpush2.xpose.msra.mxu0 0.0
      %3322 = vmatprep.subr.mxu0 0.0
      %3323 = vmatpush2.xpose.msra.mxu0 0.0
      %3324 = vmatprep.subr.mxu0 0.0
      %3325 = vmatpush2.xpose.msra.mxu0 0.0
      %3326 = vmatprep.subr.mxu0 0.0
      %3327 = vmatpush2.xpose.msra.mxu0 0.0
      %3328 = vmatprep.subr.mxu0 0.0
      %3329 = vmatpush2.xpose.msra.mxu0 0.0
      %3330 = vmatprep.subr.mxu0 0.0
      %3331 = vmatpush2.xpose.msra.mxu0 0.0
      %3332 = vmatprep.subr.mxu0 0.0
      %3333 = vmatpush2.xpose.msra.mxu0 0.0
      %3334 = vmatprep.subr.mxu0 0.0
      %3335 = vmatpush2.xpose.msra.mxu0 0.0
      %3336 = vmatprep.mubr.f32.mxu0 0.0
      %3337 = vmatmul.mubr.f32.gmra.mxu0 %v3261
      %v3338 = vpop.f32.mrf.mxu0
      %v3339 = vadd.f32 0.0, %v3338
      %v3340 = vpop.f32.mrf.mxu0
      %3341 = vmatprep.mubr.f32.mxu0 0.0
      %3342 = vmatmul.mubr.f32.gmra.mxu0 %v3264
      %v3343 = vpop.f32.mrf.mxu0
      %v3344 = vadd.f32 0.0, %v3343
      %v3345 = vpop.f32.mrf.mxu0
      %3346 = vdwg.mxu0
      %v3348 = vsel %vm576, %v2093, 0
      %v3351 = vsel %vm576, %v2094, 0
      %v3354 = vsel %vm576, %v2125, 0
      %v3357 = vsel %vm576, %v2126, 0
      %3359 = vmatprep.subr.mxu0 0.0
      %3360 = vmatpush1.xpose.msra.mxu0 0.0
      %3361 = vmatprep.subr.mxu0 0.0
      %3362 = vmatpush1.xpose.msra.mxu0 0.0
      %3363 = vmatprep.subr.mxu0 0.0
      %3364 = vmatpush1.xpose.msra.mxu0 0.0
      %3365 = vmatprep.subr.mxu0 0.0
      %3366 = vmatpush1.xpose.msra.mxu0 0.0
      %3367 = vmatprep.subr.mxu0 0.0
      %3368 = vmatpush1.xpose.msra.mxu0 0.0
      %3369 = vmatprep.subr.mxu0 0.0
      %3370 = vmatpush1.xpose.msra.mxu0 0.0
      %3371 = vmatprep.subr.mxu0 0.0
      %3372 = vmatpush1.xpose.msra.mxu0 0.0
      %3373 = vmatprep.subr.mxu0 0.0
      %3374 = vmatpush1.xpose.msra.mxu0 0.0
      %3375 = vmatprep.subr.mxu0 0.0
      %3376 = vmatpush1.xpose.msra.mxu0 0.0
      %3377 = vmatprep.subr.mxu0 0.0
      %3378 = vmatpush1.xpose.msra.mxu0 0.0
      %3379 = vmatprep.subr.mxu0 0.0
      %3380 = vmatpush1.xpose.msra.mxu0 0.0
      %3381 = vmatprep.subr.mxu0 0.0
      %3382 = vmatpush1.xpose.msra.mxu0 0.0
      %3383 = vmatprep.subr.mxu0 0.0
      %3384 = vmatpush1.xpose.msra.mxu0 0.0
      %3385 = vmatprep.subr.mxu0 0.0
      %3386 = vmatpush1.xpose.msra.mxu0 0.0
      %3387 = vmatprep.subr.mxu0 0.0
      %3388 = vmatpush1.xpose.msra.mxu0 %v3357
      %3389 = vmatprep.subr.mxu0 0.0
      %3390 = vmatpush1.xpose.msra.mxu0 %v3354
      %3391 = vmatprep.subr.mxu0 0.0
      %3392 = vmatpush2.xpose.msra.mxu0 0.0
      %3393 = vmatprep.subr.mxu0 0.0
      %3394 = vmatpush2.xpose.msra.mxu0 0.0
      %3395 = vmatprep.subr.mxu0 0.0
      %3396 = vmatpush2.xpose.msra.mxu0 0.0
      %3397 = vmatprep.subr.mxu0 0.0
      %3398 = vmatpush2.xpose.msra.mxu0 0.0
      %3399 = vmatprep.subr.mxu0 0.0
      %3400 = vmatpush2.xpose.msra.mxu0 0.0
      %3401 = vmatprep.subr.mxu0 0.0
      %3402 = vmatpush2.xpose.msra.mxu0 0.0
      %3403 = vmatprep.subr.mxu0 0.0
      %3404 = vmatpush2.xpose.msra.mxu0 0.0
      %3405 = vmatprep.subr.mxu0 0.0
      %3406 = vmatpush2.xpose.msra.mxu0 0.0
      %3407 = vmatprep.subr.mxu0 0.0
      %3408 = vmatpush2.xpose.msra.mxu0 0.0
      %3409 = vmatprep.subr.mxu0 0.0
      %3410 = vmatpush2.xpose.msra.mxu0 0.0
      %3411 = vmatprep.subr.mxu0 0.0
      %3412 = vmatpush2.xpose.msra.mxu0 0.0
      %3413 = vmatprep.subr.mxu0 0.0
      %3414 = vmatpush2.xpose.msra.mxu0 0.0
      %3415 = vmatprep.subr.mxu0 0.0
      %3416 = vmatpush2.xpose.msra.mxu0 0.0
      %3417 = vmatprep.subr.mxu0 0.0
      %3418 = vmatpush2.xpose.msra.mxu0 0.0
      %3419 = vmatprep.subr.mxu0 0.0
      %3420 = vmatpush2.xpose.msra.mxu0 0.0
      %3421 = vmatprep.subr.mxu0 0.0
      %3422 = vmatpush2.xpose.msra.mxu0 0.0
      %3423 = vmatprep.mubr.f32.mxu0 0.0
      %3424 = vmatmul.mubr.f32.gmra.mxu0 %v3348
      %v3425 = vpop.f32.mrf.mxu0
      %v3426 = vadd.f32 0.0, %v3425
      %v3427 = vpop.f32.mrf.mxu0
      %3428 = vmatprep.mubr.f32.mxu0 0.0
      %3429 = vmatmul.mubr.f32.gmra.mxu0 %v3351
      %v3430 = vpop.f32.mrf.mxu0
      %v3431 = vadd.f32 0.0, %v3430
      %v3432 = vpop.f32.mrf.mxu0
      %3433 = vdwg.mxu0
      %v3435 = vsel %vm576, %v2095, 0
      %v3438 = vsel %vm576, %v2096, 0
      %v3441 = vsel %vm576, %v2127, 0
      %v3444 = vsel %vm576, %v2128, 0
      %3446 = vmatprep.subr.mxu0 0.0
      %3447 = vmatpush1.xpose.msra.mxu0 0.0
      %3448 = vmatprep.subr.mxu0 0.0
      %3449 = vmatpush1.xpose.msra.mxu0 0.0
      %3450 = vmatprep.subr.mxu0 0.0
      %3451 = vmatpush1.xpose.msra.mxu0 0.0
      %3452 = vmatprep.subr.mxu0 0.0
      %3453 = vmatpush1.xpose.msra.mxu0 0.0
      %3454 = vmatprep.subr.mxu0 0.0
      %3455 = vmatpush1.xpose.msra.mxu0 0.0
      %3456 = vmatprep.subr.mxu0 0.0
      %3457 = vmatpush1.xpose.msra.mxu0 0.0
      %3458 = vmatprep.subr.mxu0 0.0
      %3459 = vmatpush1.xpose.msra.mxu0 0.0
      %3460 = vmatprep.subr.mxu0 0.0
      %3461 = vmatpush1.xpose.msra.mxu0 0.0
      %3462 = vmatprep.subr.mxu0 0.0
      %3463 = vmatpush1.xpose.msra.mxu0 0.0
      %3464 = vmatprep.subr.mxu0 0.0
      %3465 = vmatpush1.xpose.msra.mxu0 0.0
      %3466 = vmatprep.subr.mxu0 0.0
      %3467 = vmatpush1.xpose.msra.mxu0 0.0
      %3468 = vmatprep.subr.mxu0 0.0
      %3469 = vmatpush1.xpose.msra.mxu0 0.0
      %3470 = vmatprep.subr.mxu0 0.0
      %3471 = vmatpush1.xpose.msra.mxu0 0.0
      %3472 = vmatprep.subr.mxu0 0.0
      %3473 = vmatpush1.xpose.msra.mxu0 0.0
      %3474 = vmatprep.subr.mxu0 0.0
      %3475 = vmatpush1.xpose.msra.mxu0 %v3444
      %3476 = vmatprep.subr.mxu0 0.0
      %3477 = vmatpush1.xpose.msra.mxu0 %v3441
      %3478 = vmatprep.subr.mxu0 0.0
      %3479 = vmatpush2.xpose.msra.mxu0 0.0
      %3480 = vmatprep.subr.mxu0 0.0
      %3481 = vmatpush2.xpose.msra.mxu0 0.0
      %3482 = vmatprep.subr.mxu0 0.0
      %3483 = vmatpush2.xpose.msra.mxu0 0.0
      %3484 = vmatprep.subr.mxu0 0.0
      %3485 = vmatpush2.xpose.msra.mxu0 0.0
      %3486 = vmatprep.subr.mxu0 0.0
      %3487 = vmatpush2.xpose.msra.mxu0 0.0
      %3488 = vmatprep.subr.mxu0 0.0
      %3489 = vmatpush2.xpose.msra.mxu0 0.0
      %3490 = vmatprep.subr.mxu0 0.0
      %3491 = vmatpush2.xpose.msra.mxu0 0.0
      %3492 = vmatprep.subr.mxu0 0.0
      %3493 = vmatpush2.xpose.msra.mxu0 0.0
      %3494 = vmatprep.subr.mxu0 0.0
      %3495 = vmatpush2.xpose.msra.mxu0 0.0
      %3496 = vmatprep.subr.mxu0 0.0
      %3497 = vmatpush2.xpose.msra.mxu0 0.0
      %3498 = vmatprep.subr.mxu0 0.0
      %3499 = vmatpush2.xpose.msra.mxu0 0.0
      %3500 = vmatprep.subr.mxu0 0.0
      %3501 = vmatpush2.xpose.msra.mxu0 0.0
      %3502 = vmatprep.subr.mxu0 0.0
      %3503 = vmatpush2.xpose.msra.mxu0 0.0
      %3504 = vmatprep.subr.mxu0 0.0
      %3505 = vmatpush2.xpose.msra.mxu0 0.0
      %3506 = vmatprep.subr.mxu0 0.0
      %3507 = vmatpush2.xpose.msra.mxu0 0.0
      %3508 = vmatprep.subr.mxu0 0.0
      %3509 = vmatpush2.xpose.msra.mxu0 0.0
      %3510 = vmatprep.mubr.f32.mxu0 0.0
      %3511 = vmatmul.mubr.f32.gmra.mxu0 %v3435
      %v3512 = vpop.f32.mrf.mxu0
      %v3513 = vadd.f32 0.0, %v3512
      %v3514 = vpop.f32.mrf.mxu0
      %3515 = vmatprep.mubr.f32.mxu0 0.0
      %3516 = vmatmul.mubr.f32.gmra.mxu0 %v3438
      %v3517 = vpop.f32.mrf.mxu0
      %v3518 = vadd.f32 0.0, %v3517
      %v3519 = vpop.f32.mrf.mxu0
      %3520 = vdwg.mxu0
      %v3521 = vadd.f32 %v2033, %v2208
      %v3522 = vadd.f32 %v2034, %v2213
      %v3523 = vadd.f32 %v2035, %v2295
      %v3524 = vadd.f32 %v2036, %v2300
      %v3525 = vadd.f32 %v2037, %v2382
      %v3526 = vadd.f32 %v2038, %v2387
      %v3527 = vadd.f32 %v2039, %v2469
      %v3528 = vadd.f32 %v2040, %v2474
      %v3529 = vadd.f32 %v2041, %v2556
      %v3530 = vadd.f32 %v2042, %v2561
      %v3531 = vadd.f32 %v2043, %v2643
      %v3532 = vadd.f32 %v2044, %v2648
      %v3533 = vadd.f32 %v2045, %v2730
      %v3534 = vadd.f32 %v2046, %v2735
      %v3535 = vadd.f32 %v2047, %v2817
      %v3536 = vadd.f32 %v2048, %v2822
      %v3537 = vadd.f32 %v2049, %v2904
      %v3538 = vadd.f32 %v2050, %v2909
      %v3539 = vadd.f32 %v2051, %v2991
      %v3540 = vadd.f32 %v2052, %v2996
      %v3541 = vadd.f32 %v2053, %v3078
      %v3542 = vadd.f32 %v2054, %v3083
      %v3543 = vadd.f32 %v2055, %v3165
      %v3544 = vadd.f32 %v2056, %v3170
      %v3545 = vadd.f32 %v2057, %v3252
      %v3546 = vadd.f32 %v2058, %v3257
      %v3547 = vadd.f32 %v2059, %v3339
      %v3548 = vadd.f32 %v2060, %v3344
      %v3549 = vadd.f32 %v2061, %v3426
      %v3550 = vadd.f32 %v2062, %v3431
      %v3551 = vadd.f32 %v2063, %v3513
      %v3552 = vadd.f32 %v2064, %v3518
      %3553 = vst.msk [vmem:[#allocation3] sm:$0xff] %vm576, %v3521
      %3554 = vst.msk [vmem:[#allocation3 + $0x8] sm:$0xff] %vm576, %v3522
      %3555 = vst.msk [vmem:[#allocation3 + $0x10] sm:$0xff] %vm576, %v3523
      %3556 = vst.msk [vmem:[#allocation3 + $0x18] sm:$0xff] %vm576, %v3524
      %3557 = vst.msk [vmem:[#allocation3 + $0x20] sm:$0xff] %vm576, %v3525
      %3558 = vst.msk [vmem:[#allocation3 + $0x28] sm:$0xff] %vm576, %v3526
      %3559 = vst.msk [vmem:[#allocation3 + $0x30] sm:$0xff] %vm576, %v3527
      %3560 = vst.msk [vmem:[#allocation3 + $0x38] sm:$0xff] %vm576, %v3528
      %3561 = vst.msk [vmem:[#allocation3 + $0x40] sm:$0xff] %vm576, %v3529
      %3562 = vst.msk [vmem:[#allocation3 + $0x48] sm:$0xff] %vm576, %v3530
      %3563 = vst.msk [vmem:[#allocation3 + $0x50] sm:$0xff] %vm576, %v3531
      %3564 = vst.msk [vmem:[#allocation3 + $0x58] sm:$0xff] %vm576, %v3532
      %3565 = vst.msk [vmem:[#allocation3 + $0x60] sm:$0xff] %vm576, %v3533
      %3566 = vst.msk [vmem:[#allocation3 + $0x68] sm:$0xff] %vm576, %v3534
      %3567 = vst.msk [vmem:[#allocation3 + $0x70] sm:$0xff] %vm576, %v3535
      %3568 = vst.msk [vmem:[#allocation3 + $0x78] sm:$0xff] %vm576, %v3536
      %3569 = vst.msk [vmem:[#allocation3 + $0x80] sm:$0xff] %vm576, %v3537
      %3570 = vst.msk [vmem:[#allocation3 + $0x88] sm:$0xff] %vm576, %v3538
      %3571 = vst.msk [vmem:[#allocation3 + $0x90] sm:$0xff] %vm576, %v3539
      %3572 = vst.msk [vmem:[#allocation3 + $0x98] sm:$0xff] %vm576, %v3540
      %3573 = vst.msk [vmem:[#allocation3 + $0xa0] sm:$0xff] %vm576, %v3541
      %3574 = vst.msk [vmem:[#allocation3 + $0xa8] sm:$0xff] %vm576, %v3542
      %3575 = vst.msk [vmem:[#allocation3 + $0xb0] sm:$0xff] %vm576, %v3543
      %3576 = vst.msk [vmem:[#allocation3 + $0xb8] sm:$0xff] %vm576, %v3544
      %3577 = vst.msk [vmem:[#allocation3 + $0xc0] sm:$0xff] %vm576, %v3545
      %3578 = vst.msk [vmem:[#allocation3 + $0xc8] sm:$0xff] %vm576, %v3546
      %3579 = vst.msk [vmem:[#allocation3 + $0xd0] sm:$0xff] %vm576, %v3547
      %3580 = vst.msk [vmem:[#allocation3 + $0xd8] sm:$0xff] %vm576, %v3548
      %3581 = vst.msk [vmem:[#allocation3 + $0xe0] sm:$0xff] %vm576, %v3549
      %3582 = vst.msk [vmem:[#allocation3 + $0xe8] sm:$0xff] %vm576, %v3550
      %3583 = vst.msk [vmem:[#allocation3 + $0xf0] sm:$0xff] %vm576, %v3551
      %3584 = vst.msk [vmem:[#allocation3 + $0xf8] sm:$0xff] %vm576, %v3552
      // Predicated region
      $region41: #{quadratic_edge_update_forward.4} parent=35 // pred_check
        %p3585 = pneg %p411
      $region42: #{quadratic_edge_update_forward.4} parent=35 // pred_check_branch
        %3587 = sbr.rel (%p3585) target = $region44
      $region43: #{quadratic_edge_update_forward.4} parent=35 // pred_region
        %v3588 = vld [vmem:[#allocation2] sm:$0xff]
        %v3589 = vld [vmem:[#allocation2 + $0x8] sm:$0xff]
        %v3590 = vld [vmem:[#allocation2 + $0x10] sm:$0xff]
        %v3591 = vld [vmem:[#allocation2 + $0x18] sm:$0xff]
        %v3592 = vld [vmem:[#allocation2 + $0x20] sm:$0xff]
        %v3593 = vld [vmem:[#allocation2 + $0x28] sm:$0xff]
        %v3594 = vld [vmem:[#allocation2 + $0x30] sm:$0xff]
        %v3595 = vld [vmem:[#allocation2 + $0x38] sm:$0xff]
        %v3596 = vld [vmem:[#allocation2 + $0x40] sm:$0xff]
        %v3597 = vld [vmem:[#allocation2 + $0x48] sm:$0xff]
        %v3598 = vld [vmem:[#allocation2 + $0x50] sm:$0xff]
        %v3599 = vld [vmem:[#allocation2 + $0x58] sm:$0xff]
        %v3600 = vld [vmem:[#allocation2 + $0x60] sm:$0xff]
        %v3601 = vld [vmem:[#allocation2 + $0x68] sm:$0xff]
        %v3602 = vld [vmem:[#allocation2 + $0x70] sm:$0xff]
        %v3603 = vld [vmem:[#allocation2 + $0x78] sm:$0xff]
        %v3604 = vld [vmem:[#allocation2 + $0x80] sm:$0xff]
        %v3605 = vld [vmem:[#allocation2 + $0x88] sm:$0xff]
        %v3606 = vld [vmem:[#allocation2 + $0x90] sm:$0xff]
        %v3607 = vld [vmem:[#allocation2 + $0x98] sm:$0xff]
        %v3608 = vld [vmem:[#allocation2 + $0xa0] sm:$0xff]
        %v3609 = vld [vmem:[#allocation2 + $0xa8] sm:$0xff]
        %v3610 = vld [vmem:[#allocation2 + $0xb0] sm:$0xff]
        %v3611 = vld [vmem:[#allocation2 + $0xb8] sm:$0xff]
        %v3612 = vld [vmem:[#allocation2 + $0xc0] sm:$0xff]
        %v3613 = vld [vmem:[#allocation2 + $0xc8] sm:$0xff]
        %v3614 = vld [vmem:[#allocation2 + $0xd0] sm:$0xff]
        %v3615 = vld [vmem:[#allocation2 + $0xd8] sm:$0xff]
        %v3616 = vld [vmem:[#allocation2 + $0xe0] sm:$0xff]
        %v3617 = vld [vmem:[#allocation2 + $0xe8] sm:$0xff]
        %v3618 = vld [vmem:[#allocation2 + $0xf0] sm:$0xff]
        %v3619 = vld [vmem:[#allocation2 + $0xf8] sm:$0xff]
        %v3620 = vld [vmem:[#allocation3] sm:$0xff]
        %v3621 = vld [vmem:[#allocation3 + $0x8] sm:$0xff]
        %v3622 = vld [vmem:[#allocation3 + $0x10] sm:$0xff]
        %v3623 = vld [vmem:[#allocation3 + $0x18] sm:$0xff]
        %v3624 = vld [vmem:[#allocation3 + $0x20] sm:$0xff]
        %v3625 = vld [vmem:[#allocation3 + $0x28] sm:$0xff]
        %v3626 = vld [vmem:[#allocation3 + $0x30] sm:$0xff]
        %v3627 = vld [vmem:[#allocation3 + $0x38] sm:$0xff]
        %v3628 = vld [vmem:[#allocation3 + $0x40] sm:$0xff]
        %v3629 = vld [vmem:[#allocation3 + $0x48] sm:$0xff]
        %v3630 = vld [vmem:[#allocation3 + $0x50] sm:$0xff]
        %v3631 = vld [vmem:[#allocation3 + $0x58] sm:$0xff]
        %v3632 = vld [vmem:[#allocation3 + $0x60] sm:$0xff]
        %v3633 = vld [vmem:[#allocation3 + $0x68] sm:$0xff]
        %v3634 = vld [vmem:[#allocation3 + $0x70] sm:$0xff]
        %v3635 = vld [vmem:[#allocation3 + $0x78] sm:$0xff]
        %v3636 = vld [vmem:[#allocation3 + $0x80] sm:$0xff]
        %v3637 = vld [vmem:[#allocation3 + $0x88] sm:$0xff]
        %v3638 = vld [vmem:[#allocation3 + $0x90] sm:$0xff]
        %v3639 = vld [vmem:[#allocation3 + $0x98] sm:$0xff]
        %v3640 = vld [vmem:[#allocation3 + $0xa0] sm:$0xff]
        %v3641 = vld [vmem:[#allocation3 + $0xa8] sm:$0xff]
        %v3642 = vld [vmem:[#allocation3 + $0xb0] sm:$0xff]
        %v3643 = vld [vmem:[#allocation3 + $0xb8] sm:$0xff]
        %v3644 = vld [vmem:[#allocation3 + $0xc0] sm:$0xff]
        %v3645 = vld [vmem:[#allocation3 + $0xc8] sm:$0xff]
        %v3646 = vld [vmem:[#allocation3 + $0xd0] sm:$0xff]
        %v3647 = vld [vmem:[#allocation3 + $0xd8] sm:$0xff]
        %v3648 = vld [vmem:[#allocation3 + $0xe0] sm:$0xff]
        %v3649 = vld [vmem:[#allocation3 + $0xe8] sm:$0xff]
        %v3650 = vld [vmem:[#allocation3 + $0xf0] sm:$0xff]
        %v3651 = vld [vmem:[#allocation3 + $0xf8] sm:$0xff]
        %v3652 = vmul.f32 %v3588, %v3620
        %v3653 = vmul.f32 %v3589, %v3621
        %v3654 = vmul.f32 %v3590, %v3622
        %v3655 = vmul.f32 %v3591, %v3623
        %v3656 = vmul.f32 %v3592, %v3624
        %v3657 = vmul.f32 %v3593, %v3625
        %v3658 = vmul.f32 %v3594, %v3626
        %v3659 = vmul.f32 %v3595, %v3627
        %v3660 = vmul.f32 %v3596, %v3628
        %v3661 = vmul.f32 %v3597, %v3629
        %v3662 = vmul.f32 %v3598, %v3630
        %v3663 = vmul.f32 %v3599, %v3631
        %v3664 = vmul.f32 %v3600, %v3632
        %v3665 = vmul.f32 %v3601, %v3633
        %v3666 = vmul.f32 %v3602, %v3634
        %v3667 = vmul.f32 %v3603, %v3635
        %v3668 = vmul.f32 %v3604, %v3636
        %v3669 = vmul.f32 %v3605, %v3637
        %v3670 = vmul.f32 %v3606, %v3638
        %v3671 = vmul.f32 %v3607, %v3639
        %v3672 = vmul.f32 %v3608, %v3640
        %v3673 = vmul.f32 %v3609, %v3641
        %v3674 = vmul.f32 %v3610, %v3642
        %v3675 = vmul.f32 %v3611, %v3643
        %v3676 = vmul.f32 %v3612, %v3644
        %v3677 = vmul.f32 %v3613, %v3645
        %v3678 = vmul.f32 %v3614, %v3646
        %v3679 = vmul.f32 %v3615, %v3647
        %v3680 = vmul.f32 %v3616, %v3648
        %v3681 = vmul.f32 %v3617, %v3649
        %v3682 = vmul.f32 %v3618, %v3650
        %v3683 = vmul.f32 %v3619, %v3651
        %3684 = vst.msk [vmem:[%s409] sm:$0xff] %vm576, %v3652
        %3685 = vst.msk [vmem:[%s409 + $0x8] sm:$0xff] %vm576, %v3653
        %3686 = vst.msk [vmem:[%s409 + $0x10] sm:$0xff] %vm576, %v3654
        %3687 = vst.msk [vmem:[%s409 + $0x18] sm:$0xff] %vm576, %v3655
        %3688 = vst.msk [vmem:[%s409 + $0x20] sm:$0xff] %vm576, %v3656
        %3689 = vst.msk [vmem:[%s409 + $0x28] sm:$0xff] %vm576, %v3657
        %3690 = vst.msk [vmem:[%s409 + $0x30] sm:$0xff] %vm576, %v3658
        %3691 = vst.msk [vmem:[%s409 + $0x38] sm:$0xff] %vm576, %v3659
        %3692 = vst.msk [vmem:[%s409 + $0x40] sm:$0xff] %vm576, %v3660
        %3693 = vst.msk [vmem:[%s409 + $0x48] sm:$0xff] %vm576, %v3661
        %3694 = vst.msk [vmem:[%s409 + $0x50] sm:$0xff] %vm576, %v3662
        %3695 = vst.msk [vmem:[%s409 + $0x58] sm:$0xff] %vm576, %v3663
        %3696 = vst.msk [vmem:[%s409 + $0x60] sm:$0xff] %vm576, %v3664
        %3697 = vst.msk [vmem:[%s409 + $0x68] sm:$0xff] %vm576, %v3665
        %3698 = vst.msk [vmem:[%s409 + $0x70] sm:$0xff] %vm576, %v3666
        %3699 = vst.msk [vmem:[%s409 + $0x78] sm:$0xff] %vm576, %v3667
        %3700 = vst.msk [vmem:[%s409 + $0x80] sm:$0xff] %vm576, %v3668
        %3701 = vst.msk [vmem:[%s409 + $0x88] sm:$0xff] %vm576, %v3669
        %3702 = vst.msk [vmem:[%s409 + $0x90] sm:$0xff] %vm576, %v3670
        %3703 = vst.msk [vmem:[%s409 + $0x98] sm:$0xff] %vm576, %v3671
        %3704 = vst.msk [vmem:[%s409 + $0xa0] sm:$0xff] %vm576, %v3672
        %3705 = vst.msk [vmem:[%s409 + $0xa8] sm:$0xff] %vm576, %v3673
        %3706 = vst.msk [vmem:[%s409 + $0xb0] sm:$0xff] %vm576, %v3674
        %3707 = vst.msk [vmem:[%s409 + $0xb8] sm:$0xff] %vm576, %v3675
        %3708 = vst.msk [vmem:[%s409 + $0xc0] sm:$0xff] %vm576, %v3676
        %3709 = vst.msk [vmem:[%s409 + $0xc8] sm:$0xff] %vm576, %v3677
        %3710 = vst.msk [vmem:[%s409 + $0xd0] sm:$0xff] %vm576, %v3678
        %3711 = vst.msk [vmem:[%s409 + $0xd8] sm:$0xff] %vm576, %v3679
        %3712 = vst.msk [vmem:[%s409 + $0xe0] sm:$0xff] %vm576, %v3680
        %3713 = vst.msk [vmem:[%s409 + $0xe8] sm:$0xff] %vm576, %v3681
        %3714 = vst.msk [vmem:[%s409 + $0xf0] sm:$0xff] %vm576, %v3682
        %3715 = vst.msk [vmem:[%s409 + $0xf8] sm:$0xff] %vm576, %v3683
      $region44: #{quadratic_edge_update_forward.4} parent=35 // pred_fallthru
        _
      %s3716 = smul.u32 2, %s22
      %p3717 = scmp.lt.s32.totalorder %s21, 1
      %s3718 = scalar_select %p3717, %s21, 1
      %p3719 = scmp.lt.s32.totalorder %s3716, 1
      %s3720 = scalar_select %p3719, %s3716, 1
      %p3721 = scmp.lt.s32.totalorder %s23, 0
      %s3722 = scalar_select %p3721, %s23, 0
      %s3723 = sadd.s32 %s3722, %s3720
      %s3724 = smul.addr %s3718, 32
      %s3725 = sadd.s32 %s3723, %s3724
      %s3726 = smul.addr %s3725, 8
      %s3727 = scalar_lea.vmem %s4, %s3726
      // Predicated region
      $region45: #{quadratic_edge_update_forward.4} parent=35 // pred_check
        %p3728 = pneg %p183
      $region46: #{quadratic_edge_update_forward.4} parent=35 // pred_check_branch
        %3730 = sbr.rel (%p3728) target = $region48
      $region47: #{quadratic_edge_update_forward.4} parent=35 // pred_region
        %s3731 = smul.u32 2, %s22
      $region48: #{quadratic_edge_update_forward.4} parent=35 // pred_fallthru
        _
    $region36: #{quadratic_edge_update_forward.4} parent=5 // pred_fallthru
      _
    %p3732 = scmp.le.s32.totalorder 2, %s10
    // Predicated region
    $region49: #{quadratic_edge_update_forward.4} parent=5 // pred_check
      %p3733 = pneg %p3732
    $region50: #{quadratic_edge_update_forward.4} parent=5 // pred_check_branch
      %3735 = sbr.rel (%p3733) target = $region52
    $region51: #{quadratic_edge_update_forward.4} parent=5 // pred_region
      %s3736 = ssub.s32 %s10, 2
      // Predicated region
      $region53: #{quadratic_edge_update_forward.4} parent=51 // pred_check
        %p3737 = pneg %p189
      $region54: #{quadratic_edge_update_forward.4} parent=51 // pred_check_branch
        %3739 = sbr.rel (%p3737) target = $region56
      $region55: #{quadratic_edge_update_forward.4} parent=51 // pred_region
        %s3740 = smul.u32 2, %s26
        %p3741 = scmp.lt.s32.totalorder %s25, 1
        %s3742 = scalar_select %p3741, %s25, 1
        %p3743 = scmp.lt.s32.totalorder %s3740, 1
        %s3744 = scalar_select %p3743, %s3740, 1
        %p3745 = scmp.lt.s32.totalorder %s27, 0
        %s3746 = scalar_select %p3745, %s27, 0
        %s3747 = sadd.s32 %s3746, %s3744
        %s3748 = smul.addr %s3742, 32
        %s3749 = sadd.s32 %s3747, %s3748
        %s3750 = smul.addr %s3749, 8
        %s3751 = scalar_lea.vmem %s4, %s3750
      $region56: #{quadratic_edge_update_forward.4} parent=51 // pred_fallthru
        _
    $region52: #{quadratic_edge_update_forward.4} parent=5 // pred_fallthru
      _
  $region6: #{quadratic_edge_update_forward.4} parent=0 // loop_footer
    %s14 = sadd.s32 1, %s10
  $region7: #{quadratic_edge_update_forward.4} parent=0 // loop_footer_branch
    %9 = sbr.rel target = $region3
  $region8: #{quadratic_edge_update_forward.4} parent=0 // loop_exit
    _

</llo_original>
